<compile_context>
chip_gen: v7x
topology: tpu7x:2x2x1
jax: 0.10.0
libtpu: 0.0.40
codegen_flags: <defaults>
</compile_context>

<pallas_src>
import jax
import jax.numpy as jnp
from jax.experimental import pallas as pl
from jax.experimental.pallas import tpu as pltpu

F2 = 8                    # conv output channels
H, W = 100, 50            # spatial size implied by fc1: 50*25*8 = 10000
HP, WP = H + 4, W + 4     # padded (padding=2 per side)
PH, PW = H // 2, W // 2   # pooled spatial size (50, 25)
CW = F2 * W               # 400: channels packed along lanes, pre-pool
CPW = F2 * PW             # 200: channels packed along lanes, post-pool
FLAT = PH * CPW           # 10000
N1 = 200                  # fc1 output features
K_PAD = 10240             # FLAT padded to a multiple of 128 for fc1 K tiling
TK = 5120                 # fc1 K tile (2 grid steps)
KC = 1280                 # in-kernel int8->bf16 dequant chunk (keeps temporaries small)
BN_EPS = 1e-5


# ---------------------------------------------------------------------------
# Kernel 1: Conv(5x5, pad=2) * BN-scale (folded) + shift + ReLU + MaxPool(2x2)
#           -> lane-dense (PH, F2*PW) bf16 activation per image
# ---------------------------------------------------------------------------
def conv_bn_relu_pool_kernel(x_ref, band_ref, shift_ref, pe_ref, po_ref,
                             qe_ref, qo_ref, o_ref):
    # x_ref    : (1, HP, WP)  f32   padded single-channel image
    # band_ref : (5, WP, CW)  bf16  banded conv weights * BN scale; col = c*W + j
    # o_ref    : (1, PH, CPW) bf16  pooled activation;  col = c*PW + pw
    # Conv: 5 sublane-shifted row windows, each contracted on the MXU against a
    # banded (WP, 8*W) bf16 weight matrix -> all 8 channels at once (f32 acc).
    y = jnp.dot(x_ref[0, pl.ds(0, H), :].astype(jnp.bfloat16), band_ref[0],
                preferred_element_type=jnp.float32)                      # (H, CW)
    for di in range(1, 5):
        y += jnp.dot(x_ref[0, pl.ds(di, H), :].astype(jnp.bfloat16), band_ref[di],
                     preferred_element_type=jnp.float32)
    # Folded conv-bias/BN shift, then ReLU (BN scale already inside `band`).
    y = jnp.maximum(y + shift_ref[...], 0.0).astype(jnp.bfloat16)        # (H, CW)
    # 2x2 max-pool with exact 0/1 selection matmuls (rows, then column pairs
    # within each 50-lane channel block); bf16 values pass through exactly.
    rm = jnp.maximum(
        jnp.dot(pe_ref[...], y, preferred_element_type=jnp.float32),
        jnp.dot(po_ref[...], y, preferred_element_type=jnp.float32),
    ).astype(jnp.bfloat16)                                                # (PH, CW)
    o_ref[0] = jnp.maximum(
        jnp.dot(rm, qe_ref[...], preferred_element_type=jnp.float32),
        jnp.dot(rm, qo_ref[...], preferred_element_type=jnp.float32),
    ).astype(o_ref.dtype)                                                 # (PH, CPW)


def conv_block(x_pad, prep):
    b = x_pad.shape[0]
    const2 = lambda i: (0, 0)
    const3 = lambda i: (0, 0, 0)
    return pl.pallas_call(
        conv_bn_relu_pool_kernel,
        out_shape=jax.ShapeDtypeStruct((b, PH, CPW), jnp.bfloat16),
        grid=(b,),
        in_specs=[
            pl.BlockSpec((1, HP, WP), lambda i: (i, 0, 0)),   # x_pad (f32)
            pl.BlockSpec((5, WP, CW), const3),                # banded conv w (bf16)
            pl.BlockSpec((1, CW), const2),                    # BN shift row (f32)
            pl.BlockSpec((PH, H), const2),                    # row-pool even (bf16)
            pl.BlockSpec((PH, H), const2),                    # row-pool odd  (bf16)
            pl.BlockSpec((CW, CPW), const2),                  # col-pool even (bf16)
            pl.BlockSpec((CW, CPW), const2),                  # col-pool odd  (bf16)
        ],
        out_specs=pl.BlockSpec((1, PH, CPW), lambda i: (i, 0, 0)),
        compiler_params=pltpu.CompilerParams(
            dimension_semantics=("parallel",),
            vmem_limit_bytes=32 << 20,
        ),
    )(x_pad, prep["band"], prep["shift_row"],
      prep["pe"], prep["po"], prep["qe"], prep["qo"])


# ---------------------------------------------------------------------------
# Kernel 2: fc1 (K-tiled, int8 weights dequantized to bf16, f32 accumulate)
#           + folded fc2/fc3 matvec at the last K step
# ---------------------------------------------------------------------------
def mlp_kernel(x_ref, w1_ref, s1_ref, b1_ref, w23_ref, b23_ref, o_ref, acc_ref):
    k = pl.program_id(0)

    @pl.when(k == 0)
    def _():
        acc_ref[...] = jnp.zeros_like(acc_ref)

    # int8 weights -> bf16 in KC-row chunks (small temporaries), bf16 MXU matmul,
    # f32 accumulation.  The per-column dequant scale factors out and is applied
    # once to the accumulator at the end (exact).
    acc = acc_ref[...]
    for c in range(TK // KC):
        w = w1_ref[pl.ds(c * KC, KC), :].astype(jnp.float32).astype(jnp.bfloat16)
        acc += jnp.dot(x_ref[:, pl.ds(c * KC, KC)], w,
                       preferred_element_type=jnp.float32)
    acc_ref[...] = acc

    @pl.when(k == pl.num_programs(0) - 1)
    def _():
        h1 = acc_ref[...] * s1_ref[...] + b1_ref[...]                     # (B, 200)
        # fc2/fc3 folded offline into one (200, 1) matvec + scalar bias.
        o_ref[...] = (jnp.dot(h1, w23_ref[...], preferred_element_type=jnp.float32)
                      + b23_ref[...])


def mlp(x_flat, prep):
    b = x_flat.shape[0]
    const2 = lambda k: (0, 0)
    return pl.pallas_call(
        mlp_kernel,
        out_shape=jax.ShapeDtypeStruct((b, 1), jnp.float32),
        grid=(K_PAD // TK,),
        in_specs=[
            pl.BlockSpec((b, TK), lambda k: (0, k)),      # activations (bf16)
            pl.BlockSpec((TK, N1), lambda k: (k, 0)),     # fc1 weights (int8)
            pl.BlockSpec((1, N1), const2),                # per-column dequant scale
            pl.BlockSpec((1, N1), const2),                # fc1 bias
            pl.BlockSpec((N1, 1), const2),                # folded fc2@fc3
            pl.BlockSpec((1, 1), const2),                 # folded bias
        ],
        out_specs=pl.BlockSpec((b, 1), lambda k: (0, 0)),
        scratch_shapes=[pltpu.VMEM((b, N1), jnp.float32)],
        compiler_params=pltpu.CompilerParams(
            dimension_semantics=("arbitrary",),
            vmem_limit_bytes=32 << 20,
        ),
    )(x_flat, prep["w1_q"], prep["s1"], prep["b1"], prep["w23"], prep["b23"])


# ---------------------------------------------------------------------------
# Parameter packing (done once, outside the per-call forward)
# ---------------------------------------------------------------------------
def _pool_selectors():
    i = jnp.arange(H)[None, :]
    p = jnp.arange(PH)[:, None]
    pe = (i == 2 * p).astype(jnp.bfloat16)                      # (PH, H)
    po = (i == 2 * p + 1).astype(jnp.bfloat16)
    n = jnp.arange(CPW)
    src_even = (n // PW) * W + 2 * (n % PW)                     # source column
    q = jnp.arange(CW)[:, None]
    qe = (q == src_even[None, :]).astype(jnp.bfloat16)          # (CW, CPW)
    qo = (q == (src_even + 1)[None, :]).astype(jnp.bfloat16)
    return pe, po, qe, qo


def _conv_band(conv_w, scale):
    # band[di, k, c*W + j] = scale[c] * conv_w[c, di, k - j] for 0 <= k - j < 5,
    # so that  x_pad[i+di, :] @ band[di]  sums to  scale[c] * conv(x)[c, i, j].
    diff = jnp.arange(WP)[:, None] - jnp.arange(W)[None, :]     # (WP, W)
    valid = ((diff >= 0) & (diff < 5)).astype(jnp.float32)
    idx = jnp.clip(diff, 0, 4)
    taps = conv_w[:, :, idx] * valid[None, None]                # (F2, 5, WP, W)
    taps = taps * scale[:, None, None, None]                    # fold BN scale
    return jnp.transpose(taps, (1, 2, 0, 3)).reshape(5, WP, CW).astype(jnp.bfloat16)


def prepare_params(params):
    scale = params["bn_gamma"] / jnp.sqrt(params["bn_var"] + BN_EPS)          # (F2,)
    shift = params["bn_beta"] + (params["conv_b"] - params["bn_mean"]) * scale
    pe, po, qe, qo = _pool_selectors()
    # fc1 weight: permute rows from PyTorch flatten order (c, ph, pw) to the
    # kernel's lane-dense flatten order (ph, c, pw), quantize to int8 with
    # per-output-column scales, pad K to 10240.
    w1 = params["fc1_w"].reshape(F2, PH, PW, N1).transpose(1, 0, 2, 3)
    w1 = w1.reshape(FLAT, N1)
    col_max = jnp.max(jnp.abs(w1), axis=0)
    s1 = jnp.where(col_max > 0, col_max / 127.0, 1.0)                         # (N1,)
    w1_q = jnp.clip(jnp.round(w1 / s1), -127, 127).astype(jnp.int8)
    w1_q = jnp.pad(w1_q, ((0, K_PAD - FLAT), (0, 0)))
    w23 = params["fc2_w"] @ params["fc3_w"]                                   # (200, 1)
    b23 = params["fc2_b"] @ params["fc3_w"] + params["fc3_b"]                 # (1, 1)
    return {
        "band": _conv_band(params["conv_w"], scale),
        "shift_row": jnp.repeat(shift, W)[None, :],
        "pe": pe, "po": po, "qe": qe, "qo": qo,
        "w1_q": w1_q, "s1": s1[None, :], "b1": params["fc1_b"],
        "w23": w23, "b23": b23,
    }


# ---------------------------------------------------------------------------
# Full forward
# ---------------------------------------------------------------------------
def venty_forward(x, prep):
    # x: (B, 1, H, W) NCHW, float32
    b = x.shape[0]
    x_pad = jnp.pad(x[:, 0], ((0, 0), (2, 2), (2, 2)))           # (b, HP, WP)
    pooled = conv_block(x_pad, prep)                             # (b, PH, CPW) bf16
    # Row-major reshape is a free view (kernel flatten order); pad adds the
    # 240 zero K columns matching the zero-padded fc1 weight rows.
    x_flat = jnp.pad(pooled.reshape(b, FLAT), ((0, 0), (0, K_PAD - FLAT)))
    return mlp(x_flat, prep)                                     # (B, 1) f32


# ---------------------------------------------------------------------------
# Pure-JAX reference (f32, unfused) for a tolerance check
# ---------------------------------------------------------------------------
def venty_reference(x, params):
    w = params["conv_w"][:, None]                                # (F2, 1, 5, 5)
    y = jax.lax.conv_general_dilated(
        x, w, (1, 1), ((2, 2), (2, 2)),
        dimension_numbers=("NCHW", "OIHW", "NCHW"))
    y = y + params["conv_b"][None, :, None, None]
    scale = params["bn_gamma"] / jnp.sqrt(params["bn_var"] + BN_EPS)
    y = (y - params["bn_mean"][None, :, None, None]) * scale[None, :, None, None]
    y = y + params["bn_beta"][None, :, None, None]
    y = jnp.maximum(y, 0.0)
    y = y.reshape(x.shape[0], F2, PH, 2, PW, 2).max(axis=(3, 5))
    f = y.reshape(x.shape[0], -1)
    h = f @ params["fc1_w"] + params["fc1_b"]
    h = h @ params["fc2_w"] + params["fc2_b"]
    return h @ params["fc3_w"] + params["fc3_b"]


def init_params(key):
    ks = jax.random.split(key, 12)
    return {
        "conv_w": 0.1 * jax.random.normal(ks[0], (F2, 5, 5), jnp.float32),
        "conv_b": 0.1 * jax.random.normal(ks[1], (F2,), jnp.float32),
        "bn_gamma": 1.0 + 0.1 * jax.random.normal(ks[2], (F2,), jnp.float32),
        "bn_beta": 0.1 * jax.random.normal(ks[3], (F2,), jnp.float32),
        "bn_mean": 0.1 * jax.random.normal(ks[4], (F2,), jnp.float32),
        "bn_var": 0.5 + jnp.abs(jax.random.normal(ks[5], (F2,), jnp.float32)),
        # Linear weights stored as (in, out) so the kernel does x @ W + b.
        "fc1_w": 0.01 * jax.random.normal(ks[6], (FLAT, N1), jnp.float32),
        "fc1_b": 0.01 * jax.random.normal(ks[7], (1, N1), jnp.float32),
        "fc2_w": 0.1 * jax.random.normal(ks[8], (N1, 10), jnp.float32),
        "fc2_b": 0.1 * jax.random.normal(ks[9], (1, 10), jnp.float32),
        "fc3_w": 0.1 * jax.random.normal(ks[10], (10, 1), jnp.float32),
        "fc3_b": 0.1 * jax.random.normal(ks[11], (1, 1), jnp.float32),
    }


if __name__ == "__main__":
    key = jax.random.PRNGKey(0)
    pkey, xkey = jax.random.split(key)
    params = init_params(pkey)
    prep = prepare_params(params)

    B = 2
    x = jax.random.normal(xkey, (B, 1, H, W), jnp.float32)   # NCHW, C=1

    out = jax.jit(venty_forward)(x, prep)
    out = jax.block_until_ready(out)
    assert out.shape == (B, 1), out.shape

    ref = venty_reference(x, params)
    assert jnp.allclose(out, ref, rtol=2e-2, atol=2e-2), (out, ref)

    print("KERNEL_OK")
</pallas_src>

<mosaic_0001>
module attributes {stable_mosaic.version = 11 : i64} {
  func.func @conv_bn_relu_pool_kernel(%arg0: i32, %arg1: memref<1x104x54xf32, #tpu.memory_space<vmem>>, %arg2: memref<5x54x400xbf16, #tpu.memory_space<vmem>>, %arg3: memref<1x400xf32, #tpu.memory_space<vmem>>, %arg4: memref<50x100xbf16, #tpu.memory_space<vmem>>, %arg5: memref<50x100xbf16, #tpu.memory_space<vmem>>, %arg6: memref<400x200xbf16, #tpu.memory_space<vmem>>, %arg7: memref<400x200xbf16, #tpu.memory_space<vmem>>, %arg8: memref<1x50x200xbf16, #tpu.memory_space<vmem>>) attributes {dimension_semantics = [#tpu.dimension_semantics<parallel>], iteration_bounds = array<i64: 2>, scalar_prefetch = 0 : i64, scratch_operands = 0 : i64, tpu.core_type = #tpu.core_type<tc>, window_params = [{transform_indices = @transform_0, window_bounds = array<i64: 1, 104, 54>}, {pipeline_mode = #tpu.pipeline_mode<synchronous>, transform_indices = @transform_1, window_bounds = array<i64: 5, 54, 400>}, {pipeline_mode = #tpu.pipeline_mode<synchronous>, transform_indices = @transform_2, window_bounds = array<i64: 1, 400>}, {pipeline_mode = #tpu.pipeline_mode<synchronous>, transform_indices = @transform_3, window_bounds = array<i64: 50, 100>}, {pipeline_mode = #tpu.pipeline_mode<synchronous>, transform_indices = @transform_4, window_bounds = array<i64: 50, 100>}, {pipeline_mode = #tpu.pipeline_mode<synchronous>, transform_indices = @transform_5, window_bounds = array<i64: 400, 200>}, {pipeline_mode = #tpu.pipeline_mode<synchronous>, transform_indices = @transform_6, window_bounds = array<i64: 400, 200>}, {transform_indices = @transform_7, window_bounds = array<i64: 1, 50, 200>}]} {
    %c0 = arith.constant 0 : index
    %c0_0 = arith.constant 0 : index
    %c0_1 = arith.constant 0 : index
    %0 = vector.load %arg1[%c0, %c0_0, %c0_1] : memref<1x104x54xf32, #tpu.memory_space<vmem>>, vector<1x100x54xf32>
    %1 = vector.shape_cast %0 : vector<1x100x54xf32> to vector<100x54xf32>
    %2 = arith.truncf %1 : vector<100x54xf32> to vector<100x54xbf16>
    %c0_2 = arith.constant 0 : index
    %c0_3 = arith.constant 0 : index
    %c0_4 = arith.constant 0 : index
    %3 = vector.load %arg2[%c0_2, %c0_3, %c0_4] : memref<5x54x400xbf16, #tpu.memory_space<vmem>>, vector<1x54x400xbf16>
    %4 = vector.shape_cast %3 : vector<1x54x400xbf16> to vector<54x400xbf16>
    %cst = arith.constant dense<0.000000e+00> : vector<100x400xf32>
    %5 = tpu.matmul %2, %4, %cst {dimension_numbers = #tpu.dot_dimension_numbers<[1], [0], [0], [1], [0, 0, 1, 1], [], []>} : vector<100x54xbf16>, vector<54x400xbf16>, vector<100x400xf32> -> vector<100x400xf32>
    %c0_5 = arith.constant 0 : index
    %c1 = arith.constant 1 : index
    %c0_6 = arith.constant 0 : index
    %6 = vector.load %arg1[%c0_5, %c1, %c0_6] : memref<1x104x54xf32, #tpu.memory_space<vmem>>, vector<1x100x54xf32>
    %7 = vector.shape_cast %6 : vector<1x100x54xf32> to vector<100x54xf32>
    %8 = arith.truncf %7 : vector<100x54xf32> to vector<100x54xbf16>
    %c1_7 = arith.constant 1 : index
    %c0_8 = arith.constant 0 : index
    %c0_9 = arith.constant 0 : index
    %9 = vector.load %arg2[%c1_7, %c0_8, %c0_9] : memref<5x54x400xbf16, #tpu.memory_space<vmem>>, vector<1x54x400xbf16>
    %10 = vector.shape_cast %9 : vector<1x54x400xbf16> to vector<54x400xbf16>
    %cst_10 = arith.constant dense<0.000000e+00> : vector<100x400xf32>
    %11 = tpu.matmul %8, %10, %cst_10 {dimension_numbers = #tpu.dot_dimension_numbers<[1], [0], [0], [1], [0, 0, 1, 1], [], []>} : vector<100x54xbf16>, vector<54x400xbf16>, vector<100x400xf32> -> vector<100x400xf32>
    %12 = arith.addf %5, %11 : vector<100x400xf32>
    %c0_11 = arith.constant 0 : index
    %c2 = arith.constant 2 : index
    %c0_12 = arith.constant 0 : index
    %13 = vector.load %arg1[%c0_11, %c2, %c0_12] : memref<1x104x54xf32, #tpu.memory_space<vmem>>, vector<1x100x54xf32>
    %14 = vector.shape_cast %13 : vector<1x100x54xf32> to vector<100x54xf32>
    %15 = arith.truncf %14 : vector<100x54xf32> to vector<100x54xbf16>
    %c2_13 = arith.constant 2 : index
    %c0_14 = arith.constant 0 : index
    %c0_15 = arith.constant 0 : index
    %16 = vector.load %arg2[%c2_13, %c0_14, %c0_15] : memref<5x54x400xbf16, #tpu.memory_space<vmem>>, vector<1x54x400xbf16>
    %17 = vector.shape_cast %16 : vector<1x54x400xbf16> to vector<54x400xbf16>
    %cst_16 = arith.constant dense<0.000000e+00> : vector<100x400xf32>
    %18 = tpu.matmul %15, %17, %cst_16 {dimension_numbers = #tpu.dot_dimension_numbers<[1], [0], [0], [1], [0, 0, 1, 1], [], []>} : vector<100x54xbf16>, vector<54x400xbf16>, vector<100x400xf32> -> vector<100x400xf32>
    %19 = arith.addf %12, %18 : vector<100x400xf32>
    %c0_17 = arith.constant 0 : index
    %c3 = arith.constant 3 : index
    %c0_18 = arith.constant 0 : index
    %20 = vector.load %arg1[%c0_17, %c3, %c0_18] : memref<1x104x54xf32, #tpu.memory_space<vmem>>, vector<1x100x54xf32>
    %21 = vector.shape_cast %20 : vector<1x100x54xf32> to vector<100x54xf32>
    %22 = arith.truncf %21 : vector<100x54xf32> to vector<100x54xbf16>
    %c3_19 = arith.constant 3 : index
    %c0_20 = arith.constant 0 : index
    %c0_21 = arith.constant 0 : index
    %23 = vector.load %arg2[%c3_19, %c0_20, %c0_21] : memref<5x54x400xbf16, #tpu.memory_space<vmem>>, vector<1x54x400xbf16>
    %24 = vector.shape_cast %23 : vector<1x54x400xbf16> to vector<54x400xbf16>
    %cst_22 = arith.constant dense<0.000000e+00> : vector<100x400xf32>
    %25 = tpu.matmul %22, %24, %cst_22 {dimension_numbers = #tpu.dot_dimension_numbers<[1], [0], [0], [1], [0, 0, 1, 1], [], []>} : vector<100x54xbf16>, vector<54x400xbf16>, vector<100x400xf32> -> vector<100x400xf32>
    %26 = arith.addf %19, %25 : vector<100x400xf32>
    %c0_23 = arith.constant 0 : index
    %c4 = arith.constant 4 : index
    %c0_24 = arith.constant 0 : index
    %27 = vector.load %arg1[%c0_23, %c4, %c0_24] : memref<1x104x54xf32, #tpu.memory_space<vmem>>, vector<1x100x54xf32>
    %28 = vector.shape_cast %27 : vector<1x100x54xf32> to vector<100x54xf32>
    %29 = arith.truncf %28 : vector<100x54xf32> to vector<100x54xbf16>
    %c4_25 = arith.constant 4 : index
    %c0_26 = arith.constant 0 : index
    %c0_27 = arith.constant 0 : index
    %30 = vector.load %arg2[%c4_25, %c0_26, %c0_27] : memref<5x54x400xbf16, #tpu.memory_space<vmem>>, vector<1x54x400xbf16>
    %31 = vector.shape_cast %30 : vector<1x54x400xbf16> to vector<54x400xbf16>
    %cst_28 = arith.constant dense<0.000000e+00> : vector<100x400xf32>
    %32 = tpu.matmul %29, %31, %cst_28 {dimension_numbers = #tpu.dot_dimension_numbers<[1], [0], [0], [1], [0, 0, 1, 1], [], []>} : vector<100x54xbf16>, vector<54x400xbf16>, vector<100x400xf32> -> vector<100x400xf32>
    %33 = arith.addf %26, %32 : vector<100x400xf32>
    %c0_29 = arith.constant 0 : index
    %c0_30 = arith.constant 0 : index
    %34 = vector.load %arg3[%c0_29, %c0_30] : memref<1x400xf32, #tpu.memory_space<vmem>>, vector<1x400xf32>
    %35 = vector.broadcast %34 : vector<1x400xf32> to vector<100x400xf32>
    %36 = arith.addf %33, %35 : vector<100x400xf32>
    %cst_31 = arith.constant 0.000000e+00 : f32
    %37 = vector.broadcast %cst_31 : f32 to vector<100x400xf32>
    %38 = arith.maximumf %36, %37 : vector<100x400xf32>
    %39 = arith.truncf %38 : vector<100x400xf32> to vector<100x400xbf16>
    %c0_32 = arith.constant 0 : index
    %c0_33 = arith.constant 0 : index
    %40 = vector.load %arg4[%c0_32, %c0_33] : memref<50x100xbf16, #tpu.memory_space<vmem>>, vector<50x100xbf16>
    %cst_34 = arith.constant dense<0.000000e+00> : vector<50x400xf32>
    %41 = tpu.matmul %40, %39, %cst_34 {dimension_numbers = #tpu.dot_dimension_numbers<[1], [0], [0], [1], [0, 0, 1, 1], [], []>} : vector<50x100xbf16>, vector<100x400xbf16>, vector<50x400xf32> -> vector<50x400xf32>
    %c0_35 = arith.constant 0 : index
    %c0_36 = arith.constant 0 : index
    %42 = vector.load %arg5[%c0_35, %c0_36] : memref<50x100xbf16, #tpu.memory_space<vmem>>, vector<50x100xbf16>
    %cst_37 = arith.constant dense<0.000000e+00> : vector<50x400xf32>
    %43 = tpu.matmul %42, %39, %cst_37 {dimension_numbers = #tpu.dot_dimension_numbers<[1], [0], [0], [1], [0, 0, 1, 1], [], []>} : vector<50x100xbf16>, vector<100x400xbf16>, vector<50x400xf32> -> vector<50x400xf32>
    %44 = arith.maximumf %41, %43 : vector<50x400xf32>
    %45 = arith.truncf %44 : vector<50x400xf32> to vector<50x400xbf16>
    %c0_38 = arith.constant 0 : index
    %c0_39 = arith.constant 0 : index
    %46 = vector.load %arg6[%c0_38, %c0_39] : memref<400x200xbf16, #tpu.memory_space<vmem>>, vector<400x200xbf16>
    %cst_40 = arith.constant dense<0.000000e+00> : vector<50x200xf32>
    %47 = tpu.matmul %45, %46, %cst_40 {dimension_numbers = #tpu.dot_dimension_numbers<[1], [0], [0], [1], [0, 0, 1, 1], [], []>} : vector<50x400xbf16>, vector<400x200xbf16>, vector<50x200xf32> -> vector<50x200xf32>
    %c0_41 = arith.constant 0 : index
    %c0_42 = arith.constant 0 : index
    %48 = vector.load %arg7[%c0_41, %c0_42] : memref<400x200xbf16, #tpu.memory_space<vmem>>, vector<400x200xbf16>
    %cst_43 = arith.constant dense<0.000000e+00> : vector<50x200xf32>
    %49 = tpu.matmul %45, %48, %cst_43 {dimension_numbers = #tpu.dot_dimension_numbers<[1], [0], [0], [1], [0, 0, 1, 1], [], []>} : vector<50x400xbf16>, vector<400x200xbf16>, vector<50x200xf32> -> vector<50x200xf32>
    %50 = arith.maximumf %47, %49 : vector<50x200xf32>
    %51 = arith.truncf %50 : vector<50x200xf32> to vector<50x200xbf16>
    %c0_44 = arith.constant 0 : index
    %c0_45 = arith.constant 0 : index
    %c0_46 = arith.constant 0 : index
    %52 = vector.load %arg8[%c0_44, %c0_45, %c0_46] : memref<1x50x200xbf16, #tpu.memory_space<vmem>>, vector<1x50x200xbf16>
    %53 = vector.shape_cast %52 : vector<1x50x200xbf16> to vector<50x200xbf16>
    %54 = vector.shape_cast %51 : vector<50x200xbf16> to vector<1x50x200xbf16>
    tpu.vector_store %arg8[%c0_44, %c0_45, %c0_46], %54 {strides = array<i32>} : memref<1x50x200xbf16, #tpu.memory_space<vmem>>, vector<1x50x200xbf16>,
    return
  }
  func.func @transform_0(%arg0: i32) -> (i32, i32, i32) {
    %c0_i32 = arith.constant 0 : i32
    %c0_i32_0 = arith.constant 0 : i32
    %c0_i32_1 = arith.constant 0 : i32
    return %arg0, %c0_i32, %c0_i32_0 : i32, i32, i32
  }
  func.func @transform_1(%arg0: i32) -> (i32, i32, i32) {
    %c0_i32 = arith.constant 0 : i32
    %c0_i32_0 = arith.constant 0 : i32
    %c0_i32_1 = arith.constant 0 : i32
    %c0_i32_2 = arith.constant 0 : i32
    return %c0_i32, %c0_i32_0, %c0_i32_1 : i32, i32, i32
  }
  func.func @transform_2(%arg0: i32) -> (i32, i32) {
    %c0_i32 = arith.constant 0 : i32
    %c0_i32_0 = arith.constant 0 : i32
    %c0_i32_1 = arith.constant 0 : i32
    return %c0_i32, %c0_i32_0 : i32, i32
  }
  func.func @transform_3(%arg0: i32) -> (i32, i32) {
    %c0_i32 = arith.constant 0 : i32
    %c0_i32_0 = arith.constant 0 : i32
    %c0_i32_1 = arith.constant 0 : i32
    return %c0_i32, %c0_i32_0 : i32, i32
  }
  func.func @transform_4(%arg0: i32) -> (i32, i32) {
    %c0_i32 = arith.constant 0 : i32
    %c0_i32_0 = arith.constant 0 : i32
    %c0_i32_1 = arith.constant 0 : i32
    return %c0_i32, %c0_i32_0 : i32, i32
  }
  func.func @transform_5(%arg0: i32) -> (i32, i32) {
    %c0_i32 = arith.constant 0 : i32
    %c0_i32_0 = arith.constant 0 : i32
    %c0_i32_1 = arith.constant 0 : i32
    return %c0_i32, %c0_i32_0 : i32, i32
  }
  func.func @transform_6(%arg0: i32) -> (i32, i32) {
    %c0_i32 = arith.constant 0 : i32
    %c0_i32_0 = arith.constant 0 : i32
    %c0_i32_1 = arith.constant 0 : i32
    return %c0_i32, %c0_i32_0 : i32, i32
  }
  func.func @transform_7(%arg0: i32) -> (i32, i32, i32) {
    %c0_i32 = arith.constant 0 : i32
    %c0_i32_0 = arith.constant 0 : i32
    %c0_i32_1 = arith.constant 0 : i32
    return %arg0, %c0_i32, %c0_i32_0 : i32, i32, i32
  }
}

module attributes {stable_mosaic.version = 11 : i64} {
  func.func @mlp_kernel(%arg0: i32, %arg1: memref<2x5120xbf16, #tpu.memory_space<vmem>>, %arg2: memref<5120x200xi8, #tpu.memory_space<vmem>>, %arg3: memref<1x200xf32, #tpu.memory_space<vmem>>, %arg4: memref<1x200xf32, #tpu.memory_space<vmem>>, %arg5: memref<200x1xf32, #tpu.memory_space<vmem>>, %arg6: memref<1x1xf32, #tpu.memory_space<vmem>>, %arg7: memref<2x1xf32, #tpu.memory_space<vmem>>, %arg8: memref<2x200xf32, #tpu.memory_space<vmem>>) attributes {dimension_semantics = [#tpu.dimension_semantics<arbitrary>], iteration_bounds = array<i64: 2>, scalar_prefetch = 0 : i64, scratch_operands = 1 : i64, tpu.core_type = #tpu.core_type<tc>, window_params = [{transform_indices = @transform_0, window_bounds = array<i64: 2, 5120>}, {transform_indices = @transform_1, window_bounds = array<i64: 5120, 200>}, {pipeline_mode = #tpu.pipeline_mode<synchronous>, transform_indices = @transform_2, window_bounds = array<i64: 1, 200>}, {pipeline_mode = #tpu.pipeline_mode<synchronous>, transform_indices = @transform_3, window_bounds = array<i64: 1, 200>}, {pipeline_mode = #tpu.pipeline_mode<synchronous>, transform_indices = @transform_4, window_bounds = array<i64: 200, 1>}, {pipeline_mode = #tpu.pipeline_mode<synchronous>, transform_indices = @transform_5, window_bounds = array<i64: 1, 1>}, {pipeline_mode = #tpu.pipeline_mode<synchronous>, transform_indices = @transform_6, window_bounds = array<i64: 2, 1>}]} {
    %c0_i32 = arith.constant 0 : i32
    %0 = arith.cmpi eq, %arg0, %c0_i32 : i32
    %1 = arith.extui %0 : i1 to i32
    %c0_i32_0 = arith.constant 0 : i32
    %2 = arith.cmpi ne, %1, %c0_i32_0 : i32
    scf.if %2 {
      %cst_21 = arith.constant 0.000000e+00 : f32
      %32 = vector.broadcast %cst_21 : f32 to vector<2x200xf32>
      %c0_22 = arith.constant 0 : index
      %c0_23 = arith.constant 0 : index
      %33 = vector.load %arg8[%c0_22, %c0_23] : memref<2x200xf32, #tpu.memory_space<vmem>>, vector<2x200xf32>
      tpu.vector_store %arg8[%c0_22, %c0_23], %32 {strides = array<i32>} : memref<2x200xf32, #tpu.memory_space<vmem>>, vector<2x200xf32>,
    } else {
    }
    %c0 = arith.constant 0 : index
    %c0_1 = arith.constant 0 : index
    %3 = vector.load %arg8[%c0, %c0_1] : memref<2x200xf32, #tpu.memory_space<vmem>>, vector<2x200xf32>
    %c0_2 = arith.constant 0 : index
    %c0_3 = arith.constant 0 : index
    %4 = vector.load %arg2[%c0_2, %c0_3] : memref<5120x200xi8, #tpu.memory_space<vmem>>, vector<1280x200xi8>
    %5 = arith.sitofp %4 : vector<1280x200xi8> to vector<1280x200xf32>
    %6 = arith.truncf %5 : vector<1280x200xf32> to vector<1280x200xbf16>
    %c0_4 = arith.constant 0 : index
    %c0_5 = arith.constant 0 : index
    %7 = vector.load %arg1[%c0_4, %c0_5] : memref<2x5120xbf16, #tpu.memory_space<vmem>>, vector<2x1280xbf16>
    %cst = arith.constant dense<0.000000e+00> : vector<2x200xf32>
    %8 = tpu.matmul %7, %6, %cst {dimension_numbers = #tpu.dot_dimension_numbers<[1], [0], [0], [1], [0, 0, 1, 1], [], []>} : vector<2x1280xbf16>, vector<1280x200xbf16>, vector<2x200xf32> -> vector<2x200xf32>
    %9 = arith.addf %3, %8 : vector<2x200xf32>
    %c1280 = arith.constant 1280 : index
    %c0_6 = arith.constant 0 : index
    %10 = vector.load %arg2[%c1280, %c0_6] : memref<5120x200xi8, #tpu.memory_space<vmem>>, vector<1280x200xi8>
    %11 = arith.sitofp %10 : vector<1280x200xi8> to vector<1280x200xf32>
    %12 = arith.truncf %11 : vector<1280x200xf32> to vector<1280x200xbf16>
    %c0_7 = arith.constant 0 : index
    %c1280_8 = arith.constant 1280 : index
    %13 = vector.load %arg1[%c0_7, %c1280_8] : memref<2x5120xbf16, #tpu.memory_space<vmem>>, vector<2x1280xbf16>
    %cst_9 = arith.constant dense<0.000000e+00> : vector<2x200xf32>
    %14 = tpu.matmul %13, %12, %cst_9 {dimension_numbers = #tpu.dot_dimension_numbers<[1], [0], [0], [1], [0, 0, 1, 1], [], []>} : vector<2x1280xbf16>, vector<1280x200xbf16>, vector<2x200xf32> -> vector<2x200xf32>
    %15 = arith.addf %9, %14 : vector<2x200xf32>
    %c2560 = arith.constant 2560 : index
    %c0_10 = arith.constant 0 : index
    %16 = vector.load %arg2[%c2560, %c0_10] : memref<5120x200xi8, #tpu.memory_space<vmem>>, vector<1280x200xi8>
    %17 = arith.sitofp %16 : vector<1280x200xi8> to vector<1280x200xf32>
    %18 = arith.truncf %17 : vector<1280x200xf32> to vector<1280x200xbf16>
    %c0_11 = arith.constant 0 : index
    %c2560_12 = arith.constant 2560 : index
    %19 = vector.load %arg1[%c0_11, %c2560_12] : memref<2x5120xbf16, #tpu.memory_space<vmem>>, vector<2x1280xbf16>
    %cst_13 = arith.constant dense<0.000000e+00> : vector<2x200xf32>
    %20 = tpu.matmul %19, %18, %cst_13 {dimension_numbers = #tpu.dot_dimension_numbers<[1], [0], [0], [1], [0, 0, 1, 1], [], []>} : vector<2x1280xbf16>, vector<1280x200xbf16>, vector<2x200xf32> -> vector<2x200xf32>
    %21 = arith.addf %15, %20 : vector<2x200xf32>
    %c3840 = arith.constant 3840 : index
    %c0_14 = arith.constant 0 : index
    %22 = vector.load %arg2[%c3840, %c0_14] : memref<5120x200xi8, #tpu.memory_space<vmem>>, vector<1280x200xi8>
    %23 = arith.sitofp %22 : vector<1280x200xi8> to vector<1280x200xf32>
    %24 = arith.truncf %23 : vector<1280x200xf32> to vector<1280x200xbf16>
    %c0_15 = arith.constant 0 : index
    %c3840_16 = arith.constant 3840 : index
    %25 = vector.load %arg1[%c0_15, %c3840_16] : memref<2x5120xbf16, #tpu.memory_space<vmem>>, vector<2x1280xbf16>
    %cst_17 = arith.constant dense<0.000000e+00> : vector<2x200xf32>
    %26 = tpu.matmul %25, %24, %cst_17 {dimension_numbers = #tpu.dot_dimension_numbers<[1], [0], [0], [1], [0, 0, 1, 1], [], []>} : vector<2x1280xbf16>, vector<1280x200xbf16>, vector<2x200xf32> -> vector<2x200xf32>
    %27 = arith.addf %21, %26 : vector<2x200xf32>
    %c0_18 = arith.constant 0 : index
    %c0_19 = arith.constant 0 : index
    %28 = vector.load %arg8[%c0_18, %c0_19] : memref<2x200xf32, #tpu.memory_space<vmem>>, vector<2x200xf32>
    tpu.vector_store %arg8[%c0_18, %c0_19], %27 {strides = array<i32>} : memref<2x200xf32, #tpu.memory_space<vmem>>, vector<2x200xf32>,
    %c1_i32 = arith.constant 1 : i32
    %29 = arith.cmpi eq, %arg0, %c1_i32 : i32
    %30 = arith.extui %29 : i1 to i32
    %c0_i32_20 = arith.constant 0 : i32
    %31 = arith.cmpi ne, %30, %c0_i32_20 : i32
    scf.if %31 {
      %c0_21 = arith.constant 0 : index
      %c0_22 = arith.constant 0 : index
      %32 = vector.load %arg8[%c0_21, %c0_22] : memref<2x200xf32, #tpu.memory_space<vmem>>, vector<2x200xf32>
      %c0_23 = arith.constant 0 : index
      %c0_24 = arith.constant 0 : index
      %33 = vector.load %arg3[%c0_23, %c0_24] : memref<1x200xf32, #tpu.memory_space<vmem>>, vector<1x200xf32>
      %34 = vector.broadcast %33 : vector<1x200xf32> to vector<2x200xf32>
      %35 = arith.mulf %32, %34 : vector<2x200xf32>
      %c0_25 = arith.constant 0 : index
      %c0_26 = arith.constant 0 : index
      %36 = vector.load %arg4[%c0_25, %c0_26] : memref<1x200xf32, #tpu.memory_space<vmem>>, vector<1x200xf32>
      %37 = vector.broadcast %36 : vector<1x200xf32> to vector<2x200xf32>
      %38 = arith.addf %35, %37 : vector<2x200xf32>
      %c0_27 = arith.constant 0 : index
      %c0_28 = arith.constant 0 : index
      %39 = vector.load %arg5[%c0_27, %c0_28] : memref<200x1xf32, #tpu.memory_space<vmem>>, vector<200x1xf32>
      %cst_29 = arith.constant dense<0.000000e+00> : vector<2x1xf32>
      %40 = tpu.matmul %38, %39, %cst_29 {dimension_numbers = #tpu.dot_dimension_numbers<[1], [0], [0], [1], [0, 0, 1, 1], [], []>} : vector<2x200xf32>, vector<200x1xf32>, vector<2x1xf32> -> vector<2x1xf32>
      %c0_30 = arith.constant 0 : index
      %c0_31 = arith.constant 0 : index
      %41 = vector.load %arg6[%c0_30, %c0_31] : memref<1x1xf32, #tpu.memory_space<vmem>>, vector<1x1xf32>
      %42 = vector.broadcast %41 : vector<1x1xf32> to vector<2x1xf32>
      %43 = arith.addf %40, %42 : vector<2x1xf32>
      %c0_32 = arith.constant 0 : index
      %c0_33 = arith.constant 0 : index
      %44 = vector.load %arg7[%c0_32, %c0_33] : memref<2x1xf32, #tpu.memory_space<vmem>>, vector<2x1xf32>
      tpu.vector_store %arg7[%c0_32, %c0_33], %43 {strides = array<i32>} : memref<2x1xf32, #tpu.memory_space<vmem>>, vector<2x1xf32>,
    } else {
    }
    return
  }
  func.func @transform_0(%arg0: i32) -> (i32, i32) {
    %c0_i32 = arith.constant 0 : i32
    %c0_i32_0 = arith.constant 0 : i32
    return %c0_i32, %arg0 : i32, i32
  }
  func.func @transform_1(%arg0: i32) -> (i32, i32) {
    %c0_i32 = arith.constant 0 : i32
    %c0_i32_0 = arith.constant 0 : i32
    return %arg0, %c0_i32 : i32, i32
  }
  func.func @transform_2(%arg0: i32) -> (i32, i32) {
    %c0_i32 = arith.constant 0 : i32
    %c0_i32_0 = arith.constant 0 : i32
    %c0_i32_1 = arith.constant 0 : i32
    return %c0_i32, %c0_i32_0 : i32, i32
  }
  func.func @transform_3(%arg0: i32) -> (i32, i32) {
    %c0_i32 = arith.constant 0 : i32
    %c0_i32_0 = arith.constant 0 : i32
    %c0_i32_1 = arith.constant 0 : i32
    return %c0_i32, %c0_i32_0 : i32, i32
  }
  func.func @transform_4(%arg0: i32) -> (i32, i32) {
    %c0_i32 = arith.constant 0 : i32
    %c0_i32_0 = arith.constant 0 : i32
    %c0_i32_1 = arith.constant 0 : i32
    return %c0_i32, %c0_i32_0 : i32, i32
  }
  func.func @transform_5(%arg0: i32) -> (i32, i32) {
    %c0_i32 = arith.constant 0 : i32
    %c0_i32_0 = arith.constant 0 : i32
    %c0_i32_1 = arith.constant 0 : i32
    return %c0_i32, %c0_i32_0 : i32, i32
  }
  func.func @transform_6(%arg0: i32) -> (i32, i32) {
    %c0_i32 = arith.constant 0 : i32
    %c0_i32_0 = arith.constant 0 : i32
    %c0_i32_1 = arith.constant 0 : i32
    return %c0_i32, %c0_i32_0 : i32, i32
  }
}

</mosaic_0001>

<llo_original>
// kernel: venty_forward.2
$region0: #{venty_forward.2}
  #allocation0 [shape = 'u32[]', space=smem, size = 0x4, offset = 0x4, fixed_abs, tag = 'smem constant byte address 0x4 - core index']
  #allocation1 [shape = 'u32[144,128]{1,0:T(1,128)}', space=vmem, size = 0x12000, scoped, tag = 'internal scratch']
  %s0 = inlined_call_operand.vmem [shape: f32[2,104,54], index: 0, kind: input, shape index: {}]
  %s1 = inlined_call_operand.hbm [shape: bf16[5,54,400], index: 1, kind: input, shape index: {}]
  %s2 = inlined_call_operand.hbm [shape: f32[1,400], index: 2, kind: input, shape index: {}]
  %s3 = inlined_call_operand.hbm [shape: bf16[50,100], index: 3, kind: input, shape index: {}]
  %s4 = inlined_call_operand.hbm [shape: bf16[50,100], index: 4, kind: input, shape index: {}]
  %s5 = inlined_call_operand.hbm [shape: bf16[400,200], index: 5, kind: input, shape index: {}]
  %s6 = inlined_call_operand.hbm [shape: bf16[400,200], index: 6, kind: input, shape index: {}]
  %s7 = inlined_call_operand.vmem [shape: bf16[2,50,200], index: 7, kind: output, shape index: {}]
  %s8 = sld [smem:[#allocation0]]
  $region85: #{venty_forward.2} parent=0
    _
  %s10 = ssub.s32 1, %s8
  %s11 = scalar_select 0, %s10, %s8
  $region1: #{venty_forward.2} parent=0
    #allocation2 [shape = 'u8[286720]{0}', space=vmem, size = 0x46000, scoped, tag = 'input window, operand 1, single buffered']
    #allocation3 [shape = 's32[2]{0}', space=sflag, size = 0x8, scoped, tag = 'scoped memory for venty_forward.2']
    #allocation4 [shape = 'u8[2048]{0}', space=vmem, size = 0x800, scoped, tag = 'input window, operand 2, single buffered']
    #allocation5 [shape = 's32[1]{0}', space=sflag, size = 0x4, scoped, tag = 'scoped memory for venty_forward.2']
    #allocation6 [shape = 'u8[14336]{0}', space=vmem, size = 0x3800, scoped, tag = 'input window, operand 3, single buffered']
    #allocation7 [shape = 'u8[14336]{0}', space=vmem, size = 0x3800, scoped, tag = 'input window, operand 4, single buffered']
    #allocation8 [shape = 's32[1]{0}', space=sflag, size = 0x4, scoped, tag = 'scoped memory for venty_forward.2']
    #allocation9 [shape = 'u8[204800]{0}', space=vmem, size = 0x32000, scoped, tag = 'input window, operand 5, single buffered']
    #allocation10 [shape = 'u8[204800]{0}', space=vmem, size = 0x32000, scoped, tag = 'input window, operand 6, single buffered']
    #allocation11 [shape = 's32[1]{0}', space=sflag, size = 0x4, scoped, tag = 'scoped memory for venty_forward.2']
    %12 = vsyncpa [#allocation3], 0
    %13 = vsyncpa [#allocation5], 0
    %14 = vsyncpa [#allocation8], 0
    %15 = vsyncpa [#allocation11], 0
    loop: start=0, step=1, limit=4
    $region2: #{venty_forward.2} parent=1 // loop_pre_header
      _
    $region3: #{venty_forward.2} parent=1 // loop_header
      %s17 = sphi 0, %s21
      %p18 = scmp.ge.s32.totalorder %s17, 4
      %s27 = sphi 0, %s29
      %s30 = sphi 0, %s27
      %s31 = sphi 0, %s30
      %s47 = sphi 0, %s31
      %s51 = sphi 0, %s51
      %s53 = sphi 0, %s51
      %s54 = sphi 0, %s53
      %s68 = sphi 0, %s54
      %s72 = sphi 0, %s72
      %s74 = sphi 0, %s72
      %s75 = sphi 0, %s74
      %s89 = sphi 0, %s75
      %s93 = sphi 0, %s93
      %s95 = sphi 0, %s93
      %s96 = sphi 0, %s95
      %s110 = sphi 0, %s96
      %s114 = sphi 0, %s114
      %s116 = sphi 0, %s114
      %s117 = sphi 0, %s116
      %s131 = sphi 0, %s117
      %s135 = sphi 0, %s135
      %s137 = sphi 0, %s135
      %s138 = sphi 0, %s137
      %s152 = sphi 0, %s138
      %s156 = sphi 0, %s156
      %s158 = sphi 0, %s156
      %s159 = sphi 0, %s158
      %s173 = sphi 0, %s159
      %s179 = sphi 0, %s181
      %s182 = sphi 0, %s179
      %s183 = sphi 0, %s182
      %s199 = sphi 0, %s183
    $region4: #{venty_forward.2} parent=1 // loop_header_branch
      %20 = sbr.rel (%p18) target = $region8
    $region5: #{venty_forward.2} parent=1 // loop_body
      %s22 = ssub.s32 %s17, 1
      %s23 = ssub.s32 %s17, 2
      %s24 = sadd.s32 %s17, 1
      %s25 = ssub.s32 %s17, %s24
      %p26 = scmp.eq.s32.totalorder %s25, 0
      %s28 = sadd.s32 %s27, 1
      %s29 = scalar_select %p26, %s27, %s28
      %p32 = pneg %p26
      %p33 = scmp.eq.s32.totalorder %s17, 1
      %p34 = por %p32, %p33
      %p35 = scmp.ne.s32.totalorder %s27, %s30
      %p36 = scmp.eq.s32.totalorder %s17, 0
      %p37 = por %p35, %p36
      %p38 = scmp.ne.s32.totalorder %s27, %s30
      %p39 = scmp.eq.s32.totalorder %s22, 1
      %p40 = por %p38, %p39
      %p41 = scmp.ne.s32.totalorder %s30, %s31
      %p42 = scmp.eq.s32.totalorder %s22, 0
      %p43 = por %p41, %p42
      %p44 = scmp.ne.s32.totalorder %s30, %s31
      %p45 = scmp.eq.s32.totalorder %s23, 1
      %p46 = por %p44, %p45
      %p48 = scmp.ne.s32.totalorder %s31, %s47
      %p49 = scmp.eq.s32.totalorder %s23, 0
      %p50 = por %p48, %p49
      %s52 = sadd.s32 %s51, 1
      %p55 = scmp.eq.s32.totalorder %s17, 1
      %p56 = scmp.ne.s32.totalorder %s51, %s53
      %p57 = scmp.eq.s32.totalorder %s17, 0
      %p58 = por %p56, %p57
      %p59 = scmp.ne.s32.totalorder %s51, %s53
      %p60 = scmp.eq.s32.totalorder %s22, 1
      %p61 = por %p59, %p60
      %p62 = scmp.ne.s32.totalorder %s53, %s54
      %p63 = scmp.eq.s32.totalorder %s22, 0
      %p64 = por %p62, %p63
      %p65 = scmp.ne.s32.totalorder %s53, %s54
      %p66 = scmp.eq.s32.totalorder %s23, 1
      %p67 = por %p65, %p66
      %p69 = scmp.ne.s32.totalorder %s54, %s68
      %p70 = scmp.eq.s32.totalorder %s23, 0
      %p71 = por %p69, %p70
      %s73 = sadd.s32 %s72, 1
      %p76 = scmp.eq.s32.totalorder %s17, 1
      %p77 = scmp.ne.s32.totalorder %s72, %s74
      %p78 = scmp.eq.s32.totalorder %s17, 0
      %p79 = por %p77, %p78
      %p80 = scmp.ne.s32.totalorder %s72, %s74
      %p81 = scmp.eq.s32.totalorder %s22, 1
      %p82 = por %p80, %p81
      %p83 = scmp.ne.s32.totalorder %s74, %s75
      %p84 = scmp.eq.s32.totalorder %s22, 0
      %p85 = por %p83, %p84
      %p86 = scmp.ne.s32.totalorder %s74, %s75
      %p87 = scmp.eq.s32.totalorder %s23, 1
      %p88 = por %p86, %p87
      %p90 = scmp.ne.s32.totalorder %s75, %s89
      %p91 = scmp.eq.s32.totalorder %s23, 0
      %p92 = por %p90, %p91
      %s94 = sadd.s32 %s93, 1
      %p97 = scmp.eq.s32.totalorder %s17, 1
      %p98 = scmp.ne.s32.totalorder %s93, %s95
      %p99 = scmp.eq.s32.totalorder %s17, 0
      %p100 = por %p98, %p99
      %p101 = scmp.ne.s32.totalorder %s93, %s95
      %p102 = scmp.eq.s32.totalorder %s22, 1
      %p103 = por %p101, %p102
      %p104 = scmp.ne.s32.totalorder %s95, %s96
      %p105 = scmp.eq.s32.totalorder %s22, 0
      %p106 = por %p104, %p105
      %p107 = scmp.ne.s32.totalorder %s95, %s96
      %p108 = scmp.eq.s32.totalorder %s23, 1
      %p109 = por %p107, %p108
      %p111 = scmp.ne.s32.totalorder %s96, %s110
      %p112 = scmp.eq.s32.totalorder %s23, 0
      %p113 = por %p111, %p112
      %s115 = sadd.s32 %s114, 1
      %p118 = scmp.eq.s32.totalorder %s17, 1
      %p119 = scmp.ne.s32.totalorder %s114, %s116
      %p120 = scmp.eq.s32.totalorder %s17, 0
      %p121 = por %p119, %p120
      %p122 = scmp.ne.s32.totalorder %s114, %s116
      %p123 = scmp.eq.s32.totalorder %s22, 1
      %p124 = por %p122, %p123
      %p125 = scmp.ne.s32.totalorder %s116, %s117
      %p126 = scmp.eq.s32.totalorder %s22, 0
      %p127 = por %p125, %p126
      %p128 = scmp.ne.s32.totalorder %s116, %s117
      %p129 = scmp.eq.s32.totalorder %s23, 1
      %p130 = por %p128, %p129
      %p132 = scmp.ne.s32.totalorder %s117, %s131
      %p133 = scmp.eq.s32.totalorder %s23, 0
      %p134 = por %p132, %p133
      %s136 = sadd.s32 %s135, 1
      %p139 = scmp.eq.s32.totalorder %s17, 1
      %p140 = scmp.ne.s32.totalorder %s135, %s137
      %p141 = scmp.eq.s32.totalorder %s17, 0
      %p142 = por %p140, %p141
      %p143 = scmp.ne.s32.totalorder %s135, %s137
      %p144 = scmp.eq.s32.totalorder %s22, 1
      %p145 = por %p143, %p144
      %p146 = scmp.ne.s32.totalorder %s137, %s138
      %p147 = scmp.eq.s32.totalorder %s22, 0
      %p148 = por %p146, %p147
      %p149 = scmp.ne.s32.totalorder %s137, %s138
      %p150 = scmp.eq.s32.totalorder %s23, 1
      %p151 = por %p149, %p150
      %p153 = scmp.ne.s32.totalorder %s138, %s152
      %p154 = scmp.eq.s32.totalorder %s23, 0
      %p155 = por %p153, %p154
      %s157 = sadd.s32 %s156, 1
      %p160 = scmp.eq.s32.totalorder %s17, 1
      %p161 = scmp.ne.s32.totalorder %s156, %s158
      %p162 = scmp.eq.s32.totalorder %s17, 0
      %p163 = por %p161, %p162
      %p164 = scmp.ne.s32.totalorder %s156, %s158
      %p165 = scmp.eq.s32.totalorder %s22, 1
      %p166 = por %p164, %p165
      %p167 = scmp.ne.s32.totalorder %s158, %s159
      %p168 = scmp.eq.s32.totalorder %s22, 0
      %p169 = por %p167, %p168
      %p170 = scmp.ne.s32.totalorder %s158, %s159
      %p171 = scmp.eq.s32.totalorder %s23, 1
      %p172 = por %p170, %p171
      %p174 = scmp.ne.s32.totalorder %s159, %s173
      %p175 = scmp.eq.s32.totalorder %s23, 0
      %p176 = por %p174, %p175
      %s177 = ssub.s32 %s17, %s24
      %p178 = scmp.eq.s32.totalorder %s177, 0
      %s180 = sadd.s32 %s179, 1
      %s181 = scalar_select %p178, %s179, %s180
      %p184 = pneg %p178
      %p185 = scmp.eq.s32.totalorder %s17, 1
      %p186 = por %p184, %p185
      %p187 = scmp.ne.s32.totalorder %s179, %s182
      %p188 = scmp.eq.s32.totalorder %s17, 0
      %p189 = por %p187, %p188
      %p190 = scmp.ne.s32.totalorder %s179, %s182
      %p191 = scmp.eq.s32.totalorder %s22, 1
      %p192 = por %p190, %p191
      %p193 = scmp.ne.s32.totalorder %s182, %s183
      %p194 = scmp.eq.s32.totalorder %s22, 0
      %p195 = por %p193, %p194
      %p196 = scmp.ne.s32.totalorder %s182, %s183
      %p197 = scmp.eq.s32.totalorder %s23, 1
      %p198 = por %p196, %p197
      %p200 = scmp.ne.s32.totalorder %s183, %s199
      %p201 = scmp.eq.s32.totalorder %s23, 0
      %p202 = por %p200, %p201
      %p203 = scmp.le.s32.totalorder 1, %s17
      %p204 = scmp.lt.s32.totalorder %s17, 3
      %p205 = pnand %p203, %p204
      %p206 = pneg %p205
      // Predicated region
      $region9: #{venty_forward.2} parent=5 // pred_check
        _
      $region10: #{venty_forward.2} parent=5 // pred_check_branch
        %208 = sbr.rel (%p205) target = $region12
      $region11: #{venty_forward.2} parent=5 // pred_region
        %s209 = ssub.s32 %s17, 1
        // Predicated region
        $region13: #{venty_forward.2} parent=11 // pred_check
          %p210 = pneg %p64
        $region14: #{venty_forward.2} parent=11 // pred_check_branch
          %212 = sbr.rel (%p210) target = $region16
        $region15: #{venty_forward.2} parent=11 // pred_region
          %s214 = ssub.s32 8960, 8960
          %215 = vsyncadd [#allocation3], %s214
          %s216 = sshll.u32 [#allocation2], 4
          %s217 = int_to_ptr.vmem [resolvable:$true] %s216
          %222 = dma.hbm_to_vmem [thread:$0]  %s1, 8960, %s217, [#allocation3], 256, 256, 16
        $region16: #{venty_forward.2} parent=11 // pred_fallthru
          _
        // Predicated region
        $region17: #{venty_forward.2} parent=11 // pred_check
          %p223 = pneg %p85
        $region18: #{venty_forward.2} parent=11 // pred_check_branch
          %225 = sbr.rel (%p223) target = $region20
        $region19: #{venty_forward.2} parent=11 // pred_region
          %s227 = ssub.s32 64, 64
          %228 = vsyncadd [#allocation5], %s227
          %s230 = sshll.u32 [#allocation4], 4
          %s231 = int_to_ptr.vmem [resolvable:$true] %s230
          %233 = dma.hbm_to_vmem [thread:$0]  %s2, 64, %s231, [#allocation5]
        $region20: #{venty_forward.2} parent=11 // pred_fallthru
          _
        // Predicated region
        $region21: #{venty_forward.2} parent=11 // pred_check
          %p234 = pneg %p106
        $region22: #{venty_forward.2} parent=11 // pred_check_branch
          %236 = sbr.rel (%p234) target = $region24
        $region23: #{venty_forward.2} parent=11 // pred_region
          %s238 = ssub.s32 448, 448
          %239 = vsyncadd [#allocation5], %s238
          %s240 = sshll.u32 [#allocation6], 4
          %s241 = int_to_ptr.vmem [resolvable:$true] %s240
          %246 = dma.hbm_to_vmem [thread:$0]  %s3, 448, %s241, [#allocation5], 64, 64, 4
        $region24: #{venty_forward.2} parent=11 // pred_fallthru
          _
        // Predicated region
        $region25: #{venty_forward.2} parent=11 // pred_check
          %p247 = pneg %p127
        $region26: #{venty_forward.2} parent=11 // pred_check_branch
          %249 = sbr.rel (%p247) target = $region28
        $region27: #{venty_forward.2} parent=11 // pred_region
          %s251 = ssub.s32 448, 448
          %252 = vsyncadd [#allocation8], %s251
          %s253 = sshll.u32 [#allocation7], 4
          %s254 = int_to_ptr.vmem [resolvable:$true] %s253
          %259 = dma.hbm_to_vmem [thread:$0]  %s4, 448, %s254, [#allocation8], 64, 64, 4
        $region28: #{venty_forward.2} parent=11 // pred_fallthru
          _
        // Predicated region
        $region29: #{venty_forward.2} parent=11 // pred_check
          %p260 = pneg %p148
        $region30: #{venty_forward.2} parent=11 // pred_check_branch
          %262 = sbr.rel (%p260) target = $region32
        $region31: #{venty_forward.2} parent=11 // pred_region
          %s264 = ssub.s32 6400, 6400
          %265 = vsyncadd [#allocation8], %s264
          %s266 = sshll.u32 [#allocation9], 4
          %s267 = int_to_ptr.vmem [resolvable:$true] %s266
          %272 = dma.hbm_to_vmem [thread:$0]  %s5, 6400, %s267, [#allocation8], 128, 128, 8
        $region32: #{venty_forward.2} parent=11 // pred_fallthru
          _
        // Predicated region
        $region33: #{venty_forward.2} parent=11 // pred_check
          %p273 = pneg %p169
        $region34: #{venty_forward.2} parent=11 // pred_check_branch
          %275 = sbr.rel (%p273) target = $region36
        $region35: #{venty_forward.2} parent=11 // pred_region
          %s277 = ssub.s32 6400, 6400
          %278 = vsyncadd [#allocation11], %s277
          %s279 = sshll.u32 [#allocation10], 4
          %s280 = int_to_ptr.vmem [resolvable:$true] %s279
          %285 = dma.hbm_to_vmem [thread:$0]  %s6, 6400, %s280, [#allocation11], 128, 128, 8
        $region36: #{venty_forward.2} parent=11 // pred_fallthru
          _
      $region12: #{venty_forward.2} parent=5 // pred_fallthru
        _
      %p286 = scmp.lt.s32.totalorder %s17, 2
      // Predicated region
      $region37: #{venty_forward.2} parent=5 // pred_check
        %p287 = pneg %p286
      $region38: #{venty_forward.2} parent=5 // pred_check_branch
        %289 = sbr.rel (%p287) target = $region40
      $region39: #{venty_forward.2} parent=5 // pred_region
        // Predicated region
        $region41: #{venty_forward.2} parent=39 // pred_check
          %p290 = pneg %p37
        $region42: #{venty_forward.2} parent=39 // pred_check_branch
          %292 = sbr.rel (%p290) target = $region44
        $region43: #{venty_forward.2} parent=39 // pred_region
          %p293 = scmp.lt.s32.totalorder %s17, 1
          %s294 = scalar_select %p293, %s17, 1
          %s295 = smul.addr %s294, 13
          %s296 = smul.addr %s295, 8
          %s297 = scalar_lea.vmem %s0, %s296
        $region44: #{venty_forward.2} parent=39 // pred_fallthru
          _
      $region40: #{venty_forward.2} parent=5 // pred_fallthru
        _
      %p298 = scmp.le.s32.totalorder 1, %s17
      %p299 = scmp.lt.s32.totalorder %s17, 3
      %p300 = pnand %p298, %p299
      %p301 = pneg %p300
      // Predicated region
      $region45: #{venty_forward.2} parent=5 // pred_check
        _
      $region46: #{venty_forward.2} parent=5 // pred_check_branch
        %303 = sbr.rel (%p300) target = $region48
      $region47: #{venty_forward.2} parent=5 // pred_region
        %s304 = ssub.s32 %s17, 1
        // Predicated region
        $region49: #{venty_forward.2} parent=47 // pred_check
          %p305 = pneg %p64
        $region50: #{venty_forward.2} parent=47 // pred_check_branch
          %307 = sbr.rel (%p305) target = $region52
        $region51: #{venty_forward.2} parent=47 // pred_region
          %308 = dma.done [#allocation3], 8960
        $region52: #{venty_forward.2} parent=47 // pred_fallthru
          _
        // Predicated region
        $region53: #{venty_forward.2} parent=47 // pred_check
          %p309 = pneg %p85
        $region54: #{venty_forward.2} parent=47 // pred_check_branch
          %311 = sbr.rel (%p309) target = $region56
        $region55: #{venty_forward.2} parent=47 // pred_region
          %312 = dma.done [#allocation5], 64
        $region56: #{venty_forward.2} parent=47 // pred_fallthru
          _
        // Predicated region
        $region57: #{venty_forward.2} parent=47 // pred_check
          %p313 = pneg %p106
        $region58: #{venty_forward.2} parent=47 // pred_check_branch
          %315 = sbr.rel (%p313) target = $region60
        $region59: #{venty_forward.2} parent=47 // pred_region
          %316 = dma.done [#allocation5], 448
        $region60: #{venty_forward.2} parent=47 // pred_fallthru
          _
        // Predicated region
        $region61: #{venty_forward.2} parent=47 // pred_check
          %p317 = pneg %p127
        $region62: #{venty_forward.2} parent=47 // pred_check_branch
          %319 = sbr.rel (%p317) target = $region64
        $region63: #{venty_forward.2} parent=47 // pred_region
          %320 = dma.done [#allocation8], 448
        $region64: #{venty_forward.2} parent=47 // pred_fallthru
          _
        // Predicated region
        $region65: #{venty_forward.2} parent=47 // pred_check
          %p321 = pneg %p148
        $region66: #{venty_forward.2} parent=47 // pred_check_branch
          %323 = sbr.rel (%p321) target = $region68
        $region67: #{venty_forward.2} parent=47 // pred_region
          %324 = dma.done [#allocation8], 6400
        $region68: #{venty_forward.2} parent=47 // pred_fallthru
          _
        // Predicated region
        $region69: #{venty_forward.2} parent=47 // pred_check
          %p325 = pneg %p169
        $region70: #{venty_forward.2} parent=47 // pred_check_branch
          %327 = sbr.rel (%p325) target = $region72
        $region71: #{venty_forward.2} parent=47 // pred_region
          %328 = dma.done [#allocation11], 6400
        $region72: #{venty_forward.2} parent=47 // pred_fallthru
          _
        %p329 = scmp.lt.s32.totalorder %s22, 1
        %s330 = scalar_select %p329, %s22, 1
        %s331 = smul.addr %s330, 13
        %s332 = smul.addr %s331, 8
        %s333 = scalar_lea.vmem %s0, %s332
        %p334 = pneg %p43
        %p335 = pneg %p40
        %p336 = pneg %p64
        %p337 = pneg %p61
        %p338 = pneg %p85
        %p339 = pneg %p82
        %p340 = pneg %p106
        %p341 = pneg %p103
        %p342 = pneg %p127
        %p343 = pneg %p124
        %p344 = pneg %p148
        %p345 = pneg %p145
        %p346 = pneg %p169
        %p347 = pneg %p166
        %p348 = pneg %p195
        %p349 = pneg %p192
        %p350 = scmp.lt.s32.totalorder %s22, 1
        %s351 = scalar_select %p350, %s22, 1
        %s352 = smul.addr %s351, 14
        %s353 = smul.addr %s352, 4
        %s354 = scalar_lea.vmem %s7, %s353
        %p355 = scmp.lt.s32.totalorder %s22, 1
        %s356 = scalar_select %p355, %s22, 1
        %s357 = smul.addr %s356, 13
        %s358 = smul.addr %s357, 8
        %s359 = scalar_lea.vmem %s0, %s358
        %p360 = scmp.lt.s32.totalorder %s22, 1
        %s361 = scalar_select %p360, %s22, 1
        %s362 = smul.addr %s361, 14
        %s363 = smul.addr %s362, 4
        %s364 = scalar_lea.vmem %s7, %s363
        %v366 = vld [vmem:[%s359] sm:$0xff]
        %v367 = vld [vmem:[%s359 + $0x8] sm:$0xff]
        %v368 = vld [vmem:[%s359 + $0x10] sm:$0xff]
        %v369 = vld [vmem:[%s359 + $0x18] sm:$0xff]
        %v370 = vld [vmem:[%s359 + $0x20] sm:$0xff]
        %v371 = vld [vmem:[%s359 + $0x28] sm:$0xff]
        %v372 = vld [vmem:[%s359 + $0x30] sm:$0xff]
        %v373 = vld [vmem:[%s359 + $0x38] sm:$0xff]
        %v374 = vld [vmem:[%s359 + $0x40] sm:$0xff]
        %v375 = vld [vmem:[%s359 + $0x48] sm:$0xff]
        %v376 = vld [vmem:[%s359 + $0x50] sm:$0xff]
        %v377 = vld [vmem:[%s359 + $0x58] sm:$0xff]
        %v378 = vld [vmem:[%s359 + $0x60] sm:$0xf]
        %v379 = vpack.c.bf16 %v367, %v366
        %v380 = vpack.c.bf16 %v369, %v368
        %v381 = vpack.c.bf16 %v371, %v370
        %v382 = vpack.c.bf16 %v373, %v372
        %v383 = vpack.c.bf16 %v375, %v374
        %v384 = vpack.c.bf16 %v377, %v376
        %v385 = vpack.c.bf16 %v378, %v378
        %v386 = vld [vmem:[#allocation2] sm:$0xff]
        %v387 = vld [vmem:[#allocation2 + $0x8] sm:$0xff]
        %v388 = vld [vmem:[#allocation2 + $0x10] sm:$0xff]
        %v389 = vld [vmem:[#allocation2 + $0x18] sm:$0xff]
        %v390 = vld [vmem:[#allocation2 + $0x20] sm:$0xff]
        %v391 = vld [vmem:[#allocation2 + $0x28] sm:$0xff]
        %v392 = vld [vmem:[#allocation2 + $0x30] sm:$0xff]
        %v393 = vld [vmem:[#allocation2 + $0x38] sm:$0xff]
        %v394 = vld [vmem:[#allocation2 + $0x40] sm:$0xff]
        %v395 = vld [vmem:[#allocation2 + $0x48] sm:$0xff]
        %v396 = vld [vmem:[#allocation2 + $0x50] sm:$0xff]
        %v397 = vld [vmem:[#allocation2 + $0x58] sm:$0xff]
        %v398 = vld [vmem:[#allocation2 + $0x60] sm:$0x77]
        %v399 = vld [vmem:[#allocation2 + $0x68] sm:$0x77]
        %v400 = vld [vmem:[%s359 + $0x1] sm:$0xff]
        %v401 = vld [vmem:[%s359 + $0x9] sm:$0xff]
        %v402 = vld [vmem:[%s359 + $0x11] sm:$0xff]
        %v403 = vld [vmem:[%s359 + $0x19] sm:$0xff]
        %v404 = vld [vmem:[%s359 + $0x21] sm:$0xff]
        %v405 = vld [vmem:[%s359 + $0x29] sm:$0xff]
        %v406 = vld [vmem:[%s359 + $0x31] sm:$0xff]
        %v407 = vld [vmem:[%s359 + $0x39] sm:$0xff]
        %v408 = vld [vmem:[%s359 + $0x41] sm:$0xff]
        %v409 = vld [vmem:[%s359 + $0x49] sm:$0xff]
        %v410 = vld [vmem:[%s359 + $0x51] sm:$0xff]
        %v411 = vld [vmem:[%s359 + $0x59] sm:$0xff]
        %v412 = vld [vmem:[%s359 + $0x61] sm:$0xf]
        %v413 = vpack.c.bf16 %v401, %v400
        %v414 = vpack.c.bf16 %v403, %v402
        %v415 = vpack.c.bf16 %v405, %v404
        %v416 = vpack.c.bf16 %v407, %v406
        %v417 = vpack.c.bf16 %v409, %v408
        %v418 = vpack.c.bf16 %v411, %v410
        %v419 = vpack.c.bf16 %v412, %v412
        %s420 = scalar_lea.vmem [#allocation2], 112
        %v421 = vld [vmem:[%s420] sm:$0xff]
        %v422 = vld [vmem:[%s420 + $0x8] sm:$0xff]
        %v423 = vld [vmem:[%s420 + $0x10] sm:$0xff]
        %v424 = vld [vmem:[%s420 + $0x18] sm:$0xff]
        %v425 = vld [vmem:[%s420 + $0x20] sm:$0xff]
        %v426 = vld [vmem:[%s420 + $0x28] sm:$0xff]
        %v427 = vld [vmem:[%s420 + $0x30] sm:$0xff]
        %v428 = vld [vmem:[%s420 + $0x38] sm:$0xff]
        %v429 = vld [vmem:[%s420 + $0x40] sm:$0xff]
        %v430 = vld [vmem:[%s420 + $0x48] sm:$0xff]
        %v431 = vld [vmem:[%s420 + $0x50] sm:$0xff]
        %v432 = vld [vmem:[%s420 + $0x58] sm:$0xff]
        %v433 = vld [vmem:[%s420 + $0x60] sm:$0x77]
        %v434 = vld [vmem:[%s420 + $0x68] sm:$0x77]
        %v449 = vunpack.c.l.b16 %v421
        %v450 = vunpack.c.h.b16 %v421
        %v451 = vunpack.c.l.b16 %v422
        %v452 = vunpack.c.h.b16 %v422
        %v453 = vunpack.c.l.b16 %v423
        %v454 = vunpack.c.h.b16 %v423
        %v455 = vunpack.c.l.b16 %v424
        %v456 = vunpack.c.h.b16 %v424
        %v457 = vunpack.c.l.b16 %v425
        %v458 = vunpack.c.h.b16 %v425
        %v459 = vunpack.c.l.b16 %v426
        %v460 = vunpack.c.h.b16 %v426
        %v461 = vunpack.c.l.b16 %v427
        %v462 = vunpack.c.h.b16 %v427
        %v463 = vunpack.c.l.b16 %v428
        %v464 = vunpack.c.h.b16 %v428
        %v465 = vunpack.c.l.b16 %v429
        %v466 = vunpack.c.h.b16 %v429
        %v467 = vunpack.c.l.b16 %v430
        %v468 = vunpack.c.h.b16 %v430
        %v469 = vunpack.c.l.b16 %v431
        %v470 = vunpack.c.h.b16 %v431
        %v471 = vunpack.c.l.b16 %v432
        %v472 = vunpack.c.h.b16 %v432
        %v473 = vunpack.c.l.b16 %v433
        %v474 = vunpack.c.h.b16 %v433
        %v475 = vunpack.c.l.b16 %v434
        %v476 = vunpack.c.h.b16 %v434
        %v477 = vpack.c.b16 %v453, %v449
        %v478 = vpack.c.b16 %v454, %v450
        %v479 = vpack.c.b16 %v455, %v451
        %v480 = vpack.c.b16 %v456, %v452
        %v481 = vpack.c.b16 %v461, %v457
        %v482 = vpack.c.b16 %v462, %v458
        %v483 = vpack.c.b16 %v463, %v459
        %v484 = vpack.c.b16 %v464, %v460
        %v485 = vpack.c.b16 %v469, %v465
        %v486 = vpack.c.b16 %v470, %v466
        %v487 = vpack.c.b16 %v471, %v467
        %v488 = vpack.c.b16 %v472, %v468
        %v489 = vpack.c.b16 %v473, %v473
        %v490 = vpack.c.b16 %v474, %v474
        %v491 = vpack.c.b16 %v475, %v475
        %v492 = vpack.c.b16 %v476, %v476
        %vm505 = vcmask 441344
        %v507 = vsel %vm505, %v413, 0
        %v510 = vsel %vm505, %v414, 0
        %v513 = vsel %vm505, %v415, 0
        %v516 = vsel %vm505, %v416, 0
        %v519 = vsel %vm505, %v417, 0
        %v522 = vsel %vm505, %v418, 0
        %v525 = vsel %vm505, %v419, 0
        %vm527 = vcmask 1042432
        %v529 = vsel %vm527, %v489, 0
        %v532 = vsel %vm527, %v490, 0
        %v535 = vsel %vm527, %v491, 0
        %v538 = vsel %vm527, %v492, 0
        %540 = vmatprep.subr.bf16.mxu0 %v478
        %541 = vmatpush1.bf16.msra.mxu0 %v477
        %542 = vmatprep.subr.bf16.mxu0 %v482
        %543 = vmatpush1.bf16.msra.mxu0 %v481
        %544 = vmatprep.subr.bf16.mxu0 %v486
        %545 = vmatpush1.bf16.msra.mxu0 %v485
        %546 = vmatprep.subr.bf16.mxu0 %v532
        %547 = vmatpush1.bf16.msra.mxu0 %v529
        %548 = vmatprep.subr.bf16.mxu0 0
        %549 = vmatpush1.bf16.msra.mxu0 0
        %550 = vmatprep.subr.bf16.mxu0 0
        %551 = vmatpush1.bf16.msra.mxu0 0
        %552 = vmatprep.subr.bf16.mxu0 0
        %553 = vmatpush1.bf16.msra.mxu0 0
        %554 = vmatprep.subr.bf16.mxu0 0
        %555 = vmatpush1.bf16.msra.mxu0 0
        %556 = vmatprep.subr.bf16.mxu0 0
        %557 = vmatpush1.bf16.msra.mxu0 0
        %558 = vmatprep.subr.bf16.mxu0 0
        %559 = vmatpush1.bf16.msra.mxu0 0
        %560 = vmatprep.subr.bf16.mxu0 0
        %561 = vmatpush1.bf16.msra.mxu0 0
        %562 = vmatprep.subr.bf16.mxu0 0
        %563 = vmatpush1.bf16.msra.mxu0 0
        %564 = vmatprep.subr.bf16.mxu0 0
        %565 = vmatpush1.bf16.msra.mxu0 0
        %566 = vmatprep.subr.bf16.mxu0 0
        %567 = vmatpush1.bf16.msra.mxu0 0
        %568 = vmatprep.subr.bf16.mxu0 0
        %569 = vmatpush1.bf16.msra.mxu0 0
        %570 = vmatprep.subr.bf16.mxu0 0
        %571 = vmatpush1.bf16.msra.mxu0 0
        %572 = vmatprep.mubr.bf16.mxu0 0
        %573 = vmatmul.mubr.bf16.gmra.mrb[0].mxu0 %v507
        %v574 = vpop.f32.mrb[0].mxu0
        %v575 = vadd.f32 0.0, %v574
        %v576 = vpop.f32.mrb[0].mxu0
        %v577 = vadd.f32 0.0, %v576
        %v578 = vpop.f32.mrb[0].mxu0
        %v579 = vadd.f32 0.0, %v578
        %v580 = vpop.f32.mrb[0].mxu0
        %v581 = vadd.f32 0.0, %v580
        %582 = vmatprep.mubr.bf16.mxu0 0
        %583 = vmatmul.mubr.bf16.gmra.mrb[0].mxu0 %v510
        %v584 = vpop.f32.mrb[0].mxu0
        %v585 = vadd.f32 0.0, %v584
        %v586 = vpop.f32.mrb[0].mxu0
        %v587 = vadd.f32 0.0, %v586
        %v588 = vpop.f32.mrb[0].mxu0
        %v589 = vadd.f32 0.0, %v588
        %v590 = vpop.f32.mrb[0].mxu0
        %v591 = vadd.f32 0.0, %v590
        %592 = vmatprep.mubr.bf16.mxu0 0
        %593 = vmatmul.mubr.bf16.gmra.mrb[0].mxu0 %v513
        %v594 = vpop.f32.mrb[0].mxu0
        %v595 = vadd.f32 0.0, %v594
        %v596 = vpop.f32.mrb[0].mxu0
        %v597 = vadd.f32 0.0, %v596
        %v598 = vpop.f32.mrb[0].mxu0
        %v599 = vadd.f32 0.0, %v598
        %v600 = vpop.f32.mrb[0].mxu0
        %v601 = vadd.f32 0.0, %v600
        %602 = vmatprep.mubr.bf16.mxu0 0
        %603 = vmatmul.mubr.bf16.gmra.mrb[0].mxu0 %v516
        %v604 = vpop.f32.mrb[0].mxu0
        %v605 = vadd.f32 0.0, %v604
        %v606 = vpop.f32.mrb[0].mxu0
        %v607 = vadd.f32 0.0, %v606
        %v608 = vpop.f32.mrb[0].mxu0
        %v609 = vadd.f32 0.0, %v608
        %v610 = vpop.f32.mrb[0].mxu0
        %v611 = vadd.f32 0.0, %v610
        %612 = vmatprep.mubr.bf16.mxu0 0
        %613 = vmatmul.mubr.bf16.gmra.mrb[0].mxu0 %v519
        %v614 = vpop.f32.mrb[0].mxu0
        %v615 = vadd.f32 0.0, %v614
        %v616 = vpop.f32.mrb[0].mxu0
        %v617 = vadd.f32 0.0, %v616
        %v618 = vpop.f32.mrb[0].mxu0
        %v619 = vadd.f32 0.0, %v618
        %v620 = vpop.f32.mrb[0].mxu0
        %v621 = vadd.f32 0.0, %v620
        %622 = vmatprep.mubr.bf16.mxu0 0
        %623 = vmatmul.mubr.bf16.gmra.mrb[0].mxu0 %v522
        %v624 = vpop.f32.mrb[0].mxu0
        %v625 = vadd.f32 0.0, %v624
        %v626 = vpop.f32.mrb[0].mxu0
        %v627 = vadd.f32 0.0, %v626
        %v628 = vpop.f32.mrb[0].mxu0
        %v629 = vadd.f32 0.0, %v628
        %v630 = vpop.f32.mrb[0].mxu0
        %v631 = vadd.f32 0.0, %v630
        %632 = vmatprep.mubr.bf16.mxu0 0
        %633 = vmatmul.mubr.bf16.gmra.mrb[0].mxu0 %v525
        %v634 = vpop.f32.mrb[0].mxu0
        %v635 = vadd.f32 0.0, %v634
        %v636 = vpop.f32.mrb[0].mxu0
        %v637 = vadd.f32 0.0, %v636
        %v638 = vpop.f32.mrb[0].mxu0
        %v639 = vpop.f32.mrb[0].mxu0
        %640 = vdwg.mxu0
        %641 = vmatprep.subr.bf16.mxu0 %v480
        %642 = vmatpush1.bf16.msra.mxu0 %v479
        %643 = vmatprep.subr.bf16.mxu0 %v484
        %644 = vmatpush1.bf16.msra.mxu0 %v483
        %645 = vmatprep.subr.bf16.mxu0 %v488
        %646 = vmatpush1.bf16.msra.mxu0 %v487
        %647 = vmatprep.subr.bf16.mxu0 %v538
        %648 = vmatpush1.bf16.msra.mxu0 %v535
        %649 = vmatprep.subr.bf16.mxu0 0
        %650 = vmatpush1.bf16.msra.mxu0 0
        %651 = vmatprep.subr.bf16.mxu0 0
        %652 = vmatpush1.bf16.msra.mxu0 0
        %653 = vmatprep.subr.bf16.mxu0 0
        %654 = vmatpush1.bf16.msra.mxu0 0
        %655 = vmatprep.subr.bf16.mxu0 0
        %656 = vmatpush1.bf16.msra.mxu0 0
        %657 = vmatprep.subr.bf16.mxu0 0
        %658 = vmatpush1.bf16.msra.mxu0 0
        %659 = vmatprep.subr.bf16.mxu0 0
        %660 = vmatpush1.bf16.msra.mxu0 0
        %661 = vmatprep.subr.bf16.mxu0 0
        %662 = vmatpush1.bf16.msra.mxu0 0
        %663 = vmatprep.subr.bf16.mxu0 0
        %664 = vmatpush1.bf16.msra.mxu0 0
        %665 = vmatprep.subr.bf16.mxu0 0
        %666 = vmatpush1.bf16.msra.mxu0 0
        %667 = vmatprep.subr.bf16.mxu0 0
        %668 = vmatpush1.bf16.msra.mxu0 0
        %669 = vmatprep.subr.bf16.mxu0 0
        %670 = vmatpush1.bf16.msra.mxu0 0
        %671 = vmatprep.subr.bf16.mxu0 0
        %672 = vmatpush1.bf16.msra.mxu0 0
        %673 = vmatprep.mubr.bf16.mxu0 0
        %674 = vmatmul.mubr.bf16.gmra.mrb[0].mxu0 %v507
        %v675 = vpop.f32.mrb[0].mxu0
        %v676 = vadd.f32 0.0, %v675
        %v677 = vpop.f32.mrb[0].mxu0
        %v678 = vadd.f32 0.0, %v677
        %v679 = vpop.f32.mrb[0].mxu0
        %v680 = vadd.f32 0.0, %v679
        %v681 = vpop.f32.mrb[0].mxu0
        %v682 = vadd.f32 0.0, %v681
        %683 = vmatprep.mubr.bf16.mxu0 0
        %684 = vmatmul.mubr.bf16.gmra.mrb[0].mxu0 %v510
        %v685 = vpop.f32.mrb[0].mxu0
        %v686 = vadd.f32 0.0, %v685
        %v687 = vpop.f32.mrb[0].mxu0
        %v688 = vadd.f32 0.0, %v687
        %v689 = vpop.f32.mrb[0].mxu0
        %v690 = vadd.f32 0.0, %v689
        %v691 = vpop.f32.mrb[0].mxu0
        %v692 = vadd.f32 0.0, %v691
        %693 = vmatprep.mubr.bf16.mxu0 0
        %694 = vmatmul.mubr.bf16.gmra.mrb[0].mxu0 %v513
        %v695 = vpop.f32.mrb[0].mxu0
        %v696 = vadd.f32 0.0, %v695
        %v697 = vpop.f32.mrb[0].mxu0
        %v698 = vadd.f32 0.0, %v697
        %v699 = vpop.f32.mrb[0].mxu0
        %v700 = vadd.f32 0.0, %v699
        %v701 = vpop.f32.mrb[0].mxu0
        %v702 = vadd.f32 0.0, %v701
        %703 = vmatprep.mubr.bf16.mxu0 0
        %704 = vmatmul.mubr.bf16.gmra.mrb[0].mxu0 %v516
        %v705 = vpop.f32.mrb[0].mxu0
        %v706 = vadd.f32 0.0, %v705
        %v707 = vpop.f32.mrb[0].mxu0
        %v708 = vadd.f32 0.0, %v707
        %v709 = vpop.f32.mrb[0].mxu0
        %v710 = vadd.f32 0.0, %v709
        %v711 = vpop.f32.mrb[0].mxu0
        %v712 = vadd.f32 0.0, %v711
        %713 = vmatprep.mubr.bf16.mxu0 0
        %714 = vmatmul.mubr.bf16.gmra.mrb[0].mxu0 %v519
        %v715 = vpop.f32.mrb[0].mxu0
        %v716 = vadd.f32 0.0, %v715
        %v717 = vpop.f32.mrb[0].mxu0
        %v718 = vadd.f32 0.0, %v717
        %v719 = vpop.f32.mrb[0].mxu0
        %v720 = vadd.f32 0.0, %v719
        %v721 = vpop.f32.mrb[0].mxu0
        %v722 = vadd.f32 0.0, %v721
        %723 = vmatprep.mubr.bf16.mxu0 0
        %724 = vmatmul.mubr.bf16.gmra.mrb[0].mxu0 %v522
        %v725 = vpop.f32.mrb[0].mxu0
        %v726 = vadd.f32 0.0, %v725
        %v727 = vpop.f32.mrb[0].mxu0
        %v728 = vadd.f32 0.0, %v727
        %v729 = vpop.f32.mrb[0].mxu0
        %v730 = vadd.f32 0.0, %v729
        %v731 = vpop.f32.mrb[0].mxu0
        %v732 = vadd.f32 0.0, %v731
        %733 = vmatprep.mubr.bf16.mxu0 0
        %734 = vmatmul.mubr.bf16.gmra.mrb[0].mxu0 %v525
        %v735 = vpop.f32.mrb[0].mxu0
        %v736 = vadd.f32 0.0, %v735
        %v737 = vpop.f32.mrb[0].mxu0
        %v738 = vadd.f32 0.0, %v737
        %v739 = vpop.f32.mrb[0].mxu0
        %v740 = vpop.f32.mrb[0].mxu0
        %741 = vdwg.mxu0
        %v756 = vunpack.c.l.b16 %v386
        %v757 = vunpack.c.h.b16 %v386
        %v758 = vunpack.c.l.b16 %v387
        %v759 = vunpack.c.h.b16 %v387
        %v760 = vunpack.c.l.b16 %v388
        %v761 = vunpack.c.h.b16 %v388
        %v762 = vunpack.c.l.b16 %v389
        %v763 = vunpack.c.h.b16 %v389
        %v764 = vunpack.c.l.b16 %v390
        %v765 = vunpack.c.h.b16 %v390
        %v766 = vunpack.c.l.b16 %v391
        %v767 = vunpack.c.h.b16 %v391
        %v768 = vunpack.c.l.b16 %v392
        %v769 = vunpack.c.h.b16 %v392
        %v770 = vunpack.c.l.b16 %v393
        %v771 = vunpack.c.h.b16 %v393
        %v772 = vunpack.c.l.b16 %v394
        %v773 = vunpack.c.h.b16 %v394
        %v774 = vunpack.c.l.b16 %v395
        %v775 = vunpack.c.h.b16 %v395
        %v776 = vunpack.c.l.b16 %v396
        %v777 = vunpack.c.h.b16 %v396
        %v778 = vunpack.c.l.b16 %v397
        %v779 = vunpack.c.h.b16 %v397
        %v780 = vunpack.c.l.b16 %v398
        %v781 = vunpack.c.h.b16 %v398
        %v782 = vunpack.c.l.b16 %v399
        %v783 = vunpack.c.h.b16 %v399
        %v784 = vpack.c.b16 %v760, %v756
        %v785 = vpack.c.b16 %v761, %v757
        %v786 = vpack.c.b16 %v762, %v758
        %v787 = vpack.c.b16 %v763, %v759
        %v788 = vpack.c.b16 %v768, %v764
        %v789 = vpack.c.b16 %v769, %v765
        %v790 = vpack.c.b16 %v770, %v766
        %v791 = vpack.c.b16 %v771, %v767
        %v792 = vpack.c.b16 %v776, %v772
        %v793 = vpack.c.b16 %v777, %v773
        %v794 = vpack.c.b16 %v778, %v774
        %v795 = vpack.c.b16 %v779, %v775
        %v796 = vpack.c.b16 %v780, %v780
        %v797 = vpack.c.b16 %v781, %v781
        %v798 = vpack.c.b16 %v782, %v782
        %v799 = vpack.c.b16 %v783, %v783
        %v813 = vsel %vm505, %v379, 0
        %v816 = vsel %vm505, %v380, 0
        %v819 = vsel %vm505, %v381, 0
        %v822 = vsel %vm505, %v382, 0
        %v825 = vsel %vm505, %v383, 0
        %v828 = vsel %vm505, %v384, 0
        %v831 = vsel %vm505, %v385, 0
        %v834 = vsel %vm527, %v796, 0
        %v837 = vsel %vm527, %v797, 0
        %v840 = vsel %vm527, %v798, 0
        %v843 = vsel %vm527, %v799, 0
        %845 = vmatprep.subr.bf16.mxu0 %v785
        %846 = vmatpush1.bf16.msra.mxu0 %v784
        %847 = vmatprep.subr.bf16.mxu0 %v789
        %848 = vmatpush1.bf16.msra.mxu0 %v788
        %849 = vmatprep.subr.bf16.mxu0 %v793
        %850 = vmatpush1.bf16.msra.mxu0 %v792
        %851 = vmatprep.subr.bf16.mxu0 %v837
        %852 = vmatpush1.bf16.msra.mxu0 %v834
        %853 = vmatprep.subr.bf16.mxu0 0
        %854 = vmatpush1.bf16.msra.mxu0 0
        %855 = vmatprep.subr.bf16.mxu0 0
        %856 = vmatpush1.bf16.msra.mxu0 0
        %857 = vmatprep.subr.bf16.mxu0 0
        %858 = vmatpush1.bf16.msra.mxu0 0
        %859 = vmatprep.subr.bf16.mxu0 0
        %860 = vmatpush1.bf16.msra.mxu0 0
        %861 = vmatprep.subr.bf16.mxu0 0
        %862 = vmatpush1.bf16.msra.mxu0 0
        %863 = vmatprep.subr.bf16.mxu0 0
        %864 = vmatpush1.bf16.msra.mxu0 0
        %865 = vmatprep.subr.bf16.mxu0 0
        %866 = vmatpush1.bf16.msra.mxu0 0
        %867 = vmatprep.subr.bf16.mxu0 0
        %868 = vmatpush1.bf16.msra.mxu0 0
        %869 = vmatprep.subr.bf16.mxu0 0
        %870 = vmatpush1.bf16.msra.mxu0 0
        %871 = vmatprep.subr.bf16.mxu0 0
        %872 = vmatpush1.bf16.msra.mxu0 0
        %873 = vmatprep.subr.bf16.mxu0 0
        %874 = vmatpush1.bf16.msra.mxu0 0
        %875 = vmatprep.subr.bf16.mxu0 0
        %876 = vmatpush1.bf16.msra.mxu0 0
        %877 = vmatprep.mubr.bf16.mxu0 0
        %878 = vmatmul.mubr.bf16.gmra.mrb[0].mxu0 %v813
        %v879 = vpop.f32.mrb[0].mxu0
        %v880 = vadd.f32 %v575, %v879
        %v881 = vpop.f32.mrb[0].mxu0
        %v882 = vadd.f32 %v577, %v881
        %v883 = vpop.f32.mrb[0].mxu0
        %v884 = vadd.f32 %v579, %v883
        %v885 = vpop.f32.mrb[0].mxu0
        %v886 = vadd.f32 %v581, %v885
        %887 = vmatprep.mubr.bf16.mxu0 0
        %888 = vmatmul.mubr.bf16.gmra.mrb[0].mxu0 %v816
        %v889 = vpop.f32.mrb[0].mxu0
        %v890 = vadd.f32 %v585, %v889
        %v891 = vpop.f32.mrb[0].mxu0
        %v892 = vadd.f32 %v587, %v891
        %v893 = vpop.f32.mrb[0].mxu0
        %v894 = vadd.f32 %v589, %v893
        %v895 = vpop.f32.mrb[0].mxu0
        %v896 = vadd.f32 %v591, %v895
        %897 = vmatprep.mubr.bf16.mxu0 0
        %898 = vmatmul.mubr.bf16.gmra.mrb[0].mxu0 %v819
        %v899 = vpop.f32.mrb[0].mxu0
        %v900 = vadd.f32 %v595, %v899
        %v901 = vpop.f32.mrb[0].mxu0
        %v902 = vadd.f32 %v597, %v901
        %v903 = vpop.f32.mrb[0].mxu0
        %v904 = vadd.f32 %v599, %v903
        %v905 = vpop.f32.mrb[0].mxu0
        %v906 = vadd.f32 %v601, %v905
        %907 = vmatprep.mubr.bf16.mxu0 0
        %908 = vmatmul.mubr.bf16.gmra.mrb[0].mxu0 %v822
        %v909 = vpop.f32.mrb[0].mxu0
        %v910 = vadd.f32 %v605, %v909
        %v911 = vpop.f32.mrb[0].mxu0
        %v912 = vadd.f32 %v607, %v911
        %v913 = vpop.f32.mrb[0].mxu0
        %v914 = vadd.f32 %v609, %v913
        %v915 = vpop.f32.mrb[0].mxu0
        %v916 = vadd.f32 %v611, %v915
        %917 = vmatprep.mubr.bf16.mxu0 0
        %918 = vmatmul.mubr.bf16.gmra.mrb[0].mxu0 %v825
        %v919 = vpop.f32.mrb[0].mxu0
        %v920 = vadd.f32 %v615, %v919
        %v921 = vpop.f32.mrb[0].mxu0
        %v922 = vadd.f32 %v617, %v921
        %v923 = vpop.f32.mrb[0].mxu0
        %v924 = vadd.f32 %v619, %v923
        %v925 = vpop.f32.mrb[0].mxu0
        %v926 = vadd.f32 %v621, %v925
        %927 = vmatprep.mubr.bf16.mxu0 0
        %928 = vmatmul.mubr.bf16.gmra.mrb[0].mxu0 %v828
        %v929 = vpop.f32.mrb[0].mxu0
        %v930 = vadd.f32 %v625, %v929
        %v931 = vpop.f32.mrb[0].mxu0
        %v932 = vadd.f32 %v627, %v931
        %v933 = vpop.f32.mrb[0].mxu0
        %v934 = vadd.f32 %v629, %v933
        %v935 = vpop.f32.mrb[0].mxu0
        %v936 = vadd.f32 %v631, %v935
        %937 = vmatprep.mubr.bf16.mxu0 0
        %938 = vmatmul.mubr.bf16.gmra.mrb[0].mxu0 %v831
        %v939 = vpop.f32.mrb[0].mxu0
        %v940 = vadd.f32 %v635, %v939
        %v941 = vpop.f32.mrb[0].mxu0
        %v942 = vadd.f32 %v637, %v941
        %v943 = vpop.f32.mrb[0].mxu0
        %v944 = vpop.f32.mrb[0].mxu0
        %945 = vdwg.mxu0
        %946 = vmatprep.subr.bf16.mxu0 %v787
        %947 = vmatpush1.bf16.msra.mxu0 %v786
        %948 = vmatprep.subr.bf16.mxu0 %v791
        %949 = vmatpush1.bf16.msra.mxu0 %v790
        %950 = vmatprep.subr.bf16.mxu0 %v795
        %951 = vmatpush1.bf16.msra.mxu0 %v794
        %952 = vmatprep.subr.bf16.mxu0 %v843
        %953 = vmatpush1.bf16.msra.mxu0 %v840
        %954 = vmatprep.subr.bf16.mxu0 0
        %955 = vmatpush1.bf16.msra.mxu0 0
        %956 = vmatprep.subr.bf16.mxu0 0
        %957 = vmatpush1.bf16.msra.mxu0 0
        %958 = vmatprep.subr.bf16.mxu0 0
        %959 = vmatpush1.bf16.msra.mxu0 0
        %960 = vmatprep.subr.bf16.mxu0 0
        %961 = vmatpush1.bf16.msra.mxu0 0
        %962 = vmatprep.subr.bf16.mxu0 0
        %963 = vmatpush1.bf16.msra.mxu0 0
        %964 = vmatprep.subr.bf16.mxu0 0
        %965 = vmatpush1.bf16.msra.mxu0 0
        %966 = vmatprep.subr.bf16.mxu0 0
        %967 = vmatpush1.bf16.msra.mxu0 0
        %968 = vmatprep.subr.bf16.mxu0 0
        %969 = vmatpush1.bf16.msra.mxu0 0
        %970 = vmatprep.subr.bf16.mxu0 0
        %971 = vmatpush1.bf16.msra.mxu0 0
        %972 = vmatprep.subr.bf16.mxu0 0
        %973 = vmatpush1.bf16.msra.mxu0 0
        %974 = vmatprep.subr.bf16.mxu0 0
        %975 = vmatpush1.bf16.msra.mxu0 0
        %976 = vmatprep.subr.bf16.mxu0 0
        %977 = vmatpush1.bf16.msra.mxu0 0
        %978 = vmatprep.mubr.bf16.mxu0 0
        %979 = vmatmul.mubr.bf16.gmra.mrb[0].mxu0 %v813
        %v980 = vpop.f32.mrb[0].mxu0
        %v981 = vadd.f32 %v676, %v980
        %v982 = vpop.f32.mrb[0].mxu0
        %v983 = vadd.f32 %v678, %v982
        %v984 = vpop.f32.mrb[0].mxu0
        %v985 = vadd.f32 %v680, %v984
        %v986 = vpop.f32.mrb[0].mxu0
        %v987 = vadd.f32 %v682, %v986
        %988 = vmatprep.mubr.bf16.mxu0 0
        %989 = vmatmul.mubr.bf16.gmra.mrb[0].mxu0 %v816
        %v990 = vpop.f32.mrb[0].mxu0
        %v991 = vadd.f32 %v686, %v990
        %v992 = vpop.f32.mrb[0].mxu0
        %v993 = vadd.f32 %v688, %v992
        %v994 = vpop.f32.mrb[0].mxu0
        %v995 = vadd.f32 %v690, %v994
        %v996 = vpop.f32.mrb[0].mxu0
        %v997 = vadd.f32 %v692, %v996
        %998 = vmatprep.mubr.bf16.mxu0 0
        %999 = vmatmul.mubr.bf16.gmra.mrb[0].mxu0 %v819
        %v1000 = vpop.f32.mrb[0].mxu0
        %v1001 = vadd.f32 %v696, %v1000
        %v1002 = vpop.f32.mrb[0].mxu0
        %v1003 = vadd.f32 %v698, %v1002
        %v1004 = vpop.f32.mrb[0].mxu0
        %v1005 = vadd.f32 %v700, %v1004
        %v1006 = vpop.f32.mrb[0].mxu0
        %v1007 = vadd.f32 %v702, %v1006
        %1008 = vmatprep.mubr.bf16.mxu0 0
        %1009 = vmatmul.mubr.bf16.gmra.mrb[0].mxu0 %v822
        %v1010 = vpop.f32.mrb[0].mxu0
        %v1011 = vadd.f32 %v706, %v1010
        %v1012 = vpop.f32.mrb[0].mxu0
        %v1013 = vadd.f32 %v708, %v1012
        %v1014 = vpop.f32.mrb[0].mxu0
        %v1015 = vadd.f32 %v710, %v1014
        %v1016 = vpop.f32.mrb[0].mxu0
        %v1017 = vadd.f32 %v712, %v1016
        %1018 = vmatprep.mubr.bf16.mxu0 0
        %1019 = vmatmul.mubr.bf16.gmra.mrb[0].mxu0 %v825
        %v1020 = vpop.f32.mrb[0].mxu0
        %v1021 = vadd.f32 %v716, %v1020
        %v1022 = vpop.f32.mrb[0].mxu0
        %v1023 = vadd.f32 %v718, %v1022
        %v1024 = vpop.f32.mrb[0].mxu0
        %v1025 = vadd.f32 %v720, %v1024
        %v1026 = vpop.f32.mrb[0].mxu0
        %v1027 = vadd.f32 %v722, %v1026
        %1028 = vmatprep.mubr.bf16.mxu0 0
        %1029 = vmatmul.mubr.bf16.gmra.mrb[0].mxu0 %v828
        %v1030 = vpop.f32.mrb[0].mxu0
        %v1031 = vadd.f32 %v726, %v1030
        %v1032 = vpop.f32.mrb[0].mxu0
        %v1033 = vadd.f32 %v728, %v1032
        %v1034 = vpop.f32.mrb[0].mxu0
        %v1035 = vadd.f32 %v730, %v1034
        %v1036 = vpop.f32.mrb[0].mxu0
        %v1037 = vadd.f32 %v732, %v1036
        %1038 = vmatprep.mubr.bf16.mxu0 0
        %1039 = vmatmul.mubr.bf16.gmra.mrb[0].mxu0 %v831
        %v1040 = vpop.f32.mrb[0].mxu0
        %v1041 = vadd.f32 %v736, %v1040
        %v1042 = vpop.f32.mrb[0].mxu0
        %v1043 = vadd.f32 %v738, %v1042
        %v1044 = vpop.f32.mrb[0].mxu0
        %v1045 = vpop.f32.mrb[0].mxu0
        %1046 = vdwg.mxu0
        %v1047 = vld [vmem:[%s359 + $0x2] sm:$0xff]
        %v1048 = vld [vmem:[%s359 + $0xa] sm:$0xff]
        %v1049 = vld [vmem:[%s359 + $0x12] sm:$0xff]
        %v1050 = vld [vmem:[%s359 + $0x1a] sm:$0xff]
        %v1051 = vld [vmem:[%s359 + $0x22] sm:$0xff]
        %v1052 = vld [vmem:[%s359 + $0x2a] sm:$0xff]
        %v1053 = vld [vmem:[%s359 + $0x32] sm:$0xff]
        %v1054 = vld [vmem:[%s359 + $0x3a] sm:$0xff]
        %v1055 = vld [vmem:[%s359 + $0x42] sm:$0xff]
        %v1056 = vld [vmem:[%s359 + $0x4a] sm:$0xff]
        %v1057 = vld [vmem:[%s359 + $0x52] sm:$0xff]
        %v1058 = vld [vmem:[%s359 + $0x5a] sm:$0xff]
        %v1059 = vld [vmem:[%s359 + $0x62] sm:$0xf]
        %v1060 = vpack.c.bf16 %v1048, %v1047
        %v1061 = vpack.c.bf16 %v1050, %v1049
        %v1062 = vpack.c.bf16 %v1052, %v1051
        %v1063 = vpack.c.bf16 %v1054, %v1053
        %v1064 = vpack.c.bf16 %v1056, %v1055
        %v1065 = vpack.c.bf16 %v1058, %v1057
        %v1066 = vpack.c.bf16 %v1059, %v1059
        %s1067 = scalar_lea.vmem [#allocation2], 224
        %v1068 = vld [vmem:[%s1067] sm:$0xff]
        %v1069 = vld [vmem:[%s1067 + $0x8] sm:$0xff]
        %v1070 = vld [vmem:[%s1067 + $0x10] sm:$0xff]
        %v1071 = vld [vmem:[%s1067 + $0x18] sm:$0xff]
        %v1072 = vld [vmem:[%s1067 + $0x20] sm:$0xff]
        %v1073 = vld [vmem:[%s1067 + $0x28] sm:$0xff]
        %v1074 = vld [vmem:[%s1067 + $0x30] sm:$0xff]
        %v1075 = vld [vmem:[%s1067 + $0x38] sm:$0xff]
        %v1076 = vld [vmem:[%s1067 + $0x40] sm:$0xff]
        %v1077 = vld [vmem:[%s1067 + $0x48] sm:$0xff]
        %v1078 = vld [vmem:[%s1067 + $0x50] sm:$0xff]
        %v1079 = vld [vmem:[%s1067 + $0x58] sm:$0xff]
        %v1080 = vld [vmem:[%s1067 + $0x60] sm:$0x77]
        %v1081 = vld [vmem:[%s1067 + $0x68] sm:$0x77]
        %v1096 = vunpack.c.l.b16 %v1068
        %v1097 = vunpack.c.h.b16 %v1068
        %v1098 = vunpack.c.l.b16 %v1069
        %v1099 = vunpack.c.h.b16 %v1069
        %v1100 = vunpack.c.l.b16 %v1070
        %v1101 = vunpack.c.h.b16 %v1070
        %v1102 = vunpack.c.l.b16 %v1071
        %v1103 = vunpack.c.h.b16 %v1071
        %v1104 = vunpack.c.l.b16 %v1072
        %v1105 = vunpack.c.h.b16 %v1072
        %v1106 = vunpack.c.l.b16 %v1073
        %v1107 = vunpack.c.h.b16 %v1073
        %v1108 = vunpack.c.l.b16 %v1074
        %v1109 = vunpack.c.h.b16 %v1074
        %v1110 = vunpack.c.l.b16 %v1075
        %v1111 = vunpack.c.h.b16 %v1075
        %v1112 = vunpack.c.l.b16 %v1076
        %v1113 = vunpack.c.h.b16 %v1076
        %v1114 = vunpack.c.l.b16 %v1077
        %v1115 = vunpack.c.h.b16 %v1077
        %v1116 = vunpack.c.l.b16 %v1078
        %v1117 = vunpack.c.h.b16 %v1078
        %v1118 = vunpack.c.l.b16 %v1079
        %v1119 = vunpack.c.h.b16 %v1079
        %v1120 = vunpack.c.l.b16 %v1080
        %v1121 = vunpack.c.h.b16 %v1080
        %v1122 = vunpack.c.l.b16 %v1081
        %v1123 = vunpack.c.h.b16 %v1081
        %v1124 = vpack.c.b16 %v1100, %v1096
        %v1125 = vpack.c.b16 %v1101, %v1097
        %v1126 = vpack.c.b16 %v1102, %v1098
        %v1127 = vpack.c.b16 %v1103, %v1099
        %v1128 = vpack.c.b16 %v1108, %v1104
        %v1129 = vpack.c.b16 %v1109, %v1105
        %v1130 = vpack.c.b16 %v1110, %v1106
        %v1131 = vpack.c.b16 %v1111, %v1107
        %v1132 = vpack.c.b16 %v1116, %v1112
        %v1133 = vpack.c.b16 %v1117, %v1113
        %v1134 = vpack.c.b16 %v1118, %v1114
        %v1135 = vpack.c.b16 %v1119, %v1115
        %v1136 = vpack.c.b16 %v1120, %v1120
        %v1137 = vpack.c.b16 %v1121, %v1121
        %v1138 = vpack.c.b16 %v1122, %v1122
        %v1139 = vpack.c.b16 %v1123, %v1123
        %v1153 = vsel %vm505, %v1060, 0
        %v1156 = vsel %vm505, %v1061, 0
        %v1159 = vsel %vm505, %v1062, 0
        %v1162 = vsel %vm505, %v1063, 0
        %v1165 = vsel %vm505, %v1064, 0
        %v1168 = vsel %vm505, %v1065, 0
        %v1171 = vsel %vm505, %v1066, 0
        %v1174 = vsel %vm527, %v1136, 0
        %v1177 = vsel %vm527, %v1137, 0
        %v1180 = vsel %vm527, %v1138, 0
        %v1183 = vsel %vm527, %v1139, 0
        %1185 = vmatprep.subr.bf16.mxu0 %v1125
        %1186 = vmatpush1.bf16.msra.mxu0 %v1124
        %1187 = vmatprep.subr.bf16.mxu0 %v1129
        %1188 = vmatpush1.bf16.msra.mxu0 %v1128
        %1189 = vmatprep.subr.bf16.mxu0 %v1133
        %1190 = vmatpush1.bf16.msra.mxu0 %v1132
        %1191 = vmatprep.subr.bf16.mxu0 %v1177
        %1192 = vmatpush1.bf16.msra.mxu0 %v1174
        %1193 = vmatprep.subr.bf16.mxu0 0
        %1194 = vmatpush1.bf16.msra.mxu0 0
        %1195 = vmatprep.subr.bf16.mxu0 0
        %1196 = vmatpush1.bf16.msra.mxu0 0
        %1197 = vmatprep.subr.bf16.mxu0 0
        %1198 = vmatpush1.bf16.msra.mxu0 0
        %1199 = vmatprep.subr.bf16.mxu0 0
        %1200 = vmatpush1.bf16.msra.mxu0 0
        %1201 = vmatprep.subr.bf16.mxu0 0
        %1202 = vmatpush1.bf16.msra.mxu0 0
        %1203 = vmatprep.subr.bf16.mxu0 0
        %1204 = vmatpush1.bf16.msra.mxu0 0
        %1205 = vmatprep.subr.bf16.mxu0 0
        %1206 = vmatpush1.bf16.msra.mxu0 0
        %1207 = vmatprep.subr.bf16.mxu0 0
        %1208 = vmatpush1.bf16.msra.mxu0 0
        %1209 = vmatprep.subr.bf16.mxu0 0
        %1210 = vmatpush1.bf16.msra.mxu0 0
        %1211 = vmatprep.subr.bf16.mxu0 0
        %1212 = vmatpush1.bf16.msra.mxu0 0
        %1213 = vmatprep.subr.bf16.mxu0 0
        %1214 = vmatpush1.bf16.msra.mxu0 0
        %1215 = vmatprep.subr.bf16.mxu0 0
        %1216 = vmatpush1.bf16.msra.mxu0 0
        %1217 = vmatprep.mubr.bf16.mxu0 0
        %1218 = vmatmul.mubr.bf16.gmra.mrb[0].mxu0 %v1153
        %v1219 = vpop.f32.mrb[0].mxu0
        %v1220 = vadd.f32 0.0, %v1219
        %v1221 = vpop.f32.mrb[0].mxu0
        %v1222 = vadd.f32 0.0, %v1221
        %v1223 = vpop.f32.mrb[0].mxu0
        %v1224 = vadd.f32 0.0, %v1223
        %v1225 = vpop.f32.mrb[0].mxu0
        %v1226 = vadd.f32 0.0, %v1225
        %1227 = vmatprep.mubr.bf16.mxu0 0
        %1228 = vmatmul.mubr.bf16.gmra.mrb[0].mxu0 %v1156
        %v1229 = vpop.f32.mrb[0].mxu0
        %v1230 = vadd.f32 0.0, %v1229
        %v1231 = vpop.f32.mrb[0].mxu0
        %v1232 = vadd.f32 0.0, %v1231
        %v1233 = vpop.f32.mrb[0].mxu0
        %v1234 = vadd.f32 0.0, %v1233
        %v1235 = vpop.f32.mrb[0].mxu0
        %v1236 = vadd.f32 0.0, %v1235
        %1237 = vmatprep.mubr.bf16.mxu0 0
        %1238 = vmatmul.mubr.bf16.gmra.mrb[0].mxu0 %v1159
        %v1239 = vpop.f32.mrb[0].mxu0
        %v1240 = vadd.f32 0.0, %v1239
        %v1241 = vpop.f32.mrb[0].mxu0
        %v1242 = vadd.f32 0.0, %v1241
        %v1243 = vpop.f32.mrb[0].mxu0
        %v1244 = vadd.f32 0.0, %v1243
        %v1245 = vpop.f32.mrb[0].mxu0
        %v1246 = vadd.f32 0.0, %v1245
        %1247 = vmatprep.mubr.bf16.mxu0 0
        %1248 = vmatmul.mubr.bf16.gmra.mrb[0].mxu0 %v1162
        %v1249 = vpop.f32.mrb[0].mxu0
        %v1250 = vadd.f32 0.0, %v1249
        %v1251 = vpop.f32.mrb[0].mxu0
        %v1252 = vadd.f32 0.0, %v1251
        %v1253 = vpop.f32.mrb[0].mxu0
        %v1254 = vadd.f32 0.0, %v1253
        %v1255 = vpop.f32.mrb[0].mxu0
        %v1256 = vadd.f32 0.0, %v1255
        %1257 = vmatprep.mubr.bf16.mxu0 0
        %1258 = vmatmul.mubr.bf16.gmra.mrb[0].mxu0 %v1165
        %v1259 = vpop.f32.mrb[0].mxu0
        %v1260 = vadd.f32 0.0, %v1259
        %v1261 = vpop.f32.mrb[0].mxu0
        %v1262 = vadd.f32 0.0, %v1261
        %v1263 = vpop.f32.mrb[0].mxu0
        %v1264 = vadd.f32 0.0, %v1263
        %v1265 = vpop.f32.mrb[0].mxu0
        %v1266 = vadd.f32 0.0, %v1265
        %1267 = vmatprep.mubr.bf16.mxu0 0
        %1268 = vmatmul.mubr.bf16.gmra.mrb[0].mxu0 %v1168
        %v1269 = vpop.f32.mrb[0].mxu0
        %v1270 = vadd.f32 0.0, %v1269
        %v1271 = vpop.f32.mrb[0].mxu0
        %v1272 = vadd.f32 0.0, %v1271
        %v1273 = vpop.f32.mrb[0].mxu0
        %v1274 = vadd.f32 0.0, %v1273
        %v1275 = vpop.f32.mrb[0].mxu0
        %v1276 = vadd.f32 0.0, %v1275
        %1277 = vmatprep.mubr.bf16.mxu0 0
        %1278 = vmatmul.mubr.bf16.gmra.mrb[0].mxu0 %v1171
        %v1279 = vpop.f32.mrb[0].mxu0
        %v1280 = vadd.f32 0.0, %v1279
        %v1281 = vpop.f32.mrb[0].mxu0
        %v1282 = vadd.f32 0.0, %v1281
        %v1283 = vpop.f32.mrb[0].mxu0
        %v1284 = vpop.f32.mrb[0].mxu0
        %1285 = vdwg.mxu0
        %1286 = vmatprep.subr.bf16.mxu0 %v1127
        %1287 = vmatpush1.bf16.msra.mxu0 %v1126
        %1288 = vmatprep.subr.bf16.mxu0 %v1131
        %1289 = vmatpush1.bf16.msra.mxu0 %v1130
        %1290 = vmatprep.subr.bf16.mxu0 %v1135
        %1291 = vmatpush1.bf16.msra.mxu0 %v1134
        %1292 = vmatprep.subr.bf16.mxu0 %v1183
        %1293 = vmatpush1.bf16.msra.mxu0 %v1180
        %1294 = vmatprep.subr.bf16.mxu0 0
        %1295 = vmatpush1.bf16.msra.mxu0 0
        %1296 = vmatprep.subr.bf16.mxu0 0
        %1297 = vmatpush1.bf16.msra.mxu0 0
        %1298 = vmatprep.subr.bf16.mxu0 0
        %1299 = vmatpush1.bf16.msra.mxu0 0
        %1300 = vmatprep.subr.bf16.mxu0 0
        %1301 = vmatpush1.bf16.msra.mxu0 0
        %1302 = vmatprep.subr.bf16.mxu0 0
        %1303 = vmatpush1.bf16.msra.mxu0 0
        %1304 = vmatprep.subr.bf16.mxu0 0
        %1305 = vmatpush1.bf16.msra.mxu0 0
        %1306 = vmatprep.subr.bf16.mxu0 0
        %1307 = vmatpush1.bf16.msra.mxu0 0
        %1308 = vmatprep.subr.bf16.mxu0 0
        %1309 = vmatpush1.bf16.msra.mxu0 0
        %1310 = vmatprep.subr.bf16.mxu0 0
        %1311 = vmatpush1.bf16.msra.mxu0 0
        %1312 = vmatprep.subr.bf16.mxu0 0
        %1313 = vmatpush1.bf16.msra.mxu0 0
        %1314 = vmatprep.subr.bf16.mxu0 0
        %1315 = vmatpush1.bf16.msra.mxu0 0
        %1316 = vmatprep.subr.bf16.mxu0 0
        %1317 = vmatpush1.bf16.msra.mxu0 0
        %1318 = vmatprep.mubr.bf16.mxu0 0
        %1319 = vmatmul.mubr.bf16.gmra.mrb[0].mxu0 %v1153
        %v1320 = vpop.f32.mrb[0].mxu0
        %v1321 = vadd.f32 0.0, %v1320
        %v1322 = vpop.f32.mrb[0].mxu0
        %v1323 = vadd.f32 0.0, %v1322
        %v1324 = vpop.f32.mrb[0].mxu0
        %v1325 = vadd.f32 0.0, %v1324
        %v1326 = vpop.f32.mrb[0].mxu0
        %v1327 = vadd.f32 0.0, %v1326
        %1328 = vmatprep.mubr.bf16.mxu0 0
        %1329 = vmatmul.mubr.bf16.gmra.mrb[0].mxu0 %v1156
        %v1330 = vpop.f32.mrb[0].mxu0
        %v1331 = vadd.f32 0.0, %v1330
        %v1332 = vpop.f32.mrb[0].mxu0
        %v1333 = vadd.f32 0.0, %v1332
        %v1334 = vpop.f32.mrb[0].mxu0
        %v1335 = vadd.f32 0.0, %v1334
        %v1336 = vpop.f32.mrb[0].mxu0
        %v1337 = vadd.f32 0.0, %v1336
        %1338 = vmatprep.mubr.bf16.mxu0 0
        %1339 = vmatmul.mubr.bf16.gmra.mrb[0].mxu0 %v1159
        %v1340 = vpop.f32.mrb[0].mxu0
        %v1341 = vadd.f32 0.0, %v1340
        %v1342 = vpop.f32.mrb[0].mxu0
        %v1343 = vadd.f32 0.0, %v1342
        %v1344 = vpop.f32.mrb[0].mxu0
        %v1345 = vadd.f32 0.0, %v1344
        %v1346 = vpop.f32.mrb[0].mxu0
        %v1347 = vadd.f32 0.0, %v1346
        %1348 = vmatprep.mubr.bf16.mxu0 0
        %1349 = vmatmul.mubr.bf16.gmra.mrb[0].mxu0 %v1162
        %v1350 = vpop.f32.mrb[0].mxu0
        %v1351 = vadd.f32 0.0, %v1350
        %v1352 = vpop.f32.mrb[0].mxu0
        %v1353 = vadd.f32 0.0, %v1352
        %v1354 = vpop.f32.mrb[0].mxu0
        %v1355 = vadd.f32 0.0, %v1354
        %v1356 = vpop.f32.mrb[0].mxu0
        %v1357 = vadd.f32 0.0, %v1356
        %1358 = vmatprep.mubr.bf16.mxu0 0
        %1359 = vmatmul.mubr.bf16.gmra.mrb[0].mxu0 %v1165
        %v1360 = vpop.f32.mrb[0].mxu0
        %v1361 = vadd.f32 0.0, %v1360
        %v1362 = vpop.f32.mrb[0].mxu0
        %v1363 = vadd.f32 0.0, %v1362
        %v1364 = vpop.f32.mrb[0].mxu0
        %v1365 = vadd.f32 0.0, %v1364
        %v1366 = vpop.f32.mrb[0].mxu0
        %v1367 = vadd.f32 0.0, %v1366
        %1368 = vmatprep.mubr.bf16.mxu0 0
        %1369 = vmatmul.mubr.bf16.gmra.mrb[0].mxu0 %v1168
        %v1370 = vpop.f32.mrb[0].mxu0
        %v1371 = vadd.f32 0.0, %v1370
        %v1372 = vpop.f32.mrb[0].mxu0
        %v1373 = vadd.f32 0.0, %v1372
        %v1374 = vpop.f32.mrb[0].mxu0
        %v1375 = vadd.f32 0.0, %v1374
        %v1376 = vpop.f32.mrb[0].mxu0
        %v1377 = vadd.f32 0.0, %v1376
        %1378 = vmatprep.mubr.bf16.mxu0 0
        %1379 = vmatmul.mubr.bf16.gmra.mrb[0].mxu0 %v1171
        %v1380 = vpop.f32.mrb[0].mxu0
        %v1381 = vadd.f32 0.0, %v1380
        %v1382 = vpop.f32.mrb[0].mxu0
        %v1383 = vadd.f32 0.0, %v1382
        %v1384 = vpop.f32.mrb[0].mxu0
        %v1385 = vpop.f32.mrb[0].mxu0
        %1386 = vdwg.mxu0
        %v1387 = vadd.f32 %v880, %v1220
        %v1388 = vadd.f32 %v882, %v1222
        %v1389 = vadd.f32 %v981, %v1321
        %v1390 = vadd.f32 %v983, %v1323
        %v1391 = vadd.f32 %v884, %v1224
        %v1392 = vadd.f32 %v886, %v1226
        %v1393 = vadd.f32 %v985, %v1325
        %v1394 = vadd.f32 %v987, %v1327
        %v1395 = vadd.f32 %v890, %v1230
        %v1396 = vadd.f32 %v892, %v1232
        %v1397 = vadd.f32 %v991, %v1331
        %v1398 = vadd.f32 %v993, %v1333
        %v1399 = vadd.f32 %v894, %v1234
        %v1400 = vadd.f32 %v896, %v1236
        %v1401 = vadd.f32 %v995, %v1335
        %v1402 = vadd.f32 %v997, %v1337
        %v1403 = vadd.f32 %v900, %v1240
        %v1404 = vadd.f32 %v902, %v1242
        %v1405 = vadd.f32 %v1001, %v1341
        %v1406 = vadd.f32 %v1003, %v1343
        %v1407 = vadd.f32 %v904, %v1244
        %v1408 = vadd.f32 %v906, %v1246
        %v1409 = vadd.f32 %v1005, %v1345
        %v1410 = vadd.f32 %v1007, %v1347
        %v1411 = vadd.f32 %v910, %v1250
        %v1412 = vadd.f32 %v912, %v1252
        %v1413 = vadd.f32 %v1011, %v1351
        %v1414 = vadd.f32 %v1013, %v1353
        %v1415 = vadd.f32 %v914, %v1254
        %v1416 = vadd.f32 %v916, %v1256
        %v1417 = vadd.f32 %v1015, %v1355
        %v1418 = vadd.f32 %v1017, %v1357
        %v1419 = vadd.f32 %v920, %v1260
        %v1420 = vadd.f32 %v922, %v1262
        %v1421 = vadd.f32 %v1021, %v1361
        %v1422 = vadd.f32 %v1023, %v1363
        %v1423 = vadd.f32 %v924, %v1264
        %v1424 = vadd.f32 %v926, %v1266
        %v1425 = vadd.f32 %v1025, %v1365
        %v1426 = vadd.f32 %v1027, %v1367
        %v1427 = vadd.f32 %v930, %v1270
        %v1428 = vadd.f32 %v932, %v1272
        %v1429 = vadd.f32 %v1031, %v1371
        %v1430 = vadd.f32 %v1033, %v1373
        %v1431 = vadd.f32 %v934, %v1274
        %v1432 = vadd.f32 %v936, %v1276
        %v1433 = vadd.f32 %v1035, %v1375
        %v1434 = vadd.f32 %v1037, %v1377
        %v1435 = vadd.f32 %v940, %v1280
        %v1436 = vadd.f32 %v942, %v1282
        %v1437 = vadd.f32 %v1041, %v1381
        %v1438 = vadd.f32 %v1043, %v1383
        %v1439 = vld [vmem:[%s359 + $0x3] sm:$0xff]
        %v1440 = vld [vmem:[%s359 + $0xb] sm:$0xff]
        %v1441 = vld [vmem:[%s359 + $0x13] sm:$0xff]
        %v1442 = vld [vmem:[%s359 + $0x1b] sm:$0xff]
        %v1443 = vld [vmem:[%s359 + $0x23] sm:$0xff]
        %v1444 = vld [vmem:[%s359 + $0x2b] sm:$0xff]
        %v1445 = vld [vmem:[%s359 + $0x33] sm:$0xff]
        %v1446 = vld [vmem:[%s359 + $0x3b] sm:$0xff]
        %v1447 = vld [vmem:[%s359 + $0x43] sm:$0xff]
        %v1448 = vld [vmem:[%s359 + $0x4b] sm:$0xff]
        %v1449 = vld [vmem:[%s359 + $0x53] sm:$0xff]
        %v1450 = vld [vmem:[%s359 + $0x5b] sm:$0xff]
        %v1451 = vld [vmem:[%s359 + $0x63] sm:$0xf]
        %v1452 = vpack.c.bf16 %v1440, %v1439
        %v1453 = vpack.c.bf16 %v1442, %v1441
        %v1454 = vpack.c.bf16 %v1444, %v1443
        %v1455 = vpack.c.bf16 %v1446, %v1445
        %v1456 = vpack.c.bf16 %v1448, %v1447
        %v1457 = vpack.c.bf16 %v1450, %v1449
        %v1458 = vpack.c.bf16 %v1451, %v1451
        %s1459 = scalar_lea.vmem [#allocation2], 336
        %v1460 = vld [vmem:[%s1459] sm:$0xff]
        %v1461 = vld [vmem:[%s1459 + $0x8] sm:$0xff]
        %v1462 = vld [vmem:[%s1459 + $0x10] sm:$0xff]
        %v1463 = vld [vmem:[%s1459 + $0x18] sm:$0xff]
        %v1464 = vld [vmem:[%s1459 + $0x20] sm:$0xff]
        %v1465 = vld [vmem:[%s1459 + $0x28] sm:$0xff]
        %v1466 = vld [vmem:[%s1459 + $0x30] sm:$0xff]
        %v1467 = vld [vmem:[%s1459 + $0x38] sm:$0xff]
        %v1468 = vld [vmem:[%s1459 + $0x40] sm:$0xff]
        %v1469 = vld [vmem:[%s1459 + $0x48] sm:$0xff]
        %v1470 = vld [vmem:[%s1459 + $0x50] sm:$0xff]
        %v1471 = vld [vmem:[%s1459 + $0x58] sm:$0xff]
        %v1472 = vld [vmem:[%s1459 + $0x60] sm:$0x77]
        %v1473 = vld [vmem:[%s1459 + $0x68] sm:$0x77]
        %v1488 = vunpack.c.l.b16 %v1460
        %v1489 = vunpack.c.h.b16 %v1460
        %v1490 = vunpack.c.l.b16 %v1461
        %v1491 = vunpack.c.h.b16 %v1461
        %v1492 = vunpack.c.l.b16 %v1462
        %v1493 = vunpack.c.h.b16 %v1462
        %v1494 = vunpack.c.l.b16 %v1463
        %v1495 = vunpack.c.h.b16 %v1463
        %v1496 = vunpack.c.l.b16 %v1464
        %v1497 = vunpack.c.h.b16 %v1464
        %v1498 = vunpack.c.l.b16 %v1465
        %v1499 = vunpack.c.h.b16 %v1465
        %v1500 = vunpack.c.l.b16 %v1466
        %v1501 = vunpack.c.h.b16 %v1466
        %v1502 = vunpack.c.l.b16 %v1467
        %v1503 = vunpack.c.h.b16 %v1467
        %v1504 = vunpack.c.l.b16 %v1468
        %v1505 = vunpack.c.h.b16 %v1468
        %v1506 = vunpack.c.l.b16 %v1469
        %v1507 = vunpack.c.h.b16 %v1469
        %v1508 = vunpack.c.l.b16 %v1470
        %v1509 = vunpack.c.h.b16 %v1470
        %v1510 = vunpack.c.l.b16 %v1471
        %v1511 = vunpack.c.h.b16 %v1471
        %v1512 = vunpack.c.l.b16 %v1472
        %v1513 = vunpack.c.h.b16 %v1472
        %v1514 = vunpack.c.l.b16 %v1473
        %v1515 = vunpack.c.h.b16 %v1473
        %v1516 = vpack.c.b16 %v1492, %v1488
        %v1517 = vpack.c.b16 %v1493, %v1489
        %v1518 = vpack.c.b16 %v1494, %v1490
        %v1519 = vpack.c.b16 %v1495, %v1491
        %v1520 = vpack.c.b16 %v1500, %v1496
        %v1521 = vpack.c.b16 %v1501, %v1497
        %v1522 = vpack.c.b16 %v1502, %v1498
        %v1523 = vpack.c.b16 %v1503, %v1499
        %v1524 = vpack.c.b16 %v1508, %v1504
        %v1525 = vpack.c.b16 %v1509, %v1505
        %v1526 = vpack.c.b16 %v1510, %v1506
        %v1527 = vpack.c.b16 %v1511, %v1507
        %v1528 = vpack.c.b16 %v1512, %v1512
        %v1529 = vpack.c.b16 %v1513, %v1513
        %v1530 = vpack.c.b16 %v1514, %v1514
        %v1531 = vpack.c.b16 %v1515, %v1515
        %v1545 = vsel %vm505, %v1452, 0
        %v1548 = vsel %vm505, %v1453, 0
        %v1551 = vsel %vm505, %v1454, 0
        %v1554 = vsel %vm505, %v1455, 0
        %v1557 = vsel %vm505, %v1456, 0
        %v1560 = vsel %vm505, %v1457, 0
        %v1563 = vsel %vm505, %v1458, 0
        %v1566 = vsel %vm527, %v1528, 0
        %v1569 = vsel %vm527, %v1529, 0
        %v1572 = vsel %vm527, %v1530, 0
        %v1575 = vsel %vm527, %v1531, 0
        %1577 = vmatprep.subr.bf16.mxu0 %v1517
        %1578 = vmatpush1.bf16.msra.mxu0 %v1516
        %1579 = vmatprep.subr.bf16.mxu0 %v1521
        %1580 = vmatpush1.bf16.msra.mxu0 %v1520
        %1581 = vmatprep.subr.bf16.mxu0 %v1525
        %1582 = vmatpush1.bf16.msra.mxu0 %v1524
        %1583 = vmatprep.subr.bf16.mxu0 %v1569
        %1584 = vmatpush1.bf16.msra.mxu0 %v1566
        %1585 = vmatprep.subr.bf16.mxu0 0
        %1586 = vmatpush1.bf16.msra.mxu0 0
        %1587 = vmatprep.subr.bf16.mxu0 0
        %1588 = vmatpush1.bf16.msra.mxu0 0
        %1589 = vmatprep.subr.bf16.mxu0 0
        %1590 = vmatpush1.bf16.msra.mxu0 0
        %1591 = vmatprep.subr.bf16.mxu0 0
        %1592 = vmatpush1.bf16.msra.mxu0 0
        %1593 = vmatprep.subr.bf16.mxu0 0
        %1594 = vmatpush1.bf16.msra.mxu0 0
        %1595 = vmatprep.subr.bf16.mxu0 0
        %1596 = vmatpush1.bf16.msra.mxu0 0
        %1597 = vmatprep.subr.bf16.mxu0 0
        %1598 = vmatpush1.bf16.msra.mxu0 0
        %1599 = vmatprep.subr.bf16.mxu0 0
        %1600 = vmatpush1.bf16.msra.mxu0 0
        %1601 = vmatprep.subr.bf16.mxu0 0
        %1602 = vmatpush1.bf16.msra.mxu0 0
        %1603 = vmatprep.subr.bf16.mxu0 0
        %1604 = vmatpush1.bf16.msra.mxu0 0
        %1605 = vmatprep.subr.bf16.mxu0 0
        %1606 = vmatpush1.bf16.msra.mxu0 0
        %1607 = vmatprep.subr.bf16.mxu0 0
        %1608 = vmatpush1.bf16.msra.mxu0 0
        %1609 = vmatprep.mubr.bf16.mxu0 0
        %1610 = vmatmul.mubr.bf16.gmra.mrb[0].mxu0 %v1545
        %v1611 = vpop.f32.mrb[0].mxu0
        %v1612 = vadd.f32 0.0, %v1611
        %v1613 = vpop.f32.mrb[0].mxu0
        %v1614 = vadd.f32 0.0, %v1613
        %v1615 = vpop.f32.mrb[0].mxu0
        %v1616 = vadd.f32 0.0, %v1615
        %v1617 = vpop.f32.mrb[0].mxu0
        %v1618 = vadd.f32 0.0, %v1617
        %1619 = vmatprep.mubr.bf16.mxu0 0
        %1620 = vmatmul.mubr.bf16.gmra.mrb[0].mxu0 %v1548
        %v1621 = vpop.f32.mrb[0].mxu0
        %v1622 = vadd.f32 0.0, %v1621
        %v1623 = vpop.f32.mrb[0].mxu0
        %v1624 = vadd.f32 0.0, %v1623
        %v1625 = vpop.f32.mrb[0].mxu0
        %v1626 = vadd.f32 0.0, %v1625
        %v1627 = vpop.f32.mrb[0].mxu0
        %v1628 = vadd.f32 0.0, %v1627
        %1629 = vmatprep.mubr.bf16.mxu0 0
        %1630 = vmatmul.mubr.bf16.gmra.mrb[0].mxu0 %v1551
        %v1631 = vpop.f32.mrb[0].mxu0
        %v1632 = vadd.f32 0.0, %v1631
        %v1633 = vpop.f32.mrb[0].mxu0
        %v1634 = vadd.f32 0.0, %v1633
        %v1635 = vpop.f32.mrb[0].mxu0
        %v1636 = vadd.f32 0.0, %v1635
        %v1637 = vpop.f32.mrb[0].mxu0
        %v1638 = vadd.f32 0.0, %v1637
        %1639 = vmatprep.mubr.bf16.mxu0 0
        %1640 = vmatmul.mubr.bf16.gmra.mrb[0].mxu0 %v1554
        %v1641 = vpop.f32.mrb[0].mxu0
        %v1642 = vadd.f32 0.0, %v1641
        %v1643 = vpop.f32.mrb[0].mxu0
        %v1644 = vadd.f32 0.0, %v1643
        %v1645 = vpop.f32.mrb[0].mxu0
        %v1646 = vadd.f32 0.0, %v1645
        %v1647 = vpop.f32.mrb[0].mxu0
        %v1648 = vadd.f32 0.0, %v1647
        %1649 = vmatprep.mubr.bf16.mxu0 0
        %1650 = vmatmul.mubr.bf16.gmra.mrb[0].mxu0 %v1557
        %v1651 = vpop.f32.mrb[0].mxu0
        %v1652 = vadd.f32 0.0, %v1651
        %v1653 = vpop.f32.mrb[0].mxu0
        %v1654 = vadd.f32 0.0, %v1653
        %v1655 = vpop.f32.mrb[0].mxu0
        %v1656 = vadd.f32 0.0, %v1655
        %v1657 = vpop.f32.mrb[0].mxu0
        %v1658 = vadd.f32 0.0, %v1657
        %1659 = vmatprep.mubr.bf16.mxu0 0
        %1660 = vmatmul.mubr.bf16.gmra.mrb[0].mxu0 %v1560
        %v1661 = vpop.f32.mrb[0].mxu0
        %v1662 = vadd.f32 0.0, %v1661
        %v1663 = vpop.f32.mrb[0].mxu0
        %v1664 = vadd.f32 0.0, %v1663
        %v1665 = vpop.f32.mrb[0].mxu0
        %v1666 = vadd.f32 0.0, %v1665
        %v1667 = vpop.f32.mrb[0].mxu0
        %v1668 = vadd.f32 0.0, %v1667
        %1669 = vmatprep.mubr.bf16.mxu0 0
        %1670 = vmatmul.mubr.bf16.gmra.mrb[0].mxu0 %v1563
        %v1671 = vpop.f32.mrb[0].mxu0
        %v1672 = vadd.f32 0.0, %v1671
        %v1673 = vpop.f32.mrb[0].mxu0
        %v1674 = vadd.f32 0.0, %v1673
        %v1675 = vpop.f32.mrb[0].mxu0
        %v1676 = vpop.f32.mrb[0].mxu0
        %1677 = vdwg.mxu0
        %1678 = vmatprep.subr.bf16.mxu0 %v1519
        %1679 = vmatpush1.bf16.msra.mxu0 %v1518
        %1680 = vmatprep.subr.bf16.mxu0 %v1523
        %1681 = vmatpush1.bf16.msra.mxu0 %v1522
        %1682 = vmatprep.subr.bf16.mxu0 %v1527
        %1683 = vmatpush1.bf16.msra.mxu0 %v1526
        %1684 = vmatprep.subr.bf16.mxu0 %v1575
        %1685 = vmatpush1.bf16.msra.mxu0 %v1572
        %1686 = vmatprep.subr.bf16.mxu0 0
        %1687 = vmatpush1.bf16.msra.mxu0 0
        %1688 = vmatprep.subr.bf16.mxu0 0
        %1689 = vmatpush1.bf16.msra.mxu0 0
        %1690 = vmatprep.subr.bf16.mxu0 0
        %1691 = vmatpush1.bf16.msra.mxu0 0
        %1692 = vmatprep.subr.bf16.mxu0 0
        %1693 = vmatpush1.bf16.msra.mxu0 0
        %1694 = vmatprep.subr.bf16.mxu0 0
        %1695 = vmatpush1.bf16.msra.mxu0 0
        %1696 = vmatprep.subr.bf16.mxu0 0
        %1697 = vmatpush1.bf16.msra.mxu0 0
        %1698 = vmatprep.subr.bf16.mxu0 0
        %1699 = vmatpush1.bf16.msra.mxu0 0
        %1700 = vmatprep.subr.bf16.mxu0 0
        %1701 = vmatpush1.bf16.msra.mxu0 0
        %1702 = vmatprep.subr.bf16.mxu0 0
        %1703 = vmatpush1.bf16.msra.mxu0 0
        %1704 = vmatprep.subr.bf16.mxu0 0
        %1705 = vmatpush1.bf16.msra.mxu0 0
        %1706 = vmatprep.subr.bf16.mxu0 0
        %1707 = vmatpush1.bf16.msra.mxu0 0
        %1708 = vmatprep.subr.bf16.mxu0 0
        %1709 = vmatpush1.bf16.msra.mxu0 0
        %1710 = vmatprep.mubr.bf16.mxu0 0
        %1711 = vmatmul.mubr.bf16.gmra.mrb[0].mxu0 %v1545
        %v1712 = vpop.f32.mrb[0].mxu0
        %v1713 = vadd.f32 0.0, %v1712
        %v1714 = vpop.f32.mrb[0].mxu0
        %v1715 = vadd.f32 0.0, %v1714
        %v1716 = vpop.f32.mrb[0].mxu0
        %v1717 = vadd.f32 0.0, %v1716
        %v1718 = vpop.f32.mrb[0].mxu0
        %v1719 = vadd.f32 0.0, %v1718
        %1720 = vmatprep.mubr.bf16.mxu0 0
        %1721 = vmatmul.mubr.bf16.gmra.mrb[0].mxu0 %v1548
        %v1722 = vpop.f32.mrb[0].mxu0
        %v1723 = vadd.f32 0.0, %v1722
        %v1724 = vpop.f32.mrb[0].mxu0
        %v1725 = vadd.f32 0.0, %v1724
        %v1726 = vpop.f32.mrb[0].mxu0
        %v1727 = vadd.f32 0.0, %v1726
        %v1728 = vpop.f32.mrb[0].mxu0
        %v1729 = vadd.f32 0.0, %v1728
        %1730 = vmatprep.mubr.bf16.mxu0 0
        %1731 = vmatmul.mubr.bf16.gmra.mrb[0].mxu0 %v1551
        %v1732 = vpop.f32.mrb[0].mxu0
        %v1733 = vadd.f32 0.0, %v1732
        %v1734 = vpop.f32.mrb[0].mxu0
        %v1735 = vadd.f32 0.0, %v1734
        %v1736 = vpop.f32.mrb[0].mxu0
        %v1737 = vadd.f32 0.0, %v1736
        %v1738 = vpop.f32.mrb[0].mxu0
        %v1739 = vadd.f32 0.0, %v1738
        %1740 = vmatprep.mubr.bf16.mxu0 0
        %1741 = vmatmul.mubr.bf16.gmra.mrb[0].mxu0 %v1554
        %v1742 = vpop.f32.mrb[0].mxu0
        %v1743 = vadd.f32 0.0, %v1742
        %v1744 = vpop.f32.mrb[0].mxu0
        %v1745 = vadd.f32 0.0, %v1744
        %v1746 = vpop.f32.mrb[0].mxu0
        %v1747 = vadd.f32 0.0, %v1746
        %v1748 = vpop.f32.mrb[0].mxu0
        %v1749 = vadd.f32 0.0, %v1748
        %1750 = vmatprep.mubr.bf16.mxu0 0
        %1751 = vmatmul.mubr.bf16.gmra.mrb[0].mxu0 %v1557
        %v1752 = vpop.f32.mrb[0].mxu0
        %v1753 = vadd.f32 0.0, %v1752
        %v1754 = vpop.f32.mrb[0].mxu0
        %v1755 = vadd.f32 0.0, %v1754
        %v1756 = vpop.f32.mrb[0].mxu0
        %v1757 = vadd.f32 0.0, %v1756
        %v1758 = vpop.f32.mrb[0].mxu0
        %v1759 = vadd.f32 0.0, %v1758
        %1760 = vmatprep.mubr.bf16.mxu0 0
        %1761 = vmatmul.mubr.bf16.gmra.mrb[0].mxu0 %v1560
        %v1762 = vpop.f32.mrb[0].mxu0
        %v1763 = vadd.f32 0.0, %v1762
        %v1764 = vpop.f32.mrb[0].mxu0
        %v1765 = vadd.f32 0.0, %v1764
        %v1766 = vpop.f32.mrb[0].mxu0
        %v1767 = vadd.f32 0.0, %v1766
        %v1768 = vpop.f32.mrb[0].mxu0
        %v1769 = vadd.f32 0.0, %v1768
        %1770 = vmatprep.mubr.bf16.mxu0 0
        %1771 = vmatmul.mubr.bf16.gmra.mrb[0].mxu0 %v1563
        %v1772 = vpop.f32.mrb[0].mxu0
        %v1773 = vadd.f32 0.0, %v1772
        %v1774 = vpop.f32.mrb[0].mxu0
        %v1775 = vadd.f32 0.0, %v1774
        %v1776 = vpop.f32.mrb[0].mxu0
        %v1777 = vpop.f32.mrb[0].mxu0
        %1778 = vdwg.mxu0
        %v1779 = vadd.f32 %v1387, %v1612
        %v1780 = vadd.f32 %v1388, %v1614
        %v1781 = vadd.f32 %v1389, %v1713
        %v1782 = vadd.f32 %v1390, %v1715
        %v1783 = vadd.f32 %v1391, %v1616
        %v1784 = vadd.f32 %v1392, %v1618
        %v1785 = vadd.f32 %v1393, %v1717
        %v1786 = vadd.f32 %v1394, %v1719
        %v1787 = vadd.f32 %v1395, %v1622
        %v1788 = vadd.f32 %v1396, %v1624
        %v1789 = vadd.f32 %v1397, %v1723
        %v1790 = vadd.f32 %v1398, %v1725
        %v1791 = vadd.f32 %v1399, %v1626
        %v1792 = vadd.f32 %v1400, %v1628
        %v1793 = vadd.f32 %v1401, %v1727
        %v1794 = vadd.f32 %v1402, %v1729
        %v1795 = vadd.f32 %v1403, %v1632
        %v1796 = vadd.f32 %v1404, %v1634
        %v1797 = vadd.f32 %v1405, %v1733
        %v1798 = vadd.f32 %v1406, %v1735
        %v1799 = vadd.f32 %v1407, %v1636
        %v1800 = vadd.f32 %v1408, %v1638
        %v1801 = vadd.f32 %v1409, %v1737
        %v1802 = vadd.f32 %v1410, %v1739
        %v1803 = vadd.f32 %v1411, %v1642
        %v1804 = vadd.f32 %v1412, %v1644
        %v1805 = vadd.f32 %v1413, %v1743
        %v1806 = vadd.f32 %v1414, %v1745
        %v1807 = vadd.f32 %v1415, %v1646
        %v1808 = vadd.f32 %v1416, %v1648
        %v1809 = vadd.f32 %v1417, %v1747
        %v1810 = vadd.f32 %v1418, %v1749
        %v1811 = vadd.f32 %v1419, %v1652
        %v1812 = vadd.f32 %v1420, %v1654
        %v1813 = vadd.f32 %v1421, %v1753
        %v1814 = vadd.f32 %v1422, %v1755
        %v1815 = vadd.f32 %v1423, %v1656
        %v1816 = vadd.f32 %v1424, %v1658
        %v1817 = vadd.f32 %v1425, %v1757
        %v1818 = vadd.f32 %v1426, %v1759
        %v1819 = vadd.f32 %v1427, %v1662
        %v1820 = vadd.f32 %v1428, %v1664
        %v1821 = vadd.f32 %v1429, %v1763
        %v1822 = vadd.f32 %v1430, %v1765
        %v1823 = vadd.f32 %v1431, %v1666
        %v1824 = vadd.f32 %v1432, %v1668
        %v1825 = vadd.f32 %v1433, %v1767
        %v1826 = vadd.f32 %v1434, %v1769
        %v1827 = vadd.f32 %v1435, %v1672
        %v1828 = vadd.f32 %v1436, %v1674
        %v1829 = vadd.f32 %v1437, %v1773
        %v1830 = vadd.f32 %v1438, %v1775
        %v1831 = vld [vmem:[%s359 + $0x4] sm:$0xff]
        %v1832 = vld [vmem:[%s359 + $0xc] sm:$0xff]
        %v1833 = vld [vmem:[%s359 + $0x14] sm:$0xff]
        %v1834 = vld [vmem:[%s359 + $0x1c] sm:$0xff]
        %v1835 = vld [vmem:[%s359 + $0x24] sm:$0xff]
        %v1836 = vld [vmem:[%s359 + $0x2c] sm:$0xff]
        %v1837 = vld [vmem:[%s359 + $0x34] sm:$0xff]
        %v1838 = vld [vmem:[%s359 + $0x3c] sm:$0xff]
        %v1839 = vld [vmem:[%s359 + $0x44] sm:$0xff]
        %v1840 = vld [vmem:[%s359 + $0x4c] sm:$0xff]
        %v1841 = vld [vmem:[%s359 + $0x54] sm:$0xff]
        %v1842 = vld [vmem:[%s359 + $0x5c] sm:$0xff]
        %v1843 = vld [vmem:[%s359 + $0x64] sm:$0xf]
        %v1844 = vpack.c.bf16 %v1832, %v1831
        %v1845 = vpack.c.bf16 %v1834, %v1833
        %v1846 = vpack.c.bf16 %v1836, %v1835
        %v1847 = vpack.c.bf16 %v1838, %v1837
        %v1848 = vpack.c.bf16 %v1840, %v1839
        %v1849 = vpack.c.bf16 %v1842, %v1841
        %v1850 = vpack.c.bf16 %v1843, %v1843
        %s1851 = scalar_lea.vmem [#allocation2], 448
        %v1852 = vld [vmem:[%s1851] sm:$0xff]
        %v1853 = vld [vmem:[%s1851 + $0x8] sm:$0xff]
        %v1854 = vld [vmem:[%s1851 + $0x10] sm:$0xff]
        %v1855 = vld [vmem:[%s1851 + $0x18] sm:$0xff]
        %v1856 = vld [vmem:[%s1851 + $0x20] sm:$0xff]
        %v1857 = vld [vmem:[%s1851 + $0x28] sm:$0xff]
        %v1858 = vld [vmem:[%s1851 + $0x30] sm:$0xff]
        %v1859 = vld [vmem:[%s1851 + $0x38] sm:$0xff]
        %v1860 = vld [vmem:[%s1851 + $0x40] sm:$0xff]
        %v1861 = vld [vmem:[%s1851 + $0x48] sm:$0xff]
        %v1862 = vld [vmem:[%s1851 + $0x50] sm:$0xff]
        %v1863 = vld [vmem:[%s1851 + $0x58] sm:$0xff]
        %v1864 = vld [vmem:[%s1851 + $0x60] sm:$0x77]
        %v1865 = vld [vmem:[%s1851 + $0x68] sm:$0x77]
        %v1880 = vunpack.c.l.b16 %v1852
        %v1881 = vunpack.c.h.b16 %v1852
        %v1882 = vunpack.c.l.b16 %v1853
        %v1883 = vunpack.c.h.b16 %v1853
        %v1884 = vunpack.c.l.b16 %v1854
        %v1885 = vunpack.c.h.b16 %v1854
        %v1886 = vunpack.c.l.b16 %v1855
        %v1887 = vunpack.c.h.b16 %v1855
        %v1888 = vunpack.c.l.b16 %v1856
        %v1889 = vunpack.c.h.b16 %v1856
        %v1890 = vunpack.c.l.b16 %v1857
        %v1891 = vunpack.c.h.b16 %v1857
        %v1892 = vunpack.c.l.b16 %v1858
        %v1893 = vunpack.c.h.b16 %v1858
        %v1894 = vunpack.c.l.b16 %v1859
        %v1895 = vunpack.c.h.b16 %v1859
        %v1896 = vunpack.c.l.b16 %v1860
        %v1897 = vunpack.c.h.b16 %v1860
        %v1898 = vunpack.c.l.b16 %v1861
        %v1899 = vunpack.c.h.b16 %v1861
        %v1900 = vunpack.c.l.b16 %v1862
        %v1901 = vunpack.c.h.b16 %v1862
        %v1902 = vunpack.c.l.b16 %v1863
        %v1903 = vunpack.c.h.b16 %v1863
        %v1904 = vunpack.c.l.b16 %v1864
        %v1905 = vunpack.c.h.b16 %v1864
        %v1906 = vunpack.c.l.b16 %v1865
        %v1907 = vunpack.c.h.b16 %v1865
        %v1908 = vpack.c.b16 %v1884, %v1880
        %v1909 = vpack.c.b16 %v1885, %v1881
        %v1910 = vpack.c.b16 %v1886, %v1882
        %v1911 = vpack.c.b16 %v1887, %v1883
        %v1912 = vpack.c.b16 %v1892, %v1888
        %v1913 = vpack.c.b16 %v1893, %v1889
        %v1914 = vpack.c.b16 %v1894, %v1890
        %v1915 = vpack.c.b16 %v1895, %v1891
        %v1916 = vpack.c.b16 %v1900, %v1896
        %v1917 = vpack.c.b16 %v1901, %v1897
        %v1918 = vpack.c.b16 %v1902, %v1898
        %v1919 = vpack.c.b16 %v1903, %v1899
        %v1920 = vpack.c.b16 %v1904, %v1904
        %v1921 = vpack.c.b16 %v1905, %v1905
        %v1922 = vpack.c.b16 %v1906, %v1906
        %v1923 = vpack.c.b16 %v1907, %v1907
        %v1937 = vsel %vm505, %v1844, 0
        %v1940 = vsel %vm505, %v1845, 0
        %v1943 = vsel %vm505, %v1846, 0
        %v1946 = vsel %vm505, %v1847, 0
        %v1949 = vsel %vm505, %v1848, 0
        %v1952 = vsel %vm505, %v1849, 0
        %v1955 = vsel %vm505, %v1850, 0
        %v1958 = vsel %vm527, %v1920, 0
        %v1961 = vsel %vm527, %v1921, 0
        %v1964 = vsel %vm527, %v1922, 0
        %v1967 = vsel %vm527, %v1923, 0
        %1969 = vmatprep.subr.bf16.mxu0 %v1909
        %1970 = vmatpush1.bf16.msra.mxu0 %v1908
        %1971 = vmatprep.subr.bf16.mxu0 %v1913
        %1972 = vmatpush1.bf16.msra.mxu0 %v1912
        %1973 = vmatprep.subr.bf16.mxu0 %v1917
        %1974 = vmatpush1.bf16.msra.mxu0 %v1916
        %1975 = vmatprep.subr.bf16.mxu0 %v1961
        %1976 = vmatpush1.bf16.msra.mxu0 %v1958
        %1977 = vmatprep.subr.bf16.mxu0 0
        %1978 = vmatpush1.bf16.msra.mxu0 0
        %1979 = vmatprep.subr.bf16.mxu0 0
        %1980 = vmatpush1.bf16.msra.mxu0 0
        %1981 = vmatprep.subr.bf16.mxu0 0
        %1982 = vmatpush1.bf16.msra.mxu0 0
        %1983 = vmatprep.subr.bf16.mxu0 0
        %1984 = vmatpush1.bf16.msra.mxu0 0
        %1985 = vmatprep.subr.bf16.mxu0 0
        %1986 = vmatpush1.bf16.msra.mxu0 0
        %1987 = vmatprep.subr.bf16.mxu0 0
        %1988 = vmatpush1.bf16.msra.mxu0 0
        %1989 = vmatprep.subr.bf16.mxu0 0
        %1990 = vmatpush1.bf16.msra.mxu0 0
        %1991 = vmatprep.subr.bf16.mxu0 0
        %1992 = vmatpush1.bf16.msra.mxu0 0
        %1993 = vmatprep.subr.bf16.mxu0 0
        %1994 = vmatpush1.bf16.msra.mxu0 0
        %1995 = vmatprep.subr.bf16.mxu0 0
        %1996 = vmatpush1.bf16.msra.mxu0 0
        %1997 = vmatprep.subr.bf16.mxu0 0
        %1998 = vmatpush1.bf16.msra.mxu0 0
        %1999 = vmatprep.subr.bf16.mxu0 0
        %2000 = vmatpush1.bf16.msra.mxu0 0
        %2001 = vmatprep.mubr.bf16.mxu0 0
        %2002 = vmatmul.mubr.bf16.gmra.mrb[0].mxu0 %v1937
        %v2003 = vpop.f32.mrb[0].mxu0
        %v2004 = vadd.f32 0.0, %v2003
        %v2005 = vpop.f32.mrb[0].mxu0
        %v2006 = vadd.f32 0.0, %v2005
        %v2007 = vpop.f32.mrb[0].mxu0
        %v2008 = vadd.f32 0.0, %v2007
        %v2009 = vpop.f32.mrb[0].mxu0
        %v2010 = vadd.f32 0.0, %v2009
        %2011 = vmatprep.mubr.bf16.mxu0 0
        %2012 = vmatmul.mubr.bf16.gmra.mrb[0].mxu0 %v1940
        %v2013 = vpop.f32.mrb[0].mxu0
        %v2014 = vadd.f32 0.0, %v2013
        %v2015 = vpop.f32.mrb[0].mxu0
        %v2016 = vadd.f32 0.0, %v2015
        %v2017 = vpop.f32.mrb[0].mxu0
        %v2018 = vadd.f32 0.0, %v2017
        %v2019 = vpop.f32.mrb[0].mxu0
        %v2020 = vadd.f32 0.0, %v2019
        %2021 = vmatprep.mubr.bf16.mxu0 0
        %2022 = vmatmul.mubr.bf16.gmra.mrb[0].mxu0 %v1943
        %v2023 = vpop.f32.mrb[0].mxu0
        %v2024 = vadd.f32 0.0, %v2023
        %v2025 = vpop.f32.mrb[0].mxu0
        %v2026 = vadd.f32 0.0, %v2025
        %v2027 = vpop.f32.mrb[0].mxu0
        %v2028 = vadd.f32 0.0, %v2027
        %v2029 = vpop.f32.mrb[0].mxu0
        %v2030 = vadd.f32 0.0, %v2029
        %2031 = vmatprep.mubr.bf16.mxu0 0
        %2032 = vmatmul.mubr.bf16.gmra.mrb[0].mxu0 %v1946
        %v2033 = vpop.f32.mrb[0].mxu0
        %v2034 = vadd.f32 0.0, %v2033
        %v2035 = vpop.f32.mrb[0].mxu0
        %v2036 = vadd.f32 0.0, %v2035
        %v2037 = vpop.f32.mrb[0].mxu0
        %v2038 = vadd.f32 0.0, %v2037
        %v2039 = vpop.f32.mrb[0].mxu0
        %v2040 = vadd.f32 0.0, %v2039
        %2041 = vmatprep.mubr.bf16.mxu0 0
        %2042 = vmatmul.mubr.bf16.gmra.mrb[0].mxu0 %v1949
        %v2043 = vpop.f32.mrb[0].mxu0
        %v2044 = vadd.f32 0.0, %v2043
        %v2045 = vpop.f32.mrb[0].mxu0
        %v2046 = vadd.f32 0.0, %v2045
        %v2047 = vpop.f32.mrb[0].mxu0
        %v2048 = vadd.f32 0.0, %v2047
        %v2049 = vpop.f32.mrb[0].mxu0
        %v2050 = vadd.f32 0.0, %v2049
        %2051 = vmatprep.mubr.bf16.mxu0 0
        %2052 = vmatmul.mubr.bf16.gmra.mrb[0].mxu0 %v1952
        %v2053 = vpop.f32.mrb[0].mxu0
        %v2054 = vadd.f32 0.0, %v2053
        %v2055 = vpop.f32.mrb[0].mxu0
        %v2056 = vadd.f32 0.0, %v2055
        %v2057 = vpop.f32.mrb[0].mxu0
        %v2058 = vadd.f32 0.0, %v2057
        %v2059 = vpop.f32.mrb[0].mxu0
        %v2060 = vadd.f32 0.0, %v2059
        %2061 = vmatprep.mubr.bf16.mxu0 0
        %2062 = vmatmul.mubr.bf16.gmra.mrb[0].mxu0 %v1955
        %v2063 = vpop.f32.mrb[0].mxu0
        %v2064 = vadd.f32 0.0, %v2063
        %v2065 = vpop.f32.mrb[0].mxu0
        %v2066 = vadd.f32 0.0, %v2065
        %v2067 = vpop.f32.mrb[0].mxu0
        %v2068 = vpop.f32.mrb[0].mxu0
        %2069 = vdwg.mxu0
        %2070 = vmatprep.subr.bf16.mxu0 %v1911
        %2071 = vmatpush1.bf16.msra.mxu0 %v1910
        %2072 = vmatprep.subr.bf16.mxu0 %v1915
        %2073 = vmatpush1.bf16.msra.mxu0 %v1914
        %2074 = vmatprep.subr.bf16.mxu0 %v1919
        %2075 = vmatpush1.bf16.msra.mxu0 %v1918
        %2076 = vmatprep.subr.bf16.mxu0 %v1967
        %2077 = vmatpush1.bf16.msra.mxu0 %v1964
        %2078 = vmatprep.subr.bf16.mxu0 0
        %2079 = vmatpush1.bf16.msra.mxu0 0
        %2080 = vmatprep.subr.bf16.mxu0 0
        %2081 = vmatpush1.bf16.msra.mxu0 0
        %2082 = vmatprep.subr.bf16.mxu0 0
        %2083 = vmatpush1.bf16.msra.mxu0 0
        %2084 = vmatprep.subr.bf16.mxu0 0
        %2085 = vmatpush1.bf16.msra.mxu0 0
        %2086 = vmatprep.subr.bf16.mxu0 0
        %2087 = vmatpush1.bf16.msra.mxu0 0
        %2088 = vmatprep.subr.bf16.mxu0 0
        %2089 = vmatpush1.bf16.msra.mxu0 0
        %2090 = vmatprep.subr.bf16.mxu0 0
        %2091 = vmatpush1.bf16.msra.mxu0 0
        %2092 = vmatprep.subr.bf16.mxu0 0
        %2093 = vmatpush1.bf16.msra.mxu0 0
        %2094 = vmatprep.subr.bf16.mxu0 0
        %2095 = vmatpush1.bf16.msra.mxu0 0
        %2096 = vmatprep.subr.bf16.mxu0 0
        %2097 = vmatpush1.bf16.msra.mxu0 0
        %2098 = vmatprep.subr.bf16.mxu0 0
        %2099 = vmatpush1.bf16.msra.mxu0 0
        %2100 = vmatprep.subr.bf16.mxu0 0
        %2101 = vmatpush1.bf16.msra.mxu0 0
        %2102 = vmatprep.mubr.bf16.mxu0 0
        %2103 = vmatmul.mubr.bf16.gmra.mrb[0].mxu0 %v1937
        %v2104 = vpop.f32.mrb[0].mxu0
        %v2105 = vadd.f32 0.0, %v2104
        %v2106 = vpop.f32.mrb[0].mxu0
        %v2107 = vadd.f32 0.0, %v2106
        %v2108 = vpop.f32.mrb[0].mxu0
        %v2109 = vadd.f32 0.0, %v2108
        %v2110 = vpop.f32.mrb[0].mxu0
        %v2111 = vadd.f32 0.0, %v2110
        %2112 = vmatprep.mubr.bf16.mxu0 0
        %2113 = vmatmul.mubr.bf16.gmra.mrb[0].mxu0 %v1940
        %v2114 = vpop.f32.mrb[0].mxu0
        %v2115 = vadd.f32 0.0, %v2114
        %v2116 = vpop.f32.mrb[0].mxu0
        %v2117 = vadd.f32 0.0, %v2116
        %v2118 = vpop.f32.mrb[0].mxu0
        %v2119 = vadd.f32 0.0, %v2118
        %v2120 = vpop.f32.mrb[0].mxu0
        %v2121 = vadd.f32 0.0, %v2120
        %2122 = vmatprep.mubr.bf16.mxu0 0
        %2123 = vmatmul.mubr.bf16.gmra.mrb[0].mxu0 %v1943
        %v2124 = vpop.f32.mrb[0].mxu0
        %v2125 = vadd.f32 0.0, %v2124
        %v2126 = vpop.f32.mrb[0].mxu0
        %v2127 = vadd.f32 0.0, %v2126
        %v2128 = vpop.f32.mrb[0].mxu0
        %v2129 = vadd.f32 0.0, %v2128
        %v2130 = vpop.f32.mrb[0].mxu0
        %v2131 = vadd.f32 0.0, %v2130
        %2132 = vmatprep.mubr.bf16.mxu0 0
        %2133 = vmatmul.mubr.bf16.gmra.mrb[0].mxu0 %v1946
        %v2134 = vpop.f32.mrb[0].mxu0
        %v2135 = vadd.f32 0.0, %v2134
        %v2136 = vpop.f32.mrb[0].mxu0
        %v2137 = vadd.f32 0.0, %v2136
        %v2138 = vpop.f32.mrb[0].mxu0
        %v2139 = vadd.f32 0.0, %v2138
        %v2140 = vpop.f32.mrb[0].mxu0
        %v2141 = vadd.f32 0.0, %v2140
        %2142 = vmatprep.mubr.bf16.mxu0 0
        %2143 = vmatmul.mubr.bf16.gmra.mrb[0].mxu0 %v1949
        %v2144 = vpop.f32.mrb[0].mxu0
        %v2145 = vadd.f32 0.0, %v2144
        %v2146 = vpop.f32.mrb[0].mxu0
        %v2147 = vadd.f32 0.0, %v2146
        %v2148 = vpop.f32.mrb[0].mxu0
        %v2149 = vadd.f32 0.0, %v2148
        %v2150 = vpop.f32.mrb[0].mxu0
        %v2151 = vadd.f32 0.0, %v2150
        %2152 = vmatprep.mubr.bf16.mxu0 0
        %2153 = vmatmul.mubr.bf16.gmra.mrb[0].mxu0 %v1952
        %v2154 = vpop.f32.mrb[0].mxu0
        %v2155 = vadd.f32 0.0, %v2154
        %v2156 = vpop.f32.mrb[0].mxu0
        %v2157 = vadd.f32 0.0, %v2156
        %v2158 = vpop.f32.mrb[0].mxu0
        %v2159 = vadd.f32 0.0, %v2158
        %v2160 = vpop.f32.mrb[0].mxu0
        %v2161 = vadd.f32 0.0, %v2160
        %2162 = vmatprep.mubr.bf16.mxu0 0
        %2163 = vmatmul.mubr.bf16.gmra.mrb[0].mxu0 %v1955
        %v2164 = vpop.f32.mrb[0].mxu0
        %v2165 = vadd.f32 0.0, %v2164
        %v2166 = vpop.f32.mrb[0].mxu0
        %v2167 = vadd.f32 0.0, %v2166
        %v2168 = vpop.f32.mrb[0].mxu0
        %v2169 = vpop.f32.mrb[0].mxu0
        %2170 = vdwg.mxu0
        %v2171 = vadd.f32 %v1779, %v2004
        %v2172 = vadd.f32 %v1780, %v2006
        %v2173 = vadd.f32 %v1781, %v2105
        %v2174 = vadd.f32 %v1782, %v2107
        %v2175 = vadd.f32 %v1783, %v2008
        %v2176 = vadd.f32 %v1784, %v2010
        %v2177 = vadd.f32 %v1785, %v2109
        %v2178 = vadd.f32 %v1786, %v2111
        %v2179 = vadd.f32 %v1787, %v2014
        %v2180 = vadd.f32 %v1788, %v2016
        %v2181 = vadd.f32 %v1789, %v2115
        %v2182 = vadd.f32 %v1790, %v2117
        %v2183 = vadd.f32 %v1791, %v2018
        %v2184 = vadd.f32 %v1792, %v2020
        %v2185 = vadd.f32 %v1793, %v2119
        %v2186 = vadd.f32 %v1794, %v2121
        %v2187 = vadd.f32 %v1795, %v2024
        %v2188 = vadd.f32 %v1796, %v2026
        %v2189 = vadd.f32 %v1797, %v2125
        %v2190 = vadd.f32 %v1798, %v2127
        %v2191 = vadd.f32 %v1799, %v2028
        %v2192 = vadd.f32 %v1800, %v2030
        %v2193 = vadd.f32 %v1801, %v2129
        %v2194 = vadd.f32 %v1802, %v2131
        %v2195 = vadd.f32 %v1803, %v2034
        %v2196 = vadd.f32 %v1804, %v2036
        %v2197 = vadd.f32 %v1805, %v2135
        %v2198 = vadd.f32 %v1806, %v2137
        %v2199 = vadd.f32 %v1807, %v2038
        %v2200 = vadd.f32 %v1808, %v2040
        %v2201 = vadd.f32 %v1809, %v2139
        %v2202 = vadd.f32 %v1810, %v2141
        %v2203 = vadd.f32 %v1811, %v2044
        %v2204 = vadd.f32 %v1812, %v2046
        %v2205 = vadd.f32 %v1813, %v2145
        %v2206 = vadd.f32 %v1814, %v2147
        %v2207 = vadd.f32 %v1815, %v2048
        %v2208 = vadd.f32 %v1816, %v2050
        %v2209 = vadd.f32 %v1817, %v2149
        %v2210 = vadd.f32 %v1818, %v2151
        %v2211 = vadd.f32 %v1819, %v2054
        %v2212 = vadd.f32 %v1820, %v2056
        %v2213 = vadd.f32 %v1821, %v2155
        %v2214 = vadd.f32 %v1822, %v2157
        %v2215 = vadd.f32 %v1823, %v2058
        %v2216 = vadd.f32 %v1824, %v2060
        %v2217 = vadd.f32 %v1825, %v2159
        %v2218 = vadd.f32 %v1826, %v2161
        %v2219 = vadd.f32 %v1827, %v2064
        %v2220 = vadd.f32 %v1828, %v2066
        %v2221 = vadd.f32 %v1829, %v2165
        %v2222 = vadd.f32 %v1830, %v2167
        %v2223 = vld [vmem:[#allocation4] sm:$0xf]
        %v2225 = vlaneseq
        %v2226 = vshrl.u32 %v2225, 7
        %v2227 = vsub.s32 0, %v2226
        %v2228 = vrot.slane %v2223, %v2227
        %v2229 = vlaneseq
        %v2230 = vshrl.u32 %v2229, 7
        %v2231 = vsub.s32 1, %v2230
        %v2232 = vrot.slane %v2223, %v2231
        %v2233 = vlaneseq
        %v2234 = vshrl.u32 %v2233, 7
        %v2235 = vsub.s32 2, %v2234
        %v2236 = vrot.slane %v2223, %v2235
        %v2237 = vlaneseq
        %v2238 = vshrl.u32 %v2237, 7
        %v2239 = vsub.s32 3, %v2238
        %v2240 = vrot.slane %v2223, %v2239
        %v2245 = vadd.f32 %v2171, %v2228
        %v2246 = vadd.f32 %v2172, %v2232
        %v2247 = vadd.f32 %v2173, %v2236
        %v2248 = vadd.f32 %v2174, %v2240
        %v2249 = vadd.f32 %v2175, %v2228
        %v2250 = vadd.f32 %v2176, %v2232
        %v2251 = vadd.f32 %v2177, %v2236
        %v2252 = vadd.f32 %v2178, %v2240
        %v2253 = vadd.f32 %v2179, %v2228
        %v2254 = vadd.f32 %v2180, %v2232
        %v2255 = vadd.f32 %v2181, %v2236
        %v2256 = vadd.f32 %v2182, %v2240
        %v2257 = vadd.f32 %v2183, %v2228
        %v2258 = vadd.f32 %v2184, %v2232
        %v2259 = vadd.f32 %v2185, %v2236
        %v2260 = vadd.f32 %v2186, %v2240
        %v2261 = vadd.f32 %v2187, %v2228
        %v2262 = vadd.f32 %v2188, %v2232
        %v2263 = vadd.f32 %v2189, %v2236
        %v2264 = vadd.f32 %v2190, %v2240
        %v2265 = vadd.f32 %v2191, %v2228
        %v2266 = vadd.f32 %v2192, %v2232
        %v2267 = vadd.f32 %v2193, %v2236
        %v2268 = vadd.f32 %v2194, %v2240
        %v2269 = vadd.f32 %v2195, %v2228
        %v2270 = vadd.f32 %v2196, %v2232
        %v2271 = vadd.f32 %v2197, %v2236
        %v2272 = vadd.f32 %v2198, %v2240
        %v2273 = vadd.f32 %v2199, %v2228
        %v2274 = vadd.f32 %v2200, %v2232
        %v2275 = vadd.f32 %v2201, %v2236
        %v2276 = vadd.f32 %v2202, %v2240
        %v2277 = vadd.f32 %v2203, %v2228
        %v2278 = vadd.f32 %v2204, %v2232
        %v2279 = vadd.f32 %v2205, %v2236
        %v2280 = vadd.f32 %v2206, %v2240
        %v2281 = vadd.f32 %v2207, %v2228
        %v2282 = vadd.f32 %v2208, %v2232
        %v2283 = vadd.f32 %v2209, %v2236
        %v2284 = vadd.f32 %v2210, %v2240
        %v2285 = vadd.f32 %v2211, %v2228
        %v2286 = vadd.f32 %v2212, %v2232
        %v2287 = vadd.f32 %v2213, %v2236
        %v2288 = vadd.f32 %v2214, %v2240
        %v2289 = vadd.f32 %v2215, %v2228
        %v2290 = vadd.f32 %v2216, %v2232
        %v2291 = vadd.f32 %v2217, %v2236
        %v2292 = vadd.f32 %v2218, %v2240
        %v2293 = vadd.f32 %v2219, %v2228
        %v2294 = vadd.f32 %v2220, %v2232
        %v2295 = vadd.f32 %v2221, %v2236
        %v2296 = vadd.f32 %v2222, %v2240
        %v2297 = vmax.f32 %v2245, 0.0
        %v2298 = vmax.f32 %v2246, 0.0
        %v2299 = vmax.f32 %v2247, 0.0
        %v2300 = vmax.f32 %v2248, 0.0
        %v2301 = vmax.f32 %v2249, 0.0
        %v2302 = vmax.f32 %v2250, 0.0
        %v2303 = vmax.f32 %v2251, 0.0
        %v2304 = vmax.f32 %v2252, 0.0
        %v2305 = vmax.f32 %v2253, 0.0
        %v2306 = vmax.f32 %v2254, 0.0
        %v2307 = vmax.f32 %v2255, 0.0
        %v2308 = vmax.f32 %v2256, 0.0
        %v2309 = vmax.f32 %v2257, 0.0
        %v2310 = vmax.f32 %v2258, 0.0
        %v2311 = vmax.f32 %v2259, 0.0
        %v2312 = vmax.f32 %v2260, 0.0
        %v2313 = vmax.f32 %v2261, 0.0
        %v2314 = vmax.f32 %v2262, 0.0
        %v2315 = vmax.f32 %v2263, 0.0
        %v2316 = vmax.f32 %v2264, 0.0
        %v2317 = vmax.f32 %v2265, 0.0
        %v2318 = vmax.f32 %v2266, 0.0
        %v2319 = vmax.f32 %v2267, 0.0
        %v2320 = vmax.f32 %v2268, 0.0
        %v2321 = vmax.f32 %v2269, 0.0
        %v2322 = vmax.f32 %v2270, 0.0
        %v2323 = vmax.f32 %v2271, 0.0
        %v2324 = vmax.f32 %v2272, 0.0
        %v2325 = vmax.f32 %v2273, 0.0
        %v2326 = vmax.f32 %v2274, 0.0
        %v2327 = vmax.f32 %v2275, 0.0
        %v2328 = vmax.f32 %v2276, 0.0
        %v2329 = vmax.f32 %v2277, 0.0
        %v2330 = vmax.f32 %v2278, 0.0
        %v2331 = vmax.f32 %v2279, 0.0
        %v2332 = vmax.f32 %v2280, 0.0
        %v2333 = vmax.f32 %v2281, 0.0
        %v2334 = vmax.f32 %v2282, 0.0
        %v2335 = vmax.f32 %v2283, 0.0
        %v2336 = vmax.f32 %v2284, 0.0
        %v2337 = vmax.f32 %v2285, 0.0
        %v2338 = vmax.f32 %v2286, 0.0
        %v2339 = vmax.f32 %v2287, 0.0
        %v2340 = vmax.f32 %v2288, 0.0
        %v2341 = vmax.f32 %v2289, 0.0
        %v2342 = vmax.f32 %v2290, 0.0
        %v2343 = vmax.f32 %v2291, 0.0
        %v2344 = vmax.f32 %v2292, 0.0
        %v2345 = vmax.f32 %v2293, 0.0
        %v2346 = vmax.f32 %v2294, 0.0
        %v2347 = vmax.f32 %v2295, 0.0
        %v2348 = vmax.f32 %v2296, 0.0
        %v2349 = vpack.c.bf16 %v2301, %v2297
        %v2350 = vpack.c.bf16 %v2302, %v2298
        %v2351 = vpack.c.bf16 %v2303, %v2299
        %v2352 = vpack.c.bf16 %v2304, %v2300
        %v2353 = vpack.c.bf16 %v2309, %v2305
        %v2354 = vpack.c.bf16 %v2310, %v2306
        %v2355 = vpack.c.bf16 %v2311, %v2307
        %v2356 = vpack.c.bf16 %v2312, %v2308
        %v2357 = vpack.c.bf16 %v2317, %v2313
        %v2358 = vpack.c.bf16 %v2318, %v2314
        %v2359 = vpack.c.bf16 %v2319, %v2315
        %v2360 = vpack.c.bf16 %v2320, %v2316
        %v2361 = vpack.c.bf16 %v2325, %v2321
        %v2362 = vpack.c.bf16 %v2326, %v2322
        %v2363 = vpack.c.bf16 %v2327, %v2323
        %v2364 = vpack.c.bf16 %v2328, %v2324
        %v2365 = vpack.c.bf16 %v2333, %v2329
        %v2366 = vpack.c.bf16 %v2334, %v2330
        %v2367 = vpack.c.bf16 %v2335, %v2331
        %v2368 = vpack.c.bf16 %v2336, %v2332
        %v2369 = vpack.c.bf16 %v2341, %v2337
        %v2370 = vpack.c.bf16 %v2342, %v2338
        %v2371 = vpack.c.bf16 %v2343, %v2339
        %v2372 = vpack.c.bf16 %v2344, %v2340
        %v2373 = vpack.c.bf16 %v2345, %v2345
        %v2374 = vpack.c.bf16 %v2346, %v2346
        %v2375 = vpack.c.bf16 %v2347, %v2347
        %v2376 = vpack.c.bf16 %v2348, %v2348
        %v2377 = vld [vmem:[#allocation6] sm:$0xf]
        %v2378 = vld [vmem:[#allocation6 + $0x4] sm:$0xf]
        %v2379 = vld [vmem:[#allocation6 + $0x8] sm:$0xf]
        %v2380 = vld [vmem:[#allocation6 + $0xc] sm:$0xf]
        %v2381 = vld [vmem:[#allocation6 + $0x10] sm:$0xf]
        %v2382 = vld [vmem:[#allocation6 + $0x14] sm:$0xf]
        %v2383 = vld [vmem:[#allocation6 + $0x18] sm:$0x1]
        %v2391 = vunpack.c.l.b16 %v2377
        %v2392 = vunpack.c.l.b16 %v2378
        %v2393 = vunpack.c.l.b16 %v2379
        %v2394 = vunpack.c.l.b16 %v2380
        %v2395 = vunpack.c.l.b16 %v2381
        %v2396 = vunpack.c.l.b16 %v2382
        %v2397 = vunpack.c.l.b16 %v2383
        %v2398 = vpack.c.b16 %v2392, %v2391
        %v2399 = vpack.c.b16 %v2394, %v2393
        %v2400 = vpack.c.b16 %v2396, %v2395
        %v2401 = vpack.c.b16 %v2397, %v2397
        %vm2402 = vcmask 818176
        %v2404 = vsel %vm2402, %v2398, 0
        %v2407 = vsel %vm2402, %v2399, 0
        %v2410 = vsel %vm2402, %v2400, 0
        %v2413 = vsel %vm2402, %v2401, 0
        %vm2415 = vcmask 1041408
        %v2417 = vsel %vm2415, %v2373, 0
        %v2420 = vsel %vm2415, %v2374, 0
        %v2423 = vsel %vm2415, %v2375, 0
        %v2426 = vsel %vm2415, %v2376, 0
        %2428 = vmatprep.subr.bf16.mxu0 %v2350
        %2429 = vmatpush1.bf16.msra.mxu0 %v2349
        %2430 = vmatprep.subr.bf16.mxu0 %v2354
        %2431 = vmatpush1.bf16.msra.mxu0 %v2353
        %2432 = vmatprep.subr.bf16.mxu0 %v2358
        %2433 = vmatpush1.bf16.msra.mxu0 %v2357
        %2434 = vmatprep.subr.bf16.mxu0 %v2362
        %2435 = vmatpush1.bf16.msra.mxu0 %v2361
        %2436 = vmatprep.subr.bf16.mxu0 %v2366
        %2437 = vmatpush1.bf16.msra.mxu0 %v2365
        %2438 = vmatprep.subr.bf16.mxu0 %v2370
        %2439 = vmatpush1.bf16.msra.mxu0 %v2369
        %2440 = vmatprep.subr.bf16.mxu0 %v2420
        %2441 = vmatpush1.bf16.msra.mxu0 %v2417
        %2442 = vmatprep.subr.bf16.mxu0 0
        %2443 = vmatpush1.bf16.msra.mxu0 0
        %2444 = vmatprep.subr.bf16.mxu0 0
        %2445 = vmatpush1.bf16.msra.mxu0 0
        %2446 = vmatprep.subr.bf16.mxu0 0
        %2447 = vmatpush1.bf16.msra.mxu0 0
        %2448 = vmatprep.subr.bf16.mxu0 0
        %2449 = vmatpush1.bf16.msra.mxu0 0
        %2450 = vmatprep.subr.bf16.mxu0 0
        %2451 = vmatpush1.bf16.msra.mxu0 0
        %2452 = vmatprep.subr.bf16.mxu0 0
        %2453 = vmatpush1.bf16.msra.mxu0 0
        %2454 = vmatprep.subr.bf16.mxu0 0
        %2455 = vmatpush1.bf16.msra.mxu0 0
        %2456 = vmatprep.subr.bf16.mxu0 0
        %2457 = vmatpush1.bf16.msra.mxu0 0
        %2458 = vmatprep.subr.bf16.mxu0 0
        %2459 = vmatpush1.bf16.msra.mxu0 0
        %2460 = vmatprep.mubr.bf16.mxu0 0
        %2461 = vmatmul.mubr.bf16.gmra.mrb[0].mxu0 %v2404
        %v2462 = vpop.f32.mrb[0].mxu0
        %v2463 = vadd.f32 0.0, %v2462
        %v2464 = vpop.f32.mrb[0].mxu0
        %v2465 = vadd.f32 0.0, %v2464
        %v2466 = vpop.f32.mrb[0].mxu0
        %v2467 = vadd.f32 0.0, %v2466
        %v2468 = vpop.f32.mrb[0].mxu0
        %v2469 = vadd.f32 0.0, %v2468
        %2470 = vmatprep.mubr.bf16.mxu0 0
        %2471 = vmatmul.mubr.bf16.gmra.mrb[0].mxu0 %v2407
        %v2472 = vpop.f32.mrb[0].mxu0
        %v2473 = vadd.f32 0.0, %v2472
        %v2474 = vpop.f32.mrb[0].mxu0
        %v2475 = vadd.f32 0.0, %v2474
        %v2476 = vpop.f32.mrb[0].mxu0
        %v2477 = vadd.f32 0.0, %v2476
        %v2478 = vpop.f32.mrb[0].mxu0
        %v2479 = vadd.f32 0.0, %v2478
        %2480 = vmatprep.mubr.bf16.mxu0 0
        %2481 = vmatmul.mubr.bf16.gmra.mrb[0].mxu0 %v2410
        %v2482 = vpop.f32.mrb[0].mxu0
        %v2483 = vadd.f32 0.0, %v2482
        %v2484 = vpop.f32.mrb[0].mxu0
        %v2485 = vadd.f32 0.0, %v2484
        %v2486 = vpop.f32.mrb[0].mxu0
        %v2487 = vadd.f32 0.0, %v2486
        %v2488 = vpop.f32.mrb[0].mxu0
        %v2489 = vadd.f32 0.0, %v2488
        %2490 = vmatprep.mubr.bf16.mxu0 0
        %2491 = vmatmul.mubr.bf16.gmra.mrb[0].mxu0 %v2413
        %v2492 = vpop.f32.mrb[0].mxu0
        %v2493 = vadd.f32 0.0, %v2492
        %v2494 = vpop.f32.mrb[0].mxu0
        %v2495 = vadd.f32 0.0, %v2494
        %v2496 = vpop.f32.mrb[0].mxu0
        %v2497 = vpop.f32.mrb[0].mxu0
        %2498 = vdwg.mxu0
        %2499 = vmatprep.subr.bf16.mxu0 %v2352
        %2500 = vmatpush1.bf16.msra.mxu0 %v2351
        %2501 = vmatprep.subr.bf16.mxu0 %v2356
        %2502 = vmatpush1.bf16.msra.mxu0 %v2355
        %2503 = vmatprep.subr.bf16.mxu0 %v2360
        %2504 = vmatpush1.bf16.msra.mxu0 %v2359
        %2505 = vmatprep.subr.bf16.mxu0 %v2364
        %2506 = vmatpush1.bf16.msra.mxu0 %v2363
        %2507 = vmatprep.subr.bf16.mxu0 %v2368
        %2508 = vmatpush1.bf16.msra.mxu0 %v2367
        %2509 = vmatprep.subr.bf16.mxu0 %v2372
        %2510 = vmatpush1.bf16.msra.mxu0 %v2371
        %2511 = vmatprep.subr.bf16.mxu0 %v2426
        %2512 = vmatpush1.bf16.msra.mxu0 %v2423
        %2513 = vmatprep.subr.bf16.mxu0 0
        %2514 = vmatpush1.bf16.msra.mxu0 0
        %2515 = vmatprep.subr.bf16.mxu0 0
        %2516 = vmatpush1.bf16.msra.mxu0 0
        %2517 = vmatprep.subr.bf16.mxu0 0
        %2518 = vmatpush1.bf16.msra.mxu0 0
        %2519 = vmatprep.subr.bf16.mxu0 0
        %2520 = vmatpush1.bf16.msra.mxu0 0
        %2521 = vmatprep.subr.bf16.mxu0 0
        %2522 = vmatpush1.bf16.msra.mxu0 0
        %2523 = vmatprep.subr.bf16.mxu0 0
        %2524 = vmatpush1.bf16.msra.mxu0 0
        %2525 = vmatprep.subr.bf16.mxu0 0
        %2526 = vmatpush1.bf16.msra.mxu0 0
        %2527 = vmatprep.subr.bf16.mxu0 0
        %2528 = vmatpush1.bf16.msra.mxu0 0
        %2529 = vmatprep.subr.bf16.mxu0 0
        %2530 = vmatpush1.bf16.msra.mxu0 0
        %2531 = vmatprep.mubr.bf16.mxu0 0
        %2532 = vmatmul.mubr.bf16.gmra.mrb[0].mxu0 %v2404
        %v2533 = vpop.f32.mrb[0].mxu0
        %v2534 = vadd.f32 0.0, %v2533
        %v2535 = vpop.f32.mrb[0].mxu0
        %v2536 = vadd.f32 0.0, %v2535
        %v2537 = vpop.f32.mrb[0].mxu0
        %v2538 = vadd.f32 0.0, %v2537
        %v2539 = vpop.f32.mrb[0].mxu0
        %v2540 = vadd.f32 0.0, %v2539
        %2541 = vmatprep.mubr.bf16.mxu0 0
        %2542 = vmatmul.mubr.bf16.gmra.mrb[0].mxu0 %v2407
        %v2543 = vpop.f32.mrb[0].mxu0
        %v2544 = vadd.f32 0.0, %v2543
        %v2545 = vpop.f32.mrb[0].mxu0
        %v2546 = vadd.f32 0.0, %v2545
        %v2547 = vpop.f32.mrb[0].mxu0
        %v2548 = vadd.f32 0.0, %v2547
        %v2549 = vpop.f32.mrb[0].mxu0
        %v2550 = vadd.f32 0.0, %v2549
        %2551 = vmatprep.mubr.bf16.mxu0 0
        %2552 = vmatmul.mubr.bf16.gmra.mrb[0].mxu0 %v2410
        %v2553 = vpop.f32.mrb[0].mxu0
        %v2554 = vadd.f32 0.0, %v2553
        %v2555 = vpop.f32.mrb[0].mxu0
        %v2556 = vadd.f32 0.0, %v2555
        %v2557 = vpop.f32.mrb[0].mxu0
        %v2558 = vadd.f32 0.0, %v2557
        %v2559 = vpop.f32.mrb[0].mxu0
        %v2560 = vadd.f32 0.0, %v2559
        %2561 = vmatprep.mubr.bf16.mxu0 0
        %2562 = vmatmul.mubr.bf16.gmra.mrb[0].mxu0 %v2413
        %v2563 = vpop.f32.mrb[0].mxu0
        %v2564 = vadd.f32 0.0, %v2563
        %v2565 = vpop.f32.mrb[0].mxu0
        %v2566 = vadd.f32 0.0, %v2565
        %v2567 = vpop.f32.mrb[0].mxu0
        %v2568 = vpop.f32.mrb[0].mxu0
        %2569 = vdwg.mxu0
        %v2570 = vld [vmem:[#allocation7] sm:$0xf]
        %v2571 = vld [vmem:[#allocation7 + $0x4] sm:$0xf]
        %v2572 = vld [vmem:[#allocation7 + $0x8] sm:$0xf]
        %v2573 = vld [vmem:[#allocation7 + $0xc] sm:$0xf]
        %v2574 = vld [vmem:[#allocation7 + $0x10] sm:$0xf]
        %v2575 = vld [vmem:[#allocation7 + $0x14] sm:$0xf]
        %v2576 = vld [vmem:[#allocation7 + $0x18] sm:$0x1]
        %v2584 = vunpack.c.l.b16 %v2570
        %v2585 = vunpack.c.l.b16 %v2571
        %v2586 = vunpack.c.l.b16 %v2572
        %v2587 = vunpack.c.l.b16 %v2573
        %v2588 = vunpack.c.l.b16 %v2574
        %v2589 = vunpack.c.l.b16 %v2575
        %v2590 = vunpack.c.l.b16 %v2576
        %v2591 = vpack.c.b16 %v2585, %v2584
        %v2592 = vpack.c.b16 %v2587, %v2586
        %v2593 = vpack.c.b16 %v2589, %v2588
        %v2594 = vpack.c.b16 %v2590, %v2590
        %v2596 = vsel %vm2402, %v2591, 0
        %v2599 = vsel %vm2402, %v2592, 0
        %v2602 = vsel %vm2402, %v2593, 0
        %v2605 = vsel %vm2402, %v2594, 0
        %2607 = vmatprep.subr.bf16.mxu0 %v2350
        %2608 = vmatpush1.bf16.msra.mxu0 %v2349
        %2609 = vmatprep.subr.bf16.mxu0 %v2354
        %2610 = vmatpush1.bf16.msra.mxu0 %v2353
        %2611 = vmatprep.subr.bf16.mxu0 %v2358
        %2612 = vmatpush1.bf16.msra.mxu0 %v2357
        %2613 = vmatprep.subr.bf16.mxu0 %v2362
        %2614 = vmatpush1.bf16.msra.mxu0 %v2361
        %2615 = vmatprep.subr.bf16.mxu0 %v2366
        %2616 = vmatpush1.bf16.msra.mxu0 %v2365
        %2617 = vmatprep.subr.bf16.mxu0 %v2370
        %2618 = vmatpush1.bf16.msra.mxu0 %v2369
        %2619 = vmatprep.subr.bf16.mxu0 %v2420
        %2620 = vmatpush1.bf16.msra.mxu0 %v2417
        %2621 = vmatprep.subr.bf16.mxu0 0
        %2622 = vmatpush1.bf16.msra.mxu0 0
        %2623 = vmatprep.subr.bf16.mxu0 0
        %2624 = vmatpush1.bf16.msra.mxu0 0
        %2625 = vmatprep.subr.bf16.mxu0 0
        %2626 = vmatpush1.bf16.msra.mxu0 0
        %2627 = vmatprep.subr.bf16.mxu0 0
        %2628 = vmatpush1.bf16.msra.mxu0 0
        %2629 = vmatprep.subr.bf16.mxu0 0
        %2630 = vmatpush1.bf16.msra.mxu0 0
        %2631 = vmatprep.subr.bf16.mxu0 0
        %2632 = vmatpush1.bf16.msra.mxu0 0
        %2633 = vmatprep.subr.bf16.mxu0 0
        %2634 = vmatpush1.bf16.msra.mxu0 0
        %2635 = vmatprep.subr.bf16.mxu0 0
        %2636 = vmatpush1.bf16.msra.mxu0 0
        %2637 = vmatprep.subr.bf16.mxu0 0
        %2638 = vmatpush1.bf16.msra.mxu0 0
        %2639 = vmatprep.mubr.bf16.mxu0 0
        %2640 = vmatmul.mubr.bf16.gmra.mrb[0].mxu0 %v2596
        %v2641 = vpop.f32.mrb[0].mxu0
        %v2642 = vadd.f32 0.0, %v2641
        %v2643 = vpop.f32.mrb[0].mxu0
        %v2644 = vadd.f32 0.0, %v2643
        %v2645 = vpop.f32.mrb[0].mxu0
        %v2646 = vadd.f32 0.0, %v2645
        %v2647 = vpop.f32.mrb[0].mxu0
        %v2648 = vadd.f32 0.0, %v2647
        %2649 = vmatprep.mubr.bf16.mxu0 0
        %2650 = vmatmul.mubr.bf16.gmra.mrb[0].mxu0 %v2599
        %v2651 = vpop.f32.mrb[0].mxu0
        %v2652 = vadd.f32 0.0, %v2651
        %v2653 = vpop.f32.mrb[0].mxu0
        %v2654 = vadd.f32 0.0, %v2653
        %v2655 = vpop.f32.mrb[0].mxu0
        %v2656 = vadd.f32 0.0, %v2655
        %v2657 = vpop.f32.mrb[0].mxu0
        %v2658 = vadd.f32 0.0, %v2657
        %2659 = vmatprep.mubr.bf16.mxu0 0
        %2660 = vmatmul.mubr.bf16.gmra.mrb[0].mxu0 %v2602
        %v2661 = vpop.f32.mrb[0].mxu0
        %v2662 = vadd.f32 0.0, %v2661
        %v2663 = vpop.f32.mrb[0].mxu0
        %v2664 = vadd.f32 0.0, %v2663
        %v2665 = vpop.f32.mrb[0].mxu0
        %v2666 = vadd.f32 0.0, %v2665
        %v2667 = vpop.f32.mrb[0].mxu0
        %v2668 = vadd.f32 0.0, %v2667
        %2669 = vmatprep.mubr.bf16.mxu0 0
        %2670 = vmatmul.mubr.bf16.gmra.mrb[0].mxu0 %v2605
        %v2671 = vpop.f32.mrb[0].mxu0
        %v2672 = vadd.f32 0.0, %v2671
        %v2673 = vpop.f32.mrb[0].mxu0
        %v2674 = vadd.f32 0.0, %v2673
        %v2675 = vpop.f32.mrb[0].mxu0
        %v2676 = vpop.f32.mrb[0].mxu0
        %2677 = vdwg.mxu0
        %2678 = vmatprep.subr.bf16.mxu0 %v2352
        %2679 = vmatpush1.bf16.msra.mxu0 %v2351
        %2680 = vmatprep.subr.bf16.mxu0 %v2356
        %2681 = vmatpush1.bf16.msra.mxu0 %v2355
        %2682 = vmatprep.subr.bf16.mxu0 %v2360
        %2683 = vmatpush1.bf16.msra.mxu0 %v2359
        %2684 = vmatprep.subr.bf16.mxu0 %v2364
        %2685 = vmatpush1.bf16.msra.mxu0 %v2363
        %2686 = vmatprep.subr.bf16.mxu0 %v2368
        %2687 = vmatpush1.bf16.msra.mxu0 %v2367
        %2688 = vmatprep.subr.bf16.mxu0 %v2372
        %2689 = vmatpush1.bf16.msra.mxu0 %v2371
        %2690 = vmatprep.subr.bf16.mxu0 %v2426
        %2691 = vmatpush1.bf16.msra.mxu0 %v2423
        %2692 = vmatprep.subr.bf16.mxu0 0
        %2693 = vmatpush1.bf16.msra.mxu0 0
        %2694 = vmatprep.subr.bf16.mxu0 0
        %2695 = vmatpush1.bf16.msra.mxu0 0
        %2696 = vmatprep.subr.bf16.mxu0 0
        %2697 = vmatpush1.bf16.msra.mxu0 0
        %2698 = vmatprep.subr.bf16.mxu0 0
        %2699 = vmatpush1.bf16.msra.mxu0 0
        %2700 = vmatprep.subr.bf16.mxu0 0
        %2701 = vmatpush1.bf16.msra.mxu0 0
        %2702 = vmatprep.subr.bf16.mxu0 0
        %2703 = vmatpush1.bf16.msra.mxu0 0
        %2704 = vmatprep.subr.bf16.mxu0 0
        %2705 = vmatpush1.bf16.msra.mxu0 0
        %2706 = vmatprep.subr.bf16.mxu0 0
        %2707 = vmatpush1.bf16.msra.mxu0 0
        %2708 = vmatprep.subr.bf16.mxu0 0
        %2709 = vmatpush1.bf16.msra.mxu0 0
        %2710 = vmatprep.mubr.bf16.mxu0 0
        %2711 = vmatmul.mubr.bf16.gmra.mrb[0].mxu0 %v2596
        %v2712 = vpop.f32.mrb[0].mxu0
        %v2713 = vadd.f32 0.0, %v2712
        %v2714 = vpop.f32.mrb[0].mxu0
        %v2715 = vadd.f32 0.0, %v2714
        %v2716 = vpop.f32.mrb[0].mxu0
        %v2717 = vadd.f32 0.0, %v2716
        %v2718 = vpop.f32.mrb[0].mxu0
        %v2719 = vadd.f32 0.0, %v2718
        %2720 = vmatprep.mubr.bf16.mxu0 0
        %2721 = vmatmul.mubr.bf16.gmra.mrb[0].mxu0 %v2599
        %v2722 = vpop.f32.mrb[0].mxu0
        %v2723 = vadd.f32 0.0, %v2722
        %v2724 = vpop.f32.mrb[0].mxu0
        %v2725 = vadd.f32 0.0, %v2724
        %v2726 = vpop.f32.mrb[0].mxu0
        %v2727 = vadd.f32 0.0, %v2726
        %v2728 = vpop.f32.mrb[0].mxu0
        %v2729 = vadd.f32 0.0, %v2728
        %2730 = vmatprep.mubr.bf16.mxu0 0
        %2731 = vmatmul.mubr.bf16.gmra.mrb[0].mxu0 %v2602
        %v2732 = vpop.f32.mrb[0].mxu0
        %v2733 = vadd.f32 0.0, %v2732
        %v2734 = vpop.f32.mrb[0].mxu0
        %v2735 = vadd.f32 0.0, %v2734
        %v2736 = vpop.f32.mrb[0].mxu0
        %v2737 = vadd.f32 0.0, %v2736
        %v2738 = vpop.f32.mrb[0].mxu0
        %v2739 = vadd.f32 0.0, %v2738
        %2740 = vmatprep.mubr.bf16.mxu0 0
        %2741 = vmatmul.mubr.bf16.gmra.mrb[0].mxu0 %v2605
        %v2742 = vpop.f32.mrb[0].mxu0
        %v2743 = vadd.f32 0.0, %v2742
        %v2744 = vpop.f32.mrb[0].mxu0
        %v2745 = vadd.f32 0.0, %v2744
        %v2746 = vpop.f32.mrb[0].mxu0
        %v2747 = vpop.f32.mrb[0].mxu0
        %2748 = vdwg.mxu0
        %v2749 = vmax.f32 %v2463, %v2642
        %v2750 = vmax.f32 %v2465, %v2644
        %v2751 = vmax.f32 %v2534, %v2713
        %v2752 = vmax.f32 %v2536, %v2715
        %v2753 = vmax.f32 %v2467, %v2646
        %v2754 = vmax.f32 %v2469, %v2648
        %v2755 = vmax.f32 %v2538, %v2717
        %v2756 = vmax.f32 %v2540, %v2719
        %v2757 = vmax.f32 %v2473, %v2652
        %v2758 = vmax.f32 %v2475, %v2654
        %v2759 = vmax.f32 %v2544, %v2723
        %v2760 = vmax.f32 %v2546, %v2725
        %v2761 = vmax.f32 %v2477, %v2656
        %v2762 = vmax.f32 %v2479, %v2658
        %v2763 = vmax.f32 %v2548, %v2727
        %v2764 = vmax.f32 %v2550, %v2729
        %v2765 = vmax.f32 %v2483, %v2662
        %v2766 = vmax.f32 %v2485, %v2664
        %v2767 = vmax.f32 %v2554, %v2733
        %v2768 = vmax.f32 %v2556, %v2735
        %v2769 = vmax.f32 %v2487, %v2666
        %v2770 = vmax.f32 %v2489, %v2668
        %v2771 = vmax.f32 %v2558, %v2737
        %v2772 = vmax.f32 %v2560, %v2739
        %v2773 = vmax.f32 %v2493, %v2672
        %v2774 = vmax.f32 %v2495, %v2674
        %v2775 = vmax.f32 %v2564, %v2743
        %v2776 = vmax.f32 %v2566, %v2745
        %v2777 = vpack.c.bf16 %v2753, %v2749
        %v2778 = vpack.c.bf16 %v2754, %v2750
        %v2779 = vpack.c.bf16 %v2755, %v2751
        %v2780 = vpack.c.bf16 %v2756, %v2752
        %v2781 = vpack.c.bf16 %v2761, %v2757
        %v2782 = vpack.c.bf16 %v2762, %v2758
        %v2783 = vpack.c.bf16 %v2763, %v2759
        %v2784 = vpack.c.bf16 %v2764, %v2760
        %v2785 = vpack.c.bf16 %v2769, %v2765
        %v2786 = vpack.c.bf16 %v2770, %v2766
        %v2787 = vpack.c.bf16 %v2771, %v2767
        %v2788 = vpack.c.bf16 %v2772, %v2768
        %v2789 = vpack.c.bf16 %v2773, %v2773
        %v2790 = vpack.c.bf16 %v2774, %v2774
        %v2791 = vpack.c.bf16 %v2775, %v2775
        %v2792 = vpack.c.bf16 %v2776, %v2776
        %v2793 = vld [vmem:[#allocation9] sm:$0xff]
        %v2794 = vld [vmem:[#allocation9 + $0x8] sm:$0xff]
        %v2795 = vld [vmem:[#allocation9 + $0x10] sm:$0xff]
        %v2796 = vld [vmem:[#allocation9 + $0x18] sm:$0xff]
        %v2797 = vld [vmem:[#allocation9 + $0x20] sm:$0xff]
        %v2798 = vld [vmem:[#allocation9 + $0x28] sm:$0xff]
        %v2799 = vld [vmem:[#allocation9 + $0x30] sm:$0xff]
        %v2800 = vld [vmem:[#allocation9 + $0x38] sm:$0xff]
        %v2801 = vld [vmem:[#allocation9 + $0x40] sm:$0xff]
        %v2802 = vld [vmem:[#allocation9 + $0x48] sm:$0xff]
        %v2803 = vld [vmem:[#allocation9 + $0x50] sm:$0xff]
        %v2804 = vld [vmem:[#allocation9 + $0x58] sm:$0xff]
        %v2805 = vld [vmem:[#allocation9 + $0x60] sm:$0xff]
        %v2806 = vld [vmem:[#allocation9 + $0x68] sm:$0xff]
        %v2807 = vld [vmem:[#allocation9 + $0x70] sm:$0xff]
        %v2808 = vld [vmem:[#allocation9 + $0x78] sm:$0xff]
        %v2809 = vld [vmem:[#allocation9 + $0x80] sm:$0xff]
        %v2810 = vld [vmem:[#allocation9 + $0x88] sm:$0xff]
        %v2811 = vld [vmem:[#allocation9 + $0x90] sm:$0xff]
        %v2812 = vld [vmem:[#allocation9 + $0x98] sm:$0xff]
        %v2813 = vld [vmem:[#allocation9 + $0xa0] sm:$0xff]
        %v2814 = vld [vmem:[#allocation9 + $0xa8] sm:$0xff]
        %v2815 = vld [vmem:[#allocation9 + $0xb0] sm:$0xff]
        %v2816 = vld [vmem:[#allocation9 + $0xb8] sm:$0xff]
        %v2817 = vld [vmem:[#allocation9 + $0xc0] sm:$0xff]
        %v2818 = vld [vmem:[#allocation9 + $0xc8] sm:$0xff]
        %v2819 = vld [vmem:[#allocation9 + $0xd0] sm:$0xff]
        %v2820 = vld [vmem:[#allocation9 + $0xd8] sm:$0xff]
        %v2821 = vld [vmem:[#allocation9 + $0xe0] sm:$0xff]
        %v2822 = vld [vmem:[#allocation9 + $0xe8] sm:$0xff]
        %v2823 = vld [vmem:[#allocation9 + $0xf0] sm:$0xff]
        %v2824 = vld [vmem:[#allocation9 + $0xf8] sm:$0xff]
        %v2825 = vld [vmem:[#allocation9 + $0x100] sm:$0xff]
        %v2826 = vld [vmem:[#allocation9 + $0x108] sm:$0xff]
        %v2827 = vld [vmem:[#allocation9 + $0x110] sm:$0xff]
        %v2828 = vld [vmem:[#allocation9 + $0x118] sm:$0xff]
        %v2829 = vld [vmem:[#allocation9 + $0x120] sm:$0xff]
        %v2830 = vld [vmem:[#allocation9 + $0x128] sm:$0xff]
        %v2831 = vld [vmem:[#allocation9 + $0x130] sm:$0xff]
        %v2832 = vld [vmem:[#allocation9 + $0x138] sm:$0xff]
        %v2833 = vld [vmem:[#allocation9 + $0x140] sm:$0xff]
        %v2834 = vld [vmem:[#allocation9 + $0x148] sm:$0xff]
        %v2835 = vld [vmem:[#allocation9 + $0x150] sm:$0xff]
        %v2836 = vld [vmem:[#allocation9 + $0x158] sm:$0xff]
        %v2837 = vld [vmem:[#allocation9 + $0x160] sm:$0xff]
        %v2838 = vld [vmem:[#allocation9 + $0x168] sm:$0xff]
        %v2839 = vld [vmem:[#allocation9 + $0x170] sm:$0xff]
        %v2840 = vld [vmem:[#allocation9 + $0x178] sm:$0xff]
        %v2841 = vld [vmem:[#allocation9 + $0x180] sm:$0xff]
        %v2842 = vld [vmem:[#allocation9 + $0x188] sm:$0xff]
        %v2893 = vunpack.c.l.b16 %v2793
        %v2894 = vunpack.c.h.b16 %v2793
        %v2895 = vunpack.c.l.b16 %v2794
        %v2896 = vunpack.c.h.b16 %v2794
        %v2897 = vunpack.c.l.b16 %v2795
        %v2898 = vunpack.c.h.b16 %v2795
        %v2899 = vunpack.c.l.b16 %v2796
        %v2900 = vunpack.c.h.b16 %v2796
        %v2901 = vunpack.c.l.b16 %v2797
        %v2902 = vunpack.c.h.b16 %v2797
        %v2903 = vunpack.c.l.b16 %v2798
        %v2904 = vunpack.c.h.b16 %v2798
        %v2905 = vunpack.c.l.b16 %v2799
        %v2906 = vunpack.c.h.b16 %v2799
        %v2907 = vunpack.c.l.b16 %v2800
        %v2908 = vunpack.c.h.b16 %v2800
        %v2909 = vunpack.c.l.b16 %v2801
        %v2910 = vunpack.c.h.b16 %v2801
        %v2911 = vunpack.c.l.b16 %v2802
        %v2912 = vunpack.c.h.b16 %v2802
        %v2913 = vunpack.c.l.b16 %v2803
        %v2914 = vunpack.c.h.b16 %v2803
        %v2915 = vunpack.c.l.b16 %v2804
        %v2916 = vunpack.c.h.b16 %v2804
        %v2917 = vunpack.c.l.b16 %v2805
        %v2918 = vunpack.c.h.b16 %v2805
        %v2919 = vunpack.c.l.b16 %v2806
        %v2920 = vunpack.c.h.b16 %v2806
        %v2921 = vunpack.c.l.b16 %v2807
        %v2922 = vunpack.c.h.b16 %v2807
        %v2923 = vunpack.c.l.b16 %v2808
        %v2924 = vunpack.c.h.b16 %v2808
        %v2925 = vunpack.c.l.b16 %v2809
        %v2926 = vunpack.c.h.b16 %v2809
        %v2927 = vunpack.c.l.b16 %v2810
        %v2928 = vunpack.c.h.b16 %v2810
        %v2929 = vunpack.c.l.b16 %v2811
        %v2930 = vunpack.c.h.b16 %v2811
        %v2931 = vunpack.c.l.b16 %v2812
        %v2932 = vunpack.c.h.b16 %v2812
        %v2933 = vunpack.c.l.b16 %v2813
        %v2934 = vunpack.c.h.b16 %v2813
        %v2935 = vunpack.c.l.b16 %v2814
        %v2936 = vunpack.c.h.b16 %v2814
        %v2937 = vunpack.c.l.b16 %v2815
        %v2938 = vunpack.c.h.b16 %v2815
        %v2939 = vunpack.c.l.b16 %v2816
        %v2940 = vunpack.c.h.b16 %v2816
        %v2941 = vunpack.c.l.b16 %v2817
        %v2942 = vunpack.c.h.b16 %v2817
        %v2943 = vunpack.c.l.b16 %v2818
        %v2944 = vunpack.c.h.b16 %v2818
        %v2945 = vunpack.c.l.b16 %v2819
        %v2946 = vunpack.c.h.b16 %v2819
        %v2947 = vunpack.c.l.b16 %v2820
        %v2948 = vunpack.c.h.b16 %v2820
        %v2949 = vunpack.c.l.b16 %v2821
        %v2950 = vunpack.c.h.b16 %v2821
        %v2951 = vunpack.c.l.b16 %v2822
        %v2952 = vunpack.c.h.b16 %v2822
        %v2953 = vunpack.c.l.b16 %v2823
        %v2954 = vunpack.c.h.b16 %v2823
        %v2955 = vunpack.c.l.b16 %v2824
        %v2956 = vunpack.c.h.b16 %v2824
        %v2957 = vunpack.c.l.b16 %v2825
        %v2958 = vunpack.c.h.b16 %v2825
        %v2959 = vunpack.c.l.b16 %v2826
        %v2960 = vunpack.c.h.b16 %v2826
        %v2961 = vunpack.c.l.b16 %v2827
        %v2962 = vunpack.c.h.b16 %v2827
        %v2963 = vunpack.c.l.b16 %v2828
        %v2964 = vunpack.c.h.b16 %v2828
        %v2965 = vunpack.c.l.b16 %v2829
        %v2966 = vunpack.c.h.b16 %v2829
        %v2967 = vunpack.c.l.b16 %v2830
        %v2968 = vunpack.c.h.b16 %v2830
        %v2969 = vunpack.c.l.b16 %v2831
        %v2970 = vunpack.c.h.b16 %v2831
        %v2971 = vunpack.c.l.b16 %v2832
        %v2972 = vunpack.c.h.b16 %v2832
        %v2973 = vunpack.c.l.b16 %v2833
        %v2974 = vunpack.c.h.b16 %v2833
        %v2975 = vunpack.c.l.b16 %v2834
        %v2976 = vunpack.c.h.b16 %v2834
        %v2977 = vunpack.c.l.b16 %v2835
        %v2978 = vunpack.c.h.b16 %v2835
        %v2979 = vunpack.c.l.b16 %v2836
        %v2980 = vunpack.c.h.b16 %v2836
        %v2981 = vunpack.c.l.b16 %v2837
        %v2982 = vunpack.c.h.b16 %v2837
        %v2983 = vunpack.c.l.b16 %v2838
        %v2984 = vunpack.c.h.b16 %v2838
        %v2985 = vunpack.c.l.b16 %v2839
        %v2986 = vunpack.c.h.b16 %v2839
        %v2987 = vunpack.c.l.b16 %v2840
        %v2988 = vunpack.c.h.b16 %v2840
        %v2989 = vunpack.c.l.b16 %v2841
        %v2990 = vunpack.c.h.b16 %v2841
        %v2991 = vunpack.c.l.b16 %v2842
        %v2992 = vunpack.c.h.b16 %v2842
        %v2993 = vpack.c.b16 %v2895, %v2893
        %v2994 = vpack.c.b16 %v2896, %v2894
        %v2995 = vpack.c.b16 %v2899, %v2897
        %v2996 = vpack.c.b16 %v2900, %v2898
        %v2997 = vpack.c.b16 %v2903, %v2901
        %v2998 = vpack.c.b16 %v2904, %v2902
        %v2999 = vpack.c.b16 %v2907, %v2905
        %v3000 = vpack.c.b16 %v2908, %v2906
        %v3001 = vpack.c.b16 %v2911, %v2909
        %v3002 = vpack.c.b16 %v2912, %v2910
        %v3003 = vpack.c.b16 %v2915, %v2913
        %v3004 = vpack.c.b16 %v2916, %v2914
        %v3005 = vpack.c.b16 %v2919, %v2917
        %v3006 = vpack.c.b16 %v2920, %v2918
        %v3007 = vpack.c.b16 %v2923, %v2921
        %v3008 = vpack.c.b16 %v2924, %v2922
        %v3009 = vpack.c.b16 %v2927, %v2925
        %v3010 = vpack.c.b16 %v2928, %v2926
        %v3011 = vpack.c.b16 %v2931, %v2929
        %v3012 = vpack.c.b16 %v2932, %v2930
        %v3013 = vpack.c.b16 %v2935, %v2933
        %v3014 = vpack.c.b16 %v2936, %v2934
        %v3015 = vpack.c.b16 %v2939, %v2937
        %v3016 = vpack.c.b16 %v2940, %v2938
        %v3017 = vpack.c.b16 %v2943, %v2941
        %v3018 = vpack.c.b16 %v2944, %v2942
        %v3019 = vpack.c.b16 %v2947, %v2945
        %v3020 = vpack.c.b16 %v2948, %v2946
        %v3021 = vpack.c.b16 %v2951, %v2949
        %v3022 = vpack.c.b16 %v2952, %v2950
        %v3023 = vpack.c.b16 %v2955, %v2953
        %v3024 = vpack.c.b16 %v2956, %v2954
        %v3025 = vpack.c.b16 %v2959, %v2957
        %v3026 = vpack.c.b16 %v2960, %v2958
        %v3027 = vpack.c.b16 %v2963, %v2961
        %v3028 = vpack.c.b16 %v2964, %v2962
        %v3029 = vpack.c.b16 %v2967, %v2965
        %v3030 = vpack.c.b16 %v2968, %v2966
        %v3031 = vpack.c.b16 %v2971, %v2969
        %v3032 = vpack.c.b16 %v2972, %v2970
        %v3033 = vpack.c.b16 %v2975, %v2973
        %v3034 = vpack.c.b16 %v2976, %v2974
        %v3035 = vpack.c.b16 %v2979, %v2977
        %v3036 = vpack.c.b16 %v2980, %v2978
        %v3037 = vpack.c.b16 %v2983, %v2981
        %v3038 = vpack.c.b16 %v2984, %v2982
        %v3039 = vpack.c.b16 %v2987, %v2985
        %v3040 = vpack.c.b16 %v2988, %v2986
        %v3041 = vpack.c.b16 %v2991, %v2989
        %v3042 = vpack.c.b16 %v2992, %v2990
        %vm3093 = vcmask 130048
        %v3095 = vsel %vm3093, %v2780, 0
        %v3098 = vsel %vm3093, %v2784, 0
        %v3101 = vsel %vm3093, %v2788, 0
        %v3104 = vsel %vm3093, %v2792, 0
        %3106 = vmatprep.subr.bf16.mxu0 %v2994
        %3107 = vmatpush1.bf16.msra.mxu0 %v2993
        %3108 = vmatprep.subr.bf16.mxu0 %v2996
        %3109 = vmatpush1.bf16.msra.mxu0 %v2995
        %3110 = vmatprep.subr.bf16.mxu0 %v2998
        %3111 = vmatpush1.bf16.msra.mxu0 %v2997
        %3112 = vmatprep.subr.bf16.mxu0 %v3000
        %3113 = vmatpush1.bf16.msra.mxu0 %v2999
        %3114 = vmatprep.subr.bf16.mxu0 %v3002
        %3115 = vmatpush1.bf16.msra.mxu0 %v3001
        %3116 = vmatprep.subr.bf16.mxu0 %v3004
        %3117 = vmatpush1.bf16.msra.mxu0 %v3003
        %3118 = vmatprep.subr.bf16.mxu0 %v3006
        %3119 = vmatpush1.bf16.msra.mxu0 %v3005
        %3120 = vmatprep.subr.bf16.mxu0 %v3008
        %3121 = vmatpush1.bf16.msra.mxu0 %v3007
        %3122 = vmatprep.subr.bf16.mxu0 %v3010
        %3123 = vmatpush1.bf16.msra.mxu0 %v3009
        %3124 = vmatprep.subr.bf16.mxu0 %v3012
        %3125 = vmatpush1.bf16.msra.mxu0 %v3011
        %3126 = vmatprep.subr.bf16.mxu0 %v3014
        %3127 = vmatpush1.bf16.msra.mxu0 %v3013
        %3128 = vmatprep.subr.bf16.mxu0 %v3016
        %3129 = vmatpush1.bf16.msra.mxu0 %v3015
        %3130 = vmatprep.subr.bf16.mxu0 %v3018
        %3131 = vmatpush1.bf16.msra.mxu0 %v3017
        %3132 = vmatprep.subr.bf16.mxu0 %v3020
        %3133 = vmatpush1.bf16.msra.mxu0 %v3019
        %3134 = vmatprep.subr.bf16.mxu0 %v3022
        %3135 = vmatpush1.bf16.msra.mxu0 %v3021
        %3136 = vmatprep.subr.bf16.mxu0 %v3024
        %3137 = vmatpush1.bf16.msra.mxu0 %v3023
        %3138 = vmatprep.mubr.bf16.mxu0 %v2778
        %3139 = vmatmul.mubr.bf16.gmra.mrb[0].mxu0 %v2777
        %v3140 = vpop.f32.mrb[0].mxu0
        %v3141 = vadd.f32 0.0, %v3140
        %v3142 = vpop.f32.mrb[0].mxu0
        %v3143 = vadd.f32 0.0, %v3142
        %v3144 = vpop.f32.mrb[0].mxu0
        %v3145 = vadd.f32 0.0, %v3144
        %v3146 = vpop.f32.mrb[0].mxu0
        %v3147 = vadd.f32 0.0, %v3146
        %3148 = vmatprep.mubr.bf16.mxu0 %v2782
        %3149 = vmatmul.mubr.bf16.gmra.mrb[0].mxu0 %v2781
        %v3150 = vpop.f32.mrb[0].mxu0
        %v3151 = vadd.f32 0.0, %v3150
        %v3152 = vpop.f32.mrb[0].mxu0
        %v3153 = vadd.f32 0.0, %v3152
        %v3154 = vpop.f32.mrb[0].mxu0
        %v3155 = vadd.f32 0.0, %v3154
        %v3156 = vpop.f32.mrb[0].mxu0
        %v3157 = vadd.f32 0.0, %v3156
        %3158 = vmatprep.mubr.bf16.mxu0 %v2786
        %3159 = vmatmul.mubr.bf16.gmra.mrb[0].mxu0 %v2785
        %v3160 = vpop.f32.mrb[0].mxu0
        %v3161 = vadd.f32 0.0, %v3160
        %v3162 = vpop.f32.mrb[0].mxu0
        %v3163 = vadd.f32 0.0, %v3162
        %v3164 = vpop.f32.mrb[0].mxu0
        %v3165 = vadd.f32 0.0, %v3164
        %v3166 = vpop.f32.mrb[0].mxu0
        %v3167 = vadd.f32 0.0, %v3166
        %3168 = vmatprep.mubr.bf16.mxu0 %v2790
        %3169 = vmatmul.mubr.bf16.gmra.mrb[0].mxu0 %v2789
        %v3170 = vpop.f32.mrb[0].mxu0
        %v3171 = vadd.f32 0.0, %v3170
        %v3172 = vpop.f32.mrb[0].mxu0
        %v3173 = vadd.f32 0.0, %v3172
        %v3174 = vpop.f32.mrb[0].mxu0
        %v3175 = vpop.f32.mrb[0].mxu0
        %3176 = vdwg.mxu0
        %3177 = vmatprep.subr.bf16.mxu0 %v3026
        %3178 = vmatpush1.bf16.msra.mxu0 %v3025
        %3179 = vmatprep.subr.bf16.mxu0 %v3028
        %3180 = vmatpush1.bf16.msra.mxu0 %v3027
        %3181 = vmatprep.subr.bf16.mxu0 %v3030
        %3182 = vmatpush1.bf16.msra.mxu0 %v3029
        %3183 = vmatprep.subr.bf16.mxu0 %v3032
        %3184 = vmatpush1.bf16.msra.mxu0 %v3031
        %3185 = vmatprep.subr.bf16.mxu0 %v3034
        %3186 = vmatpush1.bf16.msra.mxu0 %v3033
        %3187 = vmatprep.subr.bf16.mxu0 %v3036
        %3188 = vmatpush1.bf16.msra.mxu0 %v3035
        %3189 = vmatprep.subr.bf16.mxu0 %v3038
        %3190 = vmatpush1.bf16.msra.mxu0 %v3037
        %3191 = vmatprep.subr.bf16.mxu0 %v3040
        %3192 = vmatpush1.bf16.msra.mxu0 %v3039
        %3193 = vmatprep.subr.bf16.mxu0 %v3042
        %3194 = vmatpush1.bf16.msra.mxu0 %v3041
        %3195 = vmatprep.subr.bf16.mxu0 0
        %3196 = vmatpush1.bf16.msra.mxu0 0
        %3197 = vmatprep.subr.bf16.mxu0 0
        %3198 = vmatpush1.bf16.msra.mxu0 0
        %3199 = vmatprep.subr.bf16.mxu0 0
        %3200 = vmatpush1.bf16.msra.mxu0 0
        %3201 = vmatprep.subr.bf16.mxu0 0
        %3202 = vmatpush1.bf16.msra.mxu0 0
        %3203 = vmatprep.subr.bf16.mxu0 0
        %3204 = vmatpush1.bf16.msra.mxu0 0
        %3205 = vmatprep.subr.bf16.mxu0 0
        %3206 = vmatpush1.bf16.msra.mxu0 0
        %3207 = vmatprep.subr.bf16.mxu0 0
        %3208 = vmatpush1.bf16.msra.mxu0 0
        %3209 = vmatprep.mubr.bf16.mxu0 %v3095
        %3210 = vmatmul.mubr.bf16.gmra.mrb[0].mxu0 %v2779
        %v3211 = vpop.f32.mrb[0].mxu0
        %v3212 = vadd.f32 %v3141, %v3211
        %v3213 = vpop.f32.mrb[0].mxu0
        %v3214 = vadd.f32 %v3143, %v3213
        %v3215 = vpop.f32.mrb[0].mxu0
        %v3216 = vadd.f32 %v3145, %v3215
        %v3217 = vpop.f32.mrb[0].mxu0
        %v3218 = vadd.f32 %v3147, %v3217
        %3219 = vmatprep.mubr.bf16.mxu0 %v3098
        %3220 = vmatmul.mubr.bf16.gmra.mrb[0].mxu0 %v2783
        %v3221 = vpop.f32.mrb[0].mxu0
        %v3222 = vadd.f32 %v3151, %v3221
        %v3223 = vpop.f32.mrb[0].mxu0
        %v3224 = vadd.f32 %v3153, %v3223
        %v3225 = vpop.f32.mrb[0].mxu0
        %v3226 = vadd.f32 %v3155, %v3225
        %v3227 = vpop.f32.mrb[0].mxu0
        %v3228 = vadd.f32 %v3157, %v3227
        %3229 = vmatprep.mubr.bf16.mxu0 %v3101
        %3230 = vmatmul.mubr.bf16.gmra.mrb[0].mxu0 %v2787
        %v3231 = vpop.f32.mrb[0].mxu0
        %v3232 = vadd.f32 %v3161, %v3231
        %v3233 = vpop.f32.mrb[0].mxu0
        %v3234 = vadd.f32 %v3163, %v3233
        %v3235 = vpop.f32.mrb[0].mxu0
        %v3236 = vadd.f32 %v3165, %v3235
        %v3237 = vpop.f32.mrb[0].mxu0
        %v3238 = vadd.f32 %v3167, %v3237
        %3239 = vmatprep.mubr.bf16.mxu0 %v3104
        %3240 = vmatmul.mubr.bf16.gmra.mrb[0].mxu0 %v2791
        %v3241 = vpop.f32.mrb[0].mxu0
        %v3242 = vadd.f32 %v3171, %v3241
        %v3243 = vpop.f32.mrb[0].mxu0
        %v3244 = vadd.f32 %v3173, %v3243
        %v3245 = vpop.f32.mrb[0].mxu0
        %v3246 = vpop.f32.mrb[0].mxu0
        %3247 = vdwg.mxu0
        %v3248 = vld [vmem:[#allocation10] sm:$0xff]
        %v3249 = vld [vmem:[#allocation10 + $0x8] sm:$0xff]
        %v3250 = vld [vmem:[#allocation10 + $0x10] sm:$0xff]
        %v3251 = vld [vmem:[#allocation10 + $0x18] sm:$0xff]
        %v3252 = vld [vmem:[#allocation10 + $0x20] sm:$0xff]
        %v3253 = vld [vmem:[#allocation10 + $0x28] sm:$0xff]
        %v3254 = vld [vmem:[#allocation10 + $0x30] sm:$0xff]
        %v3255 = vld [vmem:[#allocation10 + $0x38] sm:$0xff]
        %v3256 = vld [vmem:[#allocation10 + $0x40] sm:$0xff]
        %v3257 = vld [vmem:[#allocation10 + $0x48] sm:$0xff]
        %v3258 = vld [vmem:[#allocation10 + $0x50] sm:$0xff]
        %v3259 = vld [vmem:[#allocation10 + $0x58] sm:$0xff]
        %v3260 = vld [vmem:[#allocation10 + $0x60] sm:$0xff]
        %v3261 = vld [vmem:[#allocation10 + $0x68] sm:$0xff]
        %v3262 = vld [vmem:[#allocation10 + $0x70] sm:$0xff]
        %v3263 = vld [vmem:[#allocation10 + $0x78] sm:$0xff]
        %v3264 = vld [vmem:[#allocation10 + $0x80] sm:$0xff]
        %v3265 = vld [vmem:[#allocation10 + $0x88] sm:$0xff]
        %v3266 = vld [vmem:[#allocation10 + $0x90] sm:$0xff]
        %v3267 = vld [vmem:[#allocation10 + $0x98] sm:$0xff]
        %v3268 = vld [vmem:[#allocation10 + $0xa0] sm:$0xff]
        %v3269 = vld [vmem:[#allocation10 + $0xa8] sm:$0xff]
        %v3270 = vld [vmem:[#allocation10 + $0xb0] sm:$0xff]
        %v3271 = vld [vmem:[#allocation10 + $0xb8] sm:$0xff]
        %v3272 = vld [vmem:[#allocation10 + $0xc0] sm:$0xff]
        %v3273 = vld [vmem:[#allocation10 + $0xc8] sm:$0xff]
        %v3274 = vld [vmem:[#allocation10 + $0xd0] sm:$0xff]
        %v3275 = vld [vmem:[#allocation10 + $0xd8] sm:$0xff]
        %v3276 = vld [vmem:[#allocation10 + $0xe0] sm:$0xff]
        %v3277 = vld [vmem:[#allocation10 + $0xe8] sm:$0xff]
        %v3278 = vld [vmem:[#allocation10 + $0xf0] sm:$0xff]
        %v3279 = vld [vmem:[#allocation10 + $0xf8] sm:$0xff]
        %v3280 = vld [vmem:[#allocation10 + $0x100] sm:$0xff]
        %v3281 = vld [vmem:[#allocation10 + $0x108] sm:$0xff]
        %v3282 = vld [vmem:[#allocation10 + $0x110] sm:$0xff]
        %v3283 = vld [vmem:[#allocation10 + $0x118] sm:$0xff]
        %v3284 = vld [vmem:[#allocation10 + $0x120] sm:$0xff]
        %v3285 = vld [vmem:[#allocation10 + $0x128] sm:$0xff]
        %v3286 = vld [vmem:[#allocation10 + $0x130] sm:$0xff]
        %v3287 = vld [vmem:[#allocation10 + $0x138] sm:$0xff]
        %v3288 = vld [vmem:[#allocation10 + $0x140] sm:$0xff]
        %v3289 = vld [vmem:[#allocation10 + $0x148] sm:$0xff]
        %v3290 = vld [vmem:[#allocation10 + $0x150] sm:$0xff]
        %v3291 = vld [vmem:[#allocation10 + $0x158] sm:$0xff]
        %v3292 = vld [vmem:[#allocation10 + $0x160] sm:$0xff]
        %v3293 = vld [vmem:[#allocation10 + $0x168] sm:$0xff]
        %v3294 = vld [vmem:[#allocation10 + $0x170] sm:$0xff]
        %v3295 = vld [vmem:[#allocation10 + $0x178] sm:$0xff]
        %v3296 = vld [vmem:[#allocation10 + $0x180] sm:$0xff]
        %v3297 = vld [vmem:[#allocation10 + $0x188] sm:$0xff]
        %v3348 = vunpack.c.l.b16 %v3248
        %v3349 = vunpack.c.h.b16 %v3248
        %v3350 = vunpack.c.l.b16 %v3249
        %v3351 = vunpack.c.h.b16 %v3249
        %v3352 = vunpack.c.l.b16 %v3250
        %v3353 = vunpack.c.h.b16 %v3250
        %v3354 = vunpack.c.l.b16 %v3251
        %v3355 = vunpack.c.h.b16 %v3251
        %v3356 = vunpack.c.l.b16 %v3252
        %v3357 = vunpack.c.h.b16 %v3252
        %v3358 = vunpack.c.l.b16 %v3253
        %v3359 = vunpack.c.h.b16 %v3253
        %v3360 = vunpack.c.l.b16 %v3254
        %v3361 = vunpack.c.h.b16 %v3254
        %v3362 = vunpack.c.l.b16 %v3255
        %v3363 = vunpack.c.h.b16 %v3255
        %v3364 = vunpack.c.l.b16 %v3256
        %v3365 = vunpack.c.h.b16 %v3256
        %v3366 = vunpack.c.l.b16 %v3257
        %v3367 = vunpack.c.h.b16 %v3257
        %v3368 = vunpack.c.l.b16 %v3258
        %v3369 = vunpack.c.h.b16 %v3258
        %v3370 = vunpack.c.l.b16 %v3259
        %v3371 = vunpack.c.h.b16 %v3259
        %v3372 = vunpack.c.l.b16 %v3260
        %v3373 = vunpack.c.h.b16 %v3260
        %v3374 = vunpack.c.l.b16 %v3261
        %v3375 = vunpack.c.h.b16 %v3261
        %v3376 = vunpack.c.l.b16 %v3262
        %v3377 = vunpack.c.h.b16 %v3262
        %v3378 = vunpack.c.l.b16 %v3263
        %v3379 = vunpack.c.h.b16 %v3263
        %v3380 = vunpack.c.l.b16 %v3264
        %v3381 = vunpack.c.h.b16 %v3264
        %v3382 = vunpack.c.l.b16 %v3265
        %v3383 = vunpack.c.h.b16 %v3265
        %v3384 = vunpack.c.l.b16 %v3266
        %v3385 = vunpack.c.h.b16 %v3266
        %v3386 = vunpack.c.l.b16 %v3267
        %v3387 = vunpack.c.h.b16 %v3267
        %v3388 = vunpack.c.l.b16 %v3268
        %v3389 = vunpack.c.h.b16 %v3268
        %v3390 = vunpack.c.l.b16 %v3269
        %v3391 = vunpack.c.h.b16 %v3269
        %v3392 = vunpack.c.l.b16 %v3270
        %v3393 = vunpack.c.h.b16 %v3270
        %v3394 = vunpack.c.l.b16 %v3271
        %v3395 = vunpack.c.h.b16 %v3271
        %v3396 = vunpack.c.l.b16 %v3272
        %v3397 = vunpack.c.h.b16 %v3272
        %v3398 = vunpack.c.l.b16 %v3273
        %v3399 = vunpack.c.h.b16 %v3273
        %v3400 = vunpack.c.l.b16 %v3274
        %v3401 = vunpack.c.h.b16 %v3274
        %v3402 = vunpack.c.l.b16 %v3275
        %v3403 = vunpack.c.h.b16 %v3275
        %v3404 = vunpack.c.l.b16 %v3276
        %v3405 = vunpack.c.h.b16 %v3276
        %v3406 = vunpack.c.l.b16 %v3277
        %v3407 = vunpack.c.h.b16 %v3277
        %v3408 = vunpack.c.l.b16 %v3278
        %v3409 = vunpack.c.h.b16 %v3278
        %v3410 = vunpack.c.l.b16 %v3279
        %v3411 = vunpack.c.h.b16 %v3279
        %v3412 = vunpack.c.l.b16 %v3280
        %v3413 = vunpack.c.h.b16 %v3280
        %v3414 = vunpack.c.l.b16 %v3281
        %v3415 = vunpack.c.h.b16 %v3281
        %v3416 = vunpack.c.l.b16 %v3282
        %v3417 = vunpack.c.h.b16 %v3282
        %v3418 = vunpack.c.l.b16 %v3283
        %v3419 = vunpack.c.h.b16 %v3283
        %v3420 = vunpack.c.l.b16 %v3284
        %v3421 = vunpack.c.h.b16 %v3284
        %v3422 = vunpack.c.l.b16 %v3285
        %v3423 = vunpack.c.h.b16 %v3285
        %v3424 = vunpack.c.l.b16 %v3286
        %v3425 = vunpack.c.h.b16 %v3286
        %v3426 = vunpack.c.l.b16 %v3287
        %v3427 = vunpack.c.h.b16 %v3287
        %v3428 = vunpack.c.l.b16 %v3288
        %v3429 = vunpack.c.h.b16 %v3288
        %v3430 = vunpack.c.l.b16 %v3289
        %v3431 = vunpack.c.h.b16 %v3289
        %v3432 = vunpack.c.l.b16 %v3290
        %v3433 = vunpack.c.h.b16 %v3290
        %v3434 = vunpack.c.l.b16 %v3291
        %v3435 = vunpack.c.h.b16 %v3291
        %v3436 = vunpack.c.l.b16 %v3292
        %v3437 = vunpack.c.h.b16 %v3292
        %v3438 = vunpack.c.l.b16 %v3293
        %v3439 = vunpack.c.h.b16 %v3293
        %v3440 = vunpack.c.l.b16 %v3294
        %v3441 = vunpack.c.h.b16 %v3294
        %v3442 = vunpack.c.l.b16 %v3295
        %v3443 = vunpack.c.h.b16 %v3295
        %v3444 = vunpack.c.l.b16 %v3296
        %v3445 = vunpack.c.h.b16 %v3296
        %v3446 = vunpack.c.l.b16 %v3297
        %v3447 = vunpack.c.h.b16 %v3297
        %v3448 = vpack.c.b16 %v3350, %v3348
        %v3449 = vpack.c.b16 %v3351, %v3349
        %v3450 = vpack.c.b16 %v3354, %v3352
        %v3451 = vpack.c.b16 %v3355, %v3353
        %v3452 = vpack.c.b16 %v3358, %v3356
        %v3453 = vpack.c.b16 %v3359, %v3357
        %v3454 = vpack.c.b16 %v3362, %v3360
        %v3455 = vpack.c.b16 %v3363, %v3361
        %v3456 = vpack.c.b16 %v3366, %v3364
        %v3457 = vpack.c.b16 %v3367, %v3365
        %v3458 = vpack.c.b16 %v3370, %v3368
        %v3459 = vpack.c.b16 %v3371, %v3369
        %v3460 = vpack.c.b16 %v3374, %v3372
        %v3461 = vpack.c.b16 %v3375, %v3373
        %v3462 = vpack.c.b16 %v3378, %v3376
        %v3463 = vpack.c.b16 %v3379, %v3377
        %v3464 = vpack.c.b16 %v3382, %v3380
        %v3465 = vpack.c.b16 %v3383, %v3381
        %v3466 = vpack.c.b16 %v3386, %v3384
        %v3467 = vpack.c.b16 %v3387, %v3385
        %v3468 = vpack.c.b16 %v3390, %v3388
        %v3469 = vpack.c.b16 %v3391, %v3389
        %v3470 = vpack.c.b16 %v3394, %v3392
        %v3471 = vpack.c.b16 %v3395, %v3393
        %v3472 = vpack.c.b16 %v3398, %v3396
        %v3473 = vpack.c.b16 %v3399, %v3397
        %v3474 = vpack.c.b16 %v3402, %v3400
        %v3475 = vpack.c.b16 %v3403, %v3401
        %v3476 = vpack.c.b16 %v3406, %v3404
        %v3477 = vpack.c.b16 %v3407, %v3405
        %v3478 = vpack.c.b16 %v3410, %v3408
        %v3479 = vpack.c.b16 %v3411, %v3409
        %v3480 = vpack.c.b16 %v3414, %v3412
        %v3481 = vpack.c.b16 %v3415, %v3413
        %v3482 = vpack.c.b16 %v3418, %v3416
        %v3483 = vpack.c.b16 %v3419, %v3417
        %v3484 = vpack.c.b16 %v3422, %v3420
        %v3485 = vpack.c.b16 %v3423, %v3421
        %v3486 = vpack.c.b16 %v3426, %v3424
        %v3487 = vpack.c.b16 %v3427, %v3425
        %v3488 = vpack.c.b16 %v3430, %v3428
        %v3489 = vpack.c.b16 %v3431, %v3429
        %v3490 = vpack.c.b16 %v3434, %v3432
        %v3491 = vpack.c.b16 %v3435, %v3433
        %v3492 = vpack.c.b16 %v3438, %v3436
        %v3493 = vpack.c.b16 %v3439, %v3437
        %v3494 = vpack.c.b16 %v3442, %v3440
        %v3495 = vpack.c.b16 %v3443, %v3441
        %v3496 = vpack.c.b16 %v3446, %v3444
        %v3497 = vpack.c.b16 %v3447, %v3445
        %3548 = vmatprep.subr.bf16.mxu0 %v3449
        %3549 = vmatpush1.bf16.msra.mxu0 %v3448
        %3550 = vmatprep.subr.bf16.mxu0 %v3451
        %3551 = vmatpush1.bf16.msra.mxu0 %v3450
        %3552 = vmatprep.subr.bf16.mxu0 %v3453
        %3553 = vmatpush1.bf16.msra.mxu0 %v3452
        %3554 = vmatprep.subr.bf16.mxu0 %v3455
        %3555 = vmatpush1.bf16.msra.mxu0 %v3454
        %3556 = vmatprep.subr.bf16.mxu0 %v3457
        %3557 = vmatpush1.bf16.msra.mxu0 %v3456
        %3558 = vmatprep.subr.bf16.mxu0 %v3459
        %3559 = vmatpush1.bf16.msra.mxu0 %v3458
        %3560 = vmatprep.subr.bf16.mxu0 %v3461
        %3561 = vmatpush1.bf16.msra.mxu0 %v3460
        %3562 = vmatprep.subr.bf16.mxu0 %v3463
        %3563 = vmatpush1.bf16.msra.mxu0 %v3462
        %3564 = vmatprep.subr.bf16.mxu0 %v3465
        %3565 = vmatpush1.bf16.msra.mxu0 %v3464
        %3566 = vmatprep.subr.bf16.mxu0 %v3467
        %3567 = vmatpush1.bf16.msra.mxu0 %v3466
        %3568 = vmatprep.subr.bf16.mxu0 %v3469
        %3569 = vmatpush1.bf16.msra.mxu0 %v3468
        %3570 = vmatprep.subr.bf16.mxu0 %v3471
        %3571 = vmatpush1.bf16.msra.mxu0 %v3470
        %3572 = vmatprep.subr.bf16.mxu0 %v3473
        %3573 = vmatpush1.bf16.msra.mxu0 %v3472
        %3574 = vmatprep.subr.bf16.mxu0 %v3475
        %3575 = vmatpush1.bf16.msra.mxu0 %v3474
        %3576 = vmatprep.subr.bf16.mxu0 %v3477
        %3577 = vmatpush1.bf16.msra.mxu0 %v3476
        %3578 = vmatprep.subr.bf16.mxu0 %v3479
        %3579 = vmatpush1.bf16.msra.mxu0 %v3478
        %3580 = vmatprep.mubr.bf16.mxu0 %v2778
        %3581 = vmatmul.mubr.bf16.gmra.mrb[0].mxu0 %v2777
        %v3582 = vpop.f32.mrb[0].mxu0
        %v3583 = vadd.f32 0.0, %v3582
        %v3584 = vpop.f32.mrb[0].mxu0
        %v3585 = vadd.f32 0.0, %v3584
        %v3586 = vpop.f32.mrb[0].mxu0
        %v3587 = vadd.f32 0.0, %v3586
        %v3588 = vpop.f32.mrb[0].mxu0
        %v3589 = vadd.f32 0.0, %v3588
        %3590 = vmatprep.mubr.bf16.mxu0 %v2782
        %3591 = vmatmul.mubr.bf16.gmra.mrb[0].mxu0 %v2781
        %v3592 = vpop.f32.mrb[0].mxu0
        %v3593 = vadd.f32 0.0, %v3592
        %v3594 = vpop.f32.mrb[0].mxu0
        %v3595 = vadd.f32 0.0, %v3594
        %v3596 = vpop.f32.mrb[0].mxu0
        %v3597 = vadd.f32 0.0, %v3596
        %v3598 = vpop.f32.mrb[0].mxu0
        %v3599 = vadd.f32 0.0, %v3598
        %3600 = vmatprep.mubr.bf16.mxu0 %v2786
        %3601 = vmatmul.mubr.bf16.gmra.mrb[0].mxu0 %v2785
        %v3602 = vpop.f32.mrb[0].mxu0
        %v3603 = vadd.f32 0.0, %v3602
        %v3604 = vpop.f32.mrb[0].mxu0
        %v3605 = vadd.f32 0.0, %v3604
        %v3606 = vpop.f32.mrb[0].mxu0
        %v3607 = vadd.f32 0.0, %v3606
        %v3608 = vpop.f32.mrb[0].mxu0
        %v3609 = vadd.f32 0.0, %v3608
        %3610 = vmatprep.mubr.bf16.mxu0 %v2790
        %3611 = vmatmul.mubr.bf16.gmra.mrb[0].mxu0 %v2789
        %v3612 = vpop.f32.mrb[0].mxu0
        %v3613 = vadd.f32 0.0, %v3612
        %v3614 = vpop.f32.mrb[0].mxu0
        %v3615 = vadd.f32 0.0, %v3614
        %v3616 = vpop.f32.mrb[0].mxu0
        %v3617 = vpop.f32.mrb[0].mxu0
        %3618 = vdwg.mxu0
        %3619 = vmatprep.subr.bf16.mxu0 %v3481
        %3620 = vmatpush1.bf16.msra.mxu0 %v3480
        %3621 = vmatprep.subr.bf16.mxu0 %v3483
        %3622 = vmatpush1.bf16.msra.mxu0 %v3482
        %3623 = vmatprep.subr.bf16.mxu0 %v3485
        %3624 = vmatpush1.bf16.msra.mxu0 %v3484
        %3625 = vmatprep.subr.bf16.mxu0 %v3487
        %3626 = vmatpush1.bf16.msra.mxu0 %v3486
        %3627 = vmatprep.subr.bf16.mxu0 %v3489
        %3628 = vmatpush1.bf16.msra.mxu0 %v3488
        %3629 = vmatprep.subr.bf16.mxu0 %v3491
        %3630 = vmatpush1.bf16.msra.mxu0 %v3490
        %3631 = vmatprep.subr.bf16.mxu0 %v3493
        %3632 = vmatpush1.bf16.msra.mxu0 %v3492
        %3633 = vmatprep.subr.bf16.mxu0 %v3495
        %3634 = vmatpush1.bf16.msra.mxu0 %v3494
        %3635 = vmatprep.subr.bf16.mxu0 %v3497
        %3636 = vmatpush1.bf16.msra.mxu0 %v3496
        %3637 = vmatprep.subr.bf16.mxu0 0
        %3638 = vmatpush1.bf16.msra.mxu0 0
        %3639 = vmatprep.subr.bf16.mxu0 0
        %3640 = vmatpush1.bf16.msra.mxu0 0
        %3641 = vmatprep.subr.bf16.mxu0 0
        %3642 = vmatpush1.bf16.msra.mxu0 0
        %3643 = vmatprep.subr.bf16.mxu0 0
        %3644 = vmatpush1.bf16.msra.mxu0 0
        %3645 = vmatprep.subr.bf16.mxu0 0
        %3646 = vmatpush1.bf16.msra.mxu0 0
        %3647 = vmatprep.subr.bf16.mxu0 0
        %3648 = vmatpush1.bf16.msra.mxu0 0
        %3649 = vmatprep.subr.bf16.mxu0 0
        %3650 = vmatpush1.bf16.msra.mxu0 0
        %3651 = vmatprep.mubr.bf16.mxu0 %v3095
        %3652 = vmatmul.mubr.bf16.gmra.mrb[0].mxu0 %v2779
        %v3653 = vpop.f32.mrb[0].mxu0
        %v3654 = vadd.f32 %v3583, %v3653
        %v3655 = vpop.f32.mrb[0].mxu0
        %v3656 = vadd.f32 %v3585, %v3655
        %v3657 = vpop.f32.mrb[0].mxu0
        %v3658 = vadd.f32 %v3587, %v3657
        %v3659 = vpop.f32.mrb[0].mxu0
        %v3660 = vadd.f32 %v3589, %v3659
        %3661 = vmatprep.mubr.bf16.mxu0 %v3098
        %3662 = vmatmul.mubr.bf16.gmra.mrb[0].mxu0 %v2783
        %v3663 = vpop.f32.mrb[0].mxu0
        %v3664 = vadd.f32 %v3593, %v3663
        %v3665 = vpop.f32.mrb[0].mxu0
        %v3666 = vadd.f32 %v3595, %v3665
        %v3667 = vpop.f32.mrb[0].mxu0
        %v3668 = vadd.f32 %v3597, %v3667
        %v3669 = vpop.f32.mrb[0].mxu0
        %v3670 = vadd.f32 %v3599, %v3669
        %3671 = vmatprep.mubr.bf16.mxu0 %v3101
        %3672 = vmatmul.mubr.bf16.gmra.mrb[0].mxu0 %v2787
        %v3673 = vpop.f32.mrb[0].mxu0
        %v3674 = vadd.f32 %v3603, %v3673
        %v3675 = vpop.f32.mrb[0].mxu0
        %v3676 = vadd.f32 %v3605, %v3675
        %v3677 = vpop.f32.mrb[0].mxu0
        %v3678 = vadd.f32 %v3607, %v3677
        %v3679 = vpop.f32.mrb[0].mxu0
        %v3680 = vadd.f32 %v3609, %v3679
        %3681 = vmatprep.mubr.bf16.mxu0 %v3104
        %3682 = vmatmul.mubr.bf16.gmra.mrb[0].mxu0 %v2791
        %v3683 = vpop.f32.mrb[0].mxu0
        %v3684 = vadd.f32 %v3613, %v3683
        %v3685 = vpop.f32.mrb[0].mxu0
        %v3686 = vadd.f32 %v3615, %v3685
        %v3687 = vpop.f32.mrb[0].mxu0
        %v3688 = vpop.f32.mrb[0].mxu0
        %3689 = vdwg.mxu0
        %v3690 = vmax.f32 %v3212, %v3654
        %v3691 = vmax.f32 %v3214, %v3656
        %v3692 = vmax.f32 %v3216, %v3658
        %v3693 = vmax.f32 %v3218, %v3660
        %v3694 = vmax.f32 %v3222, %v3664
        %v3695 = vmax.f32 %v3224, %v3666
        %v3696 = vmax.f32 %v3226, %v3668
        %v3697 = vmax.f32 %v3228, %v3670
        %v3698 = vmax.f32 %v3232, %v3674
        %v3699 = vmax.f32 %v3234, %v3676
        %v3700 = vmax.f32 %v3236, %v3678
        %v3701 = vmax.f32 %v3238, %v3680
        %v3702 = vmax.f32 %v3242, %v3684
        %v3703 = vmax.f32 %v3244, %v3686
        %v3704 = vpack.c.bf16 %v3692, %v3690
        %v3705 = vpack.c.bf16 %v3693, %v3691
        %v3706 = vpack.c.bf16 %v3696, %v3694
        %v3707 = vpack.c.bf16 %v3697, %v3695
        %v3708 = vpack.c.bf16 %v3700, %v3698
        %v3709 = vpack.c.bf16 %v3701, %v3699
        %v3710 = vpack.c.bf16 %v3702, %v3702
        %v3711 = vpack.c.bf16 %v3703, %v3703
        %v3720 = vunpack.c.l.b16 %v3704
        %v3721 = vunpack.c.l.b16 %v3705
        %v3722 = vunpack.c.h.b16 %v3704
        %v3723 = vunpack.c.h.b16 %v3705
        %v3724 = vunpack.c.l.b16 %v3706
        %v3725 = vunpack.c.l.b16 %v3707
        %v3726 = vunpack.c.h.b16 %v3706
        %v3727 = vunpack.c.h.b16 %v3707
        %v3728 = vunpack.c.l.b16 %v3708
        %v3729 = vunpack.c.l.b16 %v3709
        %v3730 = vunpack.c.h.b16 %v3708
        %v3731 = vunpack.c.h.b16 %v3709
        %v3732 = vunpack.c.l.b16 %v3710
        %v3733 = vunpack.c.l.b16 %v3711
        %v3734 = vpack.c.b16 %v3721, %v3720
        %v3735 = vpack.c.b16 %v3723, %v3722
        %v3736 = vpack.c.b16 %v3725, %v3724
        %v3737 = vpack.c.b16 %v3727, %v3726
        %v3738 = vpack.c.b16 %v3729, %v3728
        %v3739 = vpack.c.b16 %v3731, %v3730
        %v3740 = vpack.c.b16 %v3733, %v3732
        %vm3748 = vcmask 1043456
        %vm3749 = vcmask 588804
        %vm3750 = vmor %vm3749, %vm3748
        %3751 = vst.msk [vmem:[%s364] sm:$0xff] %vm3750, %v3734
        %3752 = vst.msk [vmem:[%s364 + $0x8] sm:$0xff] %vm3750, %v3735
        %3753 = vst.msk [vmem:[%s364 + $0x10] sm:$0xff] %vm3750, %v3736
        %3754 = vst.msk [vmem:[%s364 + $0x18] sm:$0xff] %vm3750, %v3737
        %3755 = vst.msk [vmem:[%s364 + $0x20] sm:$0xff] %vm3750, %v3738
        %3756 = vst.msk [vmem:[%s364 + $0x28] sm:$0xff] %vm3750, %v3739
        %vm3757 = vcmask 1040384
        %vm3758 = vcmask 585732
        %vm3759 = vmor %vm3758, %vm3757
        %3760 = vst.msk [vmem:[%s364 + $0x30] sm:$0x11] %vm3759, %v3740
        %p3761 = scmp.lt.s32.totalorder %s22, 1
        %s3762 = scalar_select %p3761, %s22, 1
        %s3763 = smul.addr %s3762, 14
        %s3764 = smul.addr %s3763, 4
        %s3765 = scalar_lea.vmem %s7, %s3764
        // Predicated region
        $region73: #{venty_forward.2} parent=47 // pred_check
          %p3766 = pneg %p192
        $region74: #{venty_forward.2} parent=47 // pred_check_branch
          %3768 = sbr.rel (%p3766) target = $region76
        $region75: #{venty_forward.2} parent=47 // pred_region
          _
        $region76: #{venty_forward.2} parent=47 // pred_fallthru
          _
      $region48: #{venty_forward.2} parent=5 // pred_fallthru
        _
      %p3769 = scmp.le.s32.totalorder 2, %s17
      // Predicated region
      $region77: #{venty_forward.2} parent=5 // pred_check
        %p3770 = pneg %p3769
      $region78: #{venty_forward.2} parent=5 // pred_check_branch
        %3772 = sbr.rel (%p3770) target = $region80
      $region79: #{venty_forward.2} parent=5 // pred_region
        %s3773 = ssub.s32 %s17, 2
        // Predicated region
        $region81: #{venty_forward.2} parent=79 // pred_check
          %p3774 = pneg %p198
        $region82: #{venty_forward.2} parent=79 // pred_check_branch
          %3776 = sbr.rel (%p3774) target = $region84
        $region83: #{venty_forward.2} parent=79 // pred_region
          %p3777 = scmp.lt.s32.totalorder %s23, 1
          %s3778 = scalar_select %p3777, %s23, 1
          %s3779 = smul.addr %s3778, 14
          %s3780 = smul.addr %s3779, 4
          %s3781 = scalar_lea.vmem %s7, %s3780
        $region84: #{venty_forward.2} parent=79 // pred_fallthru
          _
      $region80: #{venty_forward.2} parent=5 // pred_fallthru
        _
    $region6: #{venty_forward.2} parent=1 // loop_footer
      %s21 = sadd.s32 1, %s17
    $region7: #{venty_forward.2} parent=1 // loop_footer_branch
      %16 = sbr.rel target = $region3
    $region8: #{venty_forward.2} parent=1 // loop_exit
      _
    %3782 = vsyncpa [#allocation3], 1
    %s3783 = scalar_lea.sflag [#allocation3], 1
    %3784 = vsyncpa %s3783, 1
    %3785 = vsyncpa [#allocation5], 1
    %3786 = vsyncpa [#allocation8], 1
    %3787 = vsyncpa [#allocation11], 1

// kernel: venty_forward.3
$region0: #{venty_forward.3}
  #allocation0 [shape = 'u32[]', space=smem, size = 0x4, offset = 0x4, fixed_abs, tag = 'smem constant byte address 0x4 - core index']
  #allocation1 [shape = 'u32[144,128]{1,0:T(1,128)}', space=vmem, size = 0x12000, scoped, tag = 'internal scratch']
  #allocation2 [shape = 'f32[2,200]{1,0:T(2,128)}', space=vmem, size = 0x800, scoped, tag = 'scratch operand']
  #allocation3 [shape = 'f32[1,1]{1,0:T(1,128)S(1)}', space=vmem, size = 0x200, scoped, tag = 'scoped memory for venty_forward.3']
  %s0 = inlined_call_operand.vmem [shape: bf16[2,10240], index: 0, kind: input, shape index: {}]
  %s1 = inlined_call_operand.vmem [shape: s8[10240,200], index: 1, kind: input, shape index: {}]
  %s2 = inlined_call_operand.vmem [shape: f32[1,200], index: 2, kind: input, shape index: {}]
  %s3 = inlined_call_operand.vmem [shape: f32[1,200], index: 3, kind: input, shape index: {}]
  %s4 = inlined_call_operand.vmem [shape: f32[200,1], index: 4, kind: input, shape index: {}]
  %s5 = inlined_call_operand.<no memory space> [shape: f32[1,1], index: 5, kind: input, shape index: {}]
  %s6 = inlined_call_operand.vmem [shape: f32[2,1], index: 6, kind: output, shape index: {}]
  %s7 = sld [smem:[#allocation0]]
  $region65: #{venty_forward.3} parent=0
    _
  %s9 = ssub.s32 1, %s7
  %s10 = scalar_select 0, %s9, %s7
  %v11 = vstv %s5
  %12 = vst [vmem:[#allocation3] sm:$0x1] %v11
  loop: start=0, step=1, limit=4
  $region2: #{venty_forward.3} parent=0 // loop_pre_header
    _
  $region3: #{venty_forward.3} parent=0 // loop_header
    %s14 = sphi 0, %s18
    %p15 = scmp.ge.s32.totalorder %s14, 4
    %s24 = sphi 0, %s26
    %s27 = sphi 0, %s24
    %s28 = sphi 0, %s27
    %s44 = sphi 0, %s28
    %s50 = sphi 0, %s52
    %s53 = sphi 0, %s50
    %s54 = sphi 0, %s53
    %s70 = sphi 0, %s54
    %s74 = sphi 0, %s74
    %s76 = sphi 0, %s74
    %s77 = sphi 0, %s76
    %s91 = sphi 0, %s77
    %s95 = sphi 0, %s95
    %s97 = sphi 0, %s95
    %s98 = sphi 0, %s97
    %s112 = sphi 0, %s98
    %s116 = sphi 0, %s116
    %s118 = sphi 0, %s116
    %s119 = sphi 0, %s118
    %s133 = sphi 0, %s119
    %s137 = sphi 0, %s137
    %s139 = sphi 0, %s137
    %s140 = sphi 0, %s139
    %s154 = sphi 0, %s140
    %s158 = sphi 0, %s158
    %s160 = sphi 0, %s158
    %s161 = sphi 0, %s160
    %s175 = sphi 0, %s161
  $region4: #{venty_forward.3} parent=0 // loop_header_branch
    %17 = sbr.rel (%p15) target = $region8
  $region5: #{venty_forward.3} parent=0 // loop_body
    %s19 = ssub.s32 %s14, 1
    %s20 = ssub.s32 %s14, 2
    %s21 = sadd.s32 %s14, 1
    %s22 = ssub.s32 %s14, %s21
    %p23 = scmp.eq.s32.totalorder %s22, 0
    %s25 = sadd.s32 %s24, 1
    %s26 = scalar_select %p23, %s24, %s25
    %p29 = pneg %p23
    %p30 = scmp.eq.s32.totalorder %s14, 1
    %p31 = por %p29, %p30
    %p32 = scmp.ne.s32.totalorder %s24, %s27
    %p33 = scmp.eq.s32.totalorder %s14, 0
    %p34 = por %p32, %p33
    %p35 = scmp.ne.s32.totalorder %s24, %s27
    %p36 = scmp.eq.s32.totalorder %s19, 1
    %p37 = por %p35, %p36
    %p38 = scmp.ne.s32.totalorder %s27, %s28
    %p39 = scmp.eq.s32.totalorder %s19, 0
    %p40 = por %p38, %p39
    %p41 = scmp.ne.s32.totalorder %s27, %s28
    %p42 = scmp.eq.s32.totalorder %s20, 1
    %p43 = por %p41, %p42
    %p45 = scmp.ne.s32.totalorder %s28, %s44
    %p46 = scmp.eq.s32.totalorder %s20, 0
    %p47 = por %p45, %p46
    %s48 = ssub.s32 %s14, %s21
    %p49 = scmp.eq.s32.totalorder %s48, 0
    %s51 = sadd.s32 %s50, 1
    %s52 = scalar_select %p49, %s50, %s51
    %p55 = pneg %p49
    %p56 = scmp.eq.s32.totalorder %s14, 1
    %p57 = por %p55, %p56
    %p58 = scmp.ne.s32.totalorder %s50, %s53
    %p59 = scmp.eq.s32.totalorder %s14, 0
    %p60 = por %p58, %p59
    %p61 = scmp.ne.s32.totalorder %s50, %s53
    %p62 = scmp.eq.s32.totalorder %s19, 1
    %p63 = por %p61, %p62
    %p64 = scmp.ne.s32.totalorder %s53, %s54
    %p65 = scmp.eq.s32.totalorder %s19, 0
    %p66 = por %p64, %p65
    %p67 = scmp.ne.s32.totalorder %s53, %s54
    %p68 = scmp.eq.s32.totalorder %s20, 1
    %p69 = por %p67, %p68
    %p71 = scmp.ne.s32.totalorder %s54, %s70
    %p72 = scmp.eq.s32.totalorder %s20, 0
    %p73 = por %p71, %p72
    %s75 = sadd.s32 %s74, 1
    %p78 = scmp.eq.s32.totalorder %s14, 1
    %p79 = scmp.ne.s32.totalorder %s74, %s76
    %p80 = scmp.eq.s32.totalorder %s14, 0
    %p81 = por %p79, %p80
    %p82 = scmp.ne.s32.totalorder %s74, %s76
    %p83 = scmp.eq.s32.totalorder %s19, 1
    %p84 = por %p82, %p83
    %p85 = scmp.ne.s32.totalorder %s76, %s77
    %p86 = scmp.eq.s32.totalorder %s19, 0
    %p87 = por %p85, %p86
    %p88 = scmp.ne.s32.totalorder %s76, %s77
    %p89 = scmp.eq.s32.totalorder %s20, 1
    %p90 = por %p88, %p89
    %p92 = scmp.ne.s32.totalorder %s77, %s91
    %p93 = scmp.eq.s32.totalorder %s20, 0
    %p94 = por %p92, %p93
    %s96 = sadd.s32 %s95, 1
    %p99 = scmp.eq.s32.totalorder %s14, 1
    %p100 = scmp.ne.s32.totalorder %s95, %s97
    %p101 = scmp.eq.s32.totalorder %s14, 0
    %p102 = por %p100, %p101
    %p103 = scmp.ne.s32.totalorder %s95, %s97
    %p104 = scmp.eq.s32.totalorder %s19, 1
    %p105 = por %p103, %p104
    %p106 = scmp.ne.s32.totalorder %s97, %s98
    %p107 = scmp.eq.s32.totalorder %s19, 0
    %p108 = por %p106, %p107
    %p109 = scmp.ne.s32.totalorder %s97, %s98
    %p110 = scmp.eq.s32.totalorder %s20, 1
    %p111 = por %p109, %p110
    %p113 = scmp.ne.s32.totalorder %s98, %s112
    %p114 = scmp.eq.s32.totalorder %s20, 0
    %p115 = por %p113, %p114
    %s117 = sadd.s32 %s116, 1
    %p120 = scmp.eq.s32.totalorder %s14, 1
    %p121 = scmp.ne.s32.totalorder %s116, %s118
    %p122 = scmp.eq.s32.totalorder %s14, 0
    %p123 = por %p121, %p122
    %p124 = scmp.ne.s32.totalorder %s116, %s118
    %p125 = scmp.eq.s32.totalorder %s19, 1
    %p126 = por %p124, %p125
    %p127 = scmp.ne.s32.totalorder %s118, %s119
    %p128 = scmp.eq.s32.totalorder %s19, 0
    %p129 = por %p127, %p128
    %p130 = scmp.ne.s32.totalorder %s118, %s119
    %p131 = scmp.eq.s32.totalorder %s20, 1
    %p132 = por %p130, %p131
    %p134 = scmp.ne.s32.totalorder %s119, %s133
    %p135 = scmp.eq.s32.totalorder %s20, 0
    %p136 = por %p134, %p135
    %s138 = sadd.s32 %s137, 1
    %p141 = scmp.eq.s32.totalorder %s14, 1
    %p142 = scmp.ne.s32.totalorder %s137, %s139
    %p143 = scmp.eq.s32.totalorder %s14, 0
    %p144 = por %p142, %p143
    %p145 = scmp.ne.s32.totalorder %s137, %s139
    %p146 = scmp.eq.s32.totalorder %s19, 1
    %p147 = por %p145, %p146
    %p148 = scmp.ne.s32.totalorder %s139, %s140
    %p149 = scmp.eq.s32.totalorder %s19, 0
    %p150 = por %p148, %p149
    %p151 = scmp.ne.s32.totalorder %s139, %s140
    %p152 = scmp.eq.s32.totalorder %s20, 1
    %p153 = por %p151, %p152
    %p155 = scmp.ne.s32.totalorder %s140, %s154
    %p156 = scmp.eq.s32.totalorder %s20, 0
    %p157 = por %p155, %p156
    %s159 = sadd.s32 %s158, 1
    %p162 = scmp.eq.s32.totalorder %s14, 1
    %p163 = scmp.ne.s32.totalorder %s158, %s160
    %p164 = scmp.eq.s32.totalorder %s14, 0
    %p165 = por %p163, %p164
    %p166 = scmp.ne.s32.totalorder %s158, %s160
    %p167 = scmp.eq.s32.totalorder %s19, 1
    %p168 = por %p166, %p167
    %p169 = scmp.ne.s32.totalorder %s160, %s161
    %p170 = scmp.eq.s32.totalorder %s19, 0
    %p171 = por %p169, %p170
    %p172 = scmp.ne.s32.totalorder %s160, %s161
    %p173 = scmp.eq.s32.totalorder %s20, 1
    %p174 = por %p172, %p173
    %p176 = scmp.ne.s32.totalorder %s161, %s175
    %p177 = scmp.eq.s32.totalorder %s20, 0
    %p178 = por %p176, %p177
    %p179 = scmp.le.s32.totalorder 1, %s14
    %p180 = scmp.lt.s32.totalorder %s14, 3
    %p181 = pnand %p179, %p180
    %p182 = pneg %p181
    // Predicated region
    $region9: #{venty_forward.3} parent=5 // pred_check
      _
    $region10: #{venty_forward.3} parent=5 // pred_check_branch
      %184 = sbr.rel (%p181) target = $region12
    $region11: #{venty_forward.3} parent=5 // pred_region
      %s185 = ssub.s32 %s14, 1
      // Predicated region
      $region13: #{venty_forward.3} parent=11 // pred_check
        %p186 = pneg %p87
      $region14: #{venty_forward.3} parent=11 // pred_check_branch
        %188 = sbr.rel (%p186) target = $region16
      $region15: #{venty_forward.3} parent=11 // pred_region
        _
      $region16: #{venty_forward.3} parent=11 // pred_fallthru
        _
      // Predicated region
      $region17: #{venty_forward.3} parent=11 // pred_check
        %p189 = pneg %p108
      $region18: #{venty_forward.3} parent=11 // pred_check_branch
        %191 = sbr.rel (%p189) target = $region20
      $region19: #{venty_forward.3} parent=11 // pred_region
        _
      $region20: #{venty_forward.3} parent=11 // pred_fallthru
        _
      // Predicated region
      $region21: #{venty_forward.3} parent=11 // pred_check
        %p192 = pneg %p129
      $region22: #{venty_forward.3} parent=11 // pred_check_branch
        %194 = sbr.rel (%p192) target = $region24
      $region23: #{venty_forward.3} parent=11 // pred_region
        _
      $region24: #{venty_forward.3} parent=11 // pred_fallthru
        _
      // Predicated region
      $region25: #{venty_forward.3} parent=11 // pred_check
        %p195 = pneg %p150
      $region26: #{venty_forward.3} parent=11 // pred_check_branch
        %197 = sbr.rel (%p195) target = $region28
      $region27: #{venty_forward.3} parent=11 // pred_region
        _
      $region28: #{venty_forward.3} parent=11 // pred_fallthru
        _
    $region12: #{venty_forward.3} parent=5 // pred_fallthru
      _
    %p198 = scmp.lt.s32.totalorder %s14, 2
    // Predicated region
    $region29: #{venty_forward.3} parent=5 // pred_check
      %p199 = pneg %p198
    $region30: #{venty_forward.3} parent=5 // pred_check_branch
      %201 = sbr.rel (%p199) target = $region32
    $region31: #{venty_forward.3} parent=5 // pred_region
      // Predicated region
      $region33: #{venty_forward.3} parent=31 // pred_check
        %p202 = pneg %p34
      $region34: #{venty_forward.3} parent=31 // pred_check_branch
        %204 = sbr.rel (%p202) target = $region36
      $region35: #{venty_forward.3} parent=31 // pred_region
        %s205 = smul.u32 40, %s14
        %p206 = scmp.lt.s32.totalorder %s205, 79
        %s207 = scalar_select %p206, %s205, 79
        %s208 = scalar_lea.vmem %s0, %s207
        %s209 = smul.u32 40, %s14
      $region36: #{venty_forward.3} parent=31 // pred_fallthru
        _
      // Predicated region
      $region37: #{venty_forward.3} parent=31 // pred_check
        %p210 = pneg %p60
      $region38: #{venty_forward.3} parent=31 // pred_check_branch
        %212 = sbr.rel (%p210) target = $region40
      $region39: #{venty_forward.3} parent=31 // pred_region
        %s213 = smul.u32 160, %s14
        %p214 = scmp.lt.s32.totalorder %s213, 319
        %s215 = scalar_select %p214, %s213, 319
        %s216 = smul.addr %s215, 2
        %s217 = smul.addr %s216, 8
        %s218 = scalar_lea.vmem %s1, %s217
        %s219 = smul.u32 160, %s14
      $region40: #{venty_forward.3} parent=31 // pred_fallthru
        _
    $region32: #{venty_forward.3} parent=5 // pred_fallthru
      _
    %p220 = scmp.le.s32.totalorder 1, %s14
    %p221 = scmp.lt.s32.totalorder %s14, 3
    %p222 = pnand %p220, %p221
    %p223 = pneg %p222
    // Predicated region
    $region41: #{venty_forward.3} parent=5 // pred_check
      _
    $region42: #{venty_forward.3} parent=5 // pred_check_branch
      %225 = sbr.rel (%p222) target = $region44
    $region43: #{venty_forward.3} parent=5 // pred_region
      %s226 = ssub.s32 %s14, 1
      %s227 = smul.u32 40, %s19
      %p228 = scmp.lt.s32.totalorder %s227, 79
      %s229 = scalar_select %p228, %s227, 79
      %s230 = scalar_lea.vmem %s0, %s229
      %p231 = pneg %p40
      %p232 = pneg %p37
      %s233 = smul.u32 160, %s19
      %p234 = scmp.lt.s32.totalorder %s233, 319
      %s235 = scalar_select %p234, %s233, 319
      %s236 = smul.addr %s235, 2
      %s237 = smul.addr %s236, 8
      %s238 = scalar_lea.vmem %s1, %s237
      %p239 = pneg %p66
      %p240 = pneg %p63
      %p241 = pneg %p87
      %p242 = pneg %p84
      %p243 = pneg %p108
      %p244 = pneg %p105
      %p245 = pneg %p129
      %p246 = pneg %p126
      %p247 = pneg %p150
      %p248 = pneg %p147
      %p249 = pneg %p171
      %p250 = pneg %p168
      %s251 = smul.u32 40, %s19
      %p252 = scmp.lt.s32.totalorder %s251, 79
      %s253 = scalar_select %p252, %s251, 79
      %s254 = scalar_lea.vmem %s0, %s253
      %s255 = smul.u32 40, %s19
      %s256 = smul.u32 160, %s19
      %p257 = scmp.lt.s32.totalorder %s256, 319
      %s258 = scalar_select %p257, %s256, 319
      %s259 = smul.addr %s258, 2
      %s260 = smul.addr %s259, 8
      %s261 = scalar_lea.vmem %s1, %s260
      %s262 = smul.u32 160, %s19
      %p263 = scmp.eq.s32.totalorder %s19, 0
      // Predicated region
      $region45: #{venty_forward.3} parent=43 // pred_check
        %p264 = pneg %p263
      $region46: #{venty_forward.3} parent=43 // pred_check_branch
        %266 = sbr.rel (%p264) target = $region48
      $region47: #{venty_forward.3} parent=43 // pred_region
        %vm267 = vcmask 1041408
        %vm268 = vcmask 584706
        %vm269 = vmor %vm268, %vm267
        %270 = vst.msk [vmem:[#allocation2] sm:$0xf] %vm269, 0.0
      $region48: #{venty_forward.3} parent=43 // pred_fallthru
        _
      %v271 = vld [vmem:[#allocation2] sm:$0xf]
      %v272 = vld [vmem:[%s261] sm:$0xff]
      %v273 = vld [vmem:[%s261 + $0x8] sm:$0xff]
      %v274 = vld [vmem:[%s261 + $0x10] sm:$0xff]
      %v275 = vld [vmem:[%s261 + $0x18] sm:$0xff]
      %v276 = vld [vmem:[%s261 + $0x20] sm:$0xff]
      %v277 = vld [vmem:[%s261 + $0x28] sm:$0xff]
      %v278 = vld [vmem:[%s261 + $0x30] sm:$0xff]
      %v279 = vld [vmem:[%s261 + $0x38] sm:$0xff]
      %v280 = vld [vmem:[%s261 + $0x40] sm:$0xff]
      %v281 = vld [vmem:[%s261 + $0x48] sm:$0xff]
      %v282 = vld [vmem:[%s261 + $0x50] sm:$0xff]
      %v283 = vld [vmem:[%s261 + $0x58] sm:$0xff]
      %v284 = vld [vmem:[%s261 + $0x60] sm:$0xff]
      %v285 = vld [vmem:[%s261 + $0x68] sm:$0xff]
      %v286 = vld [vmem:[%s261 + $0x70] sm:$0xff]
      %v287 = vld [vmem:[%s261 + $0x78] sm:$0xff]
      %v288 = vld [vmem:[%s261 + $0x80] sm:$0xff]
      %v289 = vld [vmem:[%s261 + $0x88] sm:$0xff]
      %v290 = vld [vmem:[%s261 + $0x90] sm:$0xff]
      %v291 = vld [vmem:[%s261 + $0x98] sm:$0xff]
      %v292 = vld [vmem:[%s261 + $0xa0] sm:$0xff]
      %v293 = vld [vmem:[%s261 + $0xa8] sm:$0xff]
      %v294 = vld [vmem:[%s261 + $0xb0] sm:$0xff]
      %v295 = vld [vmem:[%s261 + $0xb8] sm:$0xff]
      %v296 = vld [vmem:[%s261 + $0xc0] sm:$0xff]
      %v297 = vld [vmem:[%s261 + $0xc8] sm:$0xff]
      %v298 = vld [vmem:[%s261 + $0xd0] sm:$0xff]
      %v299 = vld [vmem:[%s261 + $0xd8] sm:$0xff]
      %v300 = vld [vmem:[%s261 + $0xe0] sm:$0xff]
      %v301 = vld [vmem:[%s261 + $0xe8] sm:$0xff]
      %v302 = vld [vmem:[%s261 + $0xf0] sm:$0xff]
      %v303 = vld [vmem:[%s261 + $0xf8] sm:$0xff]
      %v304 = vld [vmem:[%s261 + $0x100] sm:$0xff]
      %v305 = vld [vmem:[%s261 + $0x108] sm:$0xff]
      %v306 = vld [vmem:[%s261 + $0x110] sm:$0xff]
      %v307 = vld [vmem:[%s261 + $0x118] sm:$0xff]
      %v308 = vld [vmem:[%s261 + $0x120] sm:$0xff]
      %v309 = vld [vmem:[%s261 + $0x128] sm:$0xff]
      %v310 = vld [vmem:[%s261 + $0x130] sm:$0xff]
      %v311 = vld [vmem:[%s261 + $0x138] sm:$0xff]
      %v312 = vld [vmem:[%s261 + $0x140] sm:$0xff]
      %v313 = vld [vmem:[%s261 + $0x148] sm:$0xff]
      %v314 = vld [vmem:[%s261 + $0x150] sm:$0xff]
      %v315 = vld [vmem:[%s261 + $0x158] sm:$0xff]
      %v316 = vld [vmem:[%s261 + $0x160] sm:$0xff]
      %v317 = vld [vmem:[%s261 + $0x168] sm:$0xff]
      %v318 = vld [vmem:[%s261 + $0x170] sm:$0xff]
      %v319 = vld [vmem:[%s261 + $0x178] sm:$0xff]
      %v320 = vld [vmem:[%s261 + $0x180] sm:$0xff]
      %v321 = vld [vmem:[%s261 + $0x188] sm:$0xff]
      %v322 = vld [vmem:[%s261 + $0x190] sm:$0xff]
      %v323 = vld [vmem:[%s261 + $0x198] sm:$0xff]
      %v324 = vld [vmem:[%s261 + $0x1a0] sm:$0xff]
      %v325 = vld [vmem:[%s261 + $0x1a8] sm:$0xff]
      %v326 = vld [vmem:[%s261 + $0x1b0] sm:$0xff]
      %v327 = vld [vmem:[%s261 + $0x1b8] sm:$0xff]
      %v328 = vld [vmem:[%s261 + $0x1c0] sm:$0xff]
      %v329 = vld [vmem:[%s261 + $0x1c8] sm:$0xff]
      %v330 = vld [vmem:[%s261 + $0x1d0] sm:$0xff]
      %v331 = vld [vmem:[%s261 + $0x1d8] sm:$0xff]
      %v332 = vld [vmem:[%s261 + $0x1e0] sm:$0xff]
      %v333 = vld [vmem:[%s261 + $0x1e8] sm:$0xff]
      %v334 = vld [vmem:[%s261 + $0x1f0] sm:$0xff]
      %v335 = vld [vmem:[%s261 + $0x1f8] sm:$0xff]
      %v336 = vld [vmem:[%s261 + $0x200] sm:$0xff]
      %v337 = vld [vmem:[%s261 + $0x208] sm:$0xff]
      %v338 = vld [vmem:[%s261 + $0x210] sm:$0xff]
      %v339 = vld [vmem:[%s261 + $0x218] sm:$0xff]
      %v340 = vld [vmem:[%s261 + $0x220] sm:$0xff]
      %v341 = vld [vmem:[%s261 + $0x228] sm:$0xff]
      %v342 = vld [vmem:[%s261 + $0x230] sm:$0xff]
      %v343 = vld [vmem:[%s261 + $0x238] sm:$0xff]
      %v344 = vld [vmem:[%s261 + $0x240] sm:$0xff]
      %v345 = vld [vmem:[%s261 + $0x248] sm:$0xff]
      %v346 = vld [vmem:[%s261 + $0x250] sm:$0xff]
      %v347 = vld [vmem:[%s261 + $0x258] sm:$0xff]
      %v348 = vld [vmem:[%s261 + $0x260] sm:$0xff]
      %v349 = vld [vmem:[%s261 + $0x268] sm:$0xff]
      %v350 = vld [vmem:[%s261 + $0x270] sm:$0xff]
      %v351 = vld [vmem:[%s261 + $0x278] sm:$0xff]
      %v352 = vunpack.c.l.s8.bf16 %v272
      %v353 = vunpack.c.l.s8.bf16 %v273
      %v354 = vunpack.c.h.s8.bf16 %v272
      %v355 = vunpack.c.h.s8.bf16 %v273
      %v356 = vunpack.c.l.s8.bf16 %v274
      %v357 = vunpack.c.l.s8.bf16 %v275
      %v358 = vunpack.c.h.s8.bf16 %v274
      %v359 = vunpack.c.h.s8.bf16 %v275
      %v360 = vunpack.c.l.s8.bf16 %v276
      %v361 = vunpack.c.l.s8.bf16 %v277
      %v362 = vunpack.c.h.s8.bf16 %v276
      %v363 = vunpack.c.h.s8.bf16 %v277
      %v364 = vunpack.c.l.s8.bf16 %v278
      %v365 = vunpack.c.l.s8.bf16 %v279
      %v366 = vunpack.c.h.s8.bf16 %v278
      %v367 = vunpack.c.h.s8.bf16 %v279
      %v368 = vunpack.c.l.s8.bf16 %v280
      %v369 = vunpack.c.l.s8.bf16 %v281
      %v370 = vunpack.c.h.s8.bf16 %v280
      %v371 = vunpack.c.h.s8.bf16 %v281
      %v372 = vunpack.c.l.s8.bf16 %v282
      %v373 = vunpack.c.l.s8.bf16 %v283
      %v374 = vunpack.c.h.s8.bf16 %v282
      %v375 = vunpack.c.h.s8.bf16 %v283
      %v376 = vunpack.c.l.s8.bf16 %v284
      %v377 = vunpack.c.l.s8.bf16 %v285
      %v378 = vunpack.c.h.s8.bf16 %v284
      %v379 = vunpack.c.h.s8.bf16 %v285
      %v380 = vunpack.c.l.s8.bf16 %v286
      %v381 = vunpack.c.l.s8.bf16 %v287
      %v382 = vunpack.c.h.s8.bf16 %v286
      %v383 = vunpack.c.h.s8.bf16 %v287
      %v384 = vunpack.c.l.s8.bf16 %v288
      %v385 = vunpack.c.l.s8.bf16 %v289
      %v386 = vunpack.c.h.s8.bf16 %v288
      %v387 = vunpack.c.h.s8.bf16 %v289
      %v388 = vunpack.c.l.s8.bf16 %v290
      %v389 = vunpack.c.l.s8.bf16 %v291
      %v390 = vunpack.c.h.s8.bf16 %v290
      %v391 = vunpack.c.h.s8.bf16 %v291
      %v392 = vunpack.c.l.s8.bf16 %v292
      %v393 = vunpack.c.l.s8.bf16 %v293
      %v394 = vunpack.c.h.s8.bf16 %v292
      %v395 = vunpack.c.h.s8.bf16 %v293
      %v396 = vunpack.c.l.s8.bf16 %v294
      %v397 = vunpack.c.l.s8.bf16 %v295
      %v398 = vunpack.c.h.s8.bf16 %v294
      %v399 = vunpack.c.h.s8.bf16 %v295
      %v400 = vunpack.c.l.s8.bf16 %v296
      %v401 = vunpack.c.l.s8.bf16 %v297
      %v402 = vunpack.c.h.s8.bf16 %v296
      %v403 = vunpack.c.h.s8.bf16 %v297
      %v404 = vunpack.c.l.s8.bf16 %v298
      %v405 = vunpack.c.l.s8.bf16 %v299
      %v406 = vunpack.c.h.s8.bf16 %v298
      %v407 = vunpack.c.h.s8.bf16 %v299
      %v408 = vunpack.c.l.s8.bf16 %v300
      %v409 = vunpack.c.l.s8.bf16 %v301
      %v410 = vunpack.c.h.s8.bf16 %v300
      %v411 = vunpack.c.h.s8.bf16 %v301
      %v412 = vunpack.c.l.s8.bf16 %v302
      %v413 = vunpack.c.l.s8.bf16 %v303
      %v414 = vunpack.c.h.s8.bf16 %v302
      %v415 = vunpack.c.h.s8.bf16 %v303
      %v416 = vunpack.c.l.s8.bf16 %v304
      %v417 = vunpack.c.l.s8.bf16 %v305
      %v418 = vunpack.c.h.s8.bf16 %v304
      %v419 = vunpack.c.h.s8.bf16 %v305
      %v420 = vunpack.c.l.s8.bf16 %v306
      %v421 = vunpack.c.l.s8.bf16 %v307
      %v422 = vunpack.c.h.s8.bf16 %v306
      %v423 = vunpack.c.h.s8.bf16 %v307
      %v424 = vunpack.c.l.s8.bf16 %v308
      %v425 = vunpack.c.l.s8.bf16 %v309
      %v426 = vunpack.c.h.s8.bf16 %v308
      %v427 = vunpack.c.h.s8.bf16 %v309
      %v428 = vunpack.c.l.s8.bf16 %v310
      %v429 = vunpack.c.l.s8.bf16 %v311
      %v430 = vunpack.c.h.s8.bf16 %v310
      %v431 = vunpack.c.h.s8.bf16 %v311
      %v432 = vunpack.c.l.s8.bf16 %v312
      %v433 = vunpack.c.l.s8.bf16 %v313
      %v434 = vunpack.c.h.s8.bf16 %v312
      %v435 = vunpack.c.h.s8.bf16 %v313
      %v436 = vunpack.c.l.s8.bf16 %v314
      %v437 = vunpack.c.l.s8.bf16 %v315
      %v438 = vunpack.c.h.s8.bf16 %v314
      %v439 = vunpack.c.h.s8.bf16 %v315
      %v440 = vunpack.c.l.s8.bf16 %v316
      %v441 = vunpack.c.l.s8.bf16 %v317
      %v442 = vunpack.c.h.s8.bf16 %v316
      %v443 = vunpack.c.h.s8.bf16 %v317
      %v444 = vunpack.c.l.s8.bf16 %v318
      %v445 = vunpack.c.l.s8.bf16 %v319
      %v446 = vunpack.c.h.s8.bf16 %v318
      %v447 = vunpack.c.h.s8.bf16 %v319
      %v448 = vunpack.c.l.s8.bf16 %v320
      %v449 = vunpack.c.l.s8.bf16 %v321
      %v450 = vunpack.c.h.s8.bf16 %v320
      %v451 = vunpack.c.h.s8.bf16 %v321
      %v452 = vunpack.c.l.s8.bf16 %v322
      %v453 = vunpack.c.l.s8.bf16 %v323
      %v454 = vunpack.c.h.s8.bf16 %v322
      %v455 = vunpack.c.h.s8.bf16 %v323
      %v456 = vunpack.c.l.s8.bf16 %v324
      %v457 = vunpack.c.l.s8.bf16 %v325
      %v458 = vunpack.c.h.s8.bf16 %v324
      %v459 = vunpack.c.h.s8.bf16 %v325
      %v460 = vunpack.c.l.s8.bf16 %v326
      %v461 = vunpack.c.l.s8.bf16 %v327
      %v462 = vunpack.c.h.s8.bf16 %v326
      %v463 = vunpack.c.h.s8.bf16 %v327
      %v464 = vunpack.c.l.s8.bf16 %v328
      %v465 = vunpack.c.l.s8.bf16 %v329
      %v466 = vunpack.c.h.s8.bf16 %v328
      %v467 = vunpack.c.h.s8.bf16 %v329
      %v468 = vunpack.c.l.s8.bf16 %v330
      %v469 = vunpack.c.l.s8.bf16 %v331
      %v470 = vunpack.c.h.s8.bf16 %v330
      %v471 = vunpack.c.h.s8.bf16 %v331
      %v472 = vunpack.c.l.s8.bf16 %v332
      %v473 = vunpack.c.l.s8.bf16 %v333
      %v474 = vunpack.c.h.s8.bf16 %v332
      %v475 = vunpack.c.h.s8.bf16 %v333
      %v476 = vunpack.c.l.s8.bf16 %v334
      %v477 = vunpack.c.l.s8.bf16 %v335
      %v478 = vunpack.c.h.s8.bf16 %v334
      %v479 = vunpack.c.h.s8.bf16 %v335
      %v480 = vunpack.c.l.s8.bf16 %v336
      %v481 = vunpack.c.l.s8.bf16 %v337
      %v482 = vunpack.c.h.s8.bf16 %v336
      %v483 = vunpack.c.h.s8.bf16 %v337
      %v484 = vunpack.c.l.s8.bf16 %v338
      %v485 = vunpack.c.l.s8.bf16 %v339
      %v486 = vunpack.c.h.s8.bf16 %v338
      %v487 = vunpack.c.h.s8.bf16 %v339
      %v488 = vunpack.c.l.s8.bf16 %v340
      %v489 = vunpack.c.l.s8.bf16 %v341
      %v490 = vunpack.c.h.s8.bf16 %v340
      %v491 = vunpack.c.h.s8.bf16 %v341
      %v492 = vunpack.c.l.s8.bf16 %v342
      %v493 = vunpack.c.l.s8.bf16 %v343
      %v494 = vunpack.c.h.s8.bf16 %v342
      %v495 = vunpack.c.h.s8.bf16 %v343
      %v496 = vunpack.c.l.s8.bf16 %v344
      %v497 = vunpack.c.l.s8.bf16 %v345
      %v498 = vunpack.c.h.s8.bf16 %v344
      %v499 = vunpack.c.h.s8.bf16 %v345
      %v500 = vunpack.c.l.s8.bf16 %v346
      %v501 = vunpack.c.l.s8.bf16 %v347
      %v502 = vunpack.c.h.s8.bf16 %v346
      %v503 = vunpack.c.h.s8.bf16 %v347
      %v504 = vunpack.c.l.s8.bf16 %v348
      %v505 = vunpack.c.l.s8.bf16 %v349
      %v506 = vunpack.c.h.s8.bf16 %v348
      %v507 = vunpack.c.h.s8.bf16 %v349
      %v508 = vunpack.c.l.s8.bf16 %v350
      %v509 = vunpack.c.l.s8.bf16 %v351
      %v510 = vunpack.c.h.s8.bf16 %v350
      %v511 = vunpack.c.h.s8.bf16 %v351
      %v512 = vld [vmem:[%s254] sm:$0xff]
      %v513 = vld [vmem:[%s254 + $0x8] sm:$0x3]
      %v516 = vcombine.high %v512, %v512
      %v518 = vunpack.c.l.s4 1966171168
      %v519 = vunpack.c.0.s8 %v518
      %v520 = vlaneseq
      %v521 = vshrl.u32 %v520, 7
      %v522 = vsub.s32 %v519, %v521
      %v523 = vrot.slane %v512, %v522
      %v525 = vunpack.c.l.s4 1966171168
      %v526 = vunpack.c.0.s8 %v525
      %v527 = vlaneseq
      %v528 = vshrl.u32 %v527, 7
      %v529 = vsub.s32 %v526, %v528
      %v530 = vrot.slane %v516, %v529
      %v531 = vcombine.high %v523, %v523
      %v532 = vcombine.high %v530, %v530
      %v534 = vunpack.c.l.s4 1966171168
      %v535 = vunpack.c.0.s8 %v534
      %v536 = vlaneseq
      %v537 = vshrl.u32 %v536, 7
      %v538 = vsub.s32 %v535, %v537
      %v539 = vrot.slane %v523, %v538
      %v541 = vunpack.c.l.s4 1966171168
      %v542 = vunpack.c.0.s8 %v541
      %v543 = vlaneseq
      %v544 = vshrl.u32 %v543, 7
      %v545 = vsub.s32 %v542, %v544
      %v546 = vrot.slane %v530, %v545
      %v548 = vunpack.c.l.s4 1966171168
      %v549 = vunpack.c.0.s8 %v548
      %v550 = vlaneseq
      %v551 = vshrl.u32 %v550, 7
      %v552 = vsub.s32 %v549, %v551
      %v553 = vrot.slane %v531, %v552
      %v555 = vunpack.c.l.s4 1966171168
      %v556 = vunpack.c.0.s8 %v555
      %v557 = vlaneseq
      %v558 = vshrl.u32 %v557, 7
      %v559 = vsub.s32 %v556, %v558
      %v560 = vrot.slane %v532, %v559
      %v561 = vcombine.high %v539, %v539
      %v562 = vcombine.high %v546, %v546
      %v563 = vcombine.high %v553, %v553
      %v564 = vcombine.high %v560, %v560
      %v566 = vunpack.c.l.s4 1966171168
      %v567 = vunpack.c.0.s8 %v566
      %v568 = vlaneseq
      %v569 = vshrl.u32 %v568, 7
      %v570 = vsub.s32 %v567, %v569
      %v571 = vrot.slane %v513, %v570
      %v572 = vcombine.high %v571, %v571
      %v574 = vunpack.c.l.s4 1966171168
      %v575 = vunpack.c.0.s8 %v574
      %v576 = vlaneseq
      %v577 = vshrl.u32 %v576, 7
      %v578 = vsub.s32 %v575, %v577
      %v579 = vrot.slane %v571, %v578
      %v581 = vunpack.c.l.s4 1966171168
      %v582 = vunpack.c.0.s8 %v581
      %v583 = vlaneseq
      %v584 = vshrl.u32 %v583, 7
      %v585 = vsub.s32 %v582, %v584
      %v586 = vrot.slane %v572, %v585
      %597 = vmatprep.subr.bf16.mxu0 %v353
      %598 = vmatpush1.bf16.msra.mxu0 %v352
      %599 = vmatprep.subr.bf16.mxu0 %v355
      %600 = vmatpush1.bf16.msra.mxu0 %v354
      %601 = vmatprep.subr.bf16.mxu0 %v357
      %602 = vmatpush1.bf16.msra.mxu0 %v356
      %603 = vmatprep.subr.bf16.mxu0 %v359
      %604 = vmatpush1.bf16.msra.mxu0 %v358
      %605 = vmatprep.subr.bf16.mxu0 %v361
      %606 = vmatpush1.bf16.msra.mxu0 %v360
      %607 = vmatprep.subr.bf16.mxu0 %v363
      %608 = vmatpush1.bf16.msra.mxu0 %v362
      %609 = vmatprep.subr.bf16.mxu0 %v365
      %610 = vmatpush1.bf16.msra.mxu0 %v364
      %611 = vmatprep.subr.bf16.mxu0 %v367
      %612 = vmatpush1.bf16.msra.mxu0 %v366
      %613 = vmatprep.subr.bf16.mxu0 %v369
      %614 = vmatpush1.bf16.msra.mxu0 %v368
      %615 = vmatprep.subr.bf16.mxu0 %v371
      %616 = vmatpush1.bf16.msra.mxu0 %v370
      %617 = vmatprep.subr.bf16.mxu0 %v373
      %618 = vmatpush1.bf16.msra.mxu0 %v372
      %619 = vmatprep.subr.bf16.mxu0 %v375
      %620 = vmatpush1.bf16.msra.mxu0 %v374
      %621 = vmatprep.subr.bf16.mxu0 %v377
      %622 = vmatpush1.bf16.msra.mxu0 %v376
      %623 = vmatprep.subr.bf16.mxu0 %v379
      %624 = vmatpush1.bf16.msra.mxu0 %v378
      %625 = vmatprep.subr.bf16.mxu0 %v381
      %626 = vmatpush1.bf16.msra.mxu0 %v380
      %627 = vmatprep.subr.bf16.mxu0 %v383
      %628 = vmatpush1.bf16.msra.mxu0 %v382
      %629 = vmatprep.mubr.bf16.mxu0 %v553
      %630 = vmatmul.mubr.bf16.gmra.mrb[0].mxu0 %v539
      %v631 = vpop.f32.mrb[0].mxu0
      %v632 = vadd.f32 0.0, %v631
      %v633 = vpop.f32.mrb[0].mxu0
      %v634 = vadd.f32 0.0, %v633
      %v635 = vpop.f32.mrb[0].mxu0
      %v636 = vpop.f32.mrb[0].mxu0
      %637 = vdwg.mxu0
      %638 = vmatprep.subr.bf16.mxu0 %v385
      %639 = vmatpush1.bf16.msra.mxu0 %v384
      %640 = vmatprep.subr.bf16.mxu0 %v387
      %641 = vmatpush1.bf16.msra.mxu0 %v386
      %642 = vmatprep.subr.bf16.mxu0 %v389
      %643 = vmatpush1.bf16.msra.mxu0 %v388
      %644 = vmatprep.subr.bf16.mxu0 %v391
      %645 = vmatpush1.bf16.msra.mxu0 %v390
      %646 = vmatprep.subr.bf16.mxu0 %v393
      %647 = vmatpush1.bf16.msra.mxu0 %v392
      %648 = vmatprep.subr.bf16.mxu0 %v395
      %649 = vmatpush1.bf16.msra.mxu0 %v394
      %650 = vmatprep.subr.bf16.mxu0 %v397
      %651 = vmatpush1.bf16.msra.mxu0 %v396
      %652 = vmatprep.subr.bf16.mxu0 %v399
      %653 = vmatpush1.bf16.msra.mxu0 %v398
      %654 = vmatprep.subr.bf16.mxu0 %v401
      %655 = vmatpush1.bf16.msra.mxu0 %v400
      %656 = vmatprep.subr.bf16.mxu0 %v403
      %657 = vmatpush1.bf16.msra.mxu0 %v402
      %658 = vmatprep.subr.bf16.mxu0 %v405
      %659 = vmatpush1.bf16.msra.mxu0 %v404
      %660 = vmatprep.subr.bf16.mxu0 %v407
      %661 = vmatpush1.bf16.msra.mxu0 %v406
      %662 = vmatprep.subr.bf16.mxu0 %v409
      %663 = vmatpush1.bf16.msra.mxu0 %v408
      %664 = vmatprep.subr.bf16.mxu0 %v411
      %665 = vmatpush1.bf16.msra.mxu0 %v410
      %666 = vmatprep.subr.bf16.mxu0 %v413
      %667 = vmatpush1.bf16.msra.mxu0 %v412
      %668 = vmatprep.subr.bf16.mxu0 %v415
      %669 = vmatpush1.bf16.msra.mxu0 %v414
      %670 = vmatprep.mubr.bf16.mxu0 %v563
      %671 = vmatmul.mubr.bf16.gmra.mrb[0].mxu0 %v561
      %v672 = vpop.f32.mrb[0].mxu0
      %v673 = vadd.f32 %v632, %v672
      %v674 = vpop.f32.mrb[0].mxu0
      %v675 = vadd.f32 %v634, %v674
      %v676 = vpop.f32.mrb[0].mxu0
      %v677 = vpop.f32.mrb[0].mxu0
      %678 = vdwg.mxu0
      %679 = vmatprep.subr.bf16.mxu0 %v417
      %680 = vmatpush1.bf16.msra.mxu0 %v416
      %681 = vmatprep.subr.bf16.mxu0 %v419
      %682 = vmatpush1.bf16.msra.mxu0 %v418
      %683 = vmatprep.subr.bf16.mxu0 %v421
      %684 = vmatpush1.bf16.msra.mxu0 %v420
      %685 = vmatprep.subr.bf16.mxu0 %v423
      %686 = vmatpush1.bf16.msra.mxu0 %v422
      %687 = vmatprep.subr.bf16.mxu0 %v425
      %688 = vmatpush1.bf16.msra.mxu0 %v424
      %689 = vmatprep.subr.bf16.mxu0 %v427
      %690 = vmatpush1.bf16.msra.mxu0 %v426
      %691 = vmatprep.subr.bf16.mxu0 %v429
      %692 = vmatpush1.bf16.msra.mxu0 %v428
      %693 = vmatprep.subr.bf16.mxu0 %v431
      %694 = vmatpush1.bf16.msra.mxu0 %v430
      %695 = vmatprep.subr.bf16.mxu0 %v433
      %696 = vmatpush1.bf16.msra.mxu0 %v432
      %697 = vmatprep.subr.bf16.mxu0 %v435
      %698 = vmatpush1.bf16.msra.mxu0 %v434
      %699 = vmatprep.subr.bf16.mxu0 %v437
      %700 = vmatpush1.bf16.msra.mxu0 %v436
      %701 = vmatprep.subr.bf16.mxu0 %v439
      %702 = vmatpush1.bf16.msra.mxu0 %v438
      %703 = vmatprep.subr.bf16.mxu0 %v441
      %704 = vmatpush1.bf16.msra.mxu0 %v440
      %705 = vmatprep.subr.bf16.mxu0 %v443
      %706 = vmatpush1.bf16.msra.mxu0 %v442
      %707 = vmatprep.subr.bf16.mxu0 %v445
      %708 = vmatpush1.bf16.msra.mxu0 %v444
      %709 = vmatprep.subr.bf16.mxu0 %v447
      %710 = vmatpush1.bf16.msra.mxu0 %v446
      %711 = vmatprep.mubr.bf16.mxu0 %v560
      %712 = vmatmul.mubr.bf16.gmra.mrb[0].mxu0 %v546
      %v713 = vpop.f32.mrb[0].mxu0
      %v714 = vadd.f32 %v673, %v713
      %v715 = vpop.f32.mrb[0].mxu0
      %v716 = vadd.f32 %v675, %v715
      %v717 = vpop.f32.mrb[0].mxu0
      %v718 = vpop.f32.mrb[0].mxu0
      %719 = vdwg.mxu0
      %720 = vmatprep.subr.bf16.mxu0 %v449
      %721 = vmatpush1.bf16.msra.mxu0 %v448
      %722 = vmatprep.subr.bf16.mxu0 %v451
      %723 = vmatpush1.bf16.msra.mxu0 %v450
      %724 = vmatprep.subr.bf16.mxu0 %v453
      %725 = vmatpush1.bf16.msra.mxu0 %v452
      %726 = vmatprep.subr.bf16.mxu0 %v455
      %727 = vmatpush1.bf16.msra.mxu0 %v454
      %728 = vmatprep.subr.bf16.mxu0 %v457
      %729 = vmatpush1.bf16.msra.mxu0 %v456
      %730 = vmatprep.subr.bf16.mxu0 %v459
      %731 = vmatpush1.bf16.msra.mxu0 %v458
      %732 = vmatprep.subr.bf16.mxu0 %v461
      %733 = vmatpush1.bf16.msra.mxu0 %v460
      %734 = vmatprep.subr.bf16.mxu0 %v463
      %735 = vmatpush1.bf16.msra.mxu0 %v462
      %736 = vmatprep.subr.bf16.mxu0 %v465
      %737 = vmatpush1.bf16.msra.mxu0 %v464
      %738 = vmatprep.subr.bf16.mxu0 %v467
      %739 = vmatpush1.bf16.msra.mxu0 %v466
      %740 = vmatprep.subr.bf16.mxu0 %v469
      %741 = vmatpush1.bf16.msra.mxu0 %v468
      %742 = vmatprep.subr.bf16.mxu0 %v471
      %743 = vmatpush1.bf16.msra.mxu0 %v470
      %744 = vmatprep.subr.bf16.mxu0 %v473
      %745 = vmatpush1.bf16.msra.mxu0 %v472
      %746 = vmatprep.subr.bf16.mxu0 %v475
      %747 = vmatpush1.bf16.msra.mxu0 %v474
      %748 = vmatprep.subr.bf16.mxu0 %v477
      %749 = vmatpush1.bf16.msra.mxu0 %v476
      %750 = vmatprep.subr.bf16.mxu0 %v479
      %751 = vmatpush1.bf16.msra.mxu0 %v478
      %752 = vmatprep.mubr.bf16.mxu0 %v564
      %753 = vmatmul.mubr.bf16.gmra.mrb[0].mxu0 %v562
      %v754 = vpop.f32.mrb[0].mxu0
      %v755 = vadd.f32 %v714, %v754
      %v756 = vpop.f32.mrb[0].mxu0
      %v757 = vadd.f32 %v716, %v756
      %v758 = vpop.f32.mrb[0].mxu0
      %v759 = vpop.f32.mrb[0].mxu0
      %760 = vdwg.mxu0
      %761 = vmatprep.subr.bf16.mxu0 %v481
      %762 = vmatpush1.bf16.msra.mxu0 %v480
      %763 = vmatprep.subr.bf16.mxu0 %v483
      %764 = vmatpush1.bf16.msra.mxu0 %v482
      %765 = vmatprep.subr.bf16.mxu0 %v485
      %766 = vmatpush1.bf16.msra.mxu0 %v484
      %767 = vmatprep.subr.bf16.mxu0 %v487
      %768 = vmatpush1.bf16.msra.mxu0 %v486
      %769 = vmatprep.subr.bf16.mxu0 %v489
      %770 = vmatpush1.bf16.msra.mxu0 %v488
      %771 = vmatprep.subr.bf16.mxu0 %v491
      %772 = vmatpush1.bf16.msra.mxu0 %v490
      %773 = vmatprep.subr.bf16.mxu0 %v493
      %774 = vmatpush1.bf16.msra.mxu0 %v492
      %775 = vmatprep.subr.bf16.mxu0 %v495
      %776 = vmatpush1.bf16.msra.mxu0 %v494
      %777 = vmatprep.subr.bf16.mxu0 %v497
      %778 = vmatpush1.bf16.msra.mxu0 %v496
      %779 = vmatprep.subr.bf16.mxu0 %v499
      %780 = vmatpush1.bf16.msra.mxu0 %v498
      %781 = vmatprep.subr.bf16.mxu0 %v501
      %782 = vmatpush1.bf16.msra.mxu0 %v500
      %783 = vmatprep.subr.bf16.mxu0 %v503
      %784 = vmatpush1.bf16.msra.mxu0 %v502
      %785 = vmatprep.subr.bf16.mxu0 %v505
      %786 = vmatpush1.bf16.msra.mxu0 %v504
      %787 = vmatprep.subr.bf16.mxu0 %v507
      %788 = vmatpush1.bf16.msra.mxu0 %v506
      %789 = vmatprep.subr.bf16.mxu0 %v509
      %790 = vmatpush1.bf16.msra.mxu0 %v508
      %791 = vmatprep.subr.bf16.mxu0 %v511
      %792 = vmatpush1.bf16.msra.mxu0 %v510
      %793 = vmatprep.mubr.bf16.mxu0 %v586
      %794 = vmatmul.mubr.bf16.gmra.mrb[0].mxu0 %v579
      %v795 = vpop.f32.mrb[0].mxu0
      %v796 = vadd.f32 %v755, %v795
      %v797 = vpop.f32.mrb[0].mxu0
      %v798 = vadd.f32 %v757, %v797
      %v799 = vpop.f32.mrb[0].mxu0
      %v800 = vpop.f32.mrb[0].mxu0
      %801 = vdwg.mxu0
      %v804 = vcombine.low %v796, %v798
      %v806 = vunpack.c.l.s4 1983009808
      %v807 = vunpack.c.0.s8 %v806
      %v808 = vlaneseq
      %v809 = vshrl.u32 %v808, 7
      %v810 = vsub.s32 %v807, %v809
      %v811 = vrot.slane %v804, %v810
      %v813 = vadd.f32 %v271, %v811
      %v814 = vld [vmem:[%s261 + $0x280] sm:$0xff]
      %v815 = vld [vmem:[%s261 + $0x288] sm:$0xff]
      %v816 = vld [vmem:[%s261 + $0x290] sm:$0xff]
      %v817 = vld [vmem:[%s261 + $0x298] sm:$0xff]
      %v818 = vld [vmem:[%s261 + $0x2a0] sm:$0xff]
      %v819 = vld [vmem:[%s261 + $0x2a8] sm:$0xff]
      %v820 = vld [vmem:[%s261 + $0x2b0] sm:$0xff]
      %v821 = vld [vmem:[%s261 + $0x2b8] sm:$0xff]
      %v822 = vld [vmem:[%s261 + $0x2c0] sm:$0xff]
      %v823 = vld [vmem:[%s261 + $0x2c8] sm:$0xff]
      %v824 = vld [vmem:[%s261 + $0x2d0] sm:$0xff]
      %v825 = vld [vmem:[%s261 + $0x2d8] sm:$0xff]
      %v826 = vld [vmem:[%s261 + $0x2e0] sm:$0xff]
      %v827 = vld [vmem:[%s261 + $0x2e8] sm:$0xff]
      %v828 = vld [vmem:[%s261 + $0x2f0] sm:$0xff]
      %v829 = vld [vmem:[%s261 + $0x2f8] sm:$0xff]
      %v830 = vld [vmem:[%s261 + $0x300] sm:$0xff]
      %v831 = vld [vmem:[%s261 + $0x308] sm:$0xff]
      %v832 = vld [vmem:[%s261 + $0x310] sm:$0xff]
      %v833 = vld [vmem:[%s261 + $0x318] sm:$0xff]
      %v834 = vld [vmem:[%s261 + $0x320] sm:$0xff]
      %v835 = vld [vmem:[%s261 + $0x328] sm:$0xff]
      %v836 = vld [vmem:[%s261 + $0x330] sm:$0xff]
      %v837 = vld [vmem:[%s261 + $0x338] sm:$0xff]
      %v838 = vld [vmem:[%s261 + $0x340] sm:$0xff]
      %v839 = vld [vmem:[%s261 + $0x348] sm:$0xff]
      %v840 = vld [vmem:[%s261 + $0x350] sm:$0xff]
      %v841 = vld [vmem:[%s261 + $0x358] sm:$0xff]
      %v842 = vld [vmem:[%s261 + $0x360] sm:$0xff]
      %v843 = vld [vmem:[%s261 + $0x368] sm:$0xff]
      %v844 = vld [vmem:[%s261 + $0x370] sm:$0xff]
      %v845 = vld [vmem:[%s261 + $0x378] sm:$0xff]
      %v846 = vld [vmem:[%s261 + $0x380] sm:$0xff]
      %v847 = vld [vmem:[%s261 + $0x388] sm:$0xff]
      %v848 = vld [vmem:[%s261 + $0x390] sm:$0xff]
      %v849 = vld [vmem:[%s261 + $0x398] sm:$0xff]
      %v850 = vld [vmem:[%s261 + $0x3a0] sm:$0xff]
      %v851 = vld [vmem:[%s261 + $0x3a8] sm:$0xff]
      %v852 = vld [vmem:[%s261 + $0x3b0] sm:$0xff]
      %v853 = vld [vmem:[%s261 + $0x3b8] sm:$0xff]
      %v854 = vld [vmem:[%s261 + $0x3c0] sm:$0xff]
      %v855 = vld [vmem:[%s261 + $0x3c8] sm:$0xff]
      %v856 = vld [vmem:[%s261 + $0x3d0] sm:$0xff]
      %v857 = vld [vmem:[%s261 + $0x3d8] sm:$0xff]
      %v858 = vld [vmem:[%s261 + $0x3e0] sm:$0xff]
      %v859 = vld [vmem:[%s261 + $0x3e8] sm:$0xff]
      %v860 = vld [vmem:[%s261 + $0x3f0] sm:$0xff]
      %v861 = vld [vmem:[%s261 + $0x3f8] sm:$0xff]
      %v862 = vld [vmem:[%s261 + $0x400] sm:$0xff]
      %v863 = vld [vmem:[%s261 + $0x408] sm:$0xff]
      %v864 = vld [vmem:[%s261 + $0x410] sm:$0xff]
      %v865 = vld [vmem:[%s261 + $0x418] sm:$0xff]
      %v866 = vld [vmem:[%s261 + $0x420] sm:$0xff]
      %v867 = vld [vmem:[%s261 + $0x428] sm:$0xff]
      %v868 = vld [vmem:[%s261 + $0x430] sm:$0xff]
      %v869 = vld [vmem:[%s261 + $0x438] sm:$0xff]
      %v870 = vld [vmem:[%s261 + $0x440] sm:$0xff]
      %v871 = vld [vmem:[%s261 + $0x448] sm:$0xff]
      %v872 = vld [vmem:[%s261 + $0x450] sm:$0xff]
      %v873 = vld [vmem:[%s261 + $0x458] sm:$0xff]
      %v874 = vld [vmem:[%s261 + $0x460] sm:$0xff]
      %v875 = vld [vmem:[%s261 + $0x468] sm:$0xff]
      %v876 = vld [vmem:[%s261 + $0x470] sm:$0xff]
      %v877 = vld [vmem:[%s261 + $0x478] sm:$0xff]
      %v878 = vld [vmem:[%s261 + $0x480] sm:$0xff]
      %v879 = vld [vmem:[%s261 + $0x488] sm:$0xff]
      %v880 = vld [vmem:[%s261 + $0x490] sm:$0xff]
      %v881 = vld [vmem:[%s261 + $0x498] sm:$0xff]
      %v882 = vld [vmem:[%s261 + $0x4a0] sm:$0xff]
      %v883 = vld [vmem:[%s261 + $0x4a8] sm:$0xff]
      %v884 = vld [vmem:[%s261 + $0x4b0] sm:$0xff]
      %v885 = vld [vmem:[%s261 + $0x4b8] sm:$0xff]
      %v886 = vld [vmem:[%s261 + $0x4c0] sm:$0xff]
      %v887 = vld [vmem:[%s261 + $0x4c8] sm:$0xff]
      %v888 = vld [vmem:[%s261 + $0x4d0] sm:$0xff]
      %v889 = vld [vmem:[%s261 + $0x4d8] sm:$0xff]
      %v890 = vld [vmem:[%s261 + $0x4e0] sm:$0xff]
      %v891 = vld [vmem:[%s261 + $0x4e8] sm:$0xff]
      %v892 = vld [vmem:[%s261 + $0x4f0] sm:$0xff]
      %v893 = vld [vmem:[%s261 + $0x4f8] sm:$0xff]
      %v894 = vunpack.c.l.s8.bf16 %v814
      %v895 = vunpack.c.l.s8.bf16 %v815
      %v896 = vunpack.c.h.s8.bf16 %v814
      %v897 = vunpack.c.h.s8.bf16 %v815
      %v898 = vunpack.c.l.s8.bf16 %v816
      %v899 = vunpack.c.l.s8.bf16 %v817
      %v900 = vunpack.c.h.s8.bf16 %v816
      %v901 = vunpack.c.h.s8.bf16 %v817
      %v902 = vunpack.c.l.s8.bf16 %v818
      %v903 = vunpack.c.l.s8.bf16 %v819
      %v904 = vunpack.c.h.s8.bf16 %v818
      %v905 = vunpack.c.h.s8.bf16 %v819
      %v906 = vunpack.c.l.s8.bf16 %v820
      %v907 = vunpack.c.l.s8.bf16 %v821
      %v908 = vunpack.c.h.s8.bf16 %v820
      %v909 = vunpack.c.h.s8.bf16 %v821
      %v910 = vunpack.c.l.s8.bf16 %v822
      %v911 = vunpack.c.l.s8.bf16 %v823
      %v912 = vunpack.c.h.s8.bf16 %v822
      %v913 = vunpack.c.h.s8.bf16 %v823
      %v914 = vunpack.c.l.s8.bf16 %v824
      %v915 = vunpack.c.l.s8.bf16 %v825
      %v916 = vunpack.c.h.s8.bf16 %v824
      %v917 = vunpack.c.h.s8.bf16 %v825
      %v918 = vunpack.c.l.s8.bf16 %v826
      %v919 = vunpack.c.l.s8.bf16 %v827
      %v920 = vunpack.c.h.s8.bf16 %v826
      %v921 = vunpack.c.h.s8.bf16 %v827
      %v922 = vunpack.c.l.s8.bf16 %v828
      %v923 = vunpack.c.l.s8.bf16 %v829
      %v924 = vunpack.c.h.s8.bf16 %v828
      %v925 = vunpack.c.h.s8.bf16 %v829
      %v926 = vunpack.c.l.s8.bf16 %v830
      %v927 = vunpack.c.l.s8.bf16 %v831
      %v928 = vunpack.c.h.s8.bf16 %v830
      %v929 = vunpack.c.h.s8.bf16 %v831
      %v930 = vunpack.c.l.s8.bf16 %v832
      %v931 = vunpack.c.l.s8.bf16 %v833
      %v932 = vunpack.c.h.s8.bf16 %v832
      %v933 = vunpack.c.h.s8.bf16 %v833
      %v934 = vunpack.c.l.s8.bf16 %v834
      %v935 = vunpack.c.l.s8.bf16 %v835
      %v936 = vunpack.c.h.s8.bf16 %v834
      %v937 = vunpack.c.h.s8.bf16 %v835
      %v938 = vunpack.c.l.s8.bf16 %v836
      %v939 = vunpack.c.l.s8.bf16 %v837
      %v940 = vunpack.c.h.s8.bf16 %v836
      %v941 = vunpack.c.h.s8.bf16 %v837
      %v942 = vunpack.c.l.s8.bf16 %v838
      %v943 = vunpack.c.l.s8.bf16 %v839
      %v944 = vunpack.c.h.s8.bf16 %v838
      %v945 = vunpack.c.h.s8.bf16 %v839
      %v946 = vunpack.c.l.s8.bf16 %v840
      %v947 = vunpack.c.l.s8.bf16 %v841
      %v948 = vunpack.c.h.s8.bf16 %v840
      %v949 = vunpack.c.h.s8.bf16 %v841
      %v950 = vunpack.c.l.s8.bf16 %v842
      %v951 = vunpack.c.l.s8.bf16 %v843
      %v952 = vunpack.c.h.s8.bf16 %v842
      %v953 = vunpack.c.h.s8.bf16 %v843
      %v954 = vunpack.c.l.s8.bf16 %v844
      %v955 = vunpack.c.l.s8.bf16 %v845
      %v956 = vunpack.c.h.s8.bf16 %v844
      %v957 = vunpack.c.h.s8.bf16 %v845
      %v958 = vunpack.c.l.s8.bf16 %v846
      %v959 = vunpack.c.l.s8.bf16 %v847
      %v960 = vunpack.c.h.s8.bf16 %v846
      %v961 = vunpack.c.h.s8.bf16 %v847
      %v962 = vunpack.c.l.s8.bf16 %v848
      %v963 = vunpack.c.l.s8.bf16 %v849
      %v964 = vunpack.c.h.s8.bf16 %v848
      %v965 = vunpack.c.h.s8.bf16 %v849
      %v966 = vunpack.c.l.s8.bf16 %v850
      %v967 = vunpack.c.l.s8.bf16 %v851
      %v968 = vunpack.c.h.s8.bf16 %v850
      %v969 = vunpack.c.h.s8.bf16 %v851
      %v970 = vunpack.c.l.s8.bf16 %v852
      %v971 = vunpack.c.l.s8.bf16 %v853
      %v972 = vunpack.c.h.s8.bf16 %v852
      %v973 = vunpack.c.h.s8.bf16 %v853
      %v974 = vunpack.c.l.s8.bf16 %v854
      %v975 = vunpack.c.l.s8.bf16 %v855
      %v976 = vunpack.c.h.s8.bf16 %v854
      %v977 = vunpack.c.h.s8.bf16 %v855
      %v978 = vunpack.c.l.s8.bf16 %v856
      %v979 = vunpack.c.l.s8.bf16 %v857
      %v980 = vunpack.c.h.s8.bf16 %v856
      %v981 = vunpack.c.h.s8.bf16 %v857
      %v982 = vunpack.c.l.s8.bf16 %v858
      %v983 = vunpack.c.l.s8.bf16 %v859
      %v984 = vunpack.c.h.s8.bf16 %v858
      %v985 = vunpack.c.h.s8.bf16 %v859
      %v986 = vunpack.c.l.s8.bf16 %v860
      %v987 = vunpack.c.l.s8.bf16 %v861
      %v988 = vunpack.c.h.s8.bf16 %v860
      %v989 = vunpack.c.h.s8.bf16 %v861
      %v990 = vunpack.c.l.s8.bf16 %v862
      %v991 = vunpack.c.l.s8.bf16 %v863
      %v992 = vunpack.c.h.s8.bf16 %v862
      %v993 = vunpack.c.h.s8.bf16 %v863
      %v994 = vunpack.c.l.s8.bf16 %v864
      %v995 = vunpack.c.l.s8.bf16 %v865
      %v996 = vunpack.c.h.s8.bf16 %v864
      %v997 = vunpack.c.h.s8.bf16 %v865
      %v998 = vunpack.c.l.s8.bf16 %v866
      %v999 = vunpack.c.l.s8.bf16 %v867
      %v1000 = vunpack.c.h.s8.bf16 %v866
      %v1001 = vunpack.c.h.s8.bf16 %v867
      %v1002 = vunpack.c.l.s8.bf16 %v868
      %v1003 = vunpack.c.l.s8.bf16 %v869
      %v1004 = vunpack.c.h.s8.bf16 %v868
      %v1005 = vunpack.c.h.s8.bf16 %v869
      %v1006 = vunpack.c.l.s8.bf16 %v870
      %v1007 = vunpack.c.l.s8.bf16 %v871
      %v1008 = vunpack.c.h.s8.bf16 %v870
      %v1009 = vunpack.c.h.s8.bf16 %v871
      %v1010 = vunpack.c.l.s8.bf16 %v872
      %v1011 = vunpack.c.l.s8.bf16 %v873
      %v1012 = vunpack.c.h.s8.bf16 %v872
      %v1013 = vunpack.c.h.s8.bf16 %v873
      %v1014 = vunpack.c.l.s8.bf16 %v874
      %v1015 = vunpack.c.l.s8.bf16 %v875
      %v1016 = vunpack.c.h.s8.bf16 %v874
      %v1017 = vunpack.c.h.s8.bf16 %v875
      %v1018 = vunpack.c.l.s8.bf16 %v876
      %v1019 = vunpack.c.l.s8.bf16 %v877
      %v1020 = vunpack.c.h.s8.bf16 %v876
      %v1021 = vunpack.c.h.s8.bf16 %v877
      %v1022 = vunpack.c.l.s8.bf16 %v878
      %v1023 = vunpack.c.l.s8.bf16 %v879
      %v1024 = vunpack.c.h.s8.bf16 %v878
      %v1025 = vunpack.c.h.s8.bf16 %v879
      %v1026 = vunpack.c.l.s8.bf16 %v880
      %v1027 = vunpack.c.l.s8.bf16 %v881
      %v1028 = vunpack.c.h.s8.bf16 %v880
      %v1029 = vunpack.c.h.s8.bf16 %v881
      %v1030 = vunpack.c.l.s8.bf16 %v882
      %v1031 = vunpack.c.l.s8.bf16 %v883
      %v1032 = vunpack.c.h.s8.bf16 %v882
      %v1033 = vunpack.c.h.s8.bf16 %v883
      %v1034 = vunpack.c.l.s8.bf16 %v884
      %v1035 = vunpack.c.l.s8.bf16 %v885
      %v1036 = vunpack.c.h.s8.bf16 %v884
      %v1037 = vunpack.c.h.s8.bf16 %v885
      %v1038 = vunpack.c.l.s8.bf16 %v886
      %v1039 = vunpack.c.l.s8.bf16 %v887
      %v1040 = vunpack.c.h.s8.bf16 %v886
      %v1041 = vunpack.c.h.s8.bf16 %v887
      %v1042 = vunpack.c.l.s8.bf16 %v888
      %v1043 = vunpack.c.l.s8.bf16 %v889
      %v1044 = vunpack.c.h.s8.bf16 %v888
      %v1045 = vunpack.c.h.s8.bf16 %v889
      %v1046 = vunpack.c.l.s8.bf16 %v890
      %v1047 = vunpack.c.l.s8.bf16 %v891
      %v1048 = vunpack.c.h.s8.bf16 %v890
      %v1049 = vunpack.c.h.s8.bf16 %v891
      %v1050 = vunpack.c.l.s8.bf16 %v892
      %v1051 = vunpack.c.l.s8.bf16 %v893
      %v1052 = vunpack.c.h.s8.bf16 %v892
      %v1053 = vunpack.c.h.s8.bf16 %v893
      %v1054 = vld [vmem:[%s254 + $0xa] sm:$0xff]
      %v1055 = vld [vmem:[%s254 + $0x12] sm:$0x3]
      %v1058 = vcombine.high %v1054, %v1054
      %v1060 = vunpack.c.l.s4 1966171168
      %v1061 = vunpack.c.0.s8 %v1060
      %v1062 = vlaneseq
      %v1063 = vshrl.u32 %v1062, 7
      %v1064 = vsub.s32 %v1061, %v1063
      %v1065 = vrot.slane %v1054, %v1064
      %v1067 = vunpack.c.l.s4 1966171168
      %v1068 = vunpack.c.0.s8 %v1067
      %v1069 = vlaneseq
      %v1070 = vshrl.u32 %v1069, 7
      %v1071 = vsub.s32 %v1068, %v1070
      %v1072 = vrot.slane %v1058, %v1071
      %v1073 = vcombine.high %v1065, %v1065
      %v1074 = vcombine.high %v1072, %v1072
      %v1076 = vunpack.c.l.s4 1966171168
      %v1077 = vunpack.c.0.s8 %v1076
      %v1078 = vlaneseq
      %v1079 = vshrl.u32 %v1078, 7
      %v1080 = vsub.s32 %v1077, %v1079
      %v1081 = vrot.slane %v1065, %v1080
      %v1083 = vunpack.c.l.s4 1966171168
      %v1084 = vunpack.c.0.s8 %v1083
      %v1085 = vlaneseq
      %v1086 = vshrl.u32 %v1085, 7
      %v1087 = vsub.s32 %v1084, %v1086
      %v1088 = vrot.slane %v1072, %v1087
      %v1090 = vunpack.c.l.s4 1966171168
      %v1091 = vunpack.c.0.s8 %v1090
      %v1092 = vlaneseq
      %v1093 = vshrl.u32 %v1092, 7
      %v1094 = vsub.s32 %v1091, %v1093
      %v1095 = vrot.slane %v1073, %v1094
      %v1097 = vunpack.c.l.s4 1966171168
      %v1098 = vunpack.c.0.s8 %v1097
      %v1099 = vlaneseq
      %v1100 = vshrl.u32 %v1099, 7
      %v1101 = vsub.s32 %v1098, %v1100
      %v1102 = vrot.slane %v1074, %v1101
      %v1103 = vcombine.high %v1081, %v1081
      %v1104 = vcombine.high %v1088, %v1088
      %v1105 = vcombine.high %v1095, %v1095
      %v1106 = vcombine.high %v1102, %v1102
      %v1108 = vunpack.c.l.s4 1966171168
      %v1109 = vunpack.c.0.s8 %v1108
      %v1110 = vlaneseq
      %v1111 = vshrl.u32 %v1110, 7
      %v1112 = vsub.s32 %v1109, %v1111
      %v1113 = vrot.slane %v1055, %v1112
      %v1114 = vcombine.high %v1113, %v1113
      %v1116 = vunpack.c.l.s4 1966171168
      %v1117 = vunpack.c.0.s8 %v1116
      %v1118 = vlaneseq
      %v1119 = vshrl.u32 %v1118, 7
      %v1120 = vsub.s32 %v1117, %v1119
      %v1121 = vrot.slane %v1113, %v1120
      %v1123 = vunpack.c.l.s4 1966171168
      %v1124 = vunpack.c.0.s8 %v1123
      %v1125 = vlaneseq
      %v1126 = vshrl.u32 %v1125, 7
      %v1127 = vsub.s32 %v1124, %v1126
      %v1128 = vrot.slane %v1114, %v1127
      %1139 = vmatprep.subr.bf16.mxu0 %v895
      %1140 = vmatpush1.bf16.msra.mxu0 %v894
      %1141 = vmatprep.subr.bf16.mxu0 %v897
      %1142 = vmatpush1.bf16.msra.mxu0 %v896
      %1143 = vmatprep.subr.bf16.mxu0 %v899
      %1144 = vmatpush1.bf16.msra.mxu0 %v898
      %1145 = vmatprep.subr.bf16.mxu0 %v901
      %1146 = vmatpush1.bf16.msra.mxu0 %v900
      %1147 = vmatprep.subr.bf16.mxu0 %v903
      %1148 = vmatpush1.bf16.msra.mxu0 %v902
      %1149 = vmatprep.subr.bf16.mxu0 %v905
      %1150 = vmatpush1.bf16.msra.mxu0 %v904
      %1151 = vmatprep.subr.bf16.mxu0 %v907
      %1152 = vmatpush1.bf16.msra.mxu0 %v906
      %1153 = vmatprep.subr.bf16.mxu0 %v909
      %1154 = vmatpush1.bf16.msra.mxu0 %v908
      %1155 = vmatprep.subr.bf16.mxu0 %v911
      %1156 = vmatpush1.bf16.msra.mxu0 %v910
      %1157 = vmatprep.subr.bf16.mxu0 %v913
      %1158 = vmatpush1.bf16.msra.mxu0 %v912
      %1159 = vmatprep.subr.bf16.mxu0 %v915
      %1160 = vmatpush1.bf16.msra.mxu0 %v914
      %1161 = vmatprep.subr.bf16.mxu0 %v917
      %1162 = vmatpush1.bf16.msra.mxu0 %v916
      %1163 = vmatprep.subr.bf16.mxu0 %v919
      %1164 = vmatpush1.bf16.msra.mxu0 %v918
      %1165 = vmatprep.subr.bf16.mxu0 %v921
      %1166 = vmatpush1.bf16.msra.mxu0 %v920
      %1167 = vmatprep.subr.bf16.mxu0 %v923
      %1168 = vmatpush1.bf16.msra.mxu0 %v922
      %1169 = vmatprep.subr.bf16.mxu0 %v925
      %1170 = vmatpush1.bf16.msra.mxu0 %v924
      %1171 = vmatprep.mubr.bf16.mxu0 %v1095
      %1172 = vmatmul.mubr.bf16.gmra.mrb[0].mxu0 %v1081
      %v1173 = vpop.f32.mrb[0].mxu0
      %v1174 = vadd.f32 0.0, %v1173
      %v1175 = vpop.f32.mrb[0].mxu0
      %v1176 = vadd.f32 0.0, %v1175
      %v1177 = vpop.f32.mrb[0].mxu0
      %v1178 = vpop.f32.mrb[0].mxu0
      %1179 = vdwg.mxu0
      %1180 = vmatprep.subr.bf16.mxu0 %v927
      %1181 = vmatpush1.bf16.msra.mxu0 %v926
      %1182 = vmatprep.subr.bf16.mxu0 %v929
      %1183 = vmatpush1.bf16.msra.mxu0 %v928
      %1184 = vmatprep.subr.bf16.mxu0 %v931
      %1185 = vmatpush1.bf16.msra.mxu0 %v930
      %1186 = vmatprep.subr.bf16.mxu0 %v933
      %1187 = vmatpush1.bf16.msra.mxu0 %v932
      %1188 = vmatprep.subr.bf16.mxu0 %v935
      %1189 = vmatpush1.bf16.msra.mxu0 %v934
      %1190 = vmatprep.subr.bf16.mxu0 %v937
      %1191 = vmatpush1.bf16.msra.mxu0 %v936
      %1192 = vmatprep.subr.bf16.mxu0 %v939
      %1193 = vmatpush1.bf16.msra.mxu0 %v938
      %1194 = vmatprep.subr.bf16.mxu0 %v941
      %1195 = vmatpush1.bf16.msra.mxu0 %v940
      %1196 = vmatprep.subr.bf16.mxu0 %v943
      %1197 = vmatpush1.bf16.msra.mxu0 %v942
      %1198 = vmatprep.subr.bf16.mxu0 %v945
      %1199 = vmatpush1.bf16.msra.mxu0 %v944
      %1200 = vmatprep.subr.bf16.mxu0 %v947
      %1201 = vmatpush1.bf16.msra.mxu0 %v946
      %1202 = vmatprep.subr.bf16.mxu0 %v949
      %1203 = vmatpush1.bf16.msra.mxu0 %v948
      %1204 = vmatprep.subr.bf16.mxu0 %v951
      %1205 = vmatpush1.bf16.msra.mxu0 %v950
      %1206 = vmatprep.subr.bf16.mxu0 %v953
      %1207 = vmatpush1.bf16.msra.mxu0 %v952
      %1208 = vmatprep.subr.bf16.mxu0 %v955
      %1209 = vmatpush1.bf16.msra.mxu0 %v954
      %1210 = vmatprep.subr.bf16.mxu0 %v957
      %1211 = vmatpush1.bf16.msra.mxu0 %v956
      %1212 = vmatprep.mubr.bf16.mxu0 %v1105
      %1213 = vmatmul.mubr.bf16.gmra.mrb[0].mxu0 %v1103
      %v1214 = vpop.f32.mrb[0].mxu0
      %v1215 = vadd.f32 %v1174, %v1214
      %v1216 = vpop.f32.mrb[0].mxu0
      %v1217 = vadd.f32 %v1176, %v1216
      %v1218 = vpop.f32.mrb[0].mxu0
      %v1219 = vpop.f32.mrb[0].mxu0
      %1220 = vdwg.mxu0
      %1221 = vmatprep.subr.bf16.mxu0 %v959
      %1222 = vmatpush1.bf16.msra.mxu0 %v958
      %1223 = vmatprep.subr.bf16.mxu0 %v961
      %1224 = vmatpush1.bf16.msra.mxu0 %v960
      %1225 = vmatprep.subr.bf16.mxu0 %v963
      %1226 = vmatpush1.bf16.msra.mxu0 %v962
      %1227 = vmatprep.subr.bf16.mxu0 %v965
      %1228 = vmatpush1.bf16.msra.mxu0 %v964
      %1229 = vmatprep.subr.bf16.mxu0 %v967
      %1230 = vmatpush1.bf16.msra.mxu0 %v966
      %1231 = vmatprep.subr.bf16.mxu0 %v969
      %1232 = vmatpush1.bf16.msra.mxu0 %v968
      %1233 = vmatprep.subr.bf16.mxu0 %v971
      %1234 = vmatpush1.bf16.msra.mxu0 %v970
      %1235 = vmatprep.subr.bf16.mxu0 %v973
      %1236 = vmatpush1.bf16.msra.mxu0 %v972
      %1237 = vmatprep.subr.bf16.mxu0 %v975
      %1238 = vmatpush1.bf16.msra.mxu0 %v974
      %1239 = vmatprep.subr.bf16.mxu0 %v977
      %1240 = vmatpush1.bf16.msra.mxu0 %v976
      %1241 = vmatprep.subr.bf16.mxu0 %v979
      %1242 = vmatpush1.bf16.msra.mxu0 %v978
      %1243 = vmatprep.subr.bf16.mxu0 %v981
      %1244 = vmatpush1.bf16.msra.mxu0 %v980
      %1245 = vmatprep.subr.bf16.mxu0 %v983
      %1246 = vmatpush1.bf16.msra.mxu0 %v982
      %1247 = vmatprep.subr.bf16.mxu0 %v985
      %1248 = vmatpush1.bf16.msra.mxu0 %v984
      %1249 = vmatprep.subr.bf16.mxu0 %v987
      %1250 = vmatpush1.bf16.msra.mxu0 %v986
      %1251 = vmatprep.subr.bf16.mxu0 %v989
      %1252 = vmatpush1.bf16.msra.mxu0 %v988
      %1253 = vmatprep.mubr.bf16.mxu0 %v1102
      %1254 = vmatmul.mubr.bf16.gmra.mrb[0].mxu0 %v1088
      %v1255 = vpop.f32.mrb[0].mxu0
      %v1256 = vadd.f32 %v1215, %v1255
      %v1257 = vpop.f32.mrb[0].mxu0
      %v1258 = vadd.f32 %v1217, %v1257
      %v1259 = vpop.f32.mrb[0].mxu0
      %v1260 = vpop.f32.mrb[0].mxu0
      %1261 = vdwg.mxu0
      %1262 = vmatprep.subr.bf16.mxu0 %v991
      %1263 = vmatpush1.bf16.msra.mxu0 %v990
      %1264 = vmatprep.subr.bf16.mxu0 %v993
      %1265 = vmatpush1.bf16.msra.mxu0 %v992
      %1266 = vmatprep.subr.bf16.mxu0 %v995
      %1267 = vmatpush1.bf16.msra.mxu0 %v994
      %1268 = vmatprep.subr.bf16.mxu0 %v997
      %1269 = vmatpush1.bf16.msra.mxu0 %v996
      %1270 = vmatprep.subr.bf16.mxu0 %v999
      %1271 = vmatpush1.bf16.msra.mxu0 %v998
      %1272 = vmatprep.subr.bf16.mxu0 %v1001
      %1273 = vmatpush1.bf16.msra.mxu0 %v1000
      %1274 = vmatprep.subr.bf16.mxu0 %v1003
      %1275 = vmatpush1.bf16.msra.mxu0 %v1002
      %1276 = vmatprep.subr.bf16.mxu0 %v1005
      %1277 = vmatpush1.bf16.msra.mxu0 %v1004
      %1278 = vmatprep.subr.bf16.mxu0 %v1007
      %1279 = vmatpush1.bf16.msra.mxu0 %v1006
      %1280 = vmatprep.subr.bf16.mxu0 %v1009
      %1281 = vmatpush1.bf16.msra.mxu0 %v1008
      %1282 = vmatprep.subr.bf16.mxu0 %v1011
      %1283 = vmatpush1.bf16.msra.mxu0 %v1010
      %1284 = vmatprep.subr.bf16.mxu0 %v1013
      %1285 = vmatpush1.bf16.msra.mxu0 %v1012
      %1286 = vmatprep.subr.bf16.mxu0 %v1015
      %1287 = vmatpush1.bf16.msra.mxu0 %v1014
      %1288 = vmatprep.subr.bf16.mxu0 %v1017
      %1289 = vmatpush1.bf16.msra.mxu0 %v1016
      %1290 = vmatprep.subr.bf16.mxu0 %v1019
      %1291 = vmatpush1.bf16.msra.mxu0 %v1018
      %1292 = vmatprep.subr.bf16.mxu0 %v1021
      %1293 = vmatpush1.bf16.msra.mxu0 %v1020
      %1294 = vmatprep.mubr.bf16.mxu0 %v1106
      %1295 = vmatmul.mubr.bf16.gmra.mrb[0].mxu0 %v1104
      %v1296 = vpop.f32.mrb[0].mxu0
      %v1297 = vadd.f32 %v1256, %v1296
      %v1298 = vpop.f32.mrb[0].mxu0
      %v1299 = vadd.f32 %v1258, %v1298
      %v1300 = vpop.f32.mrb[0].mxu0
      %v1301 = vpop.f32.mrb[0].mxu0
      %1302 = vdwg.mxu0
      %1303 = vmatprep.subr.bf16.mxu0 %v1023
      %1304 = vmatpush1.bf16.msra.mxu0 %v1022
      %1305 = vmatprep.subr.bf16.mxu0 %v1025
      %1306 = vmatpush1.bf16.msra.mxu0 %v1024
      %1307 = vmatprep.subr.bf16.mxu0 %v1027
      %1308 = vmatpush1.bf16.msra.mxu0 %v1026
      %1309 = vmatprep.subr.bf16.mxu0 %v1029
      %1310 = vmatpush1.bf16.msra.mxu0 %v1028
      %1311 = vmatprep.subr.bf16.mxu0 %v1031
      %1312 = vmatpush1.bf16.msra.mxu0 %v1030
      %1313 = vmatprep.subr.bf16.mxu0 %v1033
      %1314 = vmatpush1.bf16.msra.mxu0 %v1032
      %1315 = vmatprep.subr.bf16.mxu0 %v1035
      %1316 = vmatpush1.bf16.msra.mxu0 %v1034
      %1317 = vmatprep.subr.bf16.mxu0 %v1037
      %1318 = vmatpush1.bf16.msra.mxu0 %v1036
      %1319 = vmatprep.subr.bf16.mxu0 %v1039
      %1320 = vmatpush1.bf16.msra.mxu0 %v1038
      %1321 = vmatprep.subr.bf16.mxu0 %v1041
      %1322 = vmatpush1.bf16.msra.mxu0 %v1040
      %1323 = vmatprep.subr.bf16.mxu0 %v1043
      %1324 = vmatpush1.bf16.msra.mxu0 %v1042
      %1325 = vmatprep.subr.bf16.mxu0 %v1045
      %1326 = vmatpush1.bf16.msra.mxu0 %v1044
      %1327 = vmatprep.subr.bf16.mxu0 %v1047
      %1328 = vmatpush1.bf16.msra.mxu0 %v1046
      %1329 = vmatprep.subr.bf16.mxu0 %v1049
      %1330 = vmatpush1.bf16.msra.mxu0 %v1048
      %1331 = vmatprep.subr.bf16.mxu0 %v1051
      %1332 = vmatpush1.bf16.msra.mxu0 %v1050
      %1333 = vmatprep.subr.bf16.mxu0 %v1053
      %1334 = vmatpush1.bf16.msra.mxu0 %v1052
      %1335 = vmatprep.mubr.bf16.mxu0 %v1128
      %1336 = vmatmul.mubr.bf16.gmra.mrb[0].mxu0 %v1121
      %v1337 = vpop.f32.mrb[0].mxu0
      %v1338 = vadd.f32 %v1297, %v1337
      %v1339 = vpop.f32.mrb[0].mxu0
      %v1340 = vadd.f32 %v1299, %v1339
      %v1341 = vpop.f32.mrb[0].mxu0
      %v1342 = vpop.f32.mrb[0].mxu0
      %1343 = vdwg.mxu0
      %v1346 = vcombine.low %v1338, %v1340
      %v1348 = vunpack.c.l.s4 1983009808
      %v1349 = vunpack.c.0.s8 %v1348
      %v1350 = vlaneseq
      %v1351 = vshrl.u32 %v1350, 7
      %v1352 = vsub.s32 %v1349, %v1351
      %v1353 = vrot.slane %v1346, %v1352
      %v1355 = vadd.f32 %v813, %v1353
      %v1356 = vld [vmem:[%s261 + $0x500] sm:$0xff]
      %v1357 = vld [vmem:[%s261 + $0x508] sm:$0xff]
      %v1358 = vld [vmem:[%s261 + $0x510] sm:$0xff]
      %v1359 = vld [vmem:[%s261 + $0x518] sm:$0xff]
      %v1360 = vld [vmem:[%s261 + $0x520] sm:$0xff]
      %v1361 = vld [vmem:[%s261 + $0x528] sm:$0xff]
      %v1362 = vld [vmem:[%s261 + $0x530] sm:$0xff]
      %v1363 = vld [vmem:[%s261 + $0x538] sm:$0xff]
      %v1364 = vld [vmem:[%s261 + $0x540] sm:$0xff]
      %v1365 = vld [vmem:[%s261 + $0x548] sm:$0xff]
      %v1366 = vld [vmem:[%s261 + $0x550] sm:$0xff]
      %v1367 = vld [vmem:[%s261 + $0x558] sm:$0xff]
      %v1368 = vld [vmem:[%s261 + $0x560] sm:$0xff]
      %v1369 = vld [vmem:[%s261 + $0x568] sm:$0xff]
      %v1370 = vld [vmem:[%s261 + $0x570] sm:$0xff]
      %v1371 = vld [vmem:[%s261 + $0x578] sm:$0xff]
      %v1372 = vld [vmem:[%s261 + $0x580] sm:$0xff]
      %v1373 = vld [vmem:[%s261 + $0x588] sm:$0xff]
      %v1374 = vld [vmem:[%s261 + $0x590] sm:$0xff]
      %v1375 = vld [vmem:[%s261 + $0x598] sm:$0xff]
      %v1376 = vld [vmem:[%s261 + $0x5a0] sm:$0xff]
      %v1377 = vld [vmem:[%s261 + $0x5a8] sm:$0xff]
      %v1378 = vld [vmem:[%s261 + $0x5b0] sm:$0xff]
      %v1379 = vld [vmem:[%s261 + $0x5b8] sm:$0xff]
      %v1380 = vld [vmem:[%s261 + $0x5c0] sm:$0xff]
      %v1381 = vld [vmem:[%s261 + $0x5c8] sm:$0xff]
      %v1382 = vld [vmem:[%s261 + $0x5d0] sm:$0xff]
      %v1383 = vld [vmem:[%s261 + $0x5d8] sm:$0xff]
      %v1384 = vld [vmem:[%s261 + $0x5e0] sm:$0xff]
      %v1385 = vld [vmem:[%s261 + $0x5e8] sm:$0xff]
      %v1386 = vld [vmem:[%s261 + $0x5f0] sm:$0xff]
      %v1387 = vld [vmem:[%s261 + $0x5f8] sm:$0xff]
      %v1388 = vld [vmem:[%s261 + $0x600] sm:$0xff]
      %v1389 = vld [vmem:[%s261 + $0x608] sm:$0xff]
      %v1390 = vld [vmem:[%s261 + $0x610] sm:$0xff]
      %v1391 = vld [vmem:[%s261 + $0x618] sm:$0xff]
      %v1392 = vld [vmem:[%s261 + $0x620] sm:$0xff]
      %v1393 = vld [vmem:[%s261 + $0x628] sm:$0xff]
      %v1394 = vld [vmem:[%s261 + $0x630] sm:$0xff]
      %v1395 = vld [vmem:[%s261 + $0x638] sm:$0xff]
      %v1396 = vld [vmem:[%s261 + $0x640] sm:$0xff]
      %v1397 = vld [vmem:[%s261 + $0x648] sm:$0xff]
      %v1398 = vld [vmem:[%s261 + $0x650] sm:$0xff]
      %v1399 = vld [vmem:[%s261 + $0x658] sm:$0xff]
      %v1400 = vld [vmem:[%s261 + $0x660] sm:$0xff]
      %v1401 = vld [vmem:[%s261 + $0x668] sm:$0xff]
      %v1402 = vld [vmem:[%s261 + $0x670] sm:$0xff]
      %v1403 = vld [vmem:[%s261 + $0x678] sm:$0xff]
      %v1404 = vld [vmem:[%s261 + $0x680] sm:$0xff]
      %v1405 = vld [vmem:[%s261 + $0x688] sm:$0xff]
      %v1406 = vld [vmem:[%s261 + $0x690] sm:$0xff]
      %v1407 = vld [vmem:[%s261 + $0x698] sm:$0xff]
      %v1408 = vld [vmem:[%s261 + $0x6a0] sm:$0xff]
      %v1409 = vld [vmem:[%s261 + $0x6a8] sm:$0xff]
      %v1410 = vld [vmem:[%s261 + $0x6b0] sm:$0xff]
      %v1411 = vld [vmem:[%s261 + $0x6b8] sm:$0xff]
      %v1412 = vld [vmem:[%s261 + $0x6c0] sm:$0xff]
      %v1413 = vld [vmem:[%s261 + $0x6c8] sm:$0xff]
      %v1414 = vld [vmem:[%s261 + $0x6d0] sm:$0xff]
      %v1415 = vld [vmem:[%s261 + $0x6d8] sm:$0xff]
      %v1416 = vld [vmem:[%s261 + $0x6e0] sm:$0xff]
      %v1417 = vld [vmem:[%s261 + $0x6e8] sm:$0xff]
      %v1418 = vld [vmem:[%s261 + $0x6f0] sm:$0xff]
      %v1419 = vld [vmem:[%s261 + $0x6f8] sm:$0xff]
      %v1420 = vld [vmem:[%s261 + $0x700] sm:$0xff]
      %v1421 = vld [vmem:[%s261 + $0x708] sm:$0xff]
      %v1422 = vld [vmem:[%s261 + $0x710] sm:$0xff]
      %v1423 = vld [vmem:[%s261 + $0x718] sm:$0xff]
      %v1424 = vld [vmem:[%s261 + $0x720] sm:$0xff]
      %v1425 = vld [vmem:[%s261 + $0x728] sm:$0xff]
      %v1426 = vld [vmem:[%s261 + $0x730] sm:$0xff]
      %v1427 = vld [vmem:[%s261 + $0x738] sm:$0xff]
      %v1428 = vld [vmem:[%s261 + $0x740] sm:$0xff]
      %v1429 = vld [vmem:[%s261 + $0x748] sm:$0xff]
      %v1430 = vld [vmem:[%s261 + $0x750] sm:$0xff]
      %v1431 = vld [vmem:[%s261 + $0x758] sm:$0xff]
      %v1432 = vld [vmem:[%s261 + $0x760] sm:$0xff]
      %v1433 = vld [vmem:[%s261 + $0x768] sm:$0xff]
      %v1434 = vld [vmem:[%s261 + $0x770] sm:$0xff]
      %v1435 = vld [vmem:[%s261 + $0x778] sm:$0xff]
      %v1436 = vunpack.c.l.s8.bf16 %v1356
      %v1437 = vunpack.c.l.s8.bf16 %v1357
      %v1438 = vunpack.c.h.s8.bf16 %v1356
      %v1439 = vunpack.c.h.s8.bf16 %v1357
      %v1440 = vunpack.c.l.s8.bf16 %v1358
      %v1441 = vunpack.c.l.s8.bf16 %v1359
      %v1442 = vunpack.c.h.s8.bf16 %v1358
      %v1443 = vunpack.c.h.s8.bf16 %v1359
      %v1444 = vunpack.c.l.s8.bf16 %v1360
      %v1445 = vunpack.c.l.s8.bf16 %v1361
      %v1446 = vunpack.c.h.s8.bf16 %v1360
      %v1447 = vunpack.c.h.s8.bf16 %v1361
      %v1448 = vunpack.c.l.s8.bf16 %v1362
      %v1449 = vunpack.c.l.s8.bf16 %v1363
      %v1450 = vunpack.c.h.s8.bf16 %v1362
      %v1451 = vunpack.c.h.s8.bf16 %v1363
      %v1452 = vunpack.c.l.s8.bf16 %v1364
      %v1453 = vunpack.c.l.s8.bf16 %v1365
      %v1454 = vunpack.c.h.s8.bf16 %v1364
      %v1455 = vunpack.c.h.s8.bf16 %v1365
      %v1456 = vunpack.c.l.s8.bf16 %v1366
      %v1457 = vunpack.c.l.s8.bf16 %v1367
      %v1458 = vunpack.c.h.s8.bf16 %v1366
      %v1459 = vunpack.c.h.s8.bf16 %v1367
      %v1460 = vunpack.c.l.s8.bf16 %v1368
      %v1461 = vunpack.c.l.s8.bf16 %v1369
      %v1462 = vunpack.c.h.s8.bf16 %v1368
      %v1463 = vunpack.c.h.s8.bf16 %v1369
      %v1464 = vunpack.c.l.s8.bf16 %v1370
      %v1465 = vunpack.c.l.s8.bf16 %v1371
      %v1466 = vunpack.c.h.s8.bf16 %v1370
      %v1467 = vunpack.c.h.s8.bf16 %v1371
      %v1468 = vunpack.c.l.s8.bf16 %v1372
      %v1469 = vunpack.c.l.s8.bf16 %v1373
      %v1470 = vunpack.c.h.s8.bf16 %v1372
      %v1471 = vunpack.c.h.s8.bf16 %v1373
      %v1472 = vunpack.c.l.s8.bf16 %v1374
      %v1473 = vunpack.c.l.s8.bf16 %v1375
      %v1474 = vunpack.c.h.s8.bf16 %v1374
      %v1475 = vunpack.c.h.s8.bf16 %v1375
      %v1476 = vunpack.c.l.s8.bf16 %v1376
      %v1477 = vunpack.c.l.s8.bf16 %v1377
      %v1478 = vunpack.c.h.s8.bf16 %v1376
      %v1479 = vunpack.c.h.s8.bf16 %v1377
      %v1480 = vunpack.c.l.s8.bf16 %v1378
      %v1481 = vunpack.c.l.s8.bf16 %v1379
      %v1482 = vunpack.c.h.s8.bf16 %v1378
      %v1483 = vunpack.c.h.s8.bf16 %v1379
      %v1484 = vunpack.c.l.s8.bf16 %v1380
      %v1485 = vunpack.c.l.s8.bf16 %v1381
      %v1486 = vunpack.c.h.s8.bf16 %v1380
      %v1487 = vunpack.c.h.s8.bf16 %v1381
      %v1488 = vunpack.c.l.s8.bf16 %v1382
      %v1489 = vunpack.c.l.s8.bf16 %v1383
      %v1490 = vunpack.c.h.s8.bf16 %v1382
      %v1491 = vunpack.c.h.s8.bf16 %v1383
      %v1492 = vunpack.c.l.s8.bf16 %v1384
      %v1493 = vunpack.c.l.s8.bf16 %v1385
      %v1494 = vunpack.c.h.s8.bf16 %v1384
      %v1495 = vunpack.c.h.s8.bf16 %v1385
      %v1496 = vunpack.c.l.s8.bf16 %v1386
      %v1497 = vunpack.c.l.s8.bf16 %v1387
      %v1498 = vunpack.c.h.s8.bf16 %v1386
      %v1499 = vunpack.c.h.s8.bf16 %v1387
      %v1500 = vunpack.c.l.s8.bf16 %v1388
      %v1501 = vunpack.c.l.s8.bf16 %v1389
      %v1502 = vunpack.c.h.s8.bf16 %v1388
      %v1503 = vunpack.c.h.s8.bf16 %v1389
      %v1504 = vunpack.c.l.s8.bf16 %v1390
      %v1505 = vunpack.c.l.s8.bf16 %v1391
      %v1506 = vunpack.c.h.s8.bf16 %v1390
      %v1507 = vunpack.c.h.s8.bf16 %v1391
      %v1508 = vunpack.c.l.s8.bf16 %v1392
      %v1509 = vunpack.c.l.s8.bf16 %v1393
      %v1510 = vunpack.c.h.s8.bf16 %v1392
      %v1511 = vunpack.c.h.s8.bf16 %v1393
      %v1512 = vunpack.c.l.s8.bf16 %v1394
      %v1513 = vunpack.c.l.s8.bf16 %v1395
      %v1514 = vunpack.c.h.s8.bf16 %v1394
      %v1515 = vunpack.c.h.s8.bf16 %v1395
      %v1516 = vunpack.c.l.s8.bf16 %v1396
      %v1517 = vunpack.c.l.s8.bf16 %v1397
      %v1518 = vunpack.c.h.s8.bf16 %v1396
      %v1519 = vunpack.c.h.s8.bf16 %v1397
      %v1520 = vunpack.c.l.s8.bf16 %v1398
      %v1521 = vunpack.c.l.s8.bf16 %v1399
      %v1522 = vunpack.c.h.s8.bf16 %v1398
      %v1523 = vunpack.c.h.s8.bf16 %v1399
      %v1524 = vunpack.c.l.s8.bf16 %v1400
      %v1525 = vunpack.c.l.s8.bf16 %v1401
      %v1526 = vunpack.c.h.s8.bf16 %v1400
      %v1527 = vunpack.c.h.s8.bf16 %v1401
      %v1528 = vunpack.c.l.s8.bf16 %v1402
      %v1529 = vunpack.c.l.s8.bf16 %v1403
      %v1530 = vunpack.c.h.s8.bf16 %v1402
      %v1531 = vunpack.c.h.s8.bf16 %v1403
      %v1532 = vunpack.c.l.s8.bf16 %v1404
      %v1533 = vunpack.c.l.s8.bf16 %v1405
      %v1534 = vunpack.c.h.s8.bf16 %v1404
      %v1535 = vunpack.c.h.s8.bf16 %v1405
      %v1536 = vunpack.c.l.s8.bf16 %v1406
      %v1537 = vunpack.c.l.s8.bf16 %v1407
      %v1538 = vunpack.c.h.s8.bf16 %v1406
      %v1539 = vunpack.c.h.s8.bf16 %v1407
      %v1540 = vunpack.c.l.s8.bf16 %v1408
      %v1541 = vunpack.c.l.s8.bf16 %v1409
      %v1542 = vunpack.c.h.s8.bf16 %v1408
      %v1543 = vunpack.c.h.s8.bf16 %v1409
      %v1544 = vunpack.c.l.s8.bf16 %v1410
      %v1545 = vunpack.c.l.s8.bf16 %v1411
      %v1546 = vunpack.c.h.s8.bf16 %v1410
      %v1547 = vunpack.c.h.s8.bf16 %v1411
      %v1548 = vunpack.c.l.s8.bf16 %v1412
      %v1549 = vunpack.c.l.s8.bf16 %v1413
      %v1550 = vunpack.c.h.s8.bf16 %v1412
      %v1551 = vunpack.c.h.s8.bf16 %v1413
      %v1552 = vunpack.c.l.s8.bf16 %v1414
      %v1553 = vunpack.c.l.s8.bf16 %v1415
      %v1554 = vunpack.c.h.s8.bf16 %v1414
      %v1555 = vunpack.c.h.s8.bf16 %v1415
      %v1556 = vunpack.c.l.s8.bf16 %v1416
      %v1557 = vunpack.c.l.s8.bf16 %v1417
      %v1558 = vunpack.c.h.s8.bf16 %v1416
      %v1559 = vunpack.c.h.s8.bf16 %v1417
      %v1560 = vunpack.c.l.s8.bf16 %v1418
      %v1561 = vunpack.c.l.s8.bf16 %v1419
      %v1562 = vunpack.c.h.s8.bf16 %v1418
      %v1563 = vunpack.c.h.s8.bf16 %v1419
      %v1564 = vunpack.c.l.s8.bf16 %v1420
      %v1565 = vunpack.c.l.s8.bf16 %v1421
      %v1566 = vunpack.c.h.s8.bf16 %v1420
      %v1567 = vunpack.c.h.s8.bf16 %v1421
      %v1568 = vunpack.c.l.s8.bf16 %v1422
      %v1569 = vunpack.c.l.s8.bf16 %v1423
      %v1570 = vunpack.c.h.s8.bf16 %v1422
      %v1571 = vunpack.c.h.s8.bf16 %v1423
      %v1572 = vunpack.c.l.s8.bf16 %v1424
      %v1573 = vunpack.c.l.s8.bf16 %v1425
      %v1574 = vunpack.c.h.s8.bf16 %v1424
      %v1575 = vunpack.c.h.s8.bf16 %v1425
      %v1576 = vunpack.c.l.s8.bf16 %v1426
      %v1577 = vunpack.c.l.s8.bf16 %v1427
      %v1578 = vunpack.c.h.s8.bf16 %v1426
      %v1579 = vunpack.c.h.s8.bf16 %v1427
      %v1580 = vunpack.c.l.s8.bf16 %v1428
      %v1581 = vunpack.c.l.s8.bf16 %v1429
      %v1582 = vunpack.c.h.s8.bf16 %v1428
      %v1583 = vunpack.c.h.s8.bf16 %v1429
      %v1584 = vunpack.c.l.s8.bf16 %v1430
      %v1585 = vunpack.c.l.s8.bf16 %v1431
      %v1586 = vunpack.c.h.s8.bf16 %v1430
      %v1587 = vunpack.c.h.s8.bf16 %v1431
      %v1588 = vunpack.c.l.s8.bf16 %v1432
      %v1589 = vunpack.c.l.s8.bf16 %v1433
      %v1590 = vunpack.c.h.s8.bf16 %v1432
      %v1591 = vunpack.c.h.s8.bf16 %v1433
      %v1592 = vunpack.c.l.s8.bf16 %v1434
      %v1593 = vunpack.c.l.s8.bf16 %v1435
      %v1594 = vunpack.c.h.s8.bf16 %v1434
      %v1595 = vunpack.c.h.s8.bf16 %v1435
      %v1596 = vld [vmem:[%s254 + $0x14] sm:$0xff]
      %v1597 = vld [vmem:[%s254 + $0x1c] sm:$0x3]
      %v1600 = vcombine.high %v1596, %v1596
      %v1602 = vunpack.c.l.s4 1966171168
      %v1603 = vunpack.c.0.s8 %v1602
      %v1604 = vlaneseq
      %v1605 = vshrl.u32 %v1604, 7
      %v1606 = vsub.s32 %v1603, %v1605
      %v1607 = vrot.slane %v1596, %v1606
      %v1609 = vunpack.c.l.s4 1966171168
      %v1610 = vunpack.c.0.s8 %v1609
      %v1611 = vlaneseq
      %v1612 = vshrl.u32 %v1611, 7
      %v1613 = vsub.s32 %v1610, %v1612
      %v1614 = vrot.slane %v1600, %v1613
      %v1615 = vcombine.high %v1607, %v1607
      %v1616 = vcombine.high %v1614, %v1614
      %v1618 = vunpack.c.l.s4 1966171168
      %v1619 = vunpack.c.0.s8 %v1618
      %v1620 = vlaneseq
      %v1621 = vshrl.u32 %v1620, 7
      %v1622 = vsub.s32 %v1619, %v1621
      %v1623 = vrot.slane %v1607, %v1622
      %v1625 = vunpack.c.l.s4 1966171168
      %v1626 = vunpack.c.0.s8 %v1625
      %v1627 = vlaneseq
      %v1628 = vshrl.u32 %v1627, 7
      %v1629 = vsub.s32 %v1626, %v1628
      %v1630 = vrot.slane %v1614, %v1629
      %v1632 = vunpack.c.l.s4 1966171168
      %v1633 = vunpack.c.0.s8 %v1632
      %v1634 = vlaneseq
      %v1635 = vshrl.u32 %v1634, 7
      %v1636 = vsub.s32 %v1633, %v1635
      %v1637 = vrot.slane %v1615, %v1636
      %v1639 = vunpack.c.l.s4 1966171168
      %v1640 = vunpack.c.0.s8 %v1639
      %v1641 = vlaneseq
      %v1642 = vshrl.u32 %v1641, 7
      %v1643 = vsub.s32 %v1640, %v1642
      %v1644 = vrot.slane %v1616, %v1643
      %v1645 = vcombine.high %v1623, %v1623
      %v1646 = vcombine.high %v1630, %v1630
      %v1647 = vcombine.high %v1637, %v1637
      %v1648 = vcombine.high %v1644, %v1644
      %v1650 = vunpack.c.l.s4 1966171168
      %v1651 = vunpack.c.0.s8 %v1650
      %v1652 = vlaneseq
      %v1653 = vshrl.u32 %v1652, 7
      %v1654 = vsub.s32 %v1651, %v1653
      %v1655 = vrot.slane %v1597, %v1654
      %v1656 = vcombine.high %v1655, %v1655
      %v1658 = vunpack.c.l.s4 1966171168
      %v1659 = vunpack.c.0.s8 %v1658
      %v1660 = vlaneseq
      %v1661 = vshrl.u32 %v1660, 7
      %v1662 = vsub.s32 %v1659, %v1661
      %v1663 = vrot.slane %v1655, %v1662
      %v1665 = vunpack.c.l.s4 1966171168
      %v1666 = vunpack.c.0.s8 %v1665
      %v1667 = vlaneseq
      %v1668 = vshrl.u32 %v1667, 7
      %v1669 = vsub.s32 %v1666, %v1668
      %v1670 = vrot.slane %v1656, %v1669
      %1681 = vmatprep.subr.bf16.mxu0 %v1437
      %1682 = vmatpush1.bf16.msra.mxu0 %v1436
      %1683 = vmatprep.subr.bf16.mxu0 %v1439
      %1684 = vmatpush1.bf16.msra.mxu0 %v1438
      %1685 = vmatprep.subr.bf16.mxu0 %v1441
      %1686 = vmatpush1.bf16.msra.mxu0 %v1440
      %1687 = vmatprep.subr.bf16.mxu0 %v1443
      %1688 = vmatpush1.bf16.msra.mxu0 %v1442
      %1689 = vmatprep.subr.bf16.mxu0 %v1445
      %1690 = vmatpush1.bf16.msra.mxu0 %v1444
      %1691 = vmatprep.subr.bf16.mxu0 %v1447
      %1692 = vmatpush1.bf16.msra.mxu0 %v1446
      %1693 = vmatprep.subr.bf16.mxu0 %v1449
      %1694 = vmatpush1.bf16.msra.mxu0 %v1448
      %1695 = vmatprep.subr.bf16.mxu0 %v1451
      %1696 = vmatpush1.bf16.msra.mxu0 %v1450
      %1697 = vmatprep.subr.bf16.mxu0 %v1453
      %1698 = vmatpush1.bf16.msra.mxu0 %v1452
      %1699 = vmatprep.subr.bf16.mxu0 %v1455
      %1700 = vmatpush1.bf16.msra.mxu0 %v1454
      %1701 = vmatprep.subr.bf16.mxu0 %v1457
      %1702 = vmatpush1.bf16.msra.mxu0 %v1456
      %1703 = vmatprep.subr.bf16.mxu0 %v1459
      %1704 = vmatpush1.bf16.msra.mxu0 %v1458
      %1705 = vmatprep.subr.bf16.mxu0 %v1461
      %1706 = vmatpush1.bf16.msra.mxu0 %v1460
      %1707 = vmatprep.subr.bf16.mxu0 %v1463
      %1708 = vmatpush1.bf16.msra.mxu0 %v1462
      %1709 = vmatprep.subr.bf16.mxu0 %v1465
      %1710 = vmatpush1.bf16.msra.mxu0 %v1464
      %1711 = vmatprep.subr.bf16.mxu0 %v1467
      %1712 = vmatpush1.bf16.msra.mxu0 %v1466
      %1713 = vmatprep.mubr.bf16.mxu0 %v1637
      %1714 = vmatmul.mubr.bf16.gmra.mrb[0].mxu0 %v1623
      %v1715 = vpop.f32.mrb[0].mxu0
      %v1716 = vadd.f32 0.0, %v1715
      %v1717 = vpop.f32.mrb[0].mxu0
      %v1718 = vadd.f32 0.0, %v1717
      %v1719 = vpop.f32.mrb[0].mxu0
      %v1720 = vpop.f32.mrb[0].mxu0
      %1721 = vdwg.mxu0
      %1722 = vmatprep.subr.bf16.mxu0 %v1469
      %1723 = vmatpush1.bf16.msra.mxu0 %v1468
      %1724 = vmatprep.subr.bf16.mxu0 %v1471
      %1725 = vmatpush1.bf16.msra.mxu0 %v1470
      %1726 = vmatprep.subr.bf16.mxu0 %v1473
      %1727 = vmatpush1.bf16.msra.mxu0 %v1472
      %1728 = vmatprep.subr.bf16.mxu0 %v1475
      %1729 = vmatpush1.bf16.msra.mxu0 %v1474
      %1730 = vmatprep.subr.bf16.mxu0 %v1477
      %1731 = vmatpush1.bf16.msra.mxu0 %v1476
      %1732 = vmatprep.subr.bf16.mxu0 %v1479
      %1733 = vmatpush1.bf16.msra.mxu0 %v1478
      %1734 = vmatprep.subr.bf16.mxu0 %v1481
      %1735 = vmatpush1.bf16.msra.mxu0 %v1480
      %1736 = vmatprep.subr.bf16.mxu0 %v1483
      %1737 = vmatpush1.bf16.msra.mxu0 %v1482
      %1738 = vmatprep.subr.bf16.mxu0 %v1485
      %1739 = vmatpush1.bf16.msra.mxu0 %v1484
      %1740 = vmatprep.subr.bf16.mxu0 %v1487
      %1741 = vmatpush1.bf16.msra.mxu0 %v1486
      %1742 = vmatprep.subr.bf16.mxu0 %v1489
      %1743 = vmatpush1.bf16.msra.mxu0 %v1488
      %1744 = vmatprep.subr.bf16.mxu0 %v1491
      %1745 = vmatpush1.bf16.msra.mxu0 %v1490
      %1746 = vmatprep.subr.bf16.mxu0 %v1493
      %1747 = vmatpush1.bf16.msra.mxu0 %v1492
      %1748 = vmatprep.subr.bf16.mxu0 %v1495
      %1749 = vmatpush1.bf16.msra.mxu0 %v1494
      %1750 = vmatprep.subr.bf16.mxu0 %v1497
      %1751 = vmatpush1.bf16.msra.mxu0 %v1496
      %1752 = vmatprep.subr.bf16.mxu0 %v1499
      %1753 = vmatpush1.bf16.msra.mxu0 %v1498
      %1754 = vmatprep.mubr.bf16.mxu0 %v1647
      %1755 = vmatmul.mubr.bf16.gmra.mrb[0].mxu0 %v1645
      %v1756 = vpop.f32.mrb[0].mxu0
      %v1757 = vadd.f32 %v1716, %v1756
      %v1758 = vpop.f32.mrb[0].mxu0
      %v1759 = vadd.f32 %v1718, %v1758
      %v1760 = vpop.f32.mrb[0].mxu0
      %v1761 = vpop.f32.mrb[0].mxu0
      %1762 = vdwg.mxu0
      %1763 = vmatprep.subr.bf16.mxu0 %v1501
      %1764 = vmatpush1.bf16.msra.mxu0 %v1500
      %1765 = vmatprep.subr.bf16.mxu0 %v1503
      %1766 = vmatpush1.bf16.msra.mxu0 %v1502
      %1767 = vmatprep.subr.bf16.mxu0 %v1505
      %1768 = vmatpush1.bf16.msra.mxu0 %v1504
      %1769 = vmatprep.subr.bf16.mxu0 %v1507
      %1770 = vmatpush1.bf16.msra.mxu0 %v1506
      %1771 = vmatprep.subr.bf16.mxu0 %v1509
      %1772 = vmatpush1.bf16.msra.mxu0 %v1508
      %1773 = vmatprep.subr.bf16.mxu0 %v1511
      %1774 = vmatpush1.bf16.msra.mxu0 %v1510
      %1775 = vmatprep.subr.bf16.mxu0 %v1513
      %1776 = vmatpush1.bf16.msra.mxu0 %v1512
      %1777 = vmatprep.subr.bf16.mxu0 %v1515
      %1778 = vmatpush1.bf16.msra.mxu0 %v1514
      %1779 = vmatprep.subr.bf16.mxu0 %v1517
      %1780 = vmatpush1.bf16.msra.mxu0 %v1516
      %1781 = vmatprep.subr.bf16.mxu0 %v1519
      %1782 = vmatpush1.bf16.msra.mxu0 %v1518
      %1783 = vmatprep.subr.bf16.mxu0 %v1521
      %1784 = vmatpush1.bf16.msra.mxu0 %v1520
      %1785 = vmatprep.subr.bf16.mxu0 %v1523
      %1786 = vmatpush1.bf16.msra.mxu0 %v1522
      %1787 = vmatprep.subr.bf16.mxu0 %v1525
      %1788 = vmatpush1.bf16.msra.mxu0 %v1524
      %1789 = vmatprep.subr.bf16.mxu0 %v1527
      %1790 = vmatpush1.bf16.msra.mxu0 %v1526
      %1791 = vmatprep.subr.bf16.mxu0 %v1529
      %1792 = vmatpush1.bf16.msra.mxu0 %v1528
      %1793 = vmatprep.subr.bf16.mxu0 %v1531
      %1794 = vmatpush1.bf16.msra.mxu0 %v1530
      %1795 = vmatprep.mubr.bf16.mxu0 %v1644
      %1796 = vmatmul.mubr.bf16.gmra.mrb[0].mxu0 %v1630
      %v1797 = vpop.f32.mrb[0].mxu0
      %v1798 = vadd.f32 %v1757, %v1797
      %v1799 = vpop.f32.mrb[0].mxu0
      %v1800 = vadd.f32 %v1759, %v1799
      %v1801 = vpop.f32.mrb[0].mxu0
      %v1802 = vpop.f32.mrb[0].mxu0
      %1803 = vdwg.mxu0
      %1804 = vmatprep.subr.bf16.mxu0 %v1533
      %1805 = vmatpush1.bf16.msra.mxu0 %v1532
      %1806 = vmatprep.subr.bf16.mxu0 %v1535
      %1807 = vmatpush1.bf16.msra.mxu0 %v1534
      %1808 = vmatprep.subr.bf16.mxu0 %v1537
      %1809 = vmatpush1.bf16.msra.mxu0 %v1536
      %1810 = vmatprep.subr.bf16.mxu0 %v1539
      %1811 = vmatpush1.bf16.msra.mxu0 %v1538
      %1812 = vmatprep.subr.bf16.mxu0 %v1541
      %1813 = vmatpush1.bf16.msra.mxu0 %v1540
      %1814 = vmatprep.subr.bf16.mxu0 %v1543
      %1815 = vmatpush1.bf16.msra.mxu0 %v1542
      %1816 = vmatprep.subr.bf16.mxu0 %v1545
      %1817 = vmatpush1.bf16.msra.mxu0 %v1544
      %1818 = vmatprep.subr.bf16.mxu0 %v1547
      %1819 = vmatpush1.bf16.msra.mxu0 %v1546
      %1820 = vmatprep.subr.bf16.mxu0 %v1549
      %1821 = vmatpush1.bf16.msra.mxu0 %v1548
      %1822 = vmatprep.subr.bf16.mxu0 %v1551
      %1823 = vmatpush1.bf16.msra.mxu0 %v1550
      %1824 = vmatprep.subr.bf16.mxu0 %v1553
      %1825 = vmatpush1.bf16.msra.mxu0 %v1552
      %1826 = vmatprep.subr.bf16.mxu0 %v1555
      %1827 = vmatpush1.bf16.msra.mxu0 %v1554
      %1828 = vmatprep.subr.bf16.mxu0 %v1557
      %1829 = vmatpush1.bf16.msra.mxu0 %v1556
      %1830 = vmatprep.subr.bf16.mxu0 %v1559
      %1831 = vmatpush1.bf16.msra.mxu0 %v1558
      %1832 = vmatprep.subr.bf16.mxu0 %v1561
      %1833 = vmatpush1.bf16.msra.mxu0 %v1560
      %1834 = vmatprep.subr.bf16.mxu0 %v1563
      %1835 = vmatpush1.bf16.msra.mxu0 %v1562
      %1836 = vmatprep.mubr.bf16.mxu0 %v1648
      %1837 = vmatmul.mubr.bf16.gmra.mrb[0].mxu0 %v1646
      %v1838 = vpop.f32.mrb[0].mxu0
      %v1839 = vadd.f32 %v1798, %v1838
      %v1840 = vpop.f32.mrb[0].mxu0
      %v1841 = vadd.f32 %v1800, %v1840
      %v1842 = vpop.f32.mrb[0].mxu0
      %v1843 = vpop.f32.mrb[0].mxu0
      %1844 = vdwg.mxu0
      %1845 = vmatprep.subr.bf16.mxu0 %v1565
      %1846 = vmatpush1.bf16.msra.mxu0 %v1564
      %1847 = vmatprep.subr.bf16.mxu0 %v1567
      %1848 = vmatpush1.bf16.msra.mxu0 %v1566
      %1849 = vmatprep.subr.bf16.mxu0 %v1569
      %1850 = vmatpush1.bf16.msra.mxu0 %v1568
      %1851 = vmatprep.subr.bf16.mxu0 %v1571
      %1852 = vmatpush1.bf16.msra.mxu0 %v1570
      %1853 = vmatprep.subr.bf16.mxu0 %v1573
      %1854 = vmatpush1.bf16.msra.mxu0 %v1572
      %1855 = vmatprep.subr.bf16.mxu0 %v1575
      %1856 = vmatpush1.bf16.msra.mxu0 %v1574
      %1857 = vmatprep.subr.bf16.mxu0 %v1577
      %1858 = vmatpush1.bf16.msra.mxu0 %v1576
      %1859 = vmatprep.subr.bf16.mxu0 %v1579
      %1860 = vmatpush1.bf16.msra.mxu0 %v1578
      %1861 = vmatprep.subr.bf16.mxu0 %v1581
      %1862 = vmatpush1.bf16.msra.mxu0 %v1580
      %1863 = vmatprep.subr.bf16.mxu0 %v1583
      %1864 = vmatpush1.bf16.msra.mxu0 %v1582
      %1865 = vmatprep.subr.bf16.mxu0 %v1585
      %1866 = vmatpush1.bf16.msra.mxu0 %v1584
      %1867 = vmatprep.subr.bf16.mxu0 %v1587
      %1868 = vmatpush1.bf16.msra.mxu0 %v1586
      %1869 = vmatprep.subr.bf16.mxu0 %v1589
      %1870 = vmatpush1.bf16.msra.mxu0 %v1588
      %1871 = vmatprep.subr.bf16.mxu0 %v1591
      %1872 = vmatpush1.bf16.msra.mxu0 %v1590
      %1873 = vmatprep.subr.bf16.mxu0 %v1593
      %1874 = vmatpush1.bf16.msra.mxu0 %v1592
      %1875 = vmatprep.subr.bf16.mxu0 %v1595
      %1876 = vmatpush1.bf16.msra.mxu0 %v1594
      %1877 = vmatprep.mubr.bf16.mxu0 %v1670
      %1878 = vmatmul.mubr.bf16.gmra.mrb[0].mxu0 %v1663
      %v1879 = vpop.f32.mrb[0].mxu0
      %v1880 = vadd.f32 %v1839, %v1879
      %v1881 = vpop.f32.mrb[0].mxu0
      %v1882 = vadd.f32 %v1841, %v1881
      %v1883 = vpop.f32.mrb[0].mxu0
      %v1884 = vpop.f32.mrb[0].mxu0
      %1885 = vdwg.mxu0
      %v1888 = vcombine.low %v1880, %v1882
      %v1890 = vunpack.c.l.s4 1983009808
      %v1891 = vunpack.c.0.s8 %v1890
      %v1892 = vlaneseq
      %v1893 = vshrl.u32 %v1892, 7
      %v1894 = vsub.s32 %v1891, %v1893
      %v1895 = vrot.slane %v1888, %v1894
      %v1897 = vadd.f32 %v1355, %v1895
      %v1898 = vld [vmem:[%s261 + $0x780] sm:$0xff]
      %v1899 = vld [vmem:[%s261 + $0x788] sm:$0xff]
      %v1900 = vld [vmem:[%s261 + $0x790] sm:$0xff]
      %v1901 = vld [vmem:[%s261 + $0x798] sm:$0xff]
      %v1902 = vld [vmem:[%s261 + $0x7a0] sm:$0xff]
      %v1903 = vld [vmem:[%s261 + $0x7a8] sm:$0xff]
      %v1904 = vld [vmem:[%s261 + $0x7b0] sm:$0xff]
      %v1905 = vld [vmem:[%s261 + $0x7b8] sm:$0xff]
      %v1906 = vld [vmem:[%s261 + $0x7c0] sm:$0xff]
      %v1907 = vld [vmem:[%s261 + $0x7c8] sm:$0xff]
      %v1908 = vld [vmem:[%s261 + $0x7d0] sm:$0xff]
      %v1909 = vld [vmem:[%s261 + $0x7d8] sm:$0xff]
      %v1910 = vld [vmem:[%s261 + $0x7e0] sm:$0xff]
      %v1911 = vld [vmem:[%s261 + $0x7e8] sm:$0xff]
      %v1912 = vld [vmem:[%s261 + $0x7f0] sm:$0xff]
      %v1913 = vld [vmem:[%s261 + $0x7f8] sm:$0xff]
      %v1914 = vld [vmem:[%s261 + $0x800] sm:$0xff]
      %v1915 = vld [vmem:[%s261 + $0x808] sm:$0xff]
      %v1916 = vld [vmem:[%s261 + $0x810] sm:$0xff]
      %v1917 = vld [vmem:[%s261 + $0x818] sm:$0xff]
      %v1918 = vld [vmem:[%s261 + $0x820] sm:$0xff]
      %v1919 = vld [vmem:[%s261 + $0x828] sm:$0xff]
      %v1920 = vld [vmem:[%s261 + $0x830] sm:$0xff]
      %v1921 = vld [vmem:[%s261 + $0x838] sm:$0xff]
      %v1922 = vld [vmem:[%s261 + $0x840] sm:$0xff]
      %v1923 = vld [vmem:[%s261 + $0x848] sm:$0xff]
      %v1924 = vld [vmem:[%s261 + $0x850] sm:$0xff]
      %v1925 = vld [vmem:[%s261 + $0x858] sm:$0xff]
      %v1926 = vld [vmem:[%s261 + $0x860] sm:$0xff]
      %v1927 = vld [vmem:[%s261 + $0x868] sm:$0xff]
      %v1928 = vld [vmem:[%s261 + $0x870] sm:$0xff]
      %v1929 = vld [vmem:[%s261 + $0x878] sm:$0xff]
      %v1930 = vld [vmem:[%s261 + $0x880] sm:$0xff]
      %v1931 = vld [vmem:[%s261 + $0x888] sm:$0xff]
      %v1932 = vld [vmem:[%s261 + $0x890] sm:$0xff]
      %v1933 = vld [vmem:[%s261 + $0x898] sm:$0xff]
      %v1934 = vld [vmem:[%s261 + $0x8a0] sm:$0xff]
      %v1935 = vld [vmem:[%s261 + $0x8a8] sm:$0xff]
      %v1936 = vld [vmem:[%s261 + $0x8b0] sm:$0xff]
      %v1937 = vld [vmem:[%s261 + $0x8b8] sm:$0xff]
      %v1938 = vld [vmem:[%s261 + $0x8c0] sm:$0xff]
      %v1939 = vld [vmem:[%s261 + $0x8c8] sm:$0xff]
      %v1940 = vld [vmem:[%s261 + $0x8d0] sm:$0xff]
      %v1941 = vld [vmem:[%s261 + $0x8d8] sm:$0xff]
      %v1942 = vld [vmem:[%s261 + $0x8e0] sm:$0xff]
      %v1943 = vld [vmem:[%s261 + $0x8e8] sm:$0xff]
      %v1944 = vld [vmem:[%s261 + $0x8f0] sm:$0xff]
      %v1945 = vld [vmem:[%s261 + $0x8f8] sm:$0xff]
      %v1946 = vld [vmem:[%s261 + $0x900] sm:$0xff]
      %v1947 = vld [vmem:[%s261 + $0x908] sm:$0xff]
      %v1948 = vld [vmem:[%s261 + $0x910] sm:$0xff]
      %v1949 = vld [vmem:[%s261 + $0x918] sm:$0xff]
      %v1950 = vld [vmem:[%s261 + $0x920] sm:$0xff]
      %v1951 = vld [vmem:[%s261 + $0x928] sm:$0xff]
      %v1952 = vld [vmem:[%s261 + $0x930] sm:$0xff]
      %v1953 = vld [vmem:[%s261 + $0x938] sm:$0xff]
      %v1954 = vld [vmem:[%s261 + $0x940] sm:$0xff]
      %v1955 = vld [vmem:[%s261 + $0x948] sm:$0xff]
      %v1956 = vld [vmem:[%s261 + $0x950] sm:$0xff]
      %v1957 = vld [vmem:[%s261 + $0x958] sm:$0xff]
      %v1958 = vld [vmem:[%s261 + $0x960] sm:$0xff]
      %v1959 = vld [vmem:[%s261 + $0x968] sm:$0xff]
      %v1960 = vld [vmem:[%s261 + $0x970] sm:$0xff]
      %v1961 = vld [vmem:[%s261 + $0x978] sm:$0xff]
      %v1962 = vld [vmem:[%s261 + $0x980] sm:$0xff]
      %v1963 = vld [vmem:[%s261 + $0x988] sm:$0xff]
      %v1964 = vld [vmem:[%s261 + $0x990] sm:$0xff]
      %v1965 = vld [vmem:[%s261 + $0x998] sm:$0xff]
      %v1966 = vld [vmem:[%s261 + $0x9a0] sm:$0xff]
      %v1967 = vld [vmem:[%s261 + $0x9a8] sm:$0xff]
      %v1968 = vld [vmem:[%s261 + $0x9b0] sm:$0xff]
      %v1969 = vld [vmem:[%s261 + $0x9b8] sm:$0xff]
      %v1970 = vld [vmem:[%s261 + $0x9c0] sm:$0xff]
      %v1971 = vld [vmem:[%s261 + $0x9c8] sm:$0xff]
      %v1972 = vld [vmem:[%s261 + $0x9d0] sm:$0xff]
      %v1973 = vld [vmem:[%s261 + $0x9d8] sm:$0xff]
      %v1974 = vld [vmem:[%s261 + $0x9e0] sm:$0xff]
      %v1975 = vld [vmem:[%s261 + $0x9e8] sm:$0xff]
      %v1976 = vld [vmem:[%s261 + $0x9f0] sm:$0xff]
      %v1977 = vld [vmem:[%s261 + $0x9f8] sm:$0xff]
      %v1978 = vunpack.c.l.s8.bf16 %v1898
      %v1979 = vunpack.c.l.s8.bf16 %v1899
      %v1980 = vunpack.c.h.s8.bf16 %v1898
      %v1981 = vunpack.c.h.s8.bf16 %v1899
      %v1982 = vunpack.c.l.s8.bf16 %v1900
      %v1983 = vunpack.c.l.s8.bf16 %v1901
      %v1984 = vunpack.c.h.s8.bf16 %v1900
      %v1985 = vunpack.c.h.s8.bf16 %v1901
      %v1986 = vunpack.c.l.s8.bf16 %v1902
      %v1987 = vunpack.c.l.s8.bf16 %v1903
      %v1988 = vunpack.c.h.s8.bf16 %v1902
      %v1989 = vunpack.c.h.s8.bf16 %v1903
      %v1990 = vunpack.c.l.s8.bf16 %v1904
      %v1991 = vunpack.c.l.s8.bf16 %v1905
      %v1992 = vunpack.c.h.s8.bf16 %v1904
      %v1993 = vunpack.c.h.s8.bf16 %v1905
      %v1994 = vunpack.c.l.s8.bf16 %v1906
      %v1995 = vunpack.c.l.s8.bf16 %v1907
      %v1996 = vunpack.c.h.s8.bf16 %v1906
      %v1997 = vunpack.c.h.s8.bf16 %v1907
      %v1998 = vunpack.c.l.s8.bf16 %v1908
      %v1999 = vunpack.c.l.s8.bf16 %v1909
      %v2000 = vunpack.c.h.s8.bf16 %v1908
      %v2001 = vunpack.c.h.s8.bf16 %v1909
      %v2002 = vunpack.c.l.s8.bf16 %v1910
      %v2003 = vunpack.c.l.s8.bf16 %v1911
      %v2004 = vunpack.c.h.s8.bf16 %v1910
      %v2005 = vunpack.c.h.s8.bf16 %v1911
      %v2006 = vunpack.c.l.s8.bf16 %v1912
      %v2007 = vunpack.c.l.s8.bf16 %v1913
      %v2008 = vunpack.c.h.s8.bf16 %v1912
      %v2009 = vunpack.c.h.s8.bf16 %v1913
      %v2010 = vunpack.c.l.s8.bf16 %v1914
      %v2011 = vunpack.c.l.s8.bf16 %v1915
      %v2012 = vunpack.c.h.s8.bf16 %v1914
      %v2013 = vunpack.c.h.s8.bf16 %v1915
      %v2014 = vunpack.c.l.s8.bf16 %v1916
      %v2015 = vunpack.c.l.s8.bf16 %v1917
      %v2016 = vunpack.c.h.s8.bf16 %v1916
      %v2017 = vunpack.c.h.s8.bf16 %v1917
      %v2018 = vunpack.c.l.s8.bf16 %v1918
      %v2019 = vunpack.c.l.s8.bf16 %v1919
      %v2020 = vunpack.c.h.s8.bf16 %v1918
      %v2021 = vunpack.c.h.s8.bf16 %v1919
      %v2022 = vunpack.c.l.s8.bf16 %v1920
      %v2023 = vunpack.c.l.s8.bf16 %v1921
      %v2024 = vunpack.c.h.s8.bf16 %v1920
      %v2025 = vunpack.c.h.s8.bf16 %v1921
      %v2026 = vunpack.c.l.s8.bf16 %v1922
      %v2027 = vunpack.c.l.s8.bf16 %v1923
      %v2028 = vunpack.c.h.s8.bf16 %v1922
      %v2029 = vunpack.c.h.s8.bf16 %v1923
      %v2030 = vunpack.c.l.s8.bf16 %v1924
      %v2031 = vunpack.c.l.s8.bf16 %v1925
      %v2032 = vunpack.c.h.s8.bf16 %v1924
      %v2033 = vunpack.c.h.s8.bf16 %v1925
      %v2034 = vunpack.c.l.s8.bf16 %v1926
      %v2035 = vunpack.c.l.s8.bf16 %v1927
      %v2036 = vunpack.c.h.s8.bf16 %v1926
      %v2037 = vunpack.c.h.s8.bf16 %v1927
      %v2038 = vunpack.c.l.s8.bf16 %v1928
      %v2039 = vunpack.c.l.s8.bf16 %v1929
      %v2040 = vunpack.c.h.s8.bf16 %v1928
      %v2041 = vunpack.c.h.s8.bf16 %v1929
      %v2042 = vunpack.c.l.s8.bf16 %v1930
      %v2043 = vunpack.c.l.s8.bf16 %v1931
      %v2044 = vunpack.c.h.s8.bf16 %v1930
      %v2045 = vunpack.c.h.s8.bf16 %v1931
      %v2046 = vunpack.c.l.s8.bf16 %v1932
      %v2047 = vunpack.c.l.s8.bf16 %v1933
      %v2048 = vunpack.c.h.s8.bf16 %v1932
      %v2049 = vunpack.c.h.s8.bf16 %v1933
      %v2050 = vunpack.c.l.s8.bf16 %v1934
      %v2051 = vunpack.c.l.s8.bf16 %v1935
      %v2052 = vunpack.c.h.s8.bf16 %v1934
      %v2053 = vunpack.c.h.s8.bf16 %v1935
      %v2054 = vunpack.c.l.s8.bf16 %v1936
      %v2055 = vunpack.c.l.s8.bf16 %v1937
      %v2056 = vunpack.c.h.s8.bf16 %v1936
      %v2057 = vunpack.c.h.s8.bf16 %v1937
      %v2058 = vunpack.c.l.s8.bf16 %v1938
      %v2059 = vunpack.c.l.s8.bf16 %v1939
      %v2060 = vunpack.c.h.s8.bf16 %v1938
      %v2061 = vunpack.c.h.s8.bf16 %v1939
      %v2062 = vunpack.c.l.s8.bf16 %v1940
      %v2063 = vunpack.c.l.s8.bf16 %v1941
      %v2064 = vunpack.c.h.s8.bf16 %v1940
      %v2065 = vunpack.c.h.s8.bf16 %v1941
      %v2066 = vunpack.c.l.s8.bf16 %v1942
      %v2067 = vunpack.c.l.s8.bf16 %v1943
      %v2068 = vunpack.c.h.s8.bf16 %v1942
      %v2069 = vunpack.c.h.s8.bf16 %v1943
      %v2070 = vunpack.c.l.s8.bf16 %v1944
      %v2071 = vunpack.c.l.s8.bf16 %v1945
      %v2072 = vunpack.c.h.s8.bf16 %v1944
      %v2073 = vunpack.c.h.s8.bf16 %v1945
      %v2074 = vunpack.c.l.s8.bf16 %v1946
      %v2075 = vunpack.c.l.s8.bf16 %v1947
      %v2076 = vunpack.c.h.s8.bf16 %v1946
      %v2077 = vunpack.c.h.s8.bf16 %v1947
      %v2078 = vunpack.c.l.s8.bf16 %v1948
      %v2079 = vunpack.c.l.s8.bf16 %v1949
      %v2080 = vunpack.c.h.s8.bf16 %v1948
      %v2081 = vunpack.c.h.s8.bf16 %v1949
      %v2082 = vunpack.c.l.s8.bf16 %v1950
      %v2083 = vunpack.c.l.s8.bf16 %v1951
      %v2084 = vunpack.c.h.s8.bf16 %v1950
      %v2085 = vunpack.c.h.s8.bf16 %v1951
      %v2086 = vunpack.c.l.s8.bf16 %v1952
      %v2087 = vunpack.c.l.s8.bf16 %v1953
      %v2088 = vunpack.c.h.s8.bf16 %v1952
      %v2089 = vunpack.c.h.s8.bf16 %v1953
      %v2090 = vunpack.c.l.s8.bf16 %v1954
      %v2091 = vunpack.c.l.s8.bf16 %v1955
      %v2092 = vunpack.c.h.s8.bf16 %v1954
      %v2093 = vunpack.c.h.s8.bf16 %v1955
      %v2094 = vunpack.c.l.s8.bf16 %v1956
      %v2095 = vunpack.c.l.s8.bf16 %v1957
      %v2096 = vunpack.c.h.s8.bf16 %v1956
      %v2097 = vunpack.c.h.s8.bf16 %v1957
      %v2098 = vunpack.c.l.s8.bf16 %v1958
      %v2099 = vunpack.c.l.s8.bf16 %v1959
      %v2100 = vunpack.c.h.s8.bf16 %v1958
      %v2101 = vunpack.c.h.s8.bf16 %v1959
      %v2102 = vunpack.c.l.s8.bf16 %v1960
      %v2103 = vunpack.c.l.s8.bf16 %v1961
      %v2104 = vunpack.c.h.s8.bf16 %v1960
      %v2105 = vunpack.c.h.s8.bf16 %v1961
      %v2106 = vunpack.c.l.s8.bf16 %v1962
      %v2107 = vunpack.c.l.s8.bf16 %v1963
      %v2108 = vunpack.c.h.s8.bf16 %v1962
      %v2109 = vunpack.c.h.s8.bf16 %v1963
      %v2110 = vunpack.c.l.s8.bf16 %v1964
      %v2111 = vunpack.c.l.s8.bf16 %v1965
      %v2112 = vunpack.c.h.s8.bf16 %v1964
      %v2113 = vunpack.c.h.s8.bf16 %v1965
      %v2114 = vunpack.c.l.s8.bf16 %v1966
      %v2115 = vunpack.c.l.s8.bf16 %v1967
      %v2116 = vunpack.c.h.s8.bf16 %v1966
      %v2117 = vunpack.c.h.s8.bf16 %v1967
      %v2118 = vunpack.c.l.s8.bf16 %v1968
      %v2119 = vunpack.c.l.s8.bf16 %v1969
      %v2120 = vunpack.c.h.s8.bf16 %v1968
      %v2121 = vunpack.c.h.s8.bf16 %v1969
      %v2122 = vunpack.c.l.s8.bf16 %v1970
      %v2123 = vunpack.c.l.s8.bf16 %v1971
      %v2124 = vunpack.c.h.s8.bf16 %v1970
      %v2125 = vunpack.c.h.s8.bf16 %v1971
      %v2126 = vunpack.c.l.s8.bf16 %v1972
      %v2127 = vunpack.c.l.s8.bf16 %v1973
      %v2128 = vunpack.c.h.s8.bf16 %v1972
      %v2129 = vunpack.c.h.s8.bf16 %v1973
      %v2130 = vunpack.c.l.s8.bf16 %v1974
      %v2131 = vunpack.c.l.s8.bf16 %v1975
      %v2132 = vunpack.c.h.s8.bf16 %v1974
      %v2133 = vunpack.c.h.s8.bf16 %v1975
      %v2134 = vunpack.c.l.s8.bf16 %v1976
      %v2135 = vunpack.c.l.s8.bf16 %v1977
      %v2136 = vunpack.c.h.s8.bf16 %v1976
      %v2137 = vunpack.c.h.s8.bf16 %v1977
      %v2138 = vld [vmem:[%s254 + $0x1e] sm:$0xff]
      %v2139 = vld [vmem:[%s254 + $0x26] sm:$0x3]
      %v2142 = vcombine.high %v2138, %v2138
      %v2144 = vunpack.c.l.s4 1966171168
      %v2145 = vunpack.c.0.s8 %v2144
      %v2146 = vlaneseq
      %v2147 = vshrl.u32 %v2146, 7
      %v2148 = vsub.s32 %v2145, %v2147
      %v2149 = vrot.slane %v2138, %v2148
      %v2151 = vunpack.c.l.s4 1966171168
      %v2152 = vunpack.c.0.s8 %v2151
      %v2153 = vlaneseq
      %v2154 = vshrl.u32 %v2153, 7
      %v2155 = vsub.s32 %v2152, %v2154
      %v2156 = vrot.slane %v2142, %v2155
      %v2157 = vcombine.high %v2149, %v2149
      %v2158 = vcombine.high %v2156, %v2156
      %v2160 = vunpack.c.l.s4 1966171168
      %v2161 = vunpack.c.0.s8 %v2160
      %v2162 = vlaneseq
      %v2163 = vshrl.u32 %v2162, 7
      %v2164 = vsub.s32 %v2161, %v2163
      %v2165 = vrot.slane %v2149, %v2164
      %v2167 = vunpack.c.l.s4 1966171168
      %v2168 = vunpack.c.0.s8 %v2167
      %v2169 = vlaneseq
      %v2170 = vshrl.u32 %v2169, 7
      %v2171 = vsub.s32 %v2168, %v2170
      %v2172 = vrot.slane %v2156, %v2171
      %v2174 = vunpack.c.l.s4 1966171168
      %v2175 = vunpack.c.0.s8 %v2174
      %v2176 = vlaneseq
      %v2177 = vshrl.u32 %v2176, 7
      %v2178 = vsub.s32 %v2175, %v2177
      %v2179 = vrot.slane %v2157, %v2178
      %v2181 = vunpack.c.l.s4 1966171168
      %v2182 = vunpack.c.0.s8 %v2181
      %v2183 = vlaneseq
      %v2184 = vshrl.u32 %v2183, 7
      %v2185 = vsub.s32 %v2182, %v2184
      %v2186 = vrot.slane %v2158, %v2185
      %v2187 = vcombine.high %v2165, %v2165
      %v2188 = vcombine.high %v2172, %v2172
      %v2189 = vcombine.high %v2179, %v2179
      %v2190 = vcombine.high %v2186, %v2186
      %v2192 = vunpack.c.l.s4 1966171168
      %v2193 = vunpack.c.0.s8 %v2192
      %v2194 = vlaneseq
      %v2195 = vshrl.u32 %v2194, 7
      %v2196 = vsub.s32 %v2193, %v2195
      %v2197 = vrot.slane %v2139, %v2196
      %v2198 = vcombine.high %v2197, %v2197
      %v2200 = vunpack.c.l.s4 1966171168
      %v2201 = vunpack.c.0.s8 %v2200
      %v2202 = vlaneseq
      %v2203 = vshrl.u32 %v2202, 7
      %v2204 = vsub.s32 %v2201, %v2203
      %v2205 = vrot.slane %v2197, %v2204
      %v2207 = vunpack.c.l.s4 1966171168
      %v2208 = vunpack.c.0.s8 %v2207
      %v2209 = vlaneseq
      %v2210 = vshrl.u32 %v2209, 7
      %v2211 = vsub.s32 %v2208, %v2210
      %v2212 = vrot.slane %v2198, %v2211
      %2223 = vmatprep.subr.bf16.mxu0 %v1979
      %2224 = vmatpush1.bf16.msra.mxu0 %v1978
      %2225 = vmatprep.subr.bf16.mxu0 %v1981
      %2226 = vmatpush1.bf16.msra.mxu0 %v1980
      %2227 = vmatprep.subr.bf16.mxu0 %v1983
      %2228 = vmatpush1.bf16.msra.mxu0 %v1982
      %2229 = vmatprep.subr.bf16.mxu0 %v1985
      %2230 = vmatpush1.bf16.msra.mxu0 %v1984
      %2231 = vmatprep.subr.bf16.mxu0 %v1987
      %2232 = vmatpush1.bf16.msra.mxu0 %v1986
      %2233 = vmatprep.subr.bf16.mxu0 %v1989
      %2234 = vmatpush1.bf16.msra.mxu0 %v1988
      %2235 = vmatprep.subr.bf16.mxu0 %v1991
      %2236 = vmatpush1.bf16.msra.mxu0 %v1990
      %2237 = vmatprep.subr.bf16.mxu0 %v1993
      %2238 = vmatpush1.bf16.msra.mxu0 %v1992
      %2239 = vmatprep.subr.bf16.mxu0 %v1995
      %2240 = vmatpush1.bf16.msra.mxu0 %v1994
      %2241 = vmatprep.subr.bf16.mxu0 %v1997
      %2242 = vmatpush1.bf16.msra.mxu0 %v1996
      %2243 = vmatprep.subr.bf16.mxu0 %v1999
      %2244 = vmatpush1.bf16.msra.mxu0 %v1998
      %2245 = vmatprep.subr.bf16.mxu0 %v2001
      %2246 = vmatpush1.bf16.msra.mxu0 %v2000
      %2247 = vmatprep.subr.bf16.mxu0 %v2003
      %2248 = vmatpush1.bf16.msra.mxu0 %v2002
      %2249 = vmatprep.subr.bf16.mxu0 %v2005
      %2250 = vmatpush1.bf16.msra.mxu0 %v2004
      %2251 = vmatprep.subr.bf16.mxu0 %v2007
      %2252 = vmatpush1.bf16.msra.mxu0 %v2006
      %2253 = vmatprep.subr.bf16.mxu0 %v2009
      %2254 = vmatpush1.bf16.msra.mxu0 %v2008
      %2255 = vmatprep.mubr.bf16.mxu0 %v2179
      %2256 = vmatmul.mubr.bf16.gmra.mrb[0].mxu0 %v2165
      %v2257 = vpop.f32.mrb[0].mxu0
      %v2258 = vadd.f32 0.0, %v2257
      %v2259 = vpop.f32.mrb[0].mxu0
      %v2260 = vadd.f32 0.0, %v2259
      %v2261 = vpop.f32.mrb[0].mxu0
      %v2262 = vpop.f32.mrb[0].mxu0
      %2263 = vdwg.mxu0
      %2264 = vmatprep.subr.bf16.mxu0 %v2011
      %2265 = vmatpush1.bf16.msra.mxu0 %v2010
      %2266 = vmatprep.subr.bf16.mxu0 %v2013
      %2267 = vmatpush1.bf16.msra.mxu0 %v2012
      %2268 = vmatprep.subr.bf16.mxu0 %v2015
      %2269 = vmatpush1.bf16.msra.mxu0 %v2014
      %2270 = vmatprep.subr.bf16.mxu0 %v2017
      %2271 = vmatpush1.bf16.msra.mxu0 %v2016
      %2272 = vmatprep.subr.bf16.mxu0 %v2019
      %2273 = vmatpush1.bf16.msra.mxu0 %v2018
      %2274 = vmatprep.subr.bf16.mxu0 %v2021
      %2275 = vmatpush1.bf16.msra.mxu0 %v2020
      %2276 = vmatprep.subr.bf16.mxu0 %v2023
      %2277 = vmatpush1.bf16.msra.mxu0 %v2022
      %2278 = vmatprep.subr.bf16.mxu0 %v2025
      %2279 = vmatpush1.bf16.msra.mxu0 %v2024
      %2280 = vmatprep.subr.bf16.mxu0 %v2027
      %2281 = vmatpush1.bf16.msra.mxu0 %v2026
      %2282 = vmatprep.subr.bf16.mxu0 %v2029
      %2283 = vmatpush1.bf16.msra.mxu0 %v2028
      %2284 = vmatprep.subr.bf16.mxu0 %v2031
      %2285 = vmatpush1.bf16.msra.mxu0 %v2030
      %2286 = vmatprep.subr.bf16.mxu0 %v2033
      %2287 = vmatpush1.bf16.msra.mxu0 %v2032
      %2288 = vmatprep.subr.bf16.mxu0 %v2035
      %2289 = vmatpush1.bf16.msra.mxu0 %v2034
      %2290 = vmatprep.subr.bf16.mxu0 %v2037
      %2291 = vmatpush1.bf16.msra.mxu0 %v2036
      %2292 = vmatprep.subr.bf16.mxu0 %v2039
      %2293 = vmatpush1.bf16.msra.mxu0 %v2038
      %2294 = vmatprep.subr.bf16.mxu0 %v2041
      %2295 = vmatpush1.bf16.msra.mxu0 %v2040
      %2296 = vmatprep.mubr.bf16.mxu0 %v2189
      %2297 = vmatmul.mubr.bf16.gmra.mrb[0].mxu0 %v2187
      %v2298 = vpop.f32.mrb[0].mxu0
      %v2299 = vadd.f32 %v2258, %v2298
      %v2300 = vpop.f32.mrb[0].mxu0
      %v2301 = vadd.f32 %v2260, %v2300
      %v2302 = vpop.f32.mrb[0].mxu0
      %v2303 = vpop.f32.mrb[0].mxu0
      %2304 = vdwg.mxu0
      %2305 = vmatprep.subr.bf16.mxu0 %v2043
      %2306 = vmatpush1.bf16.msra.mxu0 %v2042
      %2307 = vmatprep.subr.bf16.mxu0 %v2045
      %2308 = vmatpush1.bf16.msra.mxu0 %v2044
      %2309 = vmatprep.subr.bf16.mxu0 %v2047
      %2310 = vmatpush1.bf16.msra.mxu0 %v2046
      %2311 = vmatprep.subr.bf16.mxu0 %v2049
      %2312 = vmatpush1.bf16.msra.mxu0 %v2048
      %2313 = vmatprep.subr.bf16.mxu0 %v2051
      %2314 = vmatpush1.bf16.msra.mxu0 %v2050
      %2315 = vmatprep.subr.bf16.mxu0 %v2053
      %2316 = vmatpush1.bf16.msra.mxu0 %v2052
      %2317 = vmatprep.subr.bf16.mxu0 %v2055
      %2318 = vmatpush1.bf16.msra.mxu0 %v2054
      %2319 = vmatprep.subr.bf16.mxu0 %v2057
      %2320 = vmatpush1.bf16.msra.mxu0 %v2056
      %2321 = vmatprep.subr.bf16.mxu0 %v2059
      %2322 = vmatpush1.bf16.msra.mxu0 %v2058
      %2323 = vmatprep.subr.bf16.mxu0 %v2061
      %2324 = vmatpush1.bf16.msra.mxu0 %v2060
      %2325 = vmatprep.subr.bf16.mxu0 %v2063
      %2326 = vmatpush1.bf16.msra.mxu0 %v2062
      %2327 = vmatprep.subr.bf16.mxu0 %v2065
      %2328 = vmatpush1.bf16.msra.mxu0 %v2064
      %2329 = vmatprep.subr.bf16.mxu0 %v2067
      %2330 = vmatpush1.bf16.msra.mxu0 %v2066
      %2331 = vmatprep.subr.bf16.mxu0 %v2069
      %2332 = vmatpush1.bf16.msra.mxu0 %v2068
      %2333 = vmatprep.subr.bf16.mxu0 %v2071
      %2334 = vmatpush1.bf16.msra.mxu0 %v2070
      %2335 = vmatprep.subr.bf16.mxu0 %v2073
      %2336 = vmatpush1.bf16.msra.mxu0 %v2072
      %2337 = vmatprep.mubr.bf16.mxu0 %v2186
      %2338 = vmatmul.mubr.bf16.gmra.mrb[0].mxu0 %v2172
      %v2339 = vpop.f32.mrb[0].mxu0
      %v2340 = vadd.f32 %v2299, %v2339
      %v2341 = vpop.f32.mrb[0].mxu0
      %v2342 = vadd.f32 %v2301, %v2341
      %v2343 = vpop.f32.mrb[0].mxu0
      %v2344 = vpop.f32.mrb[0].mxu0
      %2345 = vdwg.mxu0
      %2346 = vmatprep.subr.bf16.mxu0 %v2075
      %2347 = vmatpush1.bf16.msra.mxu0 %v2074
      %2348 = vmatprep.subr.bf16.mxu0 %v2077
      %2349 = vmatpush1.bf16.msra.mxu0 %v2076
      %2350 = vmatprep.subr.bf16.mxu0 %v2079
      %2351 = vmatpush1.bf16.msra.mxu0 %v2078
      %2352 = vmatprep.subr.bf16.mxu0 %v2081
      %2353 = vmatpush1.bf16.msra.mxu0 %v2080
      %2354 = vmatprep.subr.bf16.mxu0 %v2083
      %2355 = vmatpush1.bf16.msra.mxu0 %v2082
      %2356 = vmatprep.subr.bf16.mxu0 %v2085
      %2357 = vmatpush1.bf16.msra.mxu0 %v2084
      %2358 = vmatprep.subr.bf16.mxu0 %v2087
      %2359 = vmatpush1.bf16.msra.mxu0 %v2086
      %2360 = vmatprep.subr.bf16.mxu0 %v2089
      %2361 = vmatpush1.bf16.msra.mxu0 %v2088
      %2362 = vmatprep.subr.bf16.mxu0 %v2091
      %2363 = vmatpush1.bf16.msra.mxu0 %v2090
      %2364 = vmatprep.subr.bf16.mxu0 %v2093
      %2365 = vmatpush1.bf16.msra.mxu0 %v2092
      %2366 = vmatprep.subr.bf16.mxu0 %v2095
      %2367 = vmatpush1.bf16.msra.mxu0 %v2094
      %2368 = vmatprep.subr.bf16.mxu0 %v2097
      %2369 = vmatpush1.bf16.msra.mxu0 %v2096
      %2370 = vmatprep.subr.bf16.mxu0 %v2099
      %2371 = vmatpush1.bf16.msra.mxu0 %v2098
      %2372 = vmatprep.subr.bf16.mxu0 %v2101
      %2373 = vmatpush1.bf16.msra.mxu0 %v2100
      %2374 = vmatprep.subr.bf16.mxu0 %v2103
      %2375 = vmatpush1.bf16.msra.mxu0 %v2102
      %2376 = vmatprep.subr.bf16.mxu0 %v2105
      %2377 = vmatpush1.bf16.msra.mxu0 %v2104
      %2378 = vmatprep.mubr.bf16.mxu0 %v2190
      %2379 = vmatmul.mubr.bf16.gmra.mrb[0].mxu0 %v2188
      %v2380 = vpop.f32.mrb[0].mxu0
      %v2381 = vadd.f32 %v2340, %v2380
      %v2382 = vpop.f32.mrb[0].mxu0
      %v2383 = vadd.f32 %v2342, %v2382
      %v2384 = vpop.f32.mrb[0].mxu0
      %v2385 = vpop.f32.mrb[0].mxu0
      %2386 = vdwg.mxu0
      %2387 = vmatprep.subr.bf16.mxu0 %v2107
      %2388 = vmatpush1.bf16.msra.mxu0 %v2106
      %2389 = vmatprep.subr.bf16.mxu0 %v2109
      %2390 = vmatpush1.bf16.msra.mxu0 %v2108
      %2391 = vmatprep.subr.bf16.mxu0 %v2111
      %2392 = vmatpush1.bf16.msra.mxu0 %v2110
      %2393 = vmatprep.subr.bf16.mxu0 %v2113
      %2394 = vmatpush1.bf16.msra.mxu0 %v2112
      %2395 = vmatprep.subr.bf16.mxu0 %v2115
      %2396 = vmatpush1.bf16.msra.mxu0 %v2114
      %2397 = vmatprep.subr.bf16.mxu0 %v2117
      %2398 = vmatpush1.bf16.msra.mxu0 %v2116
      %2399 = vmatprep.subr.bf16.mxu0 %v2119
      %2400 = vmatpush1.bf16.msra.mxu0 %v2118
      %2401 = vmatprep.subr.bf16.mxu0 %v2121
      %2402 = vmatpush1.bf16.msra.mxu0 %v2120
      %2403 = vmatprep.subr.bf16.mxu0 %v2123
      %2404 = vmatpush1.bf16.msra.mxu0 %v2122
      %2405 = vmatprep.subr.bf16.mxu0 %v2125
      %2406 = vmatpush1.bf16.msra.mxu0 %v2124
      %2407 = vmatprep.subr.bf16.mxu0 %v2127
      %2408 = vmatpush1.bf16.msra.mxu0 %v2126
      %2409 = vmatprep.subr.bf16.mxu0 %v2129
      %2410 = vmatpush1.bf16.msra.mxu0 %v2128
      %2411 = vmatprep.subr.bf16.mxu0 %v2131
      %2412 = vmatpush1.bf16.msra.mxu0 %v2130
      %2413 = vmatprep.subr.bf16.mxu0 %v2133
      %2414 = vmatpush1.bf16.msra.mxu0 %v2132
      %2415 = vmatprep.subr.bf16.mxu0 %v2135
      %2416 = vmatpush1.bf16.msra.mxu0 %v2134
      %2417 = vmatprep.subr.bf16.mxu0 %v2137
      %2418 = vmatpush1.bf16.msra.mxu0 %v2136
      %2419 = vmatprep.mubr.bf16.mxu0 %v2212
      %2420 = vmatmul.mubr.bf16.gmra.mrb[0].mxu0 %v2205
      %v2421 = vpop.f32.mrb[0].mxu0
      %v2422 = vadd.f32 %v2381, %v2421
      %v2423 = vpop.f32.mrb[0].mxu0
      %v2424 = vadd.f32 %v2383, %v2423
      %v2425 = vpop.f32.mrb[0].mxu0
      %v2426 = vpop.f32.mrb[0].mxu0
      %2427 = vdwg.mxu0
      %v2430 = vcombine.low %v2422, %v2424
      %v2432 = vunpack.c.l.s4 1983009808
      %v2433 = vunpack.c.0.s8 %v2432
      %v2434 = vlaneseq
      %v2435 = vshrl.u32 %v2434, 7
      %v2436 = vsub.s32 %v2433, %v2435
      %v2437 = vrot.slane %v2430, %v2436
      %v2439 = vadd.f32 %v1897, %v2437
      %vm2440 = vcmask 1041408
      %vm2441 = vcmask 584706
      %vm2442 = vmor %vm2441, %vm2440
      %2443 = vst.msk [vmem:[#allocation2] sm:$0xf] %vm2442, %v2439
      %p2444 = scmp.eq.s32.totalorder %s19, 1
      // Predicated region
      $region49: #{venty_forward.3} parent=43 // pred_check
        %p2445 = pneg %p2444
      $region50: #{venty_forward.3} parent=43 // pred_check_branch
        %2447 = sbr.rel (%p2445) target = $region52
      $region51: #{venty_forward.3} parent=43 // pred_region
        %v2448 = vld [vmem:[#allocation2] sm:$0xf]
        %v2449 = vld [vmem:[%s2] sm:$0x3]
        %v2451 = vlaneseq
        %v2452 = vshrl.u32 %v2451, 7
        %v2453 = vsub.s32 0, %v2452
        %v2454 = vrot.slane %v2449, %v2453
        %v2455 = vlaneseq
        %v2456 = vshrl.u32 %v2455, 7
        %v2457 = vsub.s32 1, %v2456
        %v2458 = vrot.slane %v2449, %v2457
        %v2459 = vcombine.low %v2454, %v2458
        %v2461 = vunpack.c.l.s4 1983009808
        %v2462 = vunpack.c.0.s8 %v2461
        %v2463 = vlaneseq
        %v2464 = vshrl.u32 %v2463, 7
        %v2465 = vsub.s32 %v2462, %v2464
        %v2466 = vrot.slane %v2459, %v2465
        %v2468 = vmul.f32 %v2448, %v2466
        %v2469 = vld [vmem:[%s3] sm:$0x3]
        %v2471 = vlaneseq
        %v2472 = vshrl.u32 %v2471, 7
        %v2473 = vsub.s32 0, %v2472
        %v2474 = vrot.slane %v2469, %v2473
        %v2475 = vlaneseq
        %v2476 = vshrl.u32 %v2475, 7
        %v2477 = vsub.s32 1, %v2476
        %v2478 = vrot.slane %v2469, %v2477
        %v2479 = vcombine.low %v2474, %v2478
        %v2481 = vunpack.c.l.s4 1983009808
        %v2482 = vunpack.c.0.s8 %v2481
        %v2483 = vlaneseq
        %v2484 = vshrl.u32 %v2483, 7
        %v2485 = vsub.s32 %v2482, %v2484
        %v2486 = vrot.slane %v2479, %v2485
        %v2488 = vadd.f32 %v2468, %v2486
        %v2489 = vld [vmem:[%s4] sm:$0xff]
        %v2490 = vld [vmem:[%s4 + $0x8] sm:$0xff]
        %v2491 = vld [vmem:[%s4 + $0x10] sm:$0xff]
        %v2492 = vld [vmem:[%s4 + $0x18] sm:$0xff]
        %v2493 = vld [vmem:[%s4 + $0x20] sm:$0xff]
        %v2494 = vld [vmem:[%s4 + $0x28] sm:$0xff]
        %v2495 = vld [vmem:[%s4 + $0x30] sm:$0xff]
        %v2496 = vld [vmem:[%s4 + $0x38] sm:$0xff]
        %v2497 = vld [vmem:[%s4 + $0x40] sm:$0xff]
        %v2498 = vld [vmem:[%s4 + $0x48] sm:$0xff]
        %v2499 = vld [vmem:[%s4 + $0x50] sm:$0xff]
        %v2500 = vld [vmem:[%s4 + $0x58] sm:$0xff]
        %v2501 = vld [vmem:[%s4 + $0x60] sm:$0xff]
        %v2502 = vld [vmem:[%s4 + $0x68] sm:$0xff]
        %v2503 = vld [vmem:[%s4 + $0x70] sm:$0xff]
        %v2504 = vld [vmem:[%s4 + $0x78] sm:$0xff]
        %v2505 = vld [vmem:[%s4 + $0x80] sm:$0xff]
        %v2506 = vld [vmem:[%s4 + $0x88] sm:$0xff]
        %v2507 = vld [vmem:[%s4 + $0x90] sm:$0xff]
        %v2508 = vld [vmem:[%s4 + $0x98] sm:$0xff]
        %v2509 = vld [vmem:[%s4 + $0xa0] sm:$0xff]
        %v2510 = vld [vmem:[%s4 + $0xa8] sm:$0xff]
        %v2511 = vld [vmem:[%s4 + $0xb0] sm:$0xff]
        %v2512 = vld [vmem:[%s4 + $0xb8] sm:$0xff]
        %v2513 = vld [vmem:[%s4 + $0xc0] sm:$0xff]
        %v2514 = vld [vmem:[#allocation3] sm:$0x1]
        %v2516 = vlaneseq
        %v2517 = vshrl.u32 %v2516, 7
        %v2518 = vsub.s32 0, %v2517
        %v2519 = vrot.slane %v2514, %v2518
        %v2523 = vunpack.c.l.s4 1983009808
        %v2524 = vunpack.c.0.s8 %v2523
        %v2525 = vlaneseq
        %v2526 = vshrl.u32 %v2525, 7
        %v2527 = vsub.s32 %v2524, %v2526
        %v2528 = vrot.slane %v2488, %v2527
        %v2529 = vcombine.high %v2528, %v2528
        %vm2531 = vcmask 588800
        %v2532 = vsel %vm2531, %v2529, 0
        %2534 = vmatprep.subr.mxu0 0.0
        %2535 = vmatpush1.msra.mxu0 %v2489
        %2536 = vmatprep.subr.mxu0 0.0
        %2537 = vmatpush1.msra.mxu0 %v2490
        %2538 = vmatprep.subr.mxu0 0.0
        %2539 = vmatpush1.msra.mxu0 %v2491
        %2540 = vmatprep.subr.mxu0 0.0
        %2541 = vmatpush1.msra.mxu0 %v2492
        %2542 = vmatprep.subr.mxu0 0.0
        %2543 = vmatpush1.msra.mxu0 %v2493
        %2544 = vmatprep.subr.mxu0 0.0
        %2545 = vmatpush1.msra.mxu0 %v2494
        %2546 = vmatprep.subr.mxu0 0.0
        %2547 = vmatpush1.msra.mxu0 %v2495
        %2548 = vmatprep.subr.mxu0 0.0
        %2549 = vmatpush1.msra.mxu0 %v2496
        %2550 = vmatprep.subr.mxu0 0.0
        %2551 = vmatpush1.msra.mxu0 %v2497
        %2552 = vmatprep.subr.mxu0 0.0
        %2553 = vmatpush1.msra.mxu0 %v2498
        %2554 = vmatprep.subr.mxu0 0.0
        %2555 = vmatpush1.msra.mxu0 %v2499
        %2556 = vmatprep.subr.mxu0 0.0
        %2557 = vmatpush1.msra.mxu0 %v2500
        %2558 = vmatprep.subr.mxu0 0.0
        %2559 = vmatpush1.msra.mxu0 %v2501
        %2560 = vmatprep.subr.mxu0 0.0
        %2561 = vmatpush1.msra.mxu0 %v2502
        %2562 = vmatprep.subr.mxu0 0.0
        %2563 = vmatpush1.msra.mxu0 %v2503
        %2564 = vmatprep.subr.mxu0 0.0
        %2565 = vmatpush1.msra.mxu0 %v2504
        %2566 = vmatprep.subr.mxu0 0.0
        %2567 = vmatpush1.msra.mxu0 %v2505
        %2568 = vmatprep.subr.mxu0 0.0
        %2569 = vmatpush1.msra.mxu0 %v2506
        %2570 = vmatprep.subr.mxu0 0.0
        %2571 = vmatpush1.msra.mxu0 %v2507
        %2572 = vmatprep.subr.mxu0 0.0
        %2573 = vmatpush1.msra.mxu0 %v2508
        %2574 = vmatprep.subr.mxu0 0.0
        %2575 = vmatpush1.msra.mxu0 %v2509
        %2576 = vmatprep.subr.mxu0 0.0
        %2577 = vmatpush1.msra.mxu0 %v2510
        %2578 = vmatprep.subr.mxu0 0.0
        %2579 = vmatpush1.msra.mxu0 %v2511
        %2580 = vmatprep.subr.mxu0 0.0
        %2581 = vmatpush1.msra.mxu0 %v2512
        %2582 = vmatprep.subr.mxu0 0.0
        %2583 = vmatpush1.msra.mxu0 %v2513
        %2584 = vmatprep.subr.mxu0 0.0
        %2585 = vmatpush1.msra.mxu0 0.0
        %2586 = vmatprep.subr.mxu0 0.0
        %2587 = vmatpush1.msra.mxu0 0.0
        %2588 = vmatprep.subr.mxu0 0.0
        %2589 = vmatpush1.msra.mxu0 0.0
        %2590 = vmatprep.subr.mxu0 0.0
        %2591 = vmatpush1.msra.mxu0 0.0
        %2592 = vmatprep.subr.mxu0 0.0
        %2593 = vmatpush1.msra.mxu0 0.0
        %2594 = vmatprep.subr.mxu0 0.0
        %2595 = vmatpush1.msra.mxu0 0.0
        %2596 = vmatprep.subr.mxu0 0.0
        %2597 = vmatpush1.msra.mxu0 0.0
        %2598 = vmatprep.mubr.f32.mxu0 %v2532
        %2599 = vmatmul.mubr.f32.gmra.mrb[0].mxu0 %v2528
        %v2600 = vpop.f32.mrb[0].mxu0
        %v2601 = vadd.f32 %v2519, %v2600
        %v2602 = vpop.f32.mrb[0].mxu0
        %2603 = vdwg.mxu0
        %vm2604 = vcmask 1024
        %2605 = vst.msk [vmem:[%s6] sm:$0x3] %vm2604, %v2601
      $region52: #{venty_forward.3} parent=43 // pred_fallthru
        _
      // Predicated region
      $region53: #{venty_forward.3} parent=43 // pred_check
        %p2606 = pneg %p168
      $region54: #{venty_forward.3} parent=43 // pred_check_branch
        %2608 = sbr.rel (%p2606) target = $region56
      $region55: #{venty_forward.3} parent=43 // pred_region
        _
      $region56: #{venty_forward.3} parent=43 // pred_fallthru
        _
      // Predicated region
      $region57: #{venty_forward.3} parent=43 // pred_check
        %p2609 = pneg %p168
      $region58: #{venty_forward.3} parent=43 // pred_check_branch
        %2611 = sbr.rel (%p2609) target = $region60
      $region59: #{venty_forward.3} parent=43 // pred_region
        _
      $region60: #{venty_forward.3} parent=43 // pred_fallthru
        _
    $region44: #{venty_forward.3} parent=5 // pred_fallthru
      _
    %p2612 = scmp.le.s32.totalorder 2, %s14
    // Predicated region
    $region61: #{venty_forward.3} parent=5 // pred_check
      %p2613 = pneg %p2612
    $region62: #{venty_forward.3} parent=5 // pred_check_branch
      %2615 = sbr.rel (%p2613) target = $region64
    $region63: #{venty_forward.3} parent=5 // pred_region
      %s2616 = ssub.s32 %s14, 2
    $region64: #{venty_forward.3} parent=5 // pred_fallthru
      _
  $region6: #{venty_forward.3} parent=0 // loop_footer
    %s18 = sadd.s32 1, %s14
  $region7: #{venty_forward.3} parent=0 // loop_footer_branch
    %13 = sbr.rel target = $region3
  $region8: #{venty_forward.3} parent=0 // loop_exit
    _

</llo_original>
